<compile_context>
chip_gen: v7x
topology: tpu7x:2x2x1
jax: 0.10.0
libtpu: 0.0.40
codegen_flags: <defaults>
</compile_context>

<pallas_src>
import functools

import jax
import jax.numpy as jnp
from jax.experimental import pallas as pl
from jax.experimental.pallas import tpu as pltpu

K1_PAD = 32  # conv1 contraction dim (5*5*1 = 25) padded up for tidy lane layout


def _fused_espcn_kernel(mask_ref, x1_ref, w1_ref, b1_ref, w2_ref, b2_ref,
                        w3_ref, b3_ref, w4_ref, b4_ref, o_ref,
                        a_pad_ref, col_ref, *, H, W):
    """One batch element: conv1(5x5)+ReLU -> conv2(3x3)+ReLU -> conv3(3x3)+ReLU -> conv4(3x3).

    mask_ref : (EXT, 1)          f32  1.0 on real pixels, 0.0 on junk rows
    x1_ref   : (1, EXT, K1_PAD)  bf16 conv1 im2col in extended-row layout
    wN_ref   : (KN, CN)          bf16 flattened HWIO weights (conv4 Cout padded)
    bN_ref   : (1, CN)           f32
    o_ref    : (1, EXT, CPAD)    f32  lane-dense conv4 output
    a_pad_ref: (A_ROWS, 64)      f32  zero-bordered activation scratch (reused)
    col_ref  : (EXT, 9*64)       bf16 im2col staging scratch (reused)
    """
    Wp = W + 2
    EXT = H * Wp
    C1 = w1_ref.shape[1]   # 64
    C2 = w2_ref.shape[1]   # 64
    C3 = w3_ref.shape[1]   # 32
    K4 = w4_ref.shape[0]   # 9 * C3

    def dense(lhs, w_ref, b_ref, relu):
        # one MXU matmul, bf16 inputs, f32 accumulation, fused bias (+ ReLU)
        y = jnp.dot(lhs, w_ref[...], preferred_element_type=jnp.float32)
        y = y + b_ref[...]
        return jnp.maximum(y, 0.0) if relu else y

    def store_padded(y, c):
        # masked store: junk rows -> 0 and they land on the zero border cells
        a_pad_ref[pl.ds(Wp + 1, EXT), :c] = (y * mask_ref[...]).astype(
            a_pad_ref.dtype)

    def build_col(cin):
        # every 3x3 tap is ONE contiguous (EXT, cin) sublane slice of a_pad
        for kh in range(3):
            for kw in range(3):
                t = kh * 3 + kw
                col_ref[:, t * cin:(t + 1) * cin] = a_pad_ref[
                    pl.ds(kh * Wp + kw, EXT), :cin].astype(col_ref.dtype)

    # zero the scratch once per batch element (border cells must stay zero)
    a_pad_ref[...] = jnp.zeros_like(a_pad_ref)

    # ---- conv1: 5x5, 1 -> 64, single K=32 (padded) matmul, fused ReLU
    store_padded(dense(x1_ref[0], w1_ref, b1_ref, True), C1)

    # ---- conv2: 3x3, 64 -> 64, single K=576 matmul, fused ReLU
    build_col(C1)
    store_padded(dense(col_ref[...], w2_ref, b2_ref, True), C2)

    # ---- conv3: 3x3, 64 -> 32, single K=576 matmul, fused ReLU
    build_col(C2)
    store_padded(dense(col_ref[...], w3_ref, b3_ref, True), C3)

    # ---- conv4: 3x3, 32 -> r^2 (Cout padded to 128), no ReLU, lane-dense store
    build_col(C3)
    o_ref[0] = dense(col_ref[:, :K4], w4_ref, b4_ref, False).astype(o_ref.dtype)


def _fused_espcn_pallas(row_mask, x1, weights, H, W, cout_pad):
    (w1, b1, w2, b2, w3, b3, w4, b4) = weights
    N, EXT, K1P = x1.shape
    a_rows = 2 * (W + 2) + 2 + EXT            # covers the largest tap offset
    a_rows = (a_rows + 7) // 8 * 8

    kernel = functools.partial(_fused_espcn_kernel, H=H, W=W)
    full = lambda n: (0, 0)
    return pl.pallas_call(
        kernel,
        out_shape=jax.ShapeDtypeStruct((N, EXT, cout_pad), jnp.float32),
        grid_spec=pltpu.PrefetchScalarGridSpec(
            num_scalar_prefetch=0,
            grid=(N,),
            in_specs=[
                pl.BlockSpec(row_mask.shape, full),
                pl.BlockSpec((1, EXT, K1P), lambda n: (n, 0, 0)),
                pl.BlockSpec(w1.shape, full), pl.BlockSpec(b1.shape, full),
                pl.BlockSpec(w2.shape, full), pl.BlockSpec(b2.shape, full),
                pl.BlockSpec(w3.shape, full), pl.BlockSpec(b3.shape, full),
                pl.BlockSpec(w4.shape, full), pl.BlockSpec(b4.shape, full),
            ],
            out_specs=pl.BlockSpec((1, EXT, cout_pad), lambda n: (n, 0, 0)),
            scratch_shapes=[
                pltpu.VMEM((a_rows, 64), jnp.float32),     # padded activations
                pltpu.VMEM((EXT, 9 * 64), jnp.bfloat16),   # im2col staging
            ],
        ),
        compiler_params=pltpu.CompilerParams(
            dimension_semantics=("parallel",)),
    )(row_mask, x1, w1, b1, w2, b2, w3, b3, w4, b4)


def _prep_layer(w_hwio, b, *, kpad=None, cout_pad=None):
    """HWIO (kh,kw,cin,cout) -> flattened (kh*kw*cin, cout) bf16, optional pads."""
    KH, KW, Cin, Cout = w_hwio.shape
    w = w_hwio.reshape(KH * KW * Cin, Cout)
    if kpad is not None and kpad > KH * KW * Cin:
        w = jnp.pad(w, ((0, kpad - KH * KW * Cin), (0, 0)))
    if cout_pad is not None and cout_pad > Cout:
        w = jnp.pad(w, ((0, 0), (0, cout_pad - Cout)))
        b = jnp.pad(b, (0, cout_pad - Cout))
    return w.astype(jnp.bfloat16), b.reshape(1, -1).astype(jnp.float32)


@functools.partial(jax.jit, static_argnums=(2,))
def super_resolution_forward(x_nchw, params, upscale_factor):
    N, C, H, W = x_nchw.shape
    r = upscale_factor
    Wp = W + 2
    EXT = H * Wp
    cout_pad = max(128, ((r * r + 127) // 128) * 128)

    # conv1 im2col (Cin=1) in extended-row layout: (N, EXT, 25) -> pad K to 32.
    xp = jnp.pad(x_nchw[:, 0], ((0, 0), (2, 2), (2, 4)))       # (N, H+4, W+6)
    taps = [xp[:, kh:kh + H, kw:kw + Wp] for kh in range(5) for kw in range(5)]
    x1 = jnp.stack(taps, axis=-1).reshape(N, EXT, 25)
    x1 = jnp.pad(x1, ((0, 0), (0, 0), (0, K1_PAD - 25))).astype(jnp.bfloat16)

    # 1.0 on real pixels (w' < W), 0.0 on the two junk columns per row.
    row_mask = (jnp.arange(EXT) % Wp < W).astype(jnp.float32).reshape(EXT, 1)

    w1, b1 = _prep_layer(params["w1"], params["b1"], kpad=K1_PAD)
    w2, b2 = _prep_layer(params["w2"], params["b2"])
    w3, b3 = _prep_layer(params["w3"], params["b3"])
    w4, b4 = _prep_layer(params["w4"], params["b4"], cout_pad=cout_pad)

    y = _fused_espcn_pallas(row_mask, x1, (w1, b1, w2, b2, w3, b3, w4, b4),
                            H, W, cout_pad)

    # drop junk columns / channel pad, then pixel shuffle (PixelShuffle semantics)
    y = y.reshape(N, H, Wp, cout_pad)[:, :, :W, :r * r]        # (N, H, W, r^2)
    y = y.reshape(N, H, W, r, r)
    y = jnp.transpose(y, (0, 1, 3, 2, 4)).reshape(N, 1, H * r, W * r)
    return y


# ---------------- deterministic parameter init (synthetic, no checkpoint) ----


def _orthogonal(key, rows, cols, gain):
    """Orthogonal init analogous to torch.nn.init.orthogonal_."""
    n = max(rows, cols)
    a = jax.random.normal(key, (n, n), jnp.float32)
    q, rmat = jnp.linalg.qr(a)
    q = q * jnp.sign(jnp.diag(rmat))[None, :]
    return (gain * q[:rows, :cols]).astype(jnp.float32)


def _conv_params(key, cin, cout, k, gain):
    kw_key, kb_key = jax.random.split(key)
    w_flat = _orthogonal(kw_key, cout, cin * k * k, gain)       # (Cout, Cin*K*K)
    w_oihw = w_flat.reshape(cout, cin, k, k)
    w_hwio = jnp.transpose(w_oihw, (2, 3, 1, 0))                # (K, K, Cin, Cout)
    bound = 1.0 / jnp.sqrt(float(cin * k * k))
    b = jax.random.uniform(kb_key, (cout,), jnp.float32, -bound, bound)
    return w_hwio, b


def make_params(key, upscale_factor):
    k1, k2, k3, k4 = jax.random.split(key, 4)
    relu_gain = float(jnp.sqrt(2.0))                            # calculate_gain('relu')
    w1, b1 = _conv_params(k1, 1, 64, 5, relu_gain)
    w2, b2 = _conv_params(k2, 64, 64, 3, relu_gain)
    w3, b3 = _conv_params(k3, 64, 32, 3, relu_gain)
    w4, b4 = _conv_params(k4, 32, upscale_factor ** 2, 3, 1.0)
    return {"w1": w1, "b1": b1, "w2": w2, "b2": b2,
            "w3": w3, "b3": b3, "w4": w4, "b4": b4}


def _reference_forward(x, params, r):
    """Pure-XLA f32 reference of the PyTorch forward (for a sanity check)."""
    def conv(x, w_hwio, b, relu):
        y = jax.lax.conv_general_dilated(
            x, w_hwio, window_strides=(1, 1), padding="SAME",
            dimension_numbers=("NCHW", "HWIO", "NCHW"))
        y = y + b[None, :, None, None]
        return jnp.maximum(y, 0.0) if relu else y
    y = conv(x, params["w1"], params["b1"], True)
    y = conv(y, params["w2"], params["b2"], True)
    y = conv(y, params["w3"], params["b3"], True)
    y = conv(y, params["w4"], params["b4"], False)
    N, _, H, W = y.shape
    y = y.reshape(N, r, r, H, W)
    y = jnp.transpose(y, (0, 3, 1, 4, 2)).reshape(N, 1, H * r, W * r)
    return y


if __name__ == "__main__":
    upscale = 3
    key = jax.random.PRNGKey(0)
    pkey, xkey = jax.random.split(key)
    params = make_params(pkey, upscale)

    # Small NCHW input consistent with Conv2d(1, ...): (batch=2, C=1, 16, 16)
    x = jax.random.normal(xkey, (2, 1, 16, 16), jnp.float32)

    out = super_resolution_forward(x, params, upscale)
    out = jax.block_until_ready(out)
    assert out.shape == (2, 1, 16 * upscale, 16 * upscale), out.shape
    assert out.dtype == jnp.float32

    ref = jax.block_until_ready(_reference_forward(x, params, upscale))
    assert jnp.allclose(out, ref, atol=1e-1, rtol=1e-1), float(
        jnp.max(jnp.abs(out - ref)))
    print("KERNEL_OK")
</pallas_src>

<mosaic_0001>
module attributes {stable_mosaic.version = 11 : i64} {
  func.func @_fused_espcn_kernel(%arg0: i32, %arg1: memref<288x1xf32, #tpu.memory_space<vmem>>, %arg2: memref<1x288x32xbf16, #tpu.memory_space<vmem>>, %arg3: memref<32x64xbf16, #tpu.memory_space<vmem>>, %arg4: memref<1x64xf32, #tpu.memory_space<vmem>>, %arg5: memref<576x64xbf16, #tpu.memory_space<vmem>>, %arg6: memref<1x64xf32, #tpu.memory_space<vmem>>, %arg7: memref<576x32xbf16, #tpu.memory_space<vmem>>, %arg8: memref<1x32xf32, #tpu.memory_space<vmem>>, %arg9: memref<288x128xbf16, #tpu.memory_space<vmem>>, %arg10: memref<1x128xf32, #tpu.memory_space<vmem>>, %arg11: memref<1x288x128xf32, #tpu.memory_space<vmem>>, %arg12: memref<328x64xf32, #tpu.memory_space<vmem>>, %arg13: memref<288x576xbf16, #tpu.memory_space<vmem>>) attributes {dimension_semantics = [#tpu.dimension_semantics<parallel>], iteration_bounds = array<i64: 2>, scalar_prefetch = 0 : i64, scratch_operands = 2 : i64, tpu.core_type = #tpu.core_type<tc>, window_params = [{pipeline_mode = #tpu.pipeline_mode<synchronous>, transform_indices = @transform_0, window_bounds = array<i64: 288, 1>}, {transform_indices = @transform_1, window_bounds = array<i64: 1, 288, 32>}, {pipeline_mode = #tpu.pipeline_mode<synchronous>, transform_indices = @transform_2, window_bounds = array<i64: 32, 64>}, {pipeline_mode = #tpu.pipeline_mode<synchronous>, transform_indices = @transform_3, window_bounds = array<i64: 1, 64>}, {pipeline_mode = #tpu.pipeline_mode<synchronous>, transform_indices = @transform_4, window_bounds = array<i64: 576, 64>}, {pipeline_mode = #tpu.pipeline_mode<synchronous>, transform_indices = @transform_5, window_bounds = array<i64: 1, 64>}, {pipeline_mode = #tpu.pipeline_mode<synchronous>, transform_indices = @transform_6, window_bounds = array<i64: 576, 32>}, {pipeline_mode = #tpu.pipeline_mode<synchronous>, transform_indices = @transform_7, window_bounds = array<i64: 1, 32>}, {pipeline_mode = #tpu.pipeline_mode<synchronous>, transform_indices = @transform_8, window_bounds = array<i64: 288, 128>}, {pipeline_mode = #tpu.pipeline_mode<synchronous>, transform_indices = @transform_9, window_bounds = array<i64: 1, 128>}, {transform_indices = @transform_10, window_bounds = array<i64: 1, 288, 128>}]} {
    %cst = arith.constant 0.000000e+00 : f32
    %0 = vector.broadcast %cst : f32 to vector<328x64xf32>
    %c0 = arith.constant 0 : index
    %c0_0 = arith.constant 0 : index
    %1 = vector.load %arg12[%c0, %c0_0] : memref<328x64xf32, #tpu.memory_space<vmem>>, vector<328x64xf32>
    tpu.vector_store %arg12[%c0, %c0_0], %0 {strides = array<i32>} : memref<328x64xf32, #tpu.memory_space<vmem>>, vector<328x64xf32>,
    %c0_1 = arith.constant 0 : index
    %c0_2 = arith.constant 0 : index
    %c0_3 = arith.constant 0 : index
    %2 = vector.load %arg2[%c0_1, %c0_2, %c0_3] : memref<1x288x32xbf16, #tpu.memory_space<vmem>>, vector<1x288x32xbf16>
    %3 = vector.shape_cast %2 : vector<1x288x32xbf16> to vector<288x32xbf16>
    %c0_4 = arith.constant 0 : index
    %c0_5 = arith.constant 0 : index
    %4 = vector.load %arg3[%c0_4, %c0_5] : memref<32x64xbf16, #tpu.memory_space<vmem>>, vector<32x64xbf16>
    %cst_6 = arith.constant dense<0.000000e+00> : vector<288x64xf32>
    %5 = tpu.matmul %3, %4, %cst_6 {dimension_numbers = #tpu.dot_dimension_numbers<[1], [0], [0], [1], [0, 0, 1, 1], [], []>} : vector<288x32xbf16>, vector<32x64xbf16>, vector<288x64xf32> -> vector<288x64xf32>
    %c0_7 = arith.constant 0 : index
    %c0_8 = arith.constant 0 : index
    %6 = vector.load %arg4[%c0_7, %c0_8] : memref<1x64xf32, #tpu.memory_space<vmem>>, vector<1x64xf32>
    %7 = vector.broadcast %6 : vector<1x64xf32> to vector<288x64xf32>
    %8 = arith.addf %5, %7 : vector<288x64xf32>
    %cst_9 = arith.constant 0.000000e+00 : f32
    %9 = vector.broadcast %cst_9 : f32 to vector<288x64xf32>
    %10 = arith.maximumf %8, %9 : vector<288x64xf32>
    %c0_10 = arith.constant 0 : index
    %c0_11 = arith.constant 0 : index
    %11 = vector.load %arg1[%c0_10, %c0_11] : memref<288x1xf32, #tpu.memory_space<vmem>>, vector<288x1xf32>
    %12 = vector.broadcast %11 : vector<288x1xf32> to vector<288x64xf32>
    %13 = arith.mulf %10, %12 : vector<288x64xf32>
    %c19 = arith.constant 19 : index
    %c0_12 = arith.constant 0 : index
    %14 = vector.load %arg12[%c19, %c0_12] : memref<328x64xf32, #tpu.memory_space<vmem>>, vector<288x64xf32>
    tpu.vector_store %arg12[%c19, %c0_12], %13 {strides = array<i32>} : memref<328x64xf32, #tpu.memory_space<vmem>>, vector<288x64xf32>,
    %c0_13 = arith.constant 0 : index
    %c0_14 = arith.constant 0 : index
    %15 = vector.load %arg12[%c0_13, %c0_14] : memref<328x64xf32, #tpu.memory_space<vmem>>, vector<288x64xf32>
    %16 = arith.truncf %15 : vector<288x64xf32> to vector<288x64xbf16>
    %c0_15 = arith.constant 0 : index
    %c0_16 = arith.constant 0 : index
    %17 = vector.load %arg13[%c0_15, %c0_16] : memref<288x576xbf16, #tpu.memory_space<vmem>>, vector<288x64xbf16>
    tpu.vector_store %arg13[%c0_15, %c0_16], %16 {strides = array<i32>} : memref<288x576xbf16, #tpu.memory_space<vmem>>, vector<288x64xbf16>,
    %c1 = arith.constant 1 : index
    %c0_17 = arith.constant 0 : index
    %18 = vector.load %arg12[%c1, %c0_17] : memref<328x64xf32, #tpu.memory_space<vmem>>, vector<288x64xf32>
    %19 = arith.truncf %18 : vector<288x64xf32> to vector<288x64xbf16>
    %c0_18 = arith.constant 0 : index
    %c64 = arith.constant 64 : index
    %20 = vector.load %arg13[%c0_18, %c64] : memref<288x576xbf16, #tpu.memory_space<vmem>>, vector<288x64xbf16>
    tpu.vector_store %arg13[%c0_18, %c64], %19 {strides = array<i32>} : memref<288x576xbf16, #tpu.memory_space<vmem>>, vector<288x64xbf16>,
    %c2 = arith.constant 2 : index
    %c0_19 = arith.constant 0 : index
    %21 = vector.load %arg12[%c2, %c0_19] : memref<328x64xf32, #tpu.memory_space<vmem>>, vector<288x64xf32>
    %22 = arith.truncf %21 : vector<288x64xf32> to vector<288x64xbf16>
    %c0_20 = arith.constant 0 : index
    %c128 = arith.constant 128 : index
    %23 = vector.load %arg13[%c0_20, %c128] : memref<288x576xbf16, #tpu.memory_space<vmem>>, vector<288x64xbf16>
    tpu.vector_store %arg13[%c0_20, %c128], %22 {strides = array<i32>} : memref<288x576xbf16, #tpu.memory_space<vmem>>, vector<288x64xbf16>,
    %c18 = arith.constant 18 : index
    %c0_21 = arith.constant 0 : index
    %24 = vector.load %arg12[%c18, %c0_21] : memref<328x64xf32, #tpu.memory_space<vmem>>, vector<288x64xf32>
    %25 = arith.truncf %24 : vector<288x64xf32> to vector<288x64xbf16>
    %c0_22 = arith.constant 0 : index
    %c192 = arith.constant 192 : index
    %26 = vector.load %arg13[%c0_22, %c192] : memref<288x576xbf16, #tpu.memory_space<vmem>>, vector<288x64xbf16>
    tpu.vector_store %arg13[%c0_22, %c192], %25 {strides = array<i32>} : memref<288x576xbf16, #tpu.memory_space<vmem>>, vector<288x64xbf16>,
    %c19_23 = arith.constant 19 : index
    %c0_24 = arith.constant 0 : index
    %27 = vector.load %arg12[%c19_23, %c0_24] : memref<328x64xf32, #tpu.memory_space<vmem>>, vector<288x64xf32>
    %28 = arith.truncf %27 : vector<288x64xf32> to vector<288x64xbf16>
    %c0_25 = arith.constant 0 : index
    %c256 = arith.constant 256 : index
    %29 = vector.load %arg13[%c0_25, %c256] : memref<288x576xbf16, #tpu.memory_space<vmem>>, vector<288x64xbf16>
    tpu.vector_store %arg13[%c0_25, %c256], %28 {strides = array<i32>} : memref<288x576xbf16, #tpu.memory_space<vmem>>, vector<288x64xbf16>,
    %c20 = arith.constant 20 : index
    %c0_26 = arith.constant 0 : index
    %30 = vector.load %arg12[%c20, %c0_26] : memref<328x64xf32, #tpu.memory_space<vmem>>, vector<288x64xf32>
    %31 = arith.truncf %30 : vector<288x64xf32> to vector<288x64xbf16>
    %c0_27 = arith.constant 0 : index
    %c320 = arith.constant 320 : index
    %32 = vector.load %arg13[%c0_27, %c320] : memref<288x576xbf16, #tpu.memory_space<vmem>>, vector<288x64xbf16>
    tpu.vector_store %arg13[%c0_27, %c320], %31 {strides = array<i32>} : memref<288x576xbf16, #tpu.memory_space<vmem>>, vector<288x64xbf16>,
    %c36 = arith.constant 36 : index
    %c0_28 = arith.constant 0 : index
    %33 = vector.load %arg12[%c36, %c0_28] : memref<328x64xf32, #tpu.memory_space<vmem>>, vector<288x64xf32>
    %34 = arith.truncf %33 : vector<288x64xf32> to vector<288x64xbf16>
    %c0_29 = arith.constant 0 : index
    %c384 = arith.constant 384 : index
    %35 = vector.load %arg13[%c0_29, %c384] : memref<288x576xbf16, #tpu.memory_space<vmem>>, vector<288x64xbf16>
    tpu.vector_store %arg13[%c0_29, %c384], %34 {strides = array<i32>} : memref<288x576xbf16, #tpu.memory_space<vmem>>, vector<288x64xbf16>,
    %c37 = arith.constant 37 : index
    %c0_30 = arith.constant 0 : index
    %36 = vector.load %arg12[%c37, %c0_30] : memref<328x64xf32, #tpu.memory_space<vmem>>, vector<288x64xf32>
    %37 = arith.truncf %36 : vector<288x64xf32> to vector<288x64xbf16>
    %c0_31 = arith.constant 0 : index
    %c448 = arith.constant 448 : index
    %38 = vector.load %arg13[%c0_31, %c448] : memref<288x576xbf16, #tpu.memory_space<vmem>>, vector<288x64xbf16>
    tpu.vector_store %arg13[%c0_31, %c448], %37 {strides = array<i32>} : memref<288x576xbf16, #tpu.memory_space<vmem>>, vector<288x64xbf16>,
    %c38 = arith.constant 38 : index
    %c0_32 = arith.constant 0 : index
    %39 = vector.load %arg12[%c38, %c0_32] : memref<328x64xf32, #tpu.memory_space<vmem>>, vector<288x64xf32>
    %40 = arith.truncf %39 : vector<288x64xf32> to vector<288x64xbf16>
    %c0_33 = arith.constant 0 : index
    %c512 = arith.constant 512 : index
    %41 = vector.load %arg13[%c0_33, %c512] : memref<288x576xbf16, #tpu.memory_space<vmem>>, vector<288x64xbf16>
    tpu.vector_store %arg13[%c0_33, %c512], %40 {strides = array<i32>} : memref<288x576xbf16, #tpu.memory_space<vmem>>, vector<288x64xbf16>,
    %c0_34 = arith.constant 0 : index
    %c0_35 = arith.constant 0 : index
    %42 = vector.load %arg13[%c0_34, %c0_35] : memref<288x576xbf16, #tpu.memory_space<vmem>>, vector<288x576xbf16>
    %c0_36 = arith.constant 0 : index
    %c0_37 = arith.constant 0 : index
    %43 = vector.load %arg5[%c0_36, %c0_37] : memref<576x64xbf16, #tpu.memory_space<vmem>>, vector<576x64xbf16>
    %cst_38 = arith.constant dense<0.000000e+00> : vector<288x64xf32>
    %44 = tpu.matmul %42, %43, %cst_38 {dimension_numbers = #tpu.dot_dimension_numbers<[1], [0], [0], [1], [0, 0, 1, 1], [], []>} : vector<288x576xbf16>, vector<576x64xbf16>, vector<288x64xf32> -> vector<288x64xf32>
    %c0_39 = arith.constant 0 : index
    %c0_40 = arith.constant 0 : index
    %45 = vector.load %arg6[%c0_39, %c0_40] : memref<1x64xf32, #tpu.memory_space<vmem>>, vector<1x64xf32>
    %46 = vector.broadcast %45 : vector<1x64xf32> to vector<288x64xf32>
    %47 = arith.addf %44, %46 : vector<288x64xf32>
    %cst_41 = arith.constant 0.000000e+00 : f32
    %48 = vector.broadcast %cst_41 : f32 to vector<288x64xf32>
    %49 = arith.maximumf %47, %48 : vector<288x64xf32>
    %c0_42 = arith.constant 0 : index
    %c0_43 = arith.constant 0 : index
    %50 = vector.load %arg1[%c0_42, %c0_43] : memref<288x1xf32, #tpu.memory_space<vmem>>, vector<288x1xf32>
    %51 = vector.broadcast %50 : vector<288x1xf32> to vector<288x64xf32>
    %52 = arith.mulf %49, %51 : vector<288x64xf32>
    %c19_44 = arith.constant 19 : index
    %c0_45 = arith.constant 0 : index
    %53 = vector.load %arg12[%c19_44, %c0_45] : memref<328x64xf32, #tpu.memory_space<vmem>>, vector<288x64xf32>
    tpu.vector_store %arg12[%c19_44, %c0_45], %52 {strides = array<i32>} : memref<328x64xf32, #tpu.memory_space<vmem>>, vector<288x64xf32>,
    %c0_46 = arith.constant 0 : index
    %c0_47 = arith.constant 0 : index
    %54 = vector.load %arg12[%c0_46, %c0_47] : memref<328x64xf32, #tpu.memory_space<vmem>>, vector<288x64xf32>
    %55 = arith.truncf %54 : vector<288x64xf32> to vector<288x64xbf16>
    %c0_48 = arith.constant 0 : index
    %c0_49 = arith.constant 0 : index
    %56 = vector.load %arg13[%c0_48, %c0_49] : memref<288x576xbf16, #tpu.memory_space<vmem>>, vector<288x64xbf16>
    tpu.vector_store %arg13[%c0_48, %c0_49], %55 {strides = array<i32>} : memref<288x576xbf16, #tpu.memory_space<vmem>>, vector<288x64xbf16>,
    %c1_50 = arith.constant 1 : index
    %c0_51 = arith.constant 0 : index
    %57 = vector.load %arg12[%c1_50, %c0_51] : memref<328x64xf32, #tpu.memory_space<vmem>>, vector<288x64xf32>
    %58 = arith.truncf %57 : vector<288x64xf32> to vector<288x64xbf16>
    %c0_52 = arith.constant 0 : index
    %c64_53 = arith.constant 64 : index
    %59 = vector.load %arg13[%c0_52, %c64_53] : memref<288x576xbf16, #tpu.memory_space<vmem>>, vector<288x64xbf16>
    tpu.vector_store %arg13[%c0_52, %c64_53], %58 {strides = array<i32>} : memref<288x576xbf16, #tpu.memory_space<vmem>>, vector<288x64xbf16>,
    %c2_54 = arith.constant 2 : index
    %c0_55 = arith.constant 0 : index
    %60 = vector.load %arg12[%c2_54, %c0_55] : memref<328x64xf32, #tpu.memory_space<vmem>>, vector<288x64xf32>
    %61 = arith.truncf %60 : vector<288x64xf32> to vector<288x64xbf16>
    %c0_56 = arith.constant 0 : index
    %c128_57 = arith.constant 128 : index
    %62 = vector.load %arg13[%c0_56, %c128_57] : memref<288x576xbf16, #tpu.memory_space<vmem>>, vector<288x64xbf16>
    tpu.vector_store %arg13[%c0_56, %c128_57], %61 {strides = array<i32>} : memref<288x576xbf16, #tpu.memory_space<vmem>>, vector<288x64xbf16>,
    %c18_58 = arith.constant 18 : index
    %c0_59 = arith.constant 0 : index
    %63 = vector.load %arg12[%c18_58, %c0_59] : memref<328x64xf32, #tpu.memory_space<vmem>>, vector<288x64xf32>
    %64 = arith.truncf %63 : vector<288x64xf32> to vector<288x64xbf16>
    %c0_60 = arith.constant 0 : index
    %c192_61 = arith.constant 192 : index
    %65 = vector.load %arg13[%c0_60, %c192_61] : memref<288x576xbf16, #tpu.memory_space<vmem>>, vector<288x64xbf16>
    tpu.vector_store %arg13[%c0_60, %c192_61], %64 {strides = array<i32>} : memref<288x576xbf16, #tpu.memory_space<vmem>>, vector<288x64xbf16>,
    %c19_62 = arith.constant 19 : index
    %c0_63 = arith.constant 0 : index
    %66 = vector.load %arg12[%c19_62, %c0_63] : memref<328x64xf32, #tpu.memory_space<vmem>>, vector<288x64xf32>
    %67 = arith.truncf %66 : vector<288x64xf32> to vector<288x64xbf16>
    %c0_64 = arith.constant 0 : index
    %c256_65 = arith.constant 256 : index
    %68 = vector.load %arg13[%c0_64, %c256_65] : memref<288x576xbf16, #tpu.memory_space<vmem>>, vector<288x64xbf16>
    tpu.vector_store %arg13[%c0_64, %c256_65], %67 {strides = array<i32>} : memref<288x576xbf16, #tpu.memory_space<vmem>>, vector<288x64xbf16>,
    %c20_66 = arith.constant 20 : index
    %c0_67 = arith.constant 0 : index
    %69 = vector.load %arg12[%c20_66, %c0_67] : memref<328x64xf32, #tpu.memory_space<vmem>>, vector<288x64xf32>
    %70 = arith.truncf %69 : vector<288x64xf32> to vector<288x64xbf16>
    %c0_68 = arith.constant 0 : index
    %c320_69 = arith.constant 320 : index
    %71 = vector.load %arg13[%c0_68, %c320_69] : memref<288x576xbf16, #tpu.memory_space<vmem>>, vector<288x64xbf16>
    tpu.vector_store %arg13[%c0_68, %c320_69], %70 {strides = array<i32>} : memref<288x576xbf16, #tpu.memory_space<vmem>>, vector<288x64xbf16>,
    %c36_70 = arith.constant 36 : index
    %c0_71 = arith.constant 0 : index
    %72 = vector.load %arg12[%c36_70, %c0_71] : memref<328x64xf32, #tpu.memory_space<vmem>>, vector<288x64xf32>
    %73 = arith.truncf %72 : vector<288x64xf32> to vector<288x64xbf16>
    %c0_72 = arith.constant 0 : index
    %c384_73 = arith.constant 384 : index
    %74 = vector.load %arg13[%c0_72, %c384_73] : memref<288x576xbf16, #tpu.memory_space<vmem>>, vector<288x64xbf16>
    tpu.vector_store %arg13[%c0_72, %c384_73], %73 {strides = array<i32>} : memref<288x576xbf16, #tpu.memory_space<vmem>>, vector<288x64xbf16>,
    %c37_74 = arith.constant 37 : index
    %c0_75 = arith.constant 0 : index
    %75 = vector.load %arg12[%c37_74, %c0_75] : memref<328x64xf32, #tpu.memory_space<vmem>>, vector<288x64xf32>
    %76 = arith.truncf %75 : vector<288x64xf32> to vector<288x64xbf16>
    %c0_76 = arith.constant 0 : index
    %c448_77 = arith.constant 448 : index
    %77 = vector.load %arg13[%c0_76, %c448_77] : memref<288x576xbf16, #tpu.memory_space<vmem>>, vector<288x64xbf16>
    tpu.vector_store %arg13[%c0_76, %c448_77], %76 {strides = array<i32>} : memref<288x576xbf16, #tpu.memory_space<vmem>>, vector<288x64xbf16>,
    %c38_78 = arith.constant 38 : index
    %c0_79 = arith.constant 0 : index
    %78 = vector.load %arg12[%c38_78, %c0_79] : memref<328x64xf32, #tpu.memory_space<vmem>>, vector<288x64xf32>
    %79 = arith.truncf %78 : vector<288x64xf32> to vector<288x64xbf16>
    %c0_80 = arith.constant 0 : index
    %c512_81 = arith.constant 512 : index
    %80 = vector.load %arg13[%c0_80, %c512_81] : memref<288x576xbf16, #tpu.memory_space<vmem>>, vector<288x64xbf16>
    tpu.vector_store %arg13[%c0_80, %c512_81], %79 {strides = array<i32>} : memref<288x576xbf16, #tpu.memory_space<vmem>>, vector<288x64xbf16>,
    %c0_82 = arith.constant 0 : index
    %c0_83 = arith.constant 0 : index
    %81 = vector.load %arg13[%c0_82, %c0_83] : memref<288x576xbf16, #tpu.memory_space<vmem>>, vector<288x576xbf16>
    %c0_84 = arith.constant 0 : index
    %c0_85 = arith.constant 0 : index
    %82 = vector.load %arg7[%c0_84, %c0_85] : memref<576x32xbf16, #tpu.memory_space<vmem>>, vector<576x32xbf16>
    %cst_86 = arith.constant dense<0.000000e+00> : vector<288x32xf32>
    %83 = tpu.matmul %81, %82, %cst_86 {dimension_numbers = #tpu.dot_dimension_numbers<[1], [0], [0], [1], [0, 0, 1, 1], [], []>} : vector<288x576xbf16>, vector<576x32xbf16>, vector<288x32xf32> -> vector<288x32xf32>
    %c0_87 = arith.constant 0 : index
    %c0_88 = arith.constant 0 : index
    %84 = vector.load %arg8[%c0_87, %c0_88] : memref<1x32xf32, #tpu.memory_space<vmem>>, vector<1x32xf32>
    %85 = vector.broadcast %84 : vector<1x32xf32> to vector<288x32xf32>
    %86 = arith.addf %83, %85 : vector<288x32xf32>
    %cst_89 = arith.constant 0.000000e+00 : f32
    %87 = vector.broadcast %cst_89 : f32 to vector<288x32xf32>
    %88 = arith.maximumf %86, %87 : vector<288x32xf32>
    %c0_90 = arith.constant 0 : index
    %c0_91 = arith.constant 0 : index
    %89 = vector.load %arg1[%c0_90, %c0_91] : memref<288x1xf32, #tpu.memory_space<vmem>>, vector<288x1xf32>
    %90 = vector.broadcast %89 : vector<288x1xf32> to vector<288x32xf32>
    %91 = arith.mulf %88, %90 : vector<288x32xf32>
    %c19_92 = arith.constant 19 : index
    %c0_93 = arith.constant 0 : index
    %92 = vector.load %arg12[%c19_92, %c0_93] : memref<328x64xf32, #tpu.memory_space<vmem>>, vector<288x32xf32>
    tpu.vector_store %arg12[%c19_92, %c0_93], %91 {strides = array<i32>} : memref<328x64xf32, #tpu.memory_space<vmem>>, vector<288x32xf32>,
    %c0_94 = arith.constant 0 : index
    %c0_95 = arith.constant 0 : index
    %93 = vector.load %arg12[%c0_94, %c0_95] : memref<328x64xf32, #tpu.memory_space<vmem>>, vector<288x32xf32>
    %94 = arith.truncf %93 : vector<288x32xf32> to vector<288x32xbf16>
    %c0_96 = arith.constant 0 : index
    %c0_97 = arith.constant 0 : index
    %95 = vector.load %arg13[%c0_96, %c0_97] : memref<288x576xbf16, #tpu.memory_space<vmem>>, vector<288x32xbf16>
    tpu.vector_store %arg13[%c0_96, %c0_97], %94 {strides = array<i32>} : memref<288x576xbf16, #tpu.memory_space<vmem>>, vector<288x32xbf16>,
    %c1_98 = arith.constant 1 : index
    %c0_99 = arith.constant 0 : index
    %96 = vector.load %arg12[%c1_98, %c0_99] : memref<328x64xf32, #tpu.memory_space<vmem>>, vector<288x32xf32>
    %97 = arith.truncf %96 : vector<288x32xf32> to vector<288x32xbf16>
    %c0_100 = arith.constant 0 : index
    %c32 = arith.constant 32 : index
    %98 = vector.load %arg13[%c0_100, %c32] : memref<288x576xbf16, #tpu.memory_space<vmem>>, vector<288x32xbf16>
    tpu.vector_store %arg13[%c0_100, %c32], %97 {strides = array<i32>} : memref<288x576xbf16, #tpu.memory_space<vmem>>, vector<288x32xbf16>,
    %c2_101 = arith.constant 2 : index
    %c0_102 = arith.constant 0 : index
    %99 = vector.load %arg12[%c2_101, %c0_102] : memref<328x64xf32, #tpu.memory_space<vmem>>, vector<288x32xf32>
    %100 = arith.truncf %99 : vector<288x32xf32> to vector<288x32xbf16>
    %c0_103 = arith.constant 0 : index
    %c64_104 = arith.constant 64 : index
    %101 = vector.load %arg13[%c0_103, %c64_104] : memref<288x576xbf16, #tpu.memory_space<vmem>>, vector<288x32xbf16>
    tpu.vector_store %arg13[%c0_103, %c64_104], %100 {strides = array<i32>} : memref<288x576xbf16, #tpu.memory_space<vmem>>, vector<288x32xbf16>,
    %c18_105 = arith.constant 18 : index
    %c0_106 = arith.constant 0 : index
    %102 = vector.load %arg12[%c18_105, %c0_106] : memref<328x64xf32, #tpu.memory_space<vmem>>, vector<288x32xf32>
    %103 = arith.truncf %102 : vector<288x32xf32> to vector<288x32xbf16>
    %c0_107 = arith.constant 0 : index
    %c96 = arith.constant 96 : index
    %104 = vector.load %arg13[%c0_107, %c96] : memref<288x576xbf16, #tpu.memory_space<vmem>>, vector<288x32xbf16>
    tpu.vector_store %arg13[%c0_107, %c96], %103 {strides = array<i32>} : memref<288x576xbf16, #tpu.memory_space<vmem>>, vector<288x32xbf16>,
    %c19_108 = arith.constant 19 : index
    %c0_109 = arith.constant 0 : index
    %105 = vector.load %arg12[%c19_108, %c0_109] : memref<328x64xf32, #tpu.memory_space<vmem>>, vector<288x32xf32>
    %106 = arith.truncf %105 : vector<288x32xf32> to vector<288x32xbf16>
    %c0_110 = arith.constant 0 : index
    %c128_111 = arith.constant 128 : index
    %107 = vector.load %arg13[%c0_110, %c128_111] : memref<288x576xbf16, #tpu.memory_space<vmem>>, vector<288x32xbf16>
    tpu.vector_store %arg13[%c0_110, %c128_111], %106 {strides = array<i32>} : memref<288x576xbf16, #tpu.memory_space<vmem>>, vector<288x32xbf16>,
    %c20_112 = arith.constant 20 : index
    %c0_113 = arith.constant 0 : index
    %108 = vector.load %arg12[%c20_112, %c0_113] : memref<328x64xf32, #tpu.memory_space<vmem>>, vector<288x32xf32>
    %109 = arith.truncf %108 : vector<288x32xf32> to vector<288x32xbf16>
    %c0_114 = arith.constant 0 : index
    %c160 = arith.constant 160 : index
    %110 = vector.load %arg13[%c0_114, %c160] : memref<288x576xbf16, #tpu.memory_space<vmem>>, vector<288x32xbf16>
    tpu.vector_store %arg13[%c0_114, %c160], %109 {strides = array<i32>} : memref<288x576xbf16, #tpu.memory_space<vmem>>, vector<288x32xbf16>,
    %c36_115 = arith.constant 36 : index
    %c0_116 = arith.constant 0 : index
    %111 = vector.load %arg12[%c36_115, %c0_116] : memref<328x64xf32, #tpu.memory_space<vmem>>, vector<288x32xf32>
    %112 = arith.truncf %111 : vector<288x32xf32> to vector<288x32xbf16>
    %c0_117 = arith.constant 0 : index
    %c192_118 = arith.constant 192 : index
    %113 = vector.load %arg13[%c0_117, %c192_118] : memref<288x576xbf16, #tpu.memory_space<vmem>>, vector<288x32xbf16>
    tpu.vector_store %arg13[%c0_117, %c192_118], %112 {strides = array<i32>} : memref<288x576xbf16, #tpu.memory_space<vmem>>, vector<288x32xbf16>,
    %c37_119 = arith.constant 37 : index
    %c0_120 = arith.constant 0 : index
    %114 = vector.load %arg12[%c37_119, %c0_120] : memref<328x64xf32, #tpu.memory_space<vmem>>, vector<288x32xf32>
    %115 = arith.truncf %114 : vector<288x32xf32> to vector<288x32xbf16>
    %c0_121 = arith.constant 0 : index
    %c224 = arith.constant 224 : index
    %116 = vector.load %arg13[%c0_121, %c224] : memref<288x576xbf16, #tpu.memory_space<vmem>>, vector<288x32xbf16>
    tpu.vector_store %arg13[%c0_121, %c224], %115 {strides = array<i32>} : memref<288x576xbf16, #tpu.memory_space<vmem>>, vector<288x32xbf16>,
    %c38_122 = arith.constant 38 : index
    %c0_123 = arith.constant 0 : index
    %117 = vector.load %arg12[%c38_122, %c0_123] : memref<328x64xf32, #tpu.memory_space<vmem>>, vector<288x32xf32>
    %118 = arith.truncf %117 : vector<288x32xf32> to vector<288x32xbf16>
    %c0_124 = arith.constant 0 : index
    %c256_125 = arith.constant 256 : index
    %119 = vector.load %arg13[%c0_124, %c256_125] : memref<288x576xbf16, #tpu.memory_space<vmem>>, vector<288x32xbf16>
    tpu.vector_store %arg13[%c0_124, %c256_125], %118 {strides = array<i32>} : memref<288x576xbf16, #tpu.memory_space<vmem>>, vector<288x32xbf16>,
    %c0_126 = arith.constant 0 : index
    %c0_127 = arith.constant 0 : index
    %120 = vector.load %arg13[%c0_126, %c0_127] : memref<288x576xbf16, #tpu.memory_space<vmem>>, vector<288x288xbf16>
    %c0_128 = arith.constant 0 : index
    %c0_129 = arith.constant 0 : index
    %121 = vector.load %arg9[%c0_128, %c0_129] : memref<288x128xbf16, #tpu.memory_space<vmem>>, vector<288x128xbf16>
    %cst_130 = arith.constant dense<0.000000e+00> : vector<288x128xf32>
    %122 = tpu.matmul %120, %121, %cst_130 {dimension_numbers = #tpu.dot_dimension_numbers<[1], [0], [0], [1], [0, 0, 1, 1], [], []>} : vector<288x288xbf16>, vector<288x128xbf16>, vector<288x128xf32> -> vector<288x128xf32>
    %c0_131 = arith.constant 0 : index
    %c0_132 = arith.constant 0 : index
    %123 = vector.load %arg10[%c0_131, %c0_132] : memref<1x128xf32, #tpu.memory_space<vmem>>, vector<1x128xf32>
    %124 = vector.broadcast %123 : vector<1x128xf32> to vector<288x128xf32>
    %125 = arith.addf %122, %124 : vector<288x128xf32>
    %c0_133 = arith.constant 0 : index
    %c0_134 = arith.constant 0 : index
    %c0_135 = arith.constant 0 : index
    %126 = vector.load %arg11[%c0_133, %c0_134, %c0_135] : memref<1x288x128xf32, #tpu.memory_space<vmem>>, vector<1x288x128xf32>
    %127 = vector.shape_cast %126 : vector<1x288x128xf32> to vector<288x128xf32>
    %128 = vector.shape_cast %125 : vector<288x128xf32> to vector<1x288x128xf32>
    tpu.vector_store %arg11[%c0_133, %c0_134, %c0_135], %128 {strides = array<i32>} : memref<1x288x128xf32, #tpu.memory_space<vmem>>, vector<1x288x128xf32>,
    return
  }
  func.func @transform_0(%arg0: i32) -> (i32, i32) {
    %c0_i32 = arith.constant 0 : i32
    %c0_i32_0 = arith.constant 0 : i32
    %c0_i32_1 = arith.constant 0 : i32
    return %c0_i32, %c0_i32_0 : i32, i32
  }
  func.func @transform_1(%arg0: i32) -> (i32, i32, i32) {
    %c0_i32 = arith.constant 0 : i32
    %c0_i32_0 = arith.constant 0 : i32
    %c0_i32_1 = arith.constant 0 : i32
    return %arg0, %c0_i32, %c0_i32_0 : i32, i32, i32
  }
  func.func @transform_2(%arg0: i32) -> (i32, i32) {
    %c0_i32 = arith.constant 0 : i32
    %c0_i32_0 = arith.constant 0 : i32
    %c0_i32_1 = arith.constant 0 : i32
    return %c0_i32, %c0_i32_0 : i32, i32
  }
  func.func @transform_3(%arg0: i32) -> (i32, i32) {
    %c0_i32 = arith.constant 0 : i32
    %c0_i32_0 = arith.constant 0 : i32
    %c0_i32_1 = arith.constant 0 : i32
    return %c0_i32, %c0_i32_0 : i32, i32
  }
  func.func @transform_4(%arg0: i32) -> (i32, i32) {
    %c0_i32 = arith.constant 0 : i32
    %c0_i32_0 = arith.constant 0 : i32
    %c0_i32_1 = arith.constant 0 : i32
    return %c0_i32, %c0_i32_0 : i32, i32
  }
  func.func @transform_5(%arg0: i32) -> (i32, i32) {
    %c0_i32 = arith.constant 0 : i32
    %c0_i32_0 = arith.constant 0 : i32
    %c0_i32_1 = arith.constant 0 : i32
    return %c0_i32, %c0_i32_0 : i32, i32
  }
  func.func @transform_6(%arg0: i32) -> (i32, i32) {
    %c0_i32 = arith.constant 0 : i32
    %c0_i32_0 = arith.constant 0 : i32
    %c0_i32_1 = arith.constant 0 : i32
    return %c0_i32, %c0_i32_0 : i32, i32
  }
  func.func @transform_7(%arg0: i32) -> (i32, i32) {
    %c0_i32 = arith.constant 0 : i32
    %c0_i32_0 = arith.constant 0 : i32
    %c0_i32_1 = arith.constant 0 : i32
    return %c0_i32, %c0_i32_0 : i32, i32
  }
  func.func @transform_8(%arg0: i32) -> (i32, i32) {
    %c0_i32 = arith.constant 0 : i32
    %c0_i32_0 = arith.constant 0 : i32
    %c0_i32_1 = arith.constant 0 : i32
    return %c0_i32, %c0_i32_0 : i32, i32
  }
  func.func @transform_9(%arg0: i32) -> (i32, i32) {
    %c0_i32 = arith.constant 0 : i32
    %c0_i32_0 = arith.constant 0 : i32
    %c0_i32_1 = arith.constant 0 : i32
    return %c0_i32, %c0_i32_0 : i32, i32
  }
  func.func @transform_10(%arg0: i32) -> (i32, i32, i32) {
    %c0_i32 = arith.constant 0 : i32
    %c0_i32_0 = arith.constant 0 : i32
    %c0_i32_1 = arith.constant 0 : i32
    return %arg0, %c0_i32, %c0_i32_0 : i32, i32, i32
  }
}

</mosaic_0001>

<llo_original>
// kernel: super_resolution_forward.1
$region0: #{super_resolution_forward.1}
  #allocation0 [shape = 'u32[]', space=smem, size = 0x4, offset = 0x4, fixed_abs, tag = 'smem constant byte address 0x4 - core index']
  #allocation1 [shape = 'u32[144,128]{1,0:T(1,128)}', space=vmem, size = 0x12000, scoped, tag = 'internal scratch']
  #allocation2 [shape = 'f32[328,64]{1,0:T(8,128)}', space=vmem, size = 0x29000, scoped, tag = 'scratch operand']
  #allocation3 [shape = 'bf16[288,576]{1,0:T(16,128)(2,1)}', space=vmem, size = 0x5a000, scoped, tag = 'scratch operand']
  %s0 = inlined_call_operand.vmem [shape: f32[288,1], index: 0, kind: input, shape index: {}]
  %s1 = inlined_call_operand.vmem [shape: bf16[2,288,32], index: 1, kind: input, shape index: {}]
  %s2 = inlined_call_operand.vmem [shape: bf16[32,64], index: 2, kind: input, shape index: {}]
  %s3 = inlined_call_operand.vmem [shape: f32[1,64], index: 3, kind: input, shape index: {}]
  %s4 = inlined_call_operand.vmem [shape: bf16[576,64], index: 4, kind: input, shape index: {}]
  %s5 = inlined_call_operand.vmem [shape: f32[1,64], index: 5, kind: input, shape index: {}]
  %s6 = inlined_call_operand.vmem [shape: bf16[576,32], index: 6, kind: input, shape index: {}]
  %s7 = inlined_call_operand.vmem [shape: f32[1,32], index: 7, kind: input, shape index: {}]
  %s8 = inlined_call_operand.vmem [shape: bf16[288,128], index: 8, kind: input, shape index: {}]
  %s9 = inlined_call_operand.vmem [shape: f32[1,128], index: 9, kind: input, shape index: {}]
  %s10 = inlined_call_operand.vmem [shape: f32[2,288,128], index: 10, kind: output, shape index: {}]
  %s11 = sld [smem:[#allocation0]]
  $region73: #{super_resolution_forward.1} parent=0
    _
  %s13 = ssub.s32 1, %s11
  %s14 = scalar_select 0, %s13, %s11
  loop: start=0, step=1, limit=4
  $region2: #{super_resolution_forward.1} parent=0 // loop_pre_header
    _
  $region3: #{super_resolution_forward.1} parent=0 // loop_header
    %s16 = sphi 0, %s20
    %p17 = scmp.ge.s32.totalorder %s16, 4
    %s24 = sphi 0, %s24
    %s26 = sphi 0, %s24
    %s27 = sphi 0, %s26
    %s41 = sphi 0, %s27
    %s47 = sphi 0, %s49
    %s50 = sphi 0, %s47
    %s51 = sphi 0, %s50
    %s67 = sphi 0, %s51
    %s71 = sphi 0, %s71
    %s73 = sphi 0, %s71
    %s74 = sphi 0, %s73
    %s88 = sphi 0, %s74
    %s92 = sphi 0, %s92
    %s94 = sphi 0, %s92
    %s95 = sphi 0, %s94
    %s109 = sphi 0, %s95
    %s113 = sphi 0, %s113
    %s115 = sphi 0, %s113
    %s116 = sphi 0, %s115
    %s130 = sphi 0, %s116
    %s134 = sphi 0, %s134
    %s136 = sphi 0, %s134
    %s137 = sphi 0, %s136
    %s151 = sphi 0, %s137
    %s155 = sphi 0, %s155
    %s157 = sphi 0, %s155
    %s158 = sphi 0, %s157
    %s172 = sphi 0, %s158
    %s176 = sphi 0, %s176
    %s178 = sphi 0, %s176
    %s179 = sphi 0, %s178
    %s193 = sphi 0, %s179
    %s197 = sphi 0, %s197
    %s199 = sphi 0, %s197
    %s200 = sphi 0, %s199
    %s214 = sphi 0, %s200
    %s218 = sphi 0, %s218
    %s220 = sphi 0, %s218
    %s221 = sphi 0, %s220
    %s235 = sphi 0, %s221
    %s241 = sphi 0, %s243
    %s244 = sphi 0, %s241
    %s245 = sphi 0, %s244
    %s261 = sphi 0, %s245
  $region4: #{super_resolution_forward.1} parent=0 // loop_header_branch
    %19 = sbr.rel (%p17) target = $region8
  $region5: #{super_resolution_forward.1} parent=0 // loop_body
    %s21 = ssub.s32 %s16, 1
    %s22 = ssub.s32 %s16, 2
    %s23 = sadd.s32 %s16, 1
    %s25 = sadd.s32 %s24, 1
    %p28 = scmp.eq.s32.totalorder %s16, 1
    %p29 = scmp.ne.s32.totalorder %s24, %s26
    %p30 = scmp.eq.s32.totalorder %s16, 0
    %p31 = por %p29, %p30
    %p32 = scmp.ne.s32.totalorder %s24, %s26
    %p33 = scmp.eq.s32.totalorder %s21, 1
    %p34 = por %p32, %p33
    %p35 = scmp.ne.s32.totalorder %s26, %s27
    %p36 = scmp.eq.s32.totalorder %s21, 0
    %p37 = por %p35, %p36
    %p38 = scmp.ne.s32.totalorder %s26, %s27
    %p39 = scmp.eq.s32.totalorder %s22, 1
    %p40 = por %p38, %p39
    %p42 = scmp.ne.s32.totalorder %s27, %s41
    %p43 = scmp.eq.s32.totalorder %s22, 0
    %p44 = por %p42, %p43
    %s45 = ssub.s32 %s16, %s23
    %p46 = scmp.eq.s32.totalorder %s45, 0
    %s48 = sadd.s32 %s47, 1
    %s49 = scalar_select %p46, %s47, %s48
    %p52 = pneg %p46
    %p53 = scmp.eq.s32.totalorder %s16, 1
    %p54 = por %p52, %p53
    %p55 = scmp.ne.s32.totalorder %s47, %s50
    %p56 = scmp.eq.s32.totalorder %s16, 0
    %p57 = por %p55, %p56
    %p58 = scmp.ne.s32.totalorder %s47, %s50
    %p59 = scmp.eq.s32.totalorder %s21, 1
    %p60 = por %p58, %p59
    %p61 = scmp.ne.s32.totalorder %s50, %s51
    %p62 = scmp.eq.s32.totalorder %s21, 0
    %p63 = por %p61, %p62
    %p64 = scmp.ne.s32.totalorder %s50, %s51
    %p65 = scmp.eq.s32.totalorder %s22, 1
    %p66 = por %p64, %p65
    %p68 = scmp.ne.s32.totalorder %s51, %s67
    %p69 = scmp.eq.s32.totalorder %s22, 0
    %p70 = por %p68, %p69
    %s72 = sadd.s32 %s71, 1
    %p75 = scmp.eq.s32.totalorder %s16, 1
    %p76 = scmp.ne.s32.totalorder %s71, %s73
    %p77 = scmp.eq.s32.totalorder %s16, 0
    %p78 = por %p76, %p77
    %p79 = scmp.ne.s32.totalorder %s71, %s73
    %p80 = scmp.eq.s32.totalorder %s21, 1
    %p81 = por %p79, %p80
    %p82 = scmp.ne.s32.totalorder %s73, %s74
    %p83 = scmp.eq.s32.totalorder %s21, 0
    %p84 = por %p82, %p83
    %p85 = scmp.ne.s32.totalorder %s73, %s74
    %p86 = scmp.eq.s32.totalorder %s22, 1
    %p87 = por %p85, %p86
    %p89 = scmp.ne.s32.totalorder %s74, %s88
    %p90 = scmp.eq.s32.totalorder %s22, 0
    %p91 = por %p89, %p90
    %s93 = sadd.s32 %s92, 1
    %p96 = scmp.eq.s32.totalorder %s16, 1
    %p97 = scmp.ne.s32.totalorder %s92, %s94
    %p98 = scmp.eq.s32.totalorder %s16, 0
    %p99 = por %p97, %p98
    %p100 = scmp.ne.s32.totalorder %s92, %s94
    %p101 = scmp.eq.s32.totalorder %s21, 1
    %p102 = por %p100, %p101
    %p103 = scmp.ne.s32.totalorder %s94, %s95
    %p104 = scmp.eq.s32.totalorder %s21, 0
    %p105 = por %p103, %p104
    %p106 = scmp.ne.s32.totalorder %s94, %s95
    %p107 = scmp.eq.s32.totalorder %s22, 1
    %p108 = por %p106, %p107
    %p110 = scmp.ne.s32.totalorder %s95, %s109
    %p111 = scmp.eq.s32.totalorder %s22, 0
    %p112 = por %p110, %p111
    %s114 = sadd.s32 %s113, 1
    %p117 = scmp.eq.s32.totalorder %s16, 1
    %p118 = scmp.ne.s32.totalorder %s113, %s115
    %p119 = scmp.eq.s32.totalorder %s16, 0
    %p120 = por %p118, %p119
    %p121 = scmp.ne.s32.totalorder %s113, %s115
    %p122 = scmp.eq.s32.totalorder %s21, 1
    %p123 = por %p121, %p122
    %p124 = scmp.ne.s32.totalorder %s115, %s116
    %p125 = scmp.eq.s32.totalorder %s21, 0
    %p126 = por %p124, %p125
    %p127 = scmp.ne.s32.totalorder %s115, %s116
    %p128 = scmp.eq.s32.totalorder %s22, 1
    %p129 = por %p127, %p128
    %p131 = scmp.ne.s32.totalorder %s116, %s130
    %p132 = scmp.eq.s32.totalorder %s22, 0
    %p133 = por %p131, %p132
    %s135 = sadd.s32 %s134, 1
    %p138 = scmp.eq.s32.totalorder %s16, 1
    %p139 = scmp.ne.s32.totalorder %s134, %s136
    %p140 = scmp.eq.s32.totalorder %s16, 0
    %p141 = por %p139, %p140
    %p142 = scmp.ne.s32.totalorder %s134, %s136
    %p143 = scmp.eq.s32.totalorder %s21, 1
    %p144 = por %p142, %p143
    %p145 = scmp.ne.s32.totalorder %s136, %s137
    %p146 = scmp.eq.s32.totalorder %s21, 0
    %p147 = por %p145, %p146
    %p148 = scmp.ne.s32.totalorder %s136, %s137
    %p149 = scmp.eq.s32.totalorder %s22, 1
    %p150 = por %p148, %p149
    %p152 = scmp.ne.s32.totalorder %s137, %s151
    %p153 = scmp.eq.s32.totalorder %s22, 0
    %p154 = por %p152, %p153
    %s156 = sadd.s32 %s155, 1
    %p159 = scmp.eq.s32.totalorder %s16, 1
    %p160 = scmp.ne.s32.totalorder %s155, %s157
    %p161 = scmp.eq.s32.totalorder %s16, 0
    %p162 = por %p160, %p161
    %p163 = scmp.ne.s32.totalorder %s155, %s157
    %p164 = scmp.eq.s32.totalorder %s21, 1
    %p165 = por %p163, %p164
    %p166 = scmp.ne.s32.totalorder %s157, %s158
    %p167 = scmp.eq.s32.totalorder %s21, 0
    %p168 = por %p166, %p167
    %p169 = scmp.ne.s32.totalorder %s157, %s158
    %p170 = scmp.eq.s32.totalorder %s22, 1
    %p171 = por %p169, %p170
    %p173 = scmp.ne.s32.totalorder %s158, %s172
    %p174 = scmp.eq.s32.totalorder %s22, 0
    %p175 = por %p173, %p174
    %s177 = sadd.s32 %s176, 1
    %p180 = scmp.eq.s32.totalorder %s16, 1
    %p181 = scmp.ne.s32.totalorder %s176, %s178
    %p182 = scmp.eq.s32.totalorder %s16, 0
    %p183 = por %p181, %p182
    %p184 = scmp.ne.s32.totalorder %s176, %s178
    %p185 = scmp.eq.s32.totalorder %s21, 1
    %p186 = por %p184, %p185
    %p187 = scmp.ne.s32.totalorder %s178, %s179
    %p188 = scmp.eq.s32.totalorder %s21, 0
    %p189 = por %p187, %p188
    %p190 = scmp.ne.s32.totalorder %s178, %s179
    %p191 = scmp.eq.s32.totalorder %s22, 1
    %p192 = por %p190, %p191
    %p194 = scmp.ne.s32.totalorder %s179, %s193
    %p195 = scmp.eq.s32.totalorder %s22, 0
    %p196 = por %p194, %p195
    %s198 = sadd.s32 %s197, 1
    %p201 = scmp.eq.s32.totalorder %s16, 1
    %p202 = scmp.ne.s32.totalorder %s197, %s199
    %p203 = scmp.eq.s32.totalorder %s16, 0
    %p204 = por %p202, %p203
    %p205 = scmp.ne.s32.totalorder %s197, %s199
    %p206 = scmp.eq.s32.totalorder %s21, 1
    %p207 = por %p205, %p206
    %p208 = scmp.ne.s32.totalorder %s199, %s200
    %p209 = scmp.eq.s32.totalorder %s21, 0
    %p210 = por %p208, %p209
    %p211 = scmp.ne.s32.totalorder %s199, %s200
    %p212 = scmp.eq.s32.totalorder %s22, 1
    %p213 = por %p211, %p212
    %p215 = scmp.ne.s32.totalorder %s200, %s214
    %p216 = scmp.eq.s32.totalorder %s22, 0
    %p217 = por %p215, %p216
    %s219 = sadd.s32 %s218, 1
    %p222 = scmp.eq.s32.totalorder %s16, 1
    %p223 = scmp.ne.s32.totalorder %s218, %s220
    %p224 = scmp.eq.s32.totalorder %s16, 0
    %p225 = por %p223, %p224
    %p226 = scmp.ne.s32.totalorder %s218, %s220
    %p227 = scmp.eq.s32.totalorder %s21, 1
    %p228 = por %p226, %p227
    %p229 = scmp.ne.s32.totalorder %s220, %s221
    %p230 = scmp.eq.s32.totalorder %s21, 0
    %p231 = por %p229, %p230
    %p232 = scmp.ne.s32.totalorder %s220, %s221
    %p233 = scmp.eq.s32.totalorder %s22, 1
    %p234 = por %p232, %p233
    %p236 = scmp.ne.s32.totalorder %s221, %s235
    %p237 = scmp.eq.s32.totalorder %s22, 0
    %p238 = por %p236, %p237
    %s239 = ssub.s32 %s16, %s23
    %p240 = scmp.eq.s32.totalorder %s239, 0
    %s242 = sadd.s32 %s241, 1
    %s243 = scalar_select %p240, %s241, %s242
    %p246 = pneg %p240
    %p247 = scmp.eq.s32.totalorder %s16, 1
    %p248 = por %p246, %p247
    %p249 = scmp.ne.s32.totalorder %s241, %s244
    %p250 = scmp.eq.s32.totalorder %s16, 0
    %p251 = por %p249, %p250
    %p252 = scmp.ne.s32.totalorder %s241, %s244
    %p253 = scmp.eq.s32.totalorder %s21, 1
    %p254 = por %p252, %p253
    %p255 = scmp.ne.s32.totalorder %s244, %s245
    %p256 = scmp.eq.s32.totalorder %s21, 0
    %p257 = por %p255, %p256
    %p258 = scmp.ne.s32.totalorder %s244, %s245
    %p259 = scmp.eq.s32.totalorder %s22, 1
    %p260 = por %p258, %p259
    %p262 = scmp.ne.s32.totalorder %s245, %s261
    %p263 = scmp.eq.s32.totalorder %s22, 0
    %p264 = por %p262, %p263
    %p265 = scmp.le.s32.totalorder 1, %s16
    %p266 = scmp.lt.s32.totalorder %s16, 3
    %p267 = pnand %p265, %p266
    %p268 = pneg %p267
    // Predicated region
    $region9: #{super_resolution_forward.1} parent=5 // pred_check
      _
    $region10: #{super_resolution_forward.1} parent=5 // pred_check_branch
      %270 = sbr.rel (%p267) target = $region12
    $region11: #{super_resolution_forward.1} parent=5 // pred_region
      %s271 = ssub.s32 %s16, 1
      // Predicated region
      $region13: #{super_resolution_forward.1} parent=11 // pred_check
        %p272 = pneg %p37
      $region14: #{super_resolution_forward.1} parent=11 // pred_check_branch
        %274 = sbr.rel (%p272) target = $region16
      $region15: #{super_resolution_forward.1} parent=11 // pred_region
        _
      $region16: #{super_resolution_forward.1} parent=11 // pred_fallthru
        _
      // Predicated region
      $region17: #{super_resolution_forward.1} parent=11 // pred_check
        %p275 = pneg %p84
      $region18: #{super_resolution_forward.1} parent=11 // pred_check_branch
        %277 = sbr.rel (%p275) target = $region20
      $region19: #{super_resolution_forward.1} parent=11 // pred_region
        _
      $region20: #{super_resolution_forward.1} parent=11 // pred_fallthru
        _
      // Predicated region
      $region21: #{super_resolution_forward.1} parent=11 // pred_check
        %p278 = pneg %p105
      $region22: #{super_resolution_forward.1} parent=11 // pred_check_branch
        %280 = sbr.rel (%p278) target = $region24
      $region23: #{super_resolution_forward.1} parent=11 // pred_region
        _
      $region24: #{super_resolution_forward.1} parent=11 // pred_fallthru
        _
      // Predicated region
      $region25: #{super_resolution_forward.1} parent=11 // pred_check
        %p281 = pneg %p126
      $region26: #{super_resolution_forward.1} parent=11 // pred_check_branch
        %283 = sbr.rel (%p281) target = $region28
      $region27: #{super_resolution_forward.1} parent=11 // pred_region
        _
      $region28: #{super_resolution_forward.1} parent=11 // pred_fallthru
        _
      // Predicated region
      $region29: #{super_resolution_forward.1} parent=11 // pred_check
        %p284 = pneg %p147
      $region30: #{super_resolution_forward.1} parent=11 // pred_check_branch
        %286 = sbr.rel (%p284) target = $region32
      $region31: #{super_resolution_forward.1} parent=11 // pred_region
        _
      $region32: #{super_resolution_forward.1} parent=11 // pred_fallthru
        _
      // Predicated region
      $region33: #{super_resolution_forward.1} parent=11 // pred_check
        %p287 = pneg %p168
      $region34: #{super_resolution_forward.1} parent=11 // pred_check_branch
        %289 = sbr.rel (%p287) target = $region36
      $region35: #{super_resolution_forward.1} parent=11 // pred_region
        _
      $region36: #{super_resolution_forward.1} parent=11 // pred_fallthru
        _
      // Predicated region
      $region37: #{super_resolution_forward.1} parent=11 // pred_check
        %p290 = pneg %p189
      $region38: #{super_resolution_forward.1} parent=11 // pred_check_branch
        %292 = sbr.rel (%p290) target = $region40
      $region39: #{super_resolution_forward.1} parent=11 // pred_region
        _
      $region40: #{super_resolution_forward.1} parent=11 // pred_fallthru
        _
      // Predicated region
      $region41: #{super_resolution_forward.1} parent=11 // pred_check
        %p293 = pneg %p210
      $region42: #{super_resolution_forward.1} parent=11 // pred_check_branch
        %295 = sbr.rel (%p293) target = $region44
      $region43: #{super_resolution_forward.1} parent=11 // pred_region
        _
      $region44: #{super_resolution_forward.1} parent=11 // pred_fallthru
        _
      // Predicated region
      $region45: #{super_resolution_forward.1} parent=11 // pred_check
        %p296 = pneg %p231
      $region46: #{super_resolution_forward.1} parent=11 // pred_check_branch
        %298 = sbr.rel (%p296) target = $region48
      $region47: #{super_resolution_forward.1} parent=11 // pred_region
        _
      $region48: #{super_resolution_forward.1} parent=11 // pred_fallthru
        _
    $region12: #{super_resolution_forward.1} parent=5 // pred_fallthru
      _
    %p299 = scmp.lt.s32.totalorder %s16, 2
    // Predicated region
    $region49: #{super_resolution_forward.1} parent=5 // pred_check
      %p300 = pneg %p299
    $region50: #{super_resolution_forward.1} parent=5 // pred_check_branch
      %302 = sbr.rel (%p300) target = $region52
    $region51: #{super_resolution_forward.1} parent=5 // pred_region
      // Predicated region
      $region53: #{super_resolution_forward.1} parent=51 // pred_check
        %p303 = pneg %p57
      $region54: #{super_resolution_forward.1} parent=51 // pred_check_branch
        %305 = sbr.rel (%p303) target = $region56
      $region55: #{super_resolution_forward.1} parent=51 // pred_region
        %p306 = scmp.lt.s32.totalorder %s16, 1
        %s307 = scalar_select %p306, %s16, 1
        %s308 = smul.addr %s307, 36
        %s309 = smul.addr %s308, 4
        %s310 = scalar_lea.vmem %s1, %s309
      $region56: #{super_resolution_forward.1} parent=51 // pred_fallthru
        _
    $region52: #{super_resolution_forward.1} parent=5 // pred_fallthru
      _
    %p311 = scmp.le.s32.totalorder 1, %s16
    %p312 = scmp.lt.s32.totalorder %s16, 3
    %p313 = pnand %p311, %p312
    %p314 = pneg %p313
    // Predicated region
    $region57: #{super_resolution_forward.1} parent=5 // pred_check
      _
    $region58: #{super_resolution_forward.1} parent=5 // pred_check_branch
      %316 = sbr.rel (%p313) target = $region60
    $region59: #{super_resolution_forward.1} parent=5 // pred_region
      %s317 = ssub.s32 %s16, 1
      %p318 = pneg %p37
      %p319 = pneg %p34
      %p320 = scmp.lt.s32.totalorder %s21, 1
      %s321 = scalar_select %p320, %s21, 1
      %s322 = smul.addr %s321, 36
      %s323 = smul.addr %s322, 4
      %s324 = scalar_lea.vmem %s1, %s323
      %p325 = pneg %p63
      %p326 = pneg %p60
      %p327 = pneg %p84
      %p328 = pneg %p81
      %p329 = pneg %p105
      %p330 = pneg %p102
      %p331 = pneg %p126
      %p332 = pneg %p123
      %p333 = pneg %p147
      %p334 = pneg %p144
      %p335 = pneg %p168
      %p336 = pneg %p165
      %p337 = pneg %p189
      %p338 = pneg %p186
      %p339 = pneg %p210
      %p340 = pneg %p207
      %p341 = pneg %p231
      %p342 = pneg %p228
      %p343 = pneg %p257
      %p344 = pneg %p254
      %p345 = scmp.lt.s32.totalorder %s21, 1
      %s346 = scalar_select %p345, %s21, 1
      %s347 = smul.addr %s346, 36
      %s348 = smul.addr %s347, 8
      %s349 = scalar_lea.vmem %s10, %s348
      %p350 = scmp.lt.s32.totalorder %s21, 1
      %s351 = scalar_select %p350, %s21, 1
      %s352 = smul.addr %s351, 36
      %s353 = smul.addr %s352, 4
      %s354 = scalar_lea.vmem %s1, %s353
      %p355 = scmp.lt.s32.totalorder %s21, 1
      %s356 = scalar_select %p355, %s21, 1
      %s357 = smul.addr %s356, 36
      %s358 = smul.addr %s357, 8
      %s359 = scalar_lea.vmem %s10, %s358
      %vm361 = vcmask 523264
      %362 = vst.msk [vmem:[#allocation2] sm:$0xff] %vm361, 0.0
      %363 = vst.msk [vmem:[#allocation2 + $0x8] sm:$0xff] %vm361, 0.0
      %364 = vst.msk [vmem:[#allocation2 + $0x10] sm:$0xff] %vm361, 0.0
      %365 = vst.msk [vmem:[#allocation2 + $0x18] sm:$0xff] %vm361, 0.0
      %366 = vst.msk [vmem:[#allocation2 + $0x20] sm:$0xff] %vm361, 0.0
      %367 = vst.msk [vmem:[#allocation2 + $0x28] sm:$0xff] %vm361, 0.0
      %368 = vst.msk [vmem:[#allocation2 + $0x30] sm:$0xff] %vm361, 0.0
      %369 = vst.msk [vmem:[#allocation2 + $0x38] sm:$0xff] %vm361, 0.0
      %370 = vst.msk [vmem:[#allocation2 + $0x40] sm:$0xff] %vm361, 0.0
      %371 = vst.msk [vmem:[#allocation2 + $0x48] sm:$0xff] %vm361, 0.0
      %372 = vst.msk [vmem:[#allocation2 + $0x50] sm:$0xff] %vm361, 0.0
      %373 = vst.msk [vmem:[#allocation2 + $0x58] sm:$0xff] %vm361, 0.0
      %374 = vst.msk [vmem:[#allocation2 + $0x60] sm:$0xff] %vm361, 0.0
      %375 = vst.msk [vmem:[#allocation2 + $0x68] sm:$0xff] %vm361, 0.0
      %376 = vst.msk [vmem:[#allocation2 + $0x70] sm:$0xff] %vm361, 0.0
      %377 = vst.msk [vmem:[#allocation2 + $0x78] sm:$0xff] %vm361, 0.0
      %378 = vst.msk [vmem:[#allocation2 + $0x80] sm:$0xff] %vm361, 0.0
      %379 = vst.msk [vmem:[#allocation2 + $0x88] sm:$0xff] %vm361, 0.0
      %380 = vst.msk [vmem:[#allocation2 + $0x90] sm:$0xff] %vm361, 0.0
      %381 = vst.msk [vmem:[#allocation2 + $0x98] sm:$0xff] %vm361, 0.0
      %382 = vst.msk [vmem:[#allocation2 + $0xa0] sm:$0xff] %vm361, 0.0
      %383 = vst.msk [vmem:[#allocation2 + $0xa8] sm:$0xff] %vm361, 0.0
      %384 = vst.msk [vmem:[#allocation2 + $0xb0] sm:$0xff] %vm361, 0.0
      %385 = vst.msk [vmem:[#allocation2 + $0xb8] sm:$0xff] %vm361, 0.0
      %386 = vst.msk [vmem:[#allocation2 + $0xc0] sm:$0xff] %vm361, 0.0
      %387 = vst.msk [vmem:[#allocation2 + $0xc8] sm:$0xff] %vm361, 0.0
      %388 = vst.msk [vmem:[#allocation2 + $0xd0] sm:$0xff] %vm361, 0.0
      %389 = vst.msk [vmem:[#allocation2 + $0xd8] sm:$0xff] %vm361, 0.0
      %390 = vst.msk [vmem:[#allocation2 + $0xe0] sm:$0xff] %vm361, 0.0
      %391 = vst.msk [vmem:[#allocation2 + $0xe8] sm:$0xff] %vm361, 0.0
      %392 = vst.msk [vmem:[#allocation2 + $0xf0] sm:$0xff] %vm361, 0.0
      %393 = vst.msk [vmem:[#allocation2 + $0xf8] sm:$0xff] %vm361, 0.0
      %394 = vst.msk [vmem:[#allocation2 + $0x100] sm:$0xff] %vm361, 0.0
      %395 = vst.msk [vmem:[#allocation2 + $0x108] sm:$0xff] %vm361, 0.0
      %396 = vst.msk [vmem:[#allocation2 + $0x110] sm:$0xff] %vm361, 0.0
      %397 = vst.msk [vmem:[#allocation2 + $0x118] sm:$0xff] %vm361, 0.0
      %398 = vst.msk [vmem:[#allocation2 + $0x120] sm:$0xff] %vm361, 0.0
      %399 = vst.msk [vmem:[#allocation2 + $0x128] sm:$0xff] %vm361, 0.0
      %400 = vst.msk [vmem:[#allocation2 + $0x130] sm:$0xff] %vm361, 0.0
      %401 = vst.msk [vmem:[#allocation2 + $0x138] sm:$0xff] %vm361, 0.0
      %402 = vst.msk [vmem:[#allocation2 + $0x140] sm:$0xff] %vm361, 0.0
      %v403 = vld [vmem:[%s354] sm:$0xf]
      %v404 = vld [vmem:[%s354 + $0x4] sm:$0xf]
      %v405 = vld [vmem:[%s354 + $0x8] sm:$0xf]
      %v406 = vld [vmem:[%s354 + $0xc] sm:$0xf]
      %v407 = vld [vmem:[%s354 + $0x10] sm:$0xf]
      %v408 = vld [vmem:[%s354 + $0x14] sm:$0xf]
      %v409 = vld [vmem:[%s354 + $0x18] sm:$0xf]
      %v410 = vld [vmem:[%s354 + $0x1c] sm:$0xf]
      %v411 = vld [vmem:[%s354 + $0x20] sm:$0xf]
      %v412 = vld [vmem:[%s354 + $0x24] sm:$0xf]
      %v413 = vld [vmem:[%s354 + $0x28] sm:$0xf]
      %v414 = vld [vmem:[%s354 + $0x2c] sm:$0xf]
      %v415 = vld [vmem:[%s354 + $0x30] sm:$0xf]
      %v416 = vld [vmem:[%s354 + $0x34] sm:$0xf]
      %v417 = vld [vmem:[%s354 + $0x38] sm:$0xf]
      %v418 = vld [vmem:[%s354 + $0x3c] sm:$0xf]
      %v419 = vld [vmem:[%s354 + $0x40] sm:$0xf]
      %v420 = vld [vmem:[%s354 + $0x44] sm:$0xf]
      %v421 = vld [vmem:[%s354 + $0x48] sm:$0xf]
      %v422 = vld [vmem:[%s354 + $0x4c] sm:$0xf]
      %v423 = vld [vmem:[%s354 + $0x50] sm:$0xf]
      %v424 = vld [vmem:[%s354 + $0x54] sm:$0xf]
      %v425 = vld [vmem:[%s354 + $0x58] sm:$0xf]
      %v426 = vld [vmem:[%s354 + $0x5c] sm:$0xf]
      %v427 = vld [vmem:[%s354 + $0x60] sm:$0xf]
      %v428 = vld [vmem:[%s354 + $0x64] sm:$0xf]
      %v429 = vld [vmem:[%s354 + $0x68] sm:$0xf]
      %v430 = vld [vmem:[%s354 + $0x6c] sm:$0xf]
      %v431 = vld [vmem:[%s354 + $0x70] sm:$0xf]
      %v432 = vld [vmem:[%s354 + $0x74] sm:$0xf]
      %v433 = vld [vmem:[%s354 + $0x78] sm:$0xf]
      %v434 = vld [vmem:[%s354 + $0x7c] sm:$0xf]
      %v435 = vld [vmem:[%s354 + $0x80] sm:$0xf]
      %v436 = vld [vmem:[%s354 + $0x84] sm:$0xf]
      %v437 = vld [vmem:[%s354 + $0x88] sm:$0xf]
      %v438 = vld [vmem:[%s354 + $0x8c] sm:$0xf]
      %v439 = vld [vmem:[%s2] sm:$0xf]
      %v440 = vld [vmem:[%s2 + $0x4] sm:$0xf]
      %v441 = vld [vmem:[%s2 + $0x8] sm:$0xf]
      %v442 = vld [vmem:[%s2 + $0xc] sm:$0xf]
      %v443 = vld [vmem:[%s3] sm:$0x1]
      %v445 = vlaneseq
      %v446 = vshrl.u32 %v445, 7
      %v447 = vsub.s32 0, %v446
      %v448 = vrot.slane %v443, %v447
      %v486 = vunpack.c.l.b16 %v403
      %v487 = vunpack.c.l.b16 %v404
      %v488 = vunpack.c.l.b16 %v405
      %v489 = vunpack.c.l.b16 %v406
      %v490 = vunpack.c.l.b16 %v407
      %v491 = vunpack.c.l.b16 %v408
      %v492 = vunpack.c.l.b16 %v409
      %v493 = vunpack.c.l.b16 %v410
      %v494 = vunpack.c.l.b16 %v411
      %v495 = vunpack.c.l.b16 %v412
      %v496 = vunpack.c.l.b16 %v413
      %v497 = vunpack.c.l.b16 %v414
      %v498 = vunpack.c.l.b16 %v415
      %v499 = vunpack.c.l.b16 %v416
      %v500 = vunpack.c.l.b16 %v417
      %v501 = vunpack.c.l.b16 %v418
      %v502 = vunpack.c.l.b16 %v419
      %v503 = vunpack.c.l.b16 %v420
      %v504 = vunpack.c.l.b16 %v421
      %v505 = vunpack.c.l.b16 %v422
      %v506 = vunpack.c.l.b16 %v423
      %v507 = vunpack.c.l.b16 %v424
      %v508 = vunpack.c.l.b16 %v425
      %v509 = vunpack.c.l.b16 %v426
      %v510 = vunpack.c.l.b16 %v427
      %v511 = vunpack.c.l.b16 %v428
      %v512 = vunpack.c.l.b16 %v429
      %v513 = vunpack.c.l.b16 %v430
      %v514 = vunpack.c.l.b16 %v431
      %v515 = vunpack.c.l.b16 %v432
      %v516 = vunpack.c.l.b16 %v433
      %v517 = vunpack.c.l.b16 %v434
      %v518 = vunpack.c.l.b16 %v435
      %v519 = vunpack.c.l.b16 %v436
      %v520 = vunpack.c.l.b16 %v437
      %v521 = vunpack.c.l.b16 %v438
      %v522 = vpack.c.b16 %v487, %v486
      %v523 = vpack.c.b16 %v489, %v488
      %v524 = vpack.c.b16 %v491, %v490
      %v525 = vpack.c.b16 %v493, %v492
      %v526 = vpack.c.b16 %v495, %v494
      %v527 = vpack.c.b16 %v497, %v496
      %v528 = vpack.c.b16 %v499, %v498
      %v529 = vpack.c.b16 %v501, %v500
      %v530 = vpack.c.b16 %v503, %v502
      %v531 = vpack.c.b16 %v505, %v504
      %v532 = vpack.c.b16 %v507, %v506
      %v533 = vpack.c.b16 %v509, %v508
      %v534 = vpack.c.b16 %v511, %v510
      %v535 = vpack.c.b16 %v513, %v512
      %v536 = vpack.c.b16 %v515, %v514
      %v537 = vpack.c.b16 %v517, %v516
      %v538 = vpack.c.b16 %v519, %v518
      %v539 = vpack.c.b16 %v521, %v520
      %v544 = vunpack.c.l.b16 %v439
      %v545 = vunpack.c.l.b16 %v440
      %v546 = vunpack.c.l.b16 %v441
      %v547 = vunpack.c.l.b16 %v442
      %v548 = vpack.c.b16 %v545, %v544
      %v549 = vpack.c.b16 %v547, %v546
      %vm552 = vcmask 261120
      %v554 = vsel %vm552, %v522, 0
      %v557 = vsel %vm552, %v523, 0
      %v560 = vsel %vm552, %v524, 0
      %v563 = vsel %vm552, %v525, 0
      %v566 = vsel %vm552, %v526, 0
      %v569 = vsel %vm552, %v527, 0
      %v572 = vsel %vm552, %v528, 0
      %v575 = vsel %vm552, %v529, 0
      %v578 = vsel %vm552, %v530, 0
      %v581 = vsel %vm552, %v531, 0
      %v584 = vsel %vm552, %v532, 0
      %v587 = vsel %vm552, %v533, 0
      %v590 = vsel %vm552, %v534, 0
      %v593 = vsel %vm552, %v535, 0
      %v596 = vsel %vm552, %v536, 0
      %v599 = vsel %vm552, %v537, 0
      %v602 = vsel %vm552, %v538, 0
      %v605 = vsel %vm552, %v539, 0
      %607 = vmatprep.subr.bf16.mxu0 0
      %608 = vmatpush1.bf16.msra.mxu0 %v548
      %609 = vmatprep.subr.bf16.mxu0 0
      %610 = vmatpush1.bf16.msra.mxu0 %v549
      %611 = vmatprep.subr.bf16.mxu0 0
      %612 = vmatpush1.bf16.msra.mxu0 0
      %613 = vmatprep.subr.bf16.mxu0 0
      %614 = vmatpush1.bf16.msra.mxu0 0
      %615 = vmatprep.subr.bf16.mxu0 0
      %616 = vmatpush1.bf16.msra.mxu0 0
      %617 = vmatprep.subr.bf16.mxu0 0
      %618 = vmatpush1.bf16.msra.mxu0 0
      %619 = vmatprep.subr.bf16.mxu0 0
      %620 = vmatpush1.bf16.msra.mxu0 0
      %621 = vmatprep.subr.bf16.mxu0 0
      %622 = vmatpush1.bf16.msra.mxu0 0
      %623 = vmatprep.subr.bf16.mxu0 0
      %624 = vmatpush1.bf16.msra.mxu0 0
      %625 = vmatprep.subr.bf16.mxu0 0
      %626 = vmatpush1.bf16.msra.mxu0 0
      %627 = vmatprep.subr.bf16.mxu0 0
      %628 = vmatpush1.bf16.msra.mxu0 0
      %629 = vmatprep.subr.bf16.mxu0 0
      %630 = vmatpush1.bf16.msra.mxu0 0
      %631 = vmatprep.subr.bf16.mxu0 0
      %632 = vmatpush1.bf16.msra.mxu0 0
      %633 = vmatprep.subr.bf16.mxu0 0
      %634 = vmatpush1.bf16.msra.mxu0 0
      %635 = vmatprep.subr.bf16.mxu0 0
      %636 = vmatpush1.bf16.msra.mxu0 0
      %637 = vmatprep.subr.bf16.mxu0 0
      %638 = vmatpush1.bf16.msra.mxu0 0
      %639 = vmatprep.mubr.bf16.mxu0 0
      %640 = vmatmul.mubr.bf16.gmra.mrb[0].mxu0 %v554
      %v641 = vpop.f32.mrb[0].mxu0
      %v642 = vadd.f32 %v448, %v641
      %v643 = vpop.f32.mrb[0].mxu0
      %v644 = vpop.f32.mrb[0].mxu0
      %v645 = vadd.f32 %v448, %v644
      %v646 = vpop.f32.mrb[0].mxu0
      %647 = vmatprep.mubr.bf16.mxu0 0
      %648 = vmatmul.mubr.bf16.gmra.mrb[0].mxu0 %v557
      %v649 = vpop.f32.mrb[0].mxu0
      %v650 = vadd.f32 %v448, %v649
      %v651 = vpop.f32.mrb[0].mxu0
      %v652 = vpop.f32.mrb[0].mxu0
      %v653 = vadd.f32 %v448, %v652
      %v654 = vpop.f32.mrb[0].mxu0
      %655 = vmatprep.mubr.bf16.mxu0 0
      %656 = vmatmul.mubr.bf16.gmra.mrb[0].mxu0 %v560
      %v657 = vpop.f32.mrb[0].mxu0
      %v658 = vadd.f32 %v448, %v657
      %v659 = vpop.f32.mrb[0].mxu0
      %v660 = vpop.f32.mrb[0].mxu0
      %v661 = vadd.f32 %v448, %v660
      %v662 = vpop.f32.mrb[0].mxu0
      %663 = vmatprep.mubr.bf16.mxu0 0
      %664 = vmatmul.mubr.bf16.gmra.mrb[0].mxu0 %v563
      %v665 = vpop.f32.mrb[0].mxu0
      %v666 = vadd.f32 %v448, %v665
      %v667 = vpop.f32.mrb[0].mxu0
      %v668 = vpop.f32.mrb[0].mxu0
      %v669 = vadd.f32 %v448, %v668
      %v670 = vpop.f32.mrb[0].mxu0
      %671 = vmatprep.mubr.bf16.mxu0 0
      %672 = vmatmul.mubr.bf16.gmra.mrb[0].mxu0 %v566
      %v673 = vpop.f32.mrb[0].mxu0
      %v674 = vadd.f32 %v448, %v673
      %v675 = vpop.f32.mrb[0].mxu0
      %v676 = vpop.f32.mrb[0].mxu0
      %v677 = vadd.f32 %v448, %v676
      %v678 = vpop.f32.mrb[0].mxu0
      %679 = vmatprep.mubr.bf16.mxu0 0
      %680 = vmatmul.mubr.bf16.gmra.mrb[0].mxu0 %v569
      %v681 = vpop.f32.mrb[0].mxu0
      %v682 = vadd.f32 %v448, %v681
      %v683 = vpop.f32.mrb[0].mxu0
      %v684 = vpop.f32.mrb[0].mxu0
      %v685 = vadd.f32 %v448, %v684
      %v686 = vpop.f32.mrb[0].mxu0
      %687 = vmatprep.mubr.bf16.mxu0 0
      %688 = vmatmul.mubr.bf16.gmra.mrb[0].mxu0 %v572
      %v689 = vpop.f32.mrb[0].mxu0
      %v690 = vadd.f32 %v448, %v689
      %v691 = vpop.f32.mrb[0].mxu0
      %v692 = vpop.f32.mrb[0].mxu0
      %v693 = vadd.f32 %v448, %v692
      %v694 = vpop.f32.mrb[0].mxu0
      %695 = vmatprep.mubr.bf16.mxu0 0
      %696 = vmatmul.mubr.bf16.gmra.mrb[0].mxu0 %v575
      %v697 = vpop.f32.mrb[0].mxu0
      %v698 = vadd.f32 %v448, %v697
      %v699 = vpop.f32.mrb[0].mxu0
      %v700 = vpop.f32.mrb[0].mxu0
      %v701 = vadd.f32 %v448, %v700
      %v702 = vpop.f32.mrb[0].mxu0
      %703 = vmatprep.mubr.bf16.mxu0 0
      %704 = vmatmul.mubr.bf16.gmra.mrb[0].mxu0 %v578
      %v705 = vpop.f32.mrb[0].mxu0
      %v706 = vadd.f32 %v448, %v705
      %v707 = vpop.f32.mrb[0].mxu0
      %v708 = vpop.f32.mrb[0].mxu0
      %v709 = vadd.f32 %v448, %v708
      %v710 = vpop.f32.mrb[0].mxu0
      %711 = vmatprep.mubr.bf16.mxu0 0
      %712 = vmatmul.mubr.bf16.gmra.mrb[0].mxu0 %v581
      %v713 = vpop.f32.mrb[0].mxu0
      %v714 = vadd.f32 %v448, %v713
      %v715 = vpop.f32.mrb[0].mxu0
      %v716 = vpop.f32.mrb[0].mxu0
      %v717 = vadd.f32 %v448, %v716
      %v718 = vpop.f32.mrb[0].mxu0
      %719 = vmatprep.mubr.bf16.mxu0 0
      %720 = vmatmul.mubr.bf16.gmra.mrb[0].mxu0 %v584
      %v721 = vpop.f32.mrb[0].mxu0
      %v722 = vadd.f32 %v448, %v721
      %v723 = vpop.f32.mrb[0].mxu0
      %v724 = vpop.f32.mrb[0].mxu0
      %v725 = vadd.f32 %v448, %v724
      %v726 = vpop.f32.mrb[0].mxu0
      %727 = vmatprep.mubr.bf16.mxu0 0
      %728 = vmatmul.mubr.bf16.gmra.mrb[0].mxu0 %v587
      %v729 = vpop.f32.mrb[0].mxu0
      %v730 = vadd.f32 %v448, %v729
      %v731 = vpop.f32.mrb[0].mxu0
      %v732 = vpop.f32.mrb[0].mxu0
      %v733 = vadd.f32 %v448, %v732
      %v734 = vpop.f32.mrb[0].mxu0
      %735 = vmatprep.mubr.bf16.mxu0 0
      %736 = vmatmul.mubr.bf16.gmra.mrb[0].mxu0 %v590
      %v737 = vpop.f32.mrb[0].mxu0
      %v738 = vadd.f32 %v448, %v737
      %v739 = vpop.f32.mrb[0].mxu0
      %v740 = vpop.f32.mrb[0].mxu0
      %v741 = vadd.f32 %v448, %v740
      %v742 = vpop.f32.mrb[0].mxu0
      %743 = vmatprep.mubr.bf16.mxu0 0
      %744 = vmatmul.mubr.bf16.gmra.mrb[0].mxu0 %v593
      %v745 = vpop.f32.mrb[0].mxu0
      %v746 = vadd.f32 %v448, %v745
      %v747 = vpop.f32.mrb[0].mxu0
      %v748 = vpop.f32.mrb[0].mxu0
      %v749 = vadd.f32 %v448, %v748
      %v750 = vpop.f32.mrb[0].mxu0
      %751 = vmatprep.mubr.bf16.mxu0 0
      %752 = vmatmul.mubr.bf16.gmra.mrb[0].mxu0 %v596
      %v753 = vpop.f32.mrb[0].mxu0
      %v754 = vadd.f32 %v448, %v753
      %v755 = vpop.f32.mrb[0].mxu0
      %v756 = vpop.f32.mrb[0].mxu0
      %v757 = vadd.f32 %v448, %v756
      %v758 = vpop.f32.mrb[0].mxu0
      %759 = vmatprep.mubr.bf16.mxu0 0
      %760 = vmatmul.mubr.bf16.gmra.mrb[0].mxu0 %v599
      %v761 = vpop.f32.mrb[0].mxu0
      %v762 = vadd.f32 %v448, %v761
      %v763 = vpop.f32.mrb[0].mxu0
      %v764 = vpop.f32.mrb[0].mxu0
      %v765 = vadd.f32 %v448, %v764
      %v766 = vpop.f32.mrb[0].mxu0
      %767 = vmatprep.mubr.bf16.mxu0 0
      %768 = vmatmul.mubr.bf16.gmra.mrb[0].mxu0 %v602
      %v769 = vpop.f32.mrb[0].mxu0
      %v770 = vadd.f32 %v448, %v769
      %v771 = vpop.f32.mrb[0].mxu0
      %v772 = vpop.f32.mrb[0].mxu0
      %v773 = vadd.f32 %v448, %v772
      %v774 = vpop.f32.mrb[0].mxu0
      %775 = vmatprep.mubr.bf16.mxu0 0
      %776 = vmatmul.mubr.bf16.gmra.mrb[0].mxu0 %v605
      %v777 = vpop.f32.mrb[0].mxu0
      %v778 = vadd.f32 %v448, %v777
      %v779 = vpop.f32.mrb[0].mxu0
      %v780 = vpop.f32.mrb[0].mxu0
      %v781 = vadd.f32 %v448, %v780
      %v782 = vpop.f32.mrb[0].mxu0
      %783 = vdwg.mxu0
      %v784 = vmax.f32 %v642, 0.0
      %v785 = vmax.f32 %v645, 0.0
      %v786 = vmax.f32 %v650, 0.0
      %v787 = vmax.f32 %v653, 0.0
      %v788 = vmax.f32 %v658, 0.0
      %v789 = vmax.f32 %v661, 0.0
      %v790 = vmax.f32 %v666, 0.0
      %v791 = vmax.f32 %v669, 0.0
      %v792 = vmax.f32 %v674, 0.0
      %v793 = vmax.f32 %v677, 0.0
      %v794 = vmax.f32 %v682, 0.0
      %v795 = vmax.f32 %v685, 0.0
      %v796 = vmax.f32 %v690, 0.0
      %v797 = vmax.f32 %v693, 0.0
      %v798 = vmax.f32 %v698, 0.0
      %v799 = vmax.f32 %v701, 0.0
      %v800 = vmax.f32 %v706, 0.0
      %v801 = vmax.f32 %v709, 0.0
      %v802 = vmax.f32 %v714, 0.0
      %v803 = vmax.f32 %v717, 0.0
      %v804 = vmax.f32 %v722, 0.0
      %v805 = vmax.f32 %v725, 0.0
      %v806 = vmax.f32 %v730, 0.0
      %v807 = vmax.f32 %v733, 0.0
      %v808 = vmax.f32 %v738, 0.0
      %v809 = vmax.f32 %v741, 0.0
      %v810 = vmax.f32 %v746, 0.0
      %v811 = vmax.f32 %v749, 0.0
      %v812 = vmax.f32 %v754, 0.0
      %v813 = vmax.f32 %v757, 0.0
      %v814 = vmax.f32 %v762, 0.0
      %v815 = vmax.f32 %v765, 0.0
      %v816 = vmax.f32 %v770, 0.0
      %v817 = vmax.f32 %v773, 0.0
      %v818 = vmax.f32 %v778, 0.0
      %v819 = vmax.f32 %v781, 0.0
      %v820 = vld [vmem:[%s0] sm:$0xff]
      %v821 = vld [vmem:[%s0 + $0x8] sm:$0xff]
      %v822 = vld [vmem:[%s0 + $0x10] sm:$0xff]
      %v823 = vld [vmem:[%s0 + $0x18] sm:$0xff]
      %v824 = vld [vmem:[%s0 + $0x20] sm:$0xff]
      %v825 = vld [vmem:[%s0 + $0x28] sm:$0xff]
      %v826 = vld [vmem:[%s0 + $0x30] sm:$0xff]
      %v827 = vld [vmem:[%s0 + $0x38] sm:$0xff]
      %v828 = vld [vmem:[%s0 + $0x40] sm:$0xff]
      %v829 = vld [vmem:[%s0 + $0x48] sm:$0xff]
      %v830 = vld [vmem:[%s0 + $0x50] sm:$0xff]
      %v831 = vld [vmem:[%s0 + $0x58] sm:$0xff]
      %v832 = vld [vmem:[%s0 + $0x60] sm:$0xff]
      %v833 = vld [vmem:[%s0 + $0x68] sm:$0xff]
      %v834 = vld [vmem:[%s0 + $0x70] sm:$0xff]
      %v835 = vld [vmem:[%s0 + $0x78] sm:$0xff]
      %v836 = vld [vmem:[%s0 + $0x80] sm:$0xff]
      %v837 = vld [vmem:[%s0 + $0x88] sm:$0xff]
      %v838 = vld [vmem:[%s0 + $0x90] sm:$0xff]
      %v839 = vld [vmem:[%s0 + $0x98] sm:$0xff]
      %v840 = vld [vmem:[%s0 + $0xa0] sm:$0xff]
      %v841 = vld [vmem:[%s0 + $0xa8] sm:$0xff]
      %v842 = vld [vmem:[%s0 + $0xb0] sm:$0xff]
      %v843 = vld [vmem:[%s0 + $0xb8] sm:$0xff]
      %v844 = vld [vmem:[%s0 + $0xc0] sm:$0xff]
      %v845 = vld [vmem:[%s0 + $0xc8] sm:$0xff]
      %v846 = vld [vmem:[%s0 + $0xd0] sm:$0xff]
      %v847 = vld [vmem:[%s0 + $0xd8] sm:$0xff]
      %v848 = vld [vmem:[%s0 + $0xe0] sm:$0xff]
      %v849 = vld [vmem:[%s0 + $0xe8] sm:$0xff]
      %v850 = vld [vmem:[%s0 + $0xf0] sm:$0xff]
      %v851 = vld [vmem:[%s0 + $0xf8] sm:$0xff]
      %v852 = vld [vmem:[%s0 + $0x100] sm:$0xff]
      %v853 = vld [vmem:[%s0 + $0x108] sm:$0xff]
      %v854 = vld [vmem:[%s0 + $0x110] sm:$0xff]
      %v855 = vld [vmem:[%s0 + $0x118] sm:$0xff]
      %857 = vset.pattern.permute.xlu0 0
      %858 = vperm.xlu0 %857, %v820
      %v859 = vpop.permute.xlu0 %858
      %862 = vset.pattern.permute.xlu0 0
      %863 = vperm.xlu0 %862, %v821
      %v864 = vpop.permute.xlu0 %863
      %867 = vset.pattern.permute.xlu0 0
      %868 = vperm.xlu0 %867, %v822
      %v869 = vpop.permute.xlu0 %868
      %872 = vset.pattern.permute.xlu0 0
      %873 = vperm.xlu0 %872, %v823
      %v874 = vpop.permute.xlu0 %873
      %877 = vset.pattern.permute.xlu0 0
      %878 = vperm.xlu0 %877, %v824
      %v879 = vpop.permute.xlu0 %878
      %882 = vset.pattern.permute.xlu0 0
      %883 = vperm.xlu0 %882, %v825
      %v884 = vpop.permute.xlu0 %883
      %887 = vset.pattern.permute.xlu0 0
      %888 = vperm.xlu0 %887, %v826
      %v889 = vpop.permute.xlu0 %888
      %892 = vset.pattern.permute.xlu0 0
      %893 = vperm.xlu0 %892, %v827
      %v894 = vpop.permute.xlu0 %893
      %897 = vset.pattern.permute.xlu0 0
      %898 = vperm.xlu0 %897, %v828
      %v899 = vpop.permute.xlu0 %898
      %902 = vset.pattern.permute.xlu0 0
      %903 = vperm.xlu0 %902, %v829
      %v904 = vpop.permute.xlu0 %903
      %907 = vset.pattern.permute.xlu0 0
      %908 = vperm.xlu0 %907, %v830
      %v909 = vpop.permute.xlu0 %908
      %912 = vset.pattern.permute.xlu0 0
      %913 = vperm.xlu0 %912, %v831
      %v914 = vpop.permute.xlu0 %913
      %917 = vset.pattern.permute.xlu0 0
      %918 = vperm.xlu0 %917, %v832
      %v919 = vpop.permute.xlu0 %918
      %922 = vset.pattern.permute.xlu0 0
      %923 = vperm.xlu0 %922, %v833
      %v924 = vpop.permute.xlu0 %923
      %927 = vset.pattern.permute.xlu0 0
      %928 = vperm.xlu0 %927, %v834
      %v929 = vpop.permute.xlu0 %928
      %932 = vset.pattern.permute.xlu0 0
      %933 = vperm.xlu0 %932, %v835
      %v934 = vpop.permute.xlu0 %933
      %937 = vset.pattern.permute.xlu0 0
      %938 = vperm.xlu0 %937, %v836
      %v939 = vpop.permute.xlu0 %938
      %942 = vset.pattern.permute.xlu0 0
      %943 = vperm.xlu0 %942, %v837
      %v944 = vpop.permute.xlu0 %943
      %947 = vset.pattern.permute.xlu0 0
      %948 = vperm.xlu0 %947, %v838
      %v949 = vpop.permute.xlu0 %948
      %952 = vset.pattern.permute.xlu0 0
      %953 = vperm.xlu0 %952, %v839
      %v954 = vpop.permute.xlu0 %953
      %957 = vset.pattern.permute.xlu0 0
      %958 = vperm.xlu0 %957, %v840
      %v959 = vpop.permute.xlu0 %958
      %962 = vset.pattern.permute.xlu0 0
      %963 = vperm.xlu0 %962, %v841
      %v964 = vpop.permute.xlu0 %963
      %967 = vset.pattern.permute.xlu0 0
      %968 = vperm.xlu0 %967, %v842
      %v969 = vpop.permute.xlu0 %968
      %972 = vset.pattern.permute.xlu0 0
      %973 = vperm.xlu0 %972, %v843
      %v974 = vpop.permute.xlu0 %973
      %977 = vset.pattern.permute.xlu0 0
      %978 = vperm.xlu0 %977, %v844
      %v979 = vpop.permute.xlu0 %978
      %982 = vset.pattern.permute.xlu0 0
      %983 = vperm.xlu0 %982, %v845
      %v984 = vpop.permute.xlu0 %983
      %987 = vset.pattern.permute.xlu0 0
      %988 = vperm.xlu0 %987, %v846
      %v989 = vpop.permute.xlu0 %988
      %992 = vset.pattern.permute.xlu0 0
      %993 = vperm.xlu0 %992, %v847
      %v994 = vpop.permute.xlu0 %993
      %997 = vset.pattern.permute.xlu0 0
      %998 = vperm.xlu0 %997, %v848
      %v999 = vpop.permute.xlu0 %998
      %1002 = vset.pattern.permute.xlu0 0
      %1003 = vperm.xlu0 %1002, %v849
      %v1004 = vpop.permute.xlu0 %1003
      %1007 = vset.pattern.permute.xlu0 0
      %1008 = vperm.xlu0 %1007, %v850
      %v1009 = vpop.permute.xlu0 %1008
      %1012 = vset.pattern.permute.xlu0 0
      %1013 = vperm.xlu0 %1012, %v851
      %v1014 = vpop.permute.xlu0 %1013
      %1017 = vset.pattern.permute.xlu0 0
      %1018 = vperm.xlu0 %1017, %v852
      %v1019 = vpop.permute.xlu0 %1018
      %1022 = vset.pattern.permute.xlu0 0
      %1023 = vperm.xlu0 %1022, %v853
      %v1024 = vpop.permute.xlu0 %1023
      %1027 = vset.pattern.permute.xlu0 0
      %1028 = vperm.xlu0 %1027, %v854
      %v1029 = vpop.permute.xlu0 %1028
      %1032 = vset.pattern.permute.xlu0 0
      %1033 = vperm.xlu0 %1032, %v855
      %v1034 = vpop.permute.xlu0 %1033
      %v1036 = vmul.f32 %v784, %v859
      %v1037 = vmul.f32 %v785, %v864
      %v1038 = vmul.f32 %v786, %v869
      %v1039 = vmul.f32 %v787, %v874
      %v1040 = vmul.f32 %v788, %v879
      %v1041 = vmul.f32 %v789, %v884
      %v1042 = vmul.f32 %v790, %v889
      %v1043 = vmul.f32 %v791, %v894
      %v1044 = vmul.f32 %v792, %v899
      %v1045 = vmul.f32 %v793, %v904
      %v1046 = vmul.f32 %v794, %v909
      %v1047 = vmul.f32 %v795, %v914
      %v1048 = vmul.f32 %v796, %v919
      %v1049 = vmul.f32 %v797, %v924
      %v1050 = vmul.f32 %v798, %v929
      %v1051 = vmul.f32 %v799, %v934
      %v1052 = vmul.f32 %v800, %v939
      %v1053 = vmul.f32 %v801, %v944
      %v1054 = vmul.f32 %v802, %v949
      %v1055 = vmul.f32 %v803, %v954
      %v1056 = vmul.f32 %v804, %v959
      %v1057 = vmul.f32 %v805, %v964
      %v1058 = vmul.f32 %v806, %v969
      %v1059 = vmul.f32 %v807, %v974
      %v1060 = vmul.f32 %v808, %v979
      %v1061 = vmul.f32 %v809, %v984
      %v1062 = vmul.f32 %v810, %v989
      %v1063 = vmul.f32 %v811, %v994
      %v1064 = vmul.f32 %v812, %v999
      %v1065 = vmul.f32 %v813, %v1004
      %v1066 = vmul.f32 %v814, %v1009
      %v1067 = vmul.f32 %v815, %v1014
      %v1068 = vmul.f32 %v816, %v1019
      %v1069 = vmul.f32 %v817, %v1024
      %v1070 = vmul.f32 %v818, %v1029
      %v1071 = vmul.f32 %v819, %v1034
      %1072 = vst.msk [vmem:[#allocation2 + $0x13] sm:$0xff] %vm361, %v1036
      %1073 = vst.msk [vmem:[#allocation2 + $0x1b] sm:$0xff] %vm361, %v1037
      %1074 = vst.msk [vmem:[#allocation2 + $0x23] sm:$0xff] %vm361, %v1038
      %1075 = vst.msk [vmem:[#allocation2 + $0x2b] sm:$0xff] %vm361, %v1039
      %1076 = vst.msk [vmem:[#allocation2 + $0x33] sm:$0xff] %vm361, %v1040
      %1077 = vst.msk [vmem:[#allocation2 + $0x3b] sm:$0xff] %vm361, %v1041
      %1078 = vst.msk [vmem:[#allocation2 + $0x43] sm:$0xff] %vm361, %v1042
      %1079 = vst.msk [vmem:[#allocation2 + $0x4b] sm:$0xff] %vm361, %v1043
      %1080 = vst.msk [vmem:[#allocation2 + $0x53] sm:$0xff] %vm361, %v1044
      %1081 = vst.msk [vmem:[#allocation2 + $0x5b] sm:$0xff] %vm361, %v1045
      %1082 = vst.msk [vmem:[#allocation2 + $0x63] sm:$0xff] %vm361, %v1046
      %1083 = vst.msk [vmem:[#allocation2 + $0x6b] sm:$0xff] %vm361, %v1047
      %1084 = vst.msk [vmem:[#allocation2 + $0x73] sm:$0xff] %vm361, %v1048
      %1085 = vst.msk [vmem:[#allocation2 + $0x7b] sm:$0xff] %vm361, %v1049
      %1086 = vst.msk [vmem:[#allocation2 + $0x83] sm:$0xff] %vm361, %v1050
      %1087 = vst.msk [vmem:[#allocation2 + $0x8b] sm:$0xff] %vm361, %v1051
      %1088 = vst.msk [vmem:[#allocation2 + $0x93] sm:$0xff] %vm361, %v1052
      %1089 = vst.msk [vmem:[#allocation2 + $0x9b] sm:$0xff] %vm361, %v1053
      %1090 = vst.msk [vmem:[#allocation2 + $0xa3] sm:$0xff] %vm361, %v1054
      %1091 = vst.msk [vmem:[#allocation2 + $0xab] sm:$0xff] %vm361, %v1055
      %1092 = vst.msk [vmem:[#allocation2 + $0xb3] sm:$0xff] %vm361, %v1056
      %1093 = vst.msk [vmem:[#allocation2 + $0xbb] sm:$0xff] %vm361, %v1057
      %1094 = vst.msk [vmem:[#allocation2 + $0xc3] sm:$0xff] %vm361, %v1058
      %1095 = vst.msk [vmem:[#allocation2 + $0xcb] sm:$0xff] %vm361, %v1059
      %1096 = vst.msk [vmem:[#allocation2 + $0xd3] sm:$0xff] %vm361, %v1060
      %1097 = vst.msk [vmem:[#allocation2 + $0xdb] sm:$0xff] %vm361, %v1061
      %1098 = vst.msk [vmem:[#allocation2 + $0xe3] sm:$0xff] %vm361, %v1062
      %1099 = vst.msk [vmem:[#allocation2 + $0xeb] sm:$0xff] %vm361, %v1063
      %1100 = vst.msk [vmem:[#allocation2 + $0xf3] sm:$0xff] %vm361, %v1064
      %1101 = vst.msk [vmem:[#allocation2 + $0xfb] sm:$0xff] %vm361, %v1065
      %1102 = vst.msk [vmem:[#allocation2 + $0x103] sm:$0xff] %vm361, %v1066
      %1103 = vst.msk [vmem:[#allocation2 + $0x10b] sm:$0xff] %vm361, %v1067
      %1104 = vst.msk [vmem:[#allocation2 + $0x113] sm:$0xff] %vm361, %v1068
      %1105 = vst.msk [vmem:[#allocation2 + $0x11b] sm:$0xff] %vm361, %v1069
      %1106 = vst.msk [vmem:[#allocation2 + $0x123] sm:$0xff] %vm361, %v1070
      %1107 = vst.msk [vmem:[#allocation2 + $0x12b] sm:$0xff] %vm361, %v1071
      %v1108 = vld [vmem:[#allocation2] sm:$0xff]
      %v1109 = vld [vmem:[#allocation2 + $0x8] sm:$0xff]
      %v1110 = vld [vmem:[#allocation2 + $0x10] sm:$0xff]
      %v1111 = vld [vmem:[#allocation2 + $0x18] sm:$0xff]
      %v1112 = vld [vmem:[#allocation2 + $0x20] sm:$0xff]
      %v1113 = vld [vmem:[#allocation2 + $0x28] sm:$0xff]
      %v1114 = vld [vmem:[#allocation2 + $0x30] sm:$0xff]
      %v1115 = vld [vmem:[#allocation2 + $0x38] sm:$0xff]
      %v1116 = vld [vmem:[#allocation2 + $0x40] sm:$0xff]
      %v1117 = vld [vmem:[#allocation2 + $0x48] sm:$0xff]
      %v1118 = vld [vmem:[#allocation2 + $0x50] sm:$0xff]
      %v1119 = vld [vmem:[#allocation2 + $0x58] sm:$0xff]
      %v1120 = vld [vmem:[#allocation2 + $0x60] sm:$0xff]
      %v1121 = vld [vmem:[#allocation2 + $0x68] sm:$0xff]
      %v1122 = vld [vmem:[#allocation2 + $0x70] sm:$0xff]
      %v1123 = vld [vmem:[#allocation2 + $0x78] sm:$0xff]
      %v1124 = vld [vmem:[#allocation2 + $0x80] sm:$0xff]
      %v1125 = vld [vmem:[#allocation2 + $0x88] sm:$0xff]
      %v1126 = vld [vmem:[#allocation2 + $0x90] sm:$0xff]
      %v1127 = vld [vmem:[#allocation2 + $0x98] sm:$0xff]
      %v1128 = vld [vmem:[#allocation2 + $0xa0] sm:$0xff]
      %v1129 = vld [vmem:[#allocation2 + $0xa8] sm:$0xff]
      %v1130 = vld [vmem:[#allocation2 + $0xb0] sm:$0xff]
      %v1131 = vld [vmem:[#allocation2 + $0xb8] sm:$0xff]
      %v1132 = vld [vmem:[#allocation2 + $0xc0] sm:$0xff]
      %v1133 = vld [vmem:[#allocation2 + $0xc8] sm:$0xff]
      %v1134 = vld [vmem:[#allocation2 + $0xd0] sm:$0xff]
      %v1135 = vld [vmem:[#allocation2 + $0xd8] sm:$0xff]
      %v1136 = vld [vmem:[#allocation2 + $0xe0] sm:$0xff]
      %v1137 = vld [vmem:[#allocation2 + $0xe8] sm:$0xff]
      %v1138 = vld [vmem:[#allocation2 + $0xf0] sm:$0xff]
      %v1139 = vld [vmem:[#allocation2 + $0xf8] sm:$0xff]
      %v1140 = vld [vmem:[#allocation2 + $0x100] sm:$0xff]
      %v1141 = vld [vmem:[#allocation2 + $0x108] sm:$0xff]
      %v1142 = vld [vmem:[#allocation2 + $0x110] sm:$0xff]
      %v1143 = vld [vmem:[#allocation2 + $0x118] sm:$0xff]
      %v1144 = vpack.c.bf16 %v1109, %v1108
      %v1145 = vpack.c.bf16 %v1111, %v1110
      %v1146 = vpack.c.bf16 %v1113, %v1112
      %v1147 = vpack.c.bf16 %v1115, %v1114
      %v1148 = vpack.c.bf16 %v1117, %v1116
      %v1149 = vpack.c.bf16 %v1119, %v1118
      %v1150 = vpack.c.bf16 %v1121, %v1120
      %v1151 = vpack.c.bf16 %v1123, %v1122
      %v1152 = vpack.c.bf16 %v1125, %v1124
      %v1153 = vpack.c.bf16 %v1127, %v1126
      %v1154 = vpack.c.bf16 %v1129, %v1128
      %v1155 = vpack.c.bf16 %v1131, %v1130
      %v1156 = vpack.c.bf16 %v1133, %v1132
      %v1157 = vpack.c.bf16 %v1135, %v1134
      %v1158 = vpack.c.bf16 %v1137, %v1136
      %v1159 = vpack.c.bf16 %v1139, %v1138
      %v1160 = vpack.c.bf16 %v1141, %v1140
      %v1161 = vpack.c.bf16 %v1143, %v1142
      %1162 = vst.msk [vmem:[#allocation3] sm:$0xff] %vm361, %v1144
      %1163 = vst.msk [vmem:[#allocation3 + $0x28] sm:$0xff] %vm361, %v1145
      %1164 = vst.msk [vmem:[#allocation3 + $0x50] sm:$0xff] %vm361, %v1146
      %1165 = vst.msk [vmem:[#allocation3 + $0x78] sm:$0xff] %vm361, %v1147
      %1166 = vst.msk [vmem:[#allocation3 + $0xa0] sm:$0xff] %vm361, %v1148
      %1167 = vst.msk [vmem:[#allocation3 + $0xc8] sm:$0xff] %vm361, %v1149
      %1168 = vst.msk [vmem:[#allocation3 + $0xf0] sm:$0xff] %vm361, %v1150
      %1169 = vst.msk [vmem:[#allocation3 + $0x118] sm:$0xff] %vm361, %v1151
      %1170 = vst.msk [vmem:[#allocation3 + $0x140] sm:$0xff] %vm361, %v1152
      %1171 = vst.msk [vmem:[#allocation3 + $0x168] sm:$0xff] %vm361, %v1153
      %1172 = vst.msk [vmem:[#allocation3 + $0x190] sm:$0xff] %vm361, %v1154
      %1173 = vst.msk [vmem:[#allocation3 + $0x1b8] sm:$0xff] %vm361, %v1155
      %1174 = vst.msk [vmem:[#allocation3 + $0x1e0] sm:$0xff] %vm361, %v1156
      %1175 = vst.msk [vmem:[#allocation3 + $0x208] sm:$0xff] %vm361, %v1157
      %1176 = vst.msk [vmem:[#allocation3 + $0x230] sm:$0xff] %vm361, %v1158
      %1177 = vst.msk [vmem:[#allocation3 + $0x258] sm:$0xff] %vm361, %v1159
      %1178 = vst.msk [vmem:[#allocation3 + $0x280] sm:$0xff] %vm361, %v1160
      %1179 = vst.msk [vmem:[#allocation3 + $0x2a8] sm:$0xff] %vm361, %v1161
      %v1180 = vld [vmem:[#allocation2 + $0x1] sm:$0xff]
      %v1181 = vld [vmem:[#allocation2 + $0x9] sm:$0xff]
      %v1182 = vld [vmem:[#allocation2 + $0x11] sm:$0xff]
      %v1183 = vld [vmem:[#allocation2 + $0x19] sm:$0xff]
      %v1184 = vld [vmem:[#allocation2 + $0x21] sm:$0xff]
      %v1185 = vld [vmem:[#allocation2 + $0x29] sm:$0xff]
      %v1186 = vld [vmem:[#allocation2 + $0x31] sm:$0xff]
      %v1187 = vld [vmem:[#allocation2 + $0x39] sm:$0xff]
      %v1188 = vld [vmem:[#allocation2 + $0x41] sm:$0xff]
      %v1189 = vld [vmem:[#allocation2 + $0x49] sm:$0xff]
      %v1190 = vld [vmem:[#allocation2 + $0x51] sm:$0xff]
      %v1191 = vld [vmem:[#allocation2 + $0x59] sm:$0xff]
      %v1192 = vld [vmem:[#allocation2 + $0x61] sm:$0xff]
      %v1193 = vld [vmem:[#allocation2 + $0x69] sm:$0xff]
      %v1194 = vld [vmem:[#allocation2 + $0x71] sm:$0xff]
      %v1195 = vld [vmem:[#allocation2 + $0x79] sm:$0xff]
      %v1196 = vld [vmem:[#allocation2 + $0x81] sm:$0xff]
      %v1197 = vld [vmem:[#allocation2 + $0x89] sm:$0xff]
      %v1198 = vld [vmem:[#allocation2 + $0x91] sm:$0xff]
      %v1199 = vld [vmem:[#allocation2 + $0x99] sm:$0xff]
      %v1200 = vld [vmem:[#allocation2 + $0xa1] sm:$0xff]
      %v1201 = vld [vmem:[#allocation2 + $0xa9] sm:$0xff]
      %v1202 = vld [vmem:[#allocation2 + $0xb1] sm:$0xff]
      %v1203 = vld [vmem:[#allocation2 + $0xb9] sm:$0xff]
      %v1204 = vld [vmem:[#allocation2 + $0xc1] sm:$0xff]
      %v1205 = vld [vmem:[#allocation2 + $0xc9] sm:$0xff]
      %v1206 = vld [vmem:[#allocation2 + $0xd1] sm:$0xff]
      %v1207 = vld [vmem:[#allocation2 + $0xd9] sm:$0xff]
      %v1208 = vld [vmem:[#allocation2 + $0xe1] sm:$0xff]
      %v1209 = vld [vmem:[#allocation2 + $0xe9] sm:$0xff]
      %v1210 = vld [vmem:[#allocation2 + $0xf1] sm:$0xff]
      %v1211 = vld [vmem:[#allocation2 + $0xf9] sm:$0xff]
      %v1212 = vld [vmem:[#allocation2 + $0x101] sm:$0xff]
      %v1213 = vld [vmem:[#allocation2 + $0x109] sm:$0xff]
      %v1214 = vld [vmem:[#allocation2 + $0x111] sm:$0xff]
      %v1215 = vld [vmem:[#allocation2 + $0x119] sm:$0xff]
      %v1216 = vpack.c.bf16 %v1181, %v1180
      %v1217 = vpack.c.bf16 %v1183, %v1182
      %v1218 = vpack.c.bf16 %v1185, %v1184
      %v1219 = vpack.c.bf16 %v1187, %v1186
      %v1220 = vpack.c.bf16 %v1189, %v1188
      %v1221 = vpack.c.bf16 %v1191, %v1190
      %v1222 = vpack.c.bf16 %v1193, %v1192
      %v1223 = vpack.c.bf16 %v1195, %v1194
      %v1224 = vpack.c.bf16 %v1197, %v1196
      %v1225 = vpack.c.bf16 %v1199, %v1198
      %v1226 = vpack.c.bf16 %v1201, %v1200
      %v1227 = vpack.c.bf16 %v1203, %v1202
      %v1228 = vpack.c.bf16 %v1205, %v1204
      %v1229 = vpack.c.bf16 %v1207, %v1206
      %v1230 = vpack.c.bf16 %v1209, %v1208
      %v1231 = vpack.c.bf16 %v1211, %v1210
      %v1232 = vpack.c.bf16 %v1213, %v1212
      %v1233 = vpack.c.bf16 %v1215, %v1214
      %1252 = vrot.lane.b32.xlu0 %v1216, 64
      %v1253 = vpop.permute.xlu0 %1252
      %1254 = vrot.lane.b32.xlu0 %v1217, 64
      %v1255 = vpop.permute.xlu0 %1254
      %1256 = vrot.lane.b32.xlu0 %v1218, 64
      %v1257 = vpop.permute.xlu0 %1256
      %1258 = vrot.lane.b32.xlu0 %v1219, 64
      %v1259 = vpop.permute.xlu0 %1258
      %1260 = vrot.lane.b32.xlu0 %v1220, 64
      %v1261 = vpop.permute.xlu0 %1260
      %1262 = vrot.lane.b32.xlu0 %v1221, 64
      %v1263 = vpop.permute.xlu0 %1262
      %1264 = vrot.lane.b32.xlu0 %v1222, 64
      %v1265 = vpop.permute.xlu0 %1264
      %1266 = vrot.lane.b32.xlu0 %v1223, 64
      %v1267 = vpop.permute.xlu0 %1266
      %1268 = vrot.lane.b32.xlu0 %v1224, 64
      %v1269 = vpop.permute.xlu0 %1268
      %1270 = vrot.lane.b32.xlu0 %v1225, 64
      %v1271 = vpop.permute.xlu0 %1270
      %1272 = vrot.lane.b32.xlu0 %v1226, 64
      %v1273 = vpop.permute.xlu0 %1272
      %1274 = vrot.lane.b32.xlu0 %v1227, 64
      %v1275 = vpop.permute.xlu0 %1274
      %1276 = vrot.lane.b32.xlu0 %v1228, 64
      %v1277 = vpop.permute.xlu0 %1276
      %1278 = vrot.lane.b32.xlu0 %v1229, 64
      %v1279 = vpop.permute.xlu0 %1278
      %1280 = vrot.lane.b32.xlu0 %v1230, 64
      %v1281 = vpop.permute.xlu0 %1280
      %1282 = vrot.lane.b32.xlu0 %v1231, 64
      %v1283 = vpop.permute.xlu0 %1282
      %1284 = vrot.lane.b32.xlu0 %v1232, 64
      %v1285 = vpop.permute.xlu0 %1284
      %1286 = vrot.lane.b32.xlu0 %v1233, 64
      %v1287 = vpop.permute.xlu0 %1286
      %vm1306 = vcmask 1048064
      %1307 = vst.msk [vmem:[#allocation3] sm:$0xff] %vm1306, %v1253
      %1308 = vst.msk [vmem:[#allocation3 + $0x28] sm:$0xff] %vm1306, %v1255
      %1309 = vst.msk [vmem:[#allocation3 + $0x50] sm:$0xff] %vm1306, %v1257
      %1310 = vst.msk [vmem:[#allocation3 + $0x78] sm:$0xff] %vm1306, %v1259
      %1311 = vst.msk [vmem:[#allocation3 + $0xa0] sm:$0xff] %vm1306, %v1261
      %1312 = vst.msk [vmem:[#allocation3 + $0xc8] sm:$0xff] %vm1306, %v1263
      %1313 = vst.msk [vmem:[#allocation3 + $0xf0] sm:$0xff] %vm1306, %v1265
      %1314 = vst.msk [vmem:[#allocation3 + $0x118] sm:$0xff] %vm1306, %v1267
      %1315 = vst.msk [vmem:[#allocation3 + $0x140] sm:$0xff] %vm1306, %v1269
      %1316 = vst.msk [vmem:[#allocation3 + $0x168] sm:$0xff] %vm1306, %v1271
      %1317 = vst.msk [vmem:[#allocation3 + $0x190] sm:$0xff] %vm1306, %v1273
      %1318 = vst.msk [vmem:[#allocation3 + $0x1b8] sm:$0xff] %vm1306, %v1275
      %1319 = vst.msk [vmem:[#allocation3 + $0x1e0] sm:$0xff] %vm1306, %v1277
      %1320 = vst.msk [vmem:[#allocation3 + $0x208] sm:$0xff] %vm1306, %v1279
      %1321 = vst.msk [vmem:[#allocation3 + $0x230] sm:$0xff] %vm1306, %v1281
      %1322 = vst.msk [vmem:[#allocation3 + $0x258] sm:$0xff] %vm1306, %v1283
      %1323 = vst.msk [vmem:[#allocation3 + $0x280] sm:$0xff] %vm1306, %v1285
      %1324 = vst.msk [vmem:[#allocation3 + $0x2a8] sm:$0xff] %vm1306, %v1287
      %v1325 = vld [vmem:[#allocation2 + $0x2] sm:$0xff]
      %v1326 = vld [vmem:[#allocation2 + $0xa] sm:$0xff]
      %v1327 = vld [vmem:[#allocation2 + $0x12] sm:$0xff]
      %v1328 = vld [vmem:[#allocation2 + $0x1a] sm:$0xff]
      %v1329 = vld [vmem:[#allocation2 + $0x22] sm:$0xff]
      %v1330 = vld [vmem:[#allocation2 + $0x2a] sm:$0xff]
      %v1331 = vld [vmem:[#allocation2 + $0x32] sm:$0xff]
      %v1332 = vld [vmem:[#allocation2 + $0x3a] sm:$0xff]
      %v1333 = vld [vmem:[#allocation2 + $0x42] sm:$0xff]
      %v1334 = vld [vmem:[#allocation2 + $0x4a] sm:$0xff]
      %v1335 = vld [vmem:[#allocation2 + $0x52] sm:$0xff]
      %v1336 = vld [vmem:[#allocation2 + $0x5a] sm:$0xff]
      %v1337 = vld [vmem:[#allocation2 + $0x62] sm:$0xff]
      %v1338 = vld [vmem:[#allocation2 + $0x6a] sm:$0xff]
      %v1339 = vld [vmem:[#allocation2 + $0x72] sm:$0xff]
      %v1340 = vld [vmem:[#allocation2 + $0x7a] sm:$0xff]
      %v1341 = vld [vmem:[#allocation2 + $0x82] sm:$0xff]
      %v1342 = vld [vmem:[#allocation2 + $0x8a] sm:$0xff]
      %v1343 = vld [vmem:[#allocation2 + $0x92] sm:$0xff]
      %v1344 = vld [vmem:[#allocation2 + $0x9a] sm:$0xff]
      %v1345 = vld [vmem:[#allocation2 + $0xa2] sm:$0xff]
      %v1346 = vld [vmem:[#allocation2 + $0xaa] sm:$0xff]
      %v1347 = vld [vmem:[#allocation2 + $0xb2] sm:$0xff]
      %v1348 = vld [vmem:[#allocation2 + $0xba] sm:$0xff]
      %v1349 = vld [vmem:[#allocation2 + $0xc2] sm:$0xff]
      %v1350 = vld [vmem:[#allocation2 + $0xca] sm:$0xff]
      %v1351 = vld [vmem:[#allocation2 + $0xd2] sm:$0xff]
      %v1352 = vld [vmem:[#allocation2 + $0xda] sm:$0xff]
      %v1353 = vld [vmem:[#allocation2 + $0xe2] sm:$0xff]
      %v1354 = vld [vmem:[#allocation2 + $0xea] sm:$0xff]
      %v1355 = vld [vmem:[#allocation2 + $0xf2] sm:$0xff]
      %v1356 = vld [vmem:[#allocation2 + $0xfa] sm:$0xff]
      %v1357 = vld [vmem:[#allocation2 + $0x102] sm:$0xff]
      %v1358 = vld [vmem:[#allocation2 + $0x10a] sm:$0xff]
      %v1359 = vld [vmem:[#allocation2 + $0x112] sm:$0xff]
      %v1360 = vld [vmem:[#allocation2 + $0x11a] sm:$0xff]
      %v1361 = vpack.c.bf16 %v1326, %v1325
      %v1362 = vpack.c.bf16 %v1328, %v1327
      %v1363 = vpack.c.bf16 %v1330, %v1329
      %v1364 = vpack.c.bf16 %v1332, %v1331
      %v1365 = vpack.c.bf16 %v1334, %v1333
      %v1366 = vpack.c.bf16 %v1336, %v1335
      %v1367 = vpack.c.bf16 %v1338, %v1337
      %v1368 = vpack.c.bf16 %v1340, %v1339
      %v1369 = vpack.c.bf16 %v1342, %v1341
      %v1370 = vpack.c.bf16 %v1344, %v1343
      %v1371 = vpack.c.bf16 %v1346, %v1345
      %v1372 = vpack.c.bf16 %v1348, %v1347
      %v1373 = vpack.c.bf16 %v1350, %v1349
      %v1374 = vpack.c.bf16 %v1352, %v1351
      %v1375 = vpack.c.bf16 %v1354, %v1353
      %v1376 = vpack.c.bf16 %v1356, %v1355
      %v1377 = vpack.c.bf16 %v1358, %v1357
      %v1378 = vpack.c.bf16 %v1360, %v1359
      %1379 = vst.msk [vmem:[#allocation3 + $0x8] sm:$0xff] %vm361, %v1361
      %1380 = vst.msk [vmem:[#allocation3 + $0x30] sm:$0xff] %vm361, %v1362
      %1381 = vst.msk [vmem:[#allocation3 + $0x58] sm:$0xff] %vm361, %v1363
      %1382 = vst.msk [vmem:[#allocation3 + $0x80] sm:$0xff] %vm361, %v1364
      %1383 = vst.msk [vmem:[#allocation3 + $0xa8] sm:$0xff] %vm361, %v1365
      %1384 = vst.msk [vmem:[#allocation3 + $0xd0] sm:$0xff] %vm361, %v1366
      %1385 = vst.msk [vmem:[#allocation3 + $0xf8] sm:$0xff] %vm361, %v1367
      %1386 = vst.msk [vmem:[#allocation3 + $0x120] sm:$0xff] %vm361, %v1368
      %1387 = vst.msk [vmem:[#allocation3 + $0x148] sm:$0xff] %vm361, %v1369
      %1388 = vst.msk [vmem:[#allocation3 + $0x170] sm:$0xff] %vm361, %v1370
      %1389 = vst.msk [vmem:[#allocation3 + $0x198] sm:$0xff] %vm361, %v1371
      %1390 = vst.msk [vmem:[#allocation3 + $0x1c0] sm:$0xff] %vm361, %v1372
      %1391 = vst.msk [vmem:[#allocation3 + $0x1e8] sm:$0xff] %vm361, %v1373
      %1392 = vst.msk [vmem:[#allocation3 + $0x210] sm:$0xff] %vm361, %v1374
      %1393 = vst.msk [vmem:[#allocation3 + $0x238] sm:$0xff] %vm361, %v1375
      %1394 = vst.msk [vmem:[#allocation3 + $0x260] sm:$0xff] %vm361, %v1376
      %1395 = vst.msk [vmem:[#allocation3 + $0x288] sm:$0xff] %vm361, %v1377
      %1396 = vst.msk [vmem:[#allocation3 + $0x2b0] sm:$0xff] %vm361, %v1378
      %v1397 = vld [vmem:[#allocation2 + $0x12] sm:$0xff]
      %v1398 = vld [vmem:[#allocation2 + $0x1a] sm:$0xff]
      %v1399 = vld [vmem:[#allocation2 + $0x22] sm:$0xff]
      %v1400 = vld [vmem:[#allocation2 + $0x2a] sm:$0xff]
      %v1401 = vld [vmem:[#allocation2 + $0x32] sm:$0xff]
      %v1402 = vld [vmem:[#allocation2 + $0x3a] sm:$0xff]
      %v1403 = vld [vmem:[#allocation2 + $0x42] sm:$0xff]
      %v1404 = vld [vmem:[#allocation2 + $0x4a] sm:$0xff]
      %v1405 = vld [vmem:[#allocation2 + $0x52] sm:$0xff]
      %v1406 = vld [vmem:[#allocation2 + $0x5a] sm:$0xff]
      %v1407 = vld [vmem:[#allocation2 + $0x62] sm:$0xff]
      %v1408 = vld [vmem:[#allocation2 + $0x6a] sm:$0xff]
      %v1409 = vld [vmem:[#allocation2 + $0x72] sm:$0xff]
      %v1410 = vld [vmem:[#allocation2 + $0x7a] sm:$0xff]
      %v1411 = vld [vmem:[#allocation2 + $0x82] sm:$0xff]
      %v1412 = vld [vmem:[#allocation2 + $0x8a] sm:$0xff]
      %v1413 = vld [vmem:[#allocation2 + $0x92] sm:$0xff]
      %v1414 = vld [vmem:[#allocation2 + $0x9a] sm:$0xff]
      %v1415 = vld [vmem:[#allocation2 + $0xa2] sm:$0xff]
      %v1416 = vld [vmem:[#allocation2 + $0xaa] sm:$0xff]
      %v1417 = vld [vmem:[#allocation2 + $0xb2] sm:$0xff]
      %v1418 = vld [vmem:[#allocation2 + $0xba] sm:$0xff]
      %v1419 = vld [vmem:[#allocation2 + $0xc2] sm:$0xff]
      %v1420 = vld [vmem:[#allocation2 + $0xca] sm:$0xff]
      %v1421 = vld [vmem:[#allocation2 + $0xd2] sm:$0xff]
      %v1422 = vld [vmem:[#allocation2 + $0xda] sm:$0xff]
      %v1423 = vld [vmem:[#allocation2 + $0xe2] sm:$0xff]
      %v1424 = vld [vmem:[#allocation2 + $0xea] sm:$0xff]
      %v1425 = vld [vmem:[#allocation2 + $0xf2] sm:$0xff]
      %v1426 = vld [vmem:[#allocation2 + $0xfa] sm:$0xff]
      %v1427 = vld [vmem:[#allocation2 + $0x102] sm:$0xff]
      %v1428 = vld [vmem:[#allocation2 + $0x10a] sm:$0xff]
      %v1429 = vld [vmem:[#allocation2 + $0x112] sm:$0xff]
      %v1430 = vld [vmem:[#allocation2 + $0x11a] sm:$0xff]
      %v1431 = vld [vmem:[#allocation2 + $0x122] sm:$0xff]
      %v1432 = vld [vmem:[#allocation2 + $0x12a] sm:$0xff]
      %v1433 = vpack.c.bf16 %v1398, %v1397
      %v1434 = vpack.c.bf16 %v1400, %v1399
      %v1435 = vpack.c.bf16 %v1402, %v1401
      %v1436 = vpack.c.bf16 %v1404, %v1403
      %v1437 = vpack.c.bf16 %v1406, %v1405
      %v1438 = vpack.c.bf16 %v1408, %v1407
      %v1439 = vpack.c.bf16 %v1410, %v1409
      %v1440 = vpack.c.bf16 %v1412, %v1411
      %v1441 = vpack.c.bf16 %v1414, %v1413
      %v1442 = vpack.c.bf16 %v1416, %v1415
      %v1443 = vpack.c.bf16 %v1418, %v1417
      %v1444 = vpack.c.bf16 %v1420, %v1419
      %v1445 = vpack.c.bf16 %v1422, %v1421
      %v1446 = vpack.c.bf16 %v1424, %v1423
      %v1447 = vpack.c.bf16 %v1426, %v1425
      %v1448 = vpack.c.bf16 %v1428, %v1427
      %v1449 = vpack.c.bf16 %v1430, %v1429
      %v1450 = vpack.c.bf16 %v1432, %v1431
      %1469 = vrot.lane.b32.xlu0 %v1433, 64
      %v1470 = vpop.permute.xlu0 %1469
      %1471 = vrot.lane.b32.xlu0 %v1434, 64
      %v1472 = vpop.permute.xlu0 %1471
      %1473 = vrot.lane.b32.xlu0 %v1435, 64
      %v1474 = vpop.permute.xlu0 %1473
      %1475 = vrot.lane.b32.xlu0 %v1436, 64
      %v1476 = vpop.permute.xlu0 %1475
      %1477 = vrot.lane.b32.xlu0 %v1437, 64
      %v1478 = vpop.permute.xlu0 %1477
      %1479 = vrot.lane.b32.xlu0 %v1438, 64
      %v1480 = vpop.permute.xlu0 %1479
      %1481 = vrot.lane.b32.xlu0 %v1439, 64
      %v1482 = vpop.permute.xlu0 %1481
      %1483 = vrot.lane.b32.xlu0 %v1440, 64
      %v1484 = vpop.permute.xlu0 %1483
      %1485 = vrot.lane.b32.xlu0 %v1441, 64
      %v1486 = vpop.permute.xlu0 %1485
      %1487 = vrot.lane.b32.xlu0 %v1442, 64
      %v1488 = vpop.permute.xlu0 %1487
      %1489 = vrot.lane.b32.xlu0 %v1443, 64
      %v1490 = vpop.permute.xlu0 %1489
      %1491 = vrot.lane.b32.xlu0 %v1444, 64
      %v1492 = vpop.permute.xlu0 %1491
      %1493 = vrot.lane.b32.xlu0 %v1445, 64
      %v1494 = vpop.permute.xlu0 %1493
      %1495 = vrot.lane.b32.xlu0 %v1446, 64
      %v1496 = vpop.permute.xlu0 %1495
      %1497 = vrot.lane.b32.xlu0 %v1447, 64
      %v1498 = vpop.permute.xlu0 %1497
      %1499 = vrot.lane.b32.xlu0 %v1448, 64
      %v1500 = vpop.permute.xlu0 %1499
      %1501 = vrot.lane.b32.xlu0 %v1449, 64
      %v1502 = vpop.permute.xlu0 %1501
      %1503 = vrot.lane.b32.xlu0 %v1450, 64
      %v1504 = vpop.permute.xlu0 %1503
      %1523 = vst.msk [vmem:[#allocation3 + $0x8] sm:$0xff] %vm1306, %v1470
      %1524 = vst.msk [vmem:[#allocation3 + $0x30] sm:$0xff] %vm1306, %v1472
      %1525 = vst.msk [vmem:[#allocation3 + $0x58] sm:$0xff] %vm1306, %v1474
      %1526 = vst.msk [vmem:[#allocation3 + $0x80] sm:$0xff] %vm1306, %v1476
      %1527 = vst.msk [vmem:[#allocation3 + $0xa8] sm:$0xff] %vm1306, %v1478
      %1528 = vst.msk [vmem:[#allocation3 + $0xd0] sm:$0xff] %vm1306, %v1480
      %1529 = vst.msk [vmem:[#allocation3 + $0xf8] sm:$0xff] %vm1306, %v1482
      %1530 = vst.msk [vmem:[#allocation3 + $0x120] sm:$0xff] %vm1306, %v1484
      %1531 = vst.msk [vmem:[#allocation3 + $0x148] sm:$0xff] %vm1306, %v1486
      %1532 = vst.msk [vmem:[#allocation3 + $0x170] sm:$0xff] %vm1306, %v1488
      %1533 = vst.msk [vmem:[#allocation3 + $0x198] sm:$0xff] %vm1306, %v1490
      %1534 = vst.msk [vmem:[#allocation3 + $0x1c0] sm:$0xff] %vm1306, %v1492
      %1535 = vst.msk [vmem:[#allocation3 + $0x1e8] sm:$0xff] %vm1306, %v1494
      %1536 = vst.msk [vmem:[#allocation3 + $0x210] sm:$0xff] %vm1306, %v1496
      %1537 = vst.msk [vmem:[#allocation3 + $0x238] sm:$0xff] %vm1306, %v1498
      %1538 = vst.msk [vmem:[#allocation3 + $0x260] sm:$0xff] %vm1306, %v1500
      %1539 = vst.msk [vmem:[#allocation3 + $0x288] sm:$0xff] %vm1306, %v1502
      %1540 = vst.msk [vmem:[#allocation3 + $0x2b0] sm:$0xff] %vm1306, %v1504
      %v1541 = vld [vmem:[#allocation2 + $0x13] sm:$0xff]
      %v1542 = vld [vmem:[#allocation2 + $0x1b] sm:$0xff]
      %v1543 = vld [vmem:[#allocation2 + $0x23] sm:$0xff]
      %v1544 = vld [vmem:[#allocation2 + $0x2b] sm:$0xff]
      %v1545 = vld [vmem:[#allocation2 + $0x33] sm:$0xff]
      %v1546 = vld [vmem:[#allocation2 + $0x3b] sm:$0xff]
      %v1547 = vld [vmem:[#allocation2 + $0x43] sm:$0xff]
      %v1548 = vld [vmem:[#allocation2 + $0x4b] sm:$0xff]
      %v1549 = vld [vmem:[#allocation2 + $0x53] sm:$0xff]
      %v1550 = vld [vmem:[#allocation2 + $0x5b] sm:$0xff]
      %v1551 = vld [vmem:[#allocation2 + $0x63] sm:$0xff]
      %v1552 = vld [vmem:[#allocation2 + $0x6b] sm:$0xff]
      %v1553 = vld [vmem:[#allocation2 + $0x73] sm:$0xff]
      %v1554 = vld [vmem:[#allocation2 + $0x7b] sm:$0xff]
      %v1555 = vld [vmem:[#allocation2 + $0x83] sm:$0xff]
      %v1556 = vld [vmem:[#allocation2 + $0x8b] sm:$0xff]
      %v1557 = vld [vmem:[#allocation2 + $0x93] sm:$0xff]
      %v1558 = vld [vmem:[#allocation2 + $0x9b] sm:$0xff]
      %v1559 = vld [vmem:[#allocation2 + $0xa3] sm:$0xff]
      %v1560 = vld [vmem:[#allocation2 + $0xab] sm:$0xff]
      %v1561 = vld [vmem:[#allocation2 + $0xb3] sm:$0xff]
      %v1562 = vld [vmem:[#allocation2 + $0xbb] sm:$0xff]
      %v1563 = vld [vmem:[#allocation2 + $0xc3] sm:$0xff]
      %v1564 = vld [vmem:[#allocation2 + $0xcb] sm:$0xff]
      %v1565 = vld [vmem:[#allocation2 + $0xd3] sm:$0xff]
      %v1566 = vld [vmem:[#allocation2 + $0xdb] sm:$0xff]
      %v1567 = vld [vmem:[#allocation2 + $0xe3] sm:$0xff]
      %v1568 = vld [vmem:[#allocation2 + $0xeb] sm:$0xff]
      %v1569 = vld [vmem:[#allocation2 + $0xf3] sm:$0xff]
      %v1570 = vld [vmem:[#allocation2 + $0xfb] sm:$0xff]
      %v1571 = vld [vmem:[#allocation2 + $0x103] sm:$0xff]
      %v1572 = vld [vmem:[#allocation2 + $0x10b] sm:$0xff]
      %v1573 = vld [vmem:[#allocation2 + $0x113] sm:$0xff]
      %v1574 = vld [vmem:[#allocation2 + $0x11b] sm:$0xff]
      %v1575 = vld [vmem:[#allocation2 + $0x123] sm:$0xff]
      %v1576 = vld [vmem:[#allocation2 + $0x12b] sm:$0xff]
      %v1577 = vpack.c.bf16 %v1542, %v1541
      %v1578 = vpack.c.bf16 %v1544, %v1543
      %v1579 = vpack.c.bf16 %v1546, %v1545
      %v1580 = vpack.c.bf16 %v1548, %v1547
      %v1581 = vpack.c.bf16 %v1550, %v1549
      %v1582 = vpack.c.bf16 %v1552, %v1551
      %v1583 = vpack.c.bf16 %v1554, %v1553
      %v1584 = vpack.c.bf16 %v1556, %v1555
      %v1585 = vpack.c.bf16 %v1558, %v1557
      %v1586 = vpack.c.bf16 %v1560, %v1559
      %v1587 = vpack.c.bf16 %v1562, %v1561
      %v1588 = vpack.c.bf16 %v1564, %v1563
      %v1589 = vpack.c.bf16 %v1566, %v1565
      %v1590 = vpack.c.bf16 %v1568, %v1567
      %v1591 = vpack.c.bf16 %v1570, %v1569
      %v1592 = vpack.c.bf16 %v1572, %v1571
      %v1593 = vpack.c.bf16 %v1574, %v1573
      %v1594 = vpack.c.bf16 %v1576, %v1575
      %1595 = vst.msk [vmem:[#allocation3 + $0x10] sm:$0xff] %vm361, %v1577
      %1596 = vst.msk [vmem:[#allocation3 + $0x38] sm:$0xff] %vm361, %v1578
      %1597 = vst.msk [vmem:[#allocation3 + $0x60] sm:$0xff] %vm361, %v1579
      %1598 = vst.msk [vmem:[#allocation3 + $0x88] sm:$0xff] %vm361, %v1580
      %1599 = vst.msk [vmem:[#allocation3 + $0xb0] sm:$0xff] %vm361, %v1581
      %1600 = vst.msk [vmem:[#allocation3 + $0xd8] sm:$0xff] %vm361, %v1582
      %1601 = vst.msk [vmem:[#allocation3 + $0x100] sm:$0xff] %vm361, %v1583
      %1602 = vst.msk [vmem:[#allocation3 + $0x128] sm:$0xff] %vm361, %v1584
      %1603 = vst.msk [vmem:[#allocation3 + $0x150] sm:$0xff] %vm361, %v1585
      %1604 = vst.msk [vmem:[#allocation3 + $0x178] sm:$0xff] %vm361, %v1586
      %1605 = vst.msk [vmem:[#allocation3 + $0x1a0] sm:$0xff] %vm361, %v1587
      %1606 = vst.msk [vmem:[#allocation3 + $0x1c8] sm:$0xff] %vm361, %v1588
      %1607 = vst.msk [vmem:[#allocation3 + $0x1f0] sm:$0xff] %vm361, %v1589
      %1608 = vst.msk [vmem:[#allocation3 + $0x218] sm:$0xff] %vm361, %v1590
      %1609 = vst.msk [vmem:[#allocation3 + $0x240] sm:$0xff] %vm361, %v1591
      %1610 = vst.msk [vmem:[#allocation3 + $0x268] sm:$0xff] %vm361, %v1592
      %1611 = vst.msk [vmem:[#allocation3 + $0x290] sm:$0xff] %vm361, %v1593
      %1612 = vst.msk [vmem:[#allocation3 + $0x2b8] sm:$0xff] %vm361, %v1594
      %v1613 = vld [vmem:[#allocation2 + $0x14] sm:$0xff]
      %v1614 = vld [vmem:[#allocation2 + $0x1c] sm:$0xff]
      %v1615 = vld [vmem:[#allocation2 + $0x24] sm:$0xff]
      %v1616 = vld [vmem:[#allocation2 + $0x2c] sm:$0xff]
      %v1617 = vld [vmem:[#allocation2 + $0x34] sm:$0xff]
      %v1618 = vld [vmem:[#allocation2 + $0x3c] sm:$0xff]
      %v1619 = vld [vmem:[#allocation2 + $0x44] sm:$0xff]
      %v1620 = vld [vmem:[#allocation2 + $0x4c] sm:$0xff]
      %v1621 = vld [vmem:[#allocation2 + $0x54] sm:$0xff]
      %v1622 = vld [vmem:[#allocation2 + $0x5c] sm:$0xff]
      %v1623 = vld [vmem:[#allocation2 + $0x64] sm:$0xff]
      %v1624 = vld [vmem:[#allocation2 + $0x6c] sm:$0xff]
      %v1625 = vld [vmem:[#allocation2 + $0x74] sm:$0xff]
      %v1626 = vld [vmem:[#allocation2 + $0x7c] sm:$0xff]
      %v1627 = vld [vmem:[#allocation2 + $0x84] sm:$0xff]
      %v1628 = vld [vmem:[#allocation2 + $0x8c] sm:$0xff]
      %v1629 = vld [vmem:[#allocation2 + $0x94] sm:$0xff]
      %v1630 = vld [vmem:[#allocation2 + $0x9c] sm:$0xff]
      %v1631 = vld [vmem:[#allocation2 + $0xa4] sm:$0xff]
      %v1632 = vld [vmem:[#allocation2 + $0xac] sm:$0xff]
      %v1633 = vld [vmem:[#allocation2 + $0xb4] sm:$0xff]
      %v1634 = vld [vmem:[#allocation2 + $0xbc] sm:$0xff]
      %v1635 = vld [vmem:[#allocation2 + $0xc4] sm:$0xff]
      %v1636 = vld [vmem:[#allocation2 + $0xcc] sm:$0xff]
      %v1637 = vld [vmem:[#allocation2 + $0xd4] sm:$0xff]
      %v1638 = vld [vmem:[#allocation2 + $0xdc] sm:$0xff]
      %v1639 = vld [vmem:[#allocation2 + $0xe4] sm:$0xff]
      %v1640 = vld [vmem:[#allocation2 + $0xec] sm:$0xff]
      %v1641 = vld [vmem:[#allocation2 + $0xf4] sm:$0xff]
      %v1642 = vld [vmem:[#allocation2 + $0xfc] sm:$0xff]
      %v1643 = vld [vmem:[#allocation2 + $0x104] sm:$0xff]
      %v1644 = vld [vmem:[#allocation2 + $0x10c] sm:$0xff]
      %v1645 = vld [vmem:[#allocation2 + $0x114] sm:$0xff]
      %v1646 = vld [vmem:[#allocation2 + $0x11c] sm:$0xff]
      %v1647 = vld [vmem:[#allocation2 + $0x124] sm:$0xff]
      %v1648 = vld [vmem:[#allocation2 + $0x12c] sm:$0xff]
      %v1649 = vpack.c.bf16 %v1614, %v1613
      %v1650 = vpack.c.bf16 %v1616, %v1615
      %v1651 = vpack.c.bf16 %v1618, %v1617
      %v1652 = vpack.c.bf16 %v1620, %v1619
      %v1653 = vpack.c.bf16 %v1622, %v1621
      %v1654 = vpack.c.bf16 %v1624, %v1623
      %v1655 = vpack.c.bf16 %v1626, %v1625
      %v1656 = vpack.c.bf16 %v1628, %v1627
      %v1657 = vpack.c.bf16 %v1630, %v1629
      %v1658 = vpack.c.bf16 %v1632, %v1631
      %v1659 = vpack.c.bf16 %v1634, %v1633
      %v1660 = vpack.c.bf16 %v1636, %v1635
      %v1661 = vpack.c.bf16 %v1638, %v1637
      %v1662 = vpack.c.bf16 %v1640, %v1639
      %v1663 = vpack.c.bf16 %v1642, %v1641
      %v1664 = vpack.c.bf16 %v1644, %v1643
      %v1665 = vpack.c.bf16 %v1646, %v1645
      %v1666 = vpack.c.bf16 %v1648, %v1647
      %1685 = vrot.lane.b32.xlu0 %v1649, 64
      %v1686 = vpop.permute.xlu0 %1685
      %1687 = vrot.lane.b32.xlu0 %v1650, 64
      %v1688 = vpop.permute.xlu0 %1687
      %1689 = vrot.lane.b32.xlu0 %v1651, 64
      %v1690 = vpop.permute.xlu0 %1689
      %1691 = vrot.lane.b32.xlu0 %v1652, 64
      %v1692 = vpop.permute.xlu0 %1691
      %1693 = vrot.lane.b32.xlu0 %v1653, 64
      %v1694 = vpop.permute.xlu0 %1693
      %1695 = vrot.lane.b32.xlu0 %v1654, 64
      %v1696 = vpop.permute.xlu0 %1695
      %1697 = vrot.lane.b32.xlu0 %v1655, 64
      %v1698 = vpop.permute.xlu0 %1697
      %1699 = vrot.lane.b32.xlu0 %v1656, 64
      %v1700 = vpop.permute.xlu0 %1699
      %1701 = vrot.lane.b32.xlu0 %v1657, 64
      %v1702 = vpop.permute.xlu0 %1701
      %1703 = vrot.lane.b32.xlu0 %v1658, 64
      %v1704 = vpop.permute.xlu0 %1703
      %1705 = vrot.lane.b32.xlu0 %v1659, 64
      %v1706 = vpop.permute.xlu0 %1705
      %1707 = vrot.lane.b32.xlu0 %v1660, 64
      %v1708 = vpop.permute.xlu0 %1707
      %1709 = vrot.lane.b32.xlu0 %v1661, 64
      %v1710 = vpop.permute.xlu0 %1709
      %1711 = vrot.lane.b32.xlu0 %v1662, 64
      %v1712 = vpop.permute.xlu0 %1711
      %1713 = vrot.lane.b32.xlu0 %v1663, 64
      %v1714 = vpop.permute.xlu0 %1713
      %1715 = vrot.lane.b32.xlu0 %v1664, 64
      %v1716 = vpop.permute.xlu0 %1715
      %1717 = vrot.lane.b32.xlu0 %v1665, 64
      %v1718 = vpop.permute.xlu0 %1717
      %1719 = vrot.lane.b32.xlu0 %v1666, 64
      %v1720 = vpop.permute.xlu0 %1719
      %1739 = vst.msk [vmem:[#allocation3 + $0x10] sm:$0xff] %vm1306, %v1686
      %1740 = vst.msk [vmem:[#allocation3 + $0x38] sm:$0xff] %vm1306, %v1688
      %1741 = vst.msk [vmem:[#allocation3 + $0x60] sm:$0xff] %vm1306, %v1690
      %1742 = vst.msk [vmem:[#allocation3 + $0x88] sm:$0xff] %vm1306, %v1692
      %1743 = vst.msk [vmem:[#allocation3 + $0xb0] sm:$0xff] %vm1306, %v1694
      %1744 = vst.msk [vmem:[#allocation3 + $0xd8] sm:$0xff] %vm1306, %v1696
      %1745 = vst.msk [vmem:[#allocation3 + $0x100] sm:$0xff] %vm1306, %v1698
      %1746 = vst.msk [vmem:[#allocation3 + $0x128] sm:$0xff] %vm1306, %v1700
      %1747 = vst.msk [vmem:[#allocation3 + $0x150] sm:$0xff] %vm1306, %v1702
      %1748 = vst.msk [vmem:[#allocation3 + $0x178] sm:$0xff] %vm1306, %v1704
      %1749 = vst.msk [vmem:[#allocation3 + $0x1a0] sm:$0xff] %vm1306, %v1706
      %1750 = vst.msk [vmem:[#allocation3 + $0x1c8] sm:$0xff] %vm1306, %v1708
      %1751 = vst.msk [vmem:[#allocation3 + $0x1f0] sm:$0xff] %vm1306, %v1710
      %1752 = vst.msk [vmem:[#allocation3 + $0x218] sm:$0xff] %vm1306, %v1712
      %1753 = vst.msk [vmem:[#allocation3 + $0x240] sm:$0xff] %vm1306, %v1714
      %1754 = vst.msk [vmem:[#allocation3 + $0x268] sm:$0xff] %vm1306, %v1716
      %1755 = vst.msk [vmem:[#allocation3 + $0x290] sm:$0xff] %vm1306, %v1718
      %1756 = vst.msk [vmem:[#allocation3 + $0x2b8] sm:$0xff] %vm1306, %v1720
      %v1757 = vld [vmem:[#allocation2 + $0x24] sm:$0xff]
      %v1758 = vld [vmem:[#allocation2 + $0x2c] sm:$0xff]
      %v1759 = vld [vmem:[#allocation2 + $0x34] sm:$0xff]
      %v1760 = vld [vmem:[#allocation2 + $0x3c] sm:$0xff]
      %v1761 = vld [vmem:[#allocation2 + $0x44] sm:$0xff]
      %v1762 = vld [vmem:[#allocation2 + $0x4c] sm:$0xff]
      %v1763 = vld [vmem:[#allocation2 + $0x54] sm:$0xff]
      %v1764 = vld [vmem:[#allocation2 + $0x5c] sm:$0xff]
      %v1765 = vld [vmem:[#allocation2 + $0x64] sm:$0xff]
      %v1766 = vld [vmem:[#allocation2 + $0x6c] sm:$0xff]
      %v1767 = vld [vmem:[#allocation2 + $0x74] sm:$0xff]
      %v1768 = vld [vmem:[#allocation2 + $0x7c] sm:$0xff]
      %v1769 = vld [vmem:[#allocation2 + $0x84] sm:$0xff]
      %v1770 = vld [vmem:[#allocation2 + $0x8c] sm:$0xff]
      %v1771 = vld [vmem:[#allocation2 + $0x94] sm:$0xff]
      %v1772 = vld [vmem:[#allocation2 + $0x9c] sm:$0xff]
      %v1773 = vld [vmem:[#allocation2 + $0xa4] sm:$0xff]
      %v1774 = vld [vmem:[#allocation2 + $0xac] sm:$0xff]
      %v1775 = vld [vmem:[#allocation2 + $0xb4] sm:$0xff]
      %v1776 = vld [vmem:[#allocation2 + $0xbc] sm:$0xff]
      %v1777 = vld [vmem:[#allocation2 + $0xc4] sm:$0xff]
      %v1778 = vld [vmem:[#allocation2 + $0xcc] sm:$0xff]
      %v1779 = vld [vmem:[#allocation2 + $0xd4] sm:$0xff]
      %v1780 = vld [vmem:[#allocation2 + $0xdc] sm:$0xff]
      %v1781 = vld [vmem:[#allocation2 + $0xe4] sm:$0xff]
      %v1782 = vld [vmem:[#allocation2 + $0xec] sm:$0xff]
      %v1783 = vld [vmem:[#allocation2 + $0xf4] sm:$0xff]
      %v1784 = vld [vmem:[#allocation2 + $0xfc] sm:$0xff]
      %v1785 = vld [vmem:[#allocation2 + $0x104] sm:$0xff]
      %v1786 = vld [vmem:[#allocation2 + $0x10c] sm:$0xff]
      %v1787 = vld [vmem:[#allocation2 + $0x114] sm:$0xff]
      %v1788 = vld [vmem:[#allocation2 + $0x11c] sm:$0xff]
      %v1789 = vld [vmem:[#allocation2 + $0x124] sm:$0xff]
      %v1790 = vld [vmem:[#allocation2 + $0x12c] sm:$0xff]
      %v1791 = vld [vmem:[#allocation2 + $0x134] sm:$0xff]
      %v1792 = vld [vmem:[#allocation2 + $0x13c] sm:$0xff]
      %v1793 = vpack.c.bf16 %v1758, %v1757
      %v1794 = vpack.c.bf16 %v1760, %v1759
      %v1795 = vpack.c.bf16 %v1762, %v1761
      %v1796 = vpack.c.bf16 %v1764, %v1763
      %v1797 = vpack.c.bf16 %v1766, %v1765
      %v1798 = vpack.c.bf16 %v1768, %v1767
      %v1799 = vpack.c.bf16 %v1770, %v1769
      %v1800 = vpack.c.bf16 %v1772, %v1771
      %v1801 = vpack.c.bf16 %v1774, %v1773
      %v1802 = vpack.c.bf16 %v1776, %v1775
      %v1803 = vpack.c.bf16 %v1778, %v1777
      %v1804 = vpack.c.bf16 %v1780, %v1779
      %v1805 = vpack.c.bf16 %v1782, %v1781
      %v1806 = vpack.c.bf16 %v1784, %v1783
      %v1807 = vpack.c.bf16 %v1786, %v1785
      %v1808 = vpack.c.bf16 %v1788, %v1787
      %v1809 = vpack.c.bf16 %v1790, %v1789
      %v1810 = vpack.c.bf16 %v1792, %v1791
      %1811 = vst.msk [vmem:[#allocation3 + $0x18] sm:$0xff] %vm361, %v1793
      %1812 = vst.msk [vmem:[#allocation3 + $0x40] sm:$0xff] %vm361, %v1794
      %1813 = vst.msk [vmem:[#allocation3 + $0x68] sm:$0xff] %vm361, %v1795
      %1814 = vst.msk [vmem:[#allocation3 + $0x90] sm:$0xff] %vm361, %v1796
      %1815 = vst.msk [vmem:[#allocation3 + $0xb8] sm:$0xff] %vm361, %v1797
      %1816 = vst.msk [vmem:[#allocation3 + $0xe0] sm:$0xff] %vm361, %v1798
      %1817 = vst.msk [vmem:[#allocation3 + $0x108] sm:$0xff] %vm361, %v1799
      %1818 = vst.msk [vmem:[#allocation3 + $0x130] sm:$0xff] %vm361, %v1800
      %1819 = vst.msk [vmem:[#allocation3 + $0x158] sm:$0xff] %vm361, %v1801
      %1820 = vst.msk [vmem:[#allocation3 + $0x180] sm:$0xff] %vm361, %v1802
      %1821 = vst.msk [vmem:[#allocation3 + $0x1a8] sm:$0xff] %vm361, %v1803
      %1822 = vst.msk [vmem:[#allocation3 + $0x1d0] sm:$0xff] %vm361, %v1804
      %1823 = vst.msk [vmem:[#allocation3 + $0x1f8] sm:$0xff] %vm361, %v1805
      %1824 = vst.msk [vmem:[#allocation3 + $0x220] sm:$0xff] %vm361, %v1806
      %1825 = vst.msk [vmem:[#allocation3 + $0x248] sm:$0xff] %vm361, %v1807
      %1826 = vst.msk [vmem:[#allocation3 + $0x270] sm:$0xff] %vm361, %v1808
      %1827 = vst.msk [vmem:[#allocation3 + $0x298] sm:$0xff] %vm361, %v1809
      %1828 = vst.msk [vmem:[#allocation3 + $0x2c0] sm:$0xff] %vm361, %v1810
      %v1829 = vld [vmem:[#allocation2 + $0x25] sm:$0xff]
      %v1830 = vld [vmem:[#allocation2 + $0x2d] sm:$0xff]
      %v1831 = vld [vmem:[#allocation2 + $0x35] sm:$0xff]
      %v1832 = vld [vmem:[#allocation2 + $0x3d] sm:$0xff]
      %v1833 = vld [vmem:[#allocation2 + $0x45] sm:$0xff]
      %v1834 = vld [vmem:[#allocation2 + $0x4d] sm:$0xff]
      %v1835 = vld [vmem:[#allocation2 + $0x55] sm:$0xff]
      %v1836 = vld [vmem:[#allocation2 + $0x5d] sm:$0xff]
      %v1837 = vld [vmem:[#allocation2 + $0x65] sm:$0xff]
      %v1838 = vld [vmem:[#allocation2 + $0x6d] sm:$0xff]
      %v1839 = vld [vmem:[#allocation2 + $0x75] sm:$0xff]
      %v1840 = vld [vmem:[#allocation2 + $0x7d] sm:$0xff]
      %v1841 = vld [vmem:[#allocation2 + $0x85] sm:$0xff]
      %v1842 = vld [vmem:[#allocation2 + $0x8d] sm:$0xff]
      %v1843 = vld [vmem:[#allocation2 + $0x95] sm:$0xff]
      %v1844 = vld [vmem:[#allocation2 + $0x9d] sm:$0xff]
      %v1845 = vld [vmem:[#allocation2 + $0xa5] sm:$0xff]
      %v1846 = vld [vmem:[#allocation2 + $0xad] sm:$0xff]
      %v1847 = vld [vmem:[#allocation2 + $0xb5] sm:$0xff]
      %v1848 = vld [vmem:[#allocation2 + $0xbd] sm:$0xff]
      %v1849 = vld [vmem:[#allocation2 + $0xc5] sm:$0xff]
      %v1850 = vld [vmem:[#allocation2 + $0xcd] sm:$0xff]
      %v1851 = vld [vmem:[#allocation2 + $0xd5] sm:$0xff]
      %v1852 = vld [vmem:[#allocation2 + $0xdd] sm:$0xff]
      %v1853 = vld [vmem:[#allocation2 + $0xe5] sm:$0xff]
      %v1854 = vld [vmem:[#allocation2 + $0xed] sm:$0xff]
      %v1855 = vld [vmem:[#allocation2 + $0xf5] sm:$0xff]
      %v1856 = vld [vmem:[#allocation2 + $0xfd] sm:$0xff]
      %v1857 = vld [vmem:[#allocation2 + $0x105] sm:$0xff]
      %v1858 = vld [vmem:[#allocation2 + $0x10d] sm:$0xff]
      %v1859 = vld [vmem:[#allocation2 + $0x115] sm:$0xff]
      %v1860 = vld [vmem:[#allocation2 + $0x11d] sm:$0xff]
      %v1861 = vld [vmem:[#allocation2 + $0x125] sm:$0xff]
      %v1862 = vld [vmem:[#allocation2 + $0x12d] sm:$0xff]
      %v1863 = vld [vmem:[#allocation2 + $0x135] sm:$0xff]
      %v1864 = vld [vmem:[#allocation2 + $0x13d] sm:$0xff]
      %v1865 = vpack.c.bf16 %v1830, %v1829
      %v1866 = vpack.c.bf16 %v1832, %v1831
      %v1867 = vpack.c.bf16 %v1834, %v1833
      %v1868 = vpack.c.bf16 %v1836, %v1835
      %v1869 = vpack.c.bf16 %v1838, %v1837
      %v1870 = vpack.c.bf16 %v1840, %v1839
      %v1871 = vpack.c.bf16 %v1842, %v1841
      %v1872 = vpack.c.bf16 %v1844, %v1843
      %v1873 = vpack.c.bf16 %v1846, %v1845
      %v1874 = vpack.c.bf16 %v1848, %v1847
      %v1875 = vpack.c.bf16 %v1850, %v1849
      %v1876 = vpack.c.bf16 %v1852, %v1851
      %v1877 = vpack.c.bf16 %v1854, %v1853
      %v1878 = vpack.c.bf16 %v1856, %v1855
      %v1879 = vpack.c.bf16 %v1858, %v1857
      %v1880 = vpack.c.bf16 %v1860, %v1859
      %v1881 = vpack.c.bf16 %v1862, %v1861
      %v1882 = vpack.c.bf16 %v1864, %v1863
      %1901 = vrot.lane.b32.xlu0 %v1865, 64
      %v1902 = vpop.permute.xlu0 %1901
      %1903 = vrot.lane.b32.xlu0 %v1866, 64
      %v1904 = vpop.permute.xlu0 %1903
      %1905 = vrot.lane.b32.xlu0 %v1867, 64
      %v1906 = vpop.permute.xlu0 %1905
      %1907 = vrot.lane.b32.xlu0 %v1868, 64
      %v1908 = vpop.permute.xlu0 %1907
      %1909 = vrot.lane.b32.xlu0 %v1869, 64
      %v1910 = vpop.permute.xlu0 %1909
      %1911 = vrot.lane.b32.xlu0 %v1870, 64
      %v1912 = vpop.permute.xlu0 %1911
      %1913 = vrot.lane.b32.xlu0 %v1871, 64
      %v1914 = vpop.permute.xlu0 %1913
      %1915 = vrot.lane.b32.xlu0 %v1872, 64
      %v1916 = vpop.permute.xlu0 %1915
      %1917 = vrot.lane.b32.xlu0 %v1873, 64
      %v1918 = vpop.permute.xlu0 %1917
      %1919 = vrot.lane.b32.xlu0 %v1874, 64
      %v1920 = vpop.permute.xlu0 %1919
      %1921 = vrot.lane.b32.xlu0 %v1875, 64
      %v1922 = vpop.permute.xlu0 %1921
      %1923 = vrot.lane.b32.xlu0 %v1876, 64
      %v1924 = vpop.permute.xlu0 %1923
      %1925 = vrot.lane.b32.xlu0 %v1877, 64
      %v1926 = vpop.permute.xlu0 %1925
      %1927 = vrot.lane.b32.xlu0 %v1878, 64
      %v1928 = vpop.permute.xlu0 %1927
      %1929 = vrot.lane.b32.xlu0 %v1879, 64
      %v1930 = vpop.permute.xlu0 %1929
      %1931 = vrot.lane.b32.xlu0 %v1880, 64
      %v1932 = vpop.permute.xlu0 %1931
      %1933 = vrot.lane.b32.xlu0 %v1881, 64
      %v1934 = vpop.permute.xlu0 %1933
      %1935 = vrot.lane.b32.xlu0 %v1882, 64
      %v1936 = vpop.permute.xlu0 %1935
      %1955 = vst.msk [vmem:[#allocation3 + $0x18] sm:$0xff] %vm1306, %v1902
      %1956 = vst.msk [vmem:[#allocation3 + $0x40] sm:$0xff] %vm1306, %v1904
      %1957 = vst.msk [vmem:[#allocation3 + $0x68] sm:$0xff] %vm1306, %v1906
      %1958 = vst.msk [vmem:[#allocation3 + $0x90] sm:$0xff] %vm1306, %v1908
      %1959 = vst.msk [vmem:[#allocation3 + $0xb8] sm:$0xff] %vm1306, %v1910
      %1960 = vst.msk [vmem:[#allocation3 + $0xe0] sm:$0xff] %vm1306, %v1912
      %1961 = vst.msk [vmem:[#allocation3 + $0x108] sm:$0xff] %vm1306, %v1914
      %1962 = vst.msk [vmem:[#allocation3 + $0x130] sm:$0xff] %vm1306, %v1916
      %1963 = vst.msk [vmem:[#allocation3 + $0x158] sm:$0xff] %vm1306, %v1918
      %1964 = vst.msk [vmem:[#allocation3 + $0x180] sm:$0xff] %vm1306, %v1920
      %1965 = vst.msk [vmem:[#allocation3 + $0x1a8] sm:$0xff] %vm1306, %v1922
      %1966 = vst.msk [vmem:[#allocation3 + $0x1d0] sm:$0xff] %vm1306, %v1924
      %1967 = vst.msk [vmem:[#allocation3 + $0x1f8] sm:$0xff] %vm1306, %v1926
      %1968 = vst.msk [vmem:[#allocation3 + $0x220] sm:$0xff] %vm1306, %v1928
      %1969 = vst.msk [vmem:[#allocation3 + $0x248] sm:$0xff] %vm1306, %v1930
      %1970 = vst.msk [vmem:[#allocation3 + $0x270] sm:$0xff] %vm1306, %v1932
      %1971 = vst.msk [vmem:[#allocation3 + $0x298] sm:$0xff] %vm1306, %v1934
      %1972 = vst.msk [vmem:[#allocation3 + $0x2c0] sm:$0xff] %vm1306, %v1936
      %v1973 = vld [vmem:[#allocation2 + $0x26] sm:$0xff]
      %v1974 = vld [vmem:[#allocation2 + $0x2e] sm:$0xff]
      %v1975 = vld [vmem:[#allocation2 + $0x36] sm:$0xff]
      %v1976 = vld [vmem:[#allocation2 + $0x3e] sm:$0xff]
      %v1977 = vld [vmem:[#allocation2 + $0x46] sm:$0xff]
      %v1978 = vld [vmem:[#allocation2 + $0x4e] sm:$0xff]
      %v1979 = vld [vmem:[#allocation2 + $0x56] sm:$0xff]
      %v1980 = vld [vmem:[#allocation2 + $0x5e] sm:$0xff]
      %v1981 = vld [vmem:[#allocation2 + $0x66] sm:$0xff]
      %v1982 = vld [vmem:[#allocation2 + $0x6e] sm:$0xff]
      %v1983 = vld [vmem:[#allocation2 + $0x76] sm:$0xff]
      %v1984 = vld [vmem:[#allocation2 + $0x7e] sm:$0xff]
      %v1985 = vld [vmem:[#allocation2 + $0x86] sm:$0xff]
      %v1986 = vld [vmem:[#allocation2 + $0x8e] sm:$0xff]
      %v1987 = vld [vmem:[#allocation2 + $0x96] sm:$0xff]
      %v1988 = vld [vmem:[#allocation2 + $0x9e] sm:$0xff]
      %v1989 = vld [vmem:[#allocation2 + $0xa6] sm:$0xff]
      %v1990 = vld [vmem:[#allocation2 + $0xae] sm:$0xff]
      %v1991 = vld [vmem:[#allocation2 + $0xb6] sm:$0xff]
      %v1992 = vld [vmem:[#allocation2 + $0xbe] sm:$0xff]
      %v1993 = vld [vmem:[#allocation2 + $0xc6] sm:$0xff]
      %v1994 = vld [vmem:[#allocation2 + $0xce] sm:$0xff]
      %v1995 = vld [vmem:[#allocation2 + $0xd6] sm:$0xff]
      %v1996 = vld [vmem:[#allocation2 + $0xde] sm:$0xff]
      %v1997 = vld [vmem:[#allocation2 + $0xe6] sm:$0xff]
      %v1998 = vld [vmem:[#allocation2 + $0xee] sm:$0xff]
      %v1999 = vld [vmem:[#allocation2 + $0xf6] sm:$0xff]
      %v2000 = vld [vmem:[#allocation2 + $0xfe] sm:$0xff]
      %v2001 = vld [vmem:[#allocation2 + $0x106] sm:$0xff]
      %v2002 = vld [vmem:[#allocation2 + $0x10e] sm:$0xff]
      %v2003 = vld [vmem:[#allocation2 + $0x116] sm:$0xff]
      %v2004 = vld [vmem:[#allocation2 + $0x11e] sm:$0xff]
      %v2005 = vld [vmem:[#allocation2 + $0x126] sm:$0xff]
      %v2006 = vld [vmem:[#allocation2 + $0x12e] sm:$0xff]
      %v2007 = vld [vmem:[#allocation2 + $0x136] sm:$0xff]
      %v2008 = vld [vmem:[#allocation2 + $0x13e] sm:$0xff]
      %v2009 = vpack.c.bf16 %v1974, %v1973
      %v2010 = vpack.c.bf16 %v1976, %v1975
      %v2011 = vpack.c.bf16 %v1978, %v1977
      %v2012 = vpack.c.bf16 %v1980, %v1979
      %v2013 = vpack.c.bf16 %v1982, %v1981
      %v2014 = vpack.c.bf16 %v1984, %v1983
      %v2015 = vpack.c.bf16 %v1986, %v1985
      %v2016 = vpack.c.bf16 %v1988, %v1987
      %v2017 = vpack.c.bf16 %v1990, %v1989
      %v2018 = vpack.c.bf16 %v1992, %v1991
      %v2019 = vpack.c.bf16 %v1994, %v1993
      %v2020 = vpack.c.bf16 %v1996, %v1995
      %v2021 = vpack.c.bf16 %v1998, %v1997
      %v2022 = vpack.c.bf16 %v2000, %v1999
      %v2023 = vpack.c.bf16 %v2002, %v2001
      %v2024 = vpack.c.bf16 %v2004, %v2003
      %v2025 = vpack.c.bf16 %v2006, %v2005
      %v2026 = vpack.c.bf16 %v2008, %v2007
      %2027 = vst.msk [vmem:[#allocation3 + $0x20] sm:$0xff] %vm361, %v2009
      %2028 = vst.msk [vmem:[#allocation3 + $0x48] sm:$0xff] %vm361, %v2010
      %2029 = vst.msk [vmem:[#allocation3 + $0x70] sm:$0xff] %vm361, %v2011
      %2030 = vst.msk [vmem:[#allocation3 + $0x98] sm:$0xff] %vm361, %v2012
      %2031 = vst.msk [vmem:[#allocation3 + $0xc0] sm:$0xff] %vm361, %v2013
      %2032 = vst.msk [vmem:[#allocation3 + $0xe8] sm:$0xff] %vm361, %v2014
      %2033 = vst.msk [vmem:[#allocation3 + $0x110] sm:$0xff] %vm361, %v2015
      %2034 = vst.msk [vmem:[#allocation3 + $0x138] sm:$0xff] %vm361, %v2016
      %2035 = vst.msk [vmem:[#allocation3 + $0x160] sm:$0xff] %vm361, %v2017
      %2036 = vst.msk [vmem:[#allocation3 + $0x188] sm:$0xff] %vm361, %v2018
      %2037 = vst.msk [vmem:[#allocation3 + $0x1b0] sm:$0xff] %vm361, %v2019
      %2038 = vst.msk [vmem:[#allocation3 + $0x1d8] sm:$0xff] %vm361, %v2020
      %2039 = vst.msk [vmem:[#allocation3 + $0x200] sm:$0xff] %vm361, %v2021
      %2040 = vst.msk [vmem:[#allocation3 + $0x228] sm:$0xff] %vm361, %v2022
      %2041 = vst.msk [vmem:[#allocation3 + $0x250] sm:$0xff] %vm361, %v2023
      %2042 = vst.msk [vmem:[#allocation3 + $0x278] sm:$0xff] %vm361, %v2024
      %2043 = vst.msk [vmem:[#allocation3 + $0x2a0] sm:$0xff] %vm361, %v2025
      %2044 = vst.msk [vmem:[#allocation3 + $0x2c8] sm:$0xff] %vm361, %v2026
      %v2045 = vld [vmem:[#allocation3] sm:$0xff]
      %v2046 = vld [vmem:[#allocation3 + $0x8] sm:$0xff]
      %v2047 = vld [vmem:[#allocation3 + $0x10] sm:$0xff]
      %v2048 = vld [vmem:[#allocation3 + $0x18] sm:$0xff]
      %v2049 = vld [vmem:[#allocation3 + $0x20] sm:$0xff]
      %v2050 = vld [vmem:[#allocation3 + $0x28] sm:$0xff]
      %v2051 = vld [vmem:[#allocation3 + $0x30] sm:$0xff]
      %v2052 = vld [vmem:[#allocation3 + $0x38] sm:$0xff]
      %v2053 = vld [vmem:[#allocation3 + $0x40] sm:$0xff]
      %v2054 = vld [vmem:[#allocation3 + $0x48] sm:$0xff]
      %v2055 = vld [vmem:[#allocation3 + $0x50] sm:$0xff]
      %v2056 = vld [vmem:[#allocation3 + $0x58] sm:$0xff]
      %v2057 = vld [vmem:[#allocation3 + $0x60] sm:$0xff]
      %v2058 = vld [vmem:[#allocation3 + $0x68] sm:$0xff]
      %v2059 = vld [vmem:[#allocation3 + $0x70] sm:$0xff]
      %v2060 = vld [vmem:[#allocation3 + $0x78] sm:$0xff]
      %v2061 = vld [vmem:[#allocation3 + $0x80] sm:$0xff]
      %v2062 = vld [vmem:[#allocation3 + $0x88] sm:$0xff]
      %v2063 = vld [vmem:[#allocation3 + $0x90] sm:$0xff]
      %v2064 = vld [vmem:[#allocation3 + $0x98] sm:$0xff]
      %v2065 = vld [vmem:[#allocation3 + $0xa0] sm:$0xff]
      %v2066 = vld [vmem:[#allocation3 + $0xa8] sm:$0xff]
      %v2067 = vld [vmem:[#allocation3 + $0xb0] sm:$0xff]
      %v2068 = vld [vmem:[#allocation3 + $0xb8] sm:$0xff]
      %v2069 = vld [vmem:[#allocation3 + $0xc0] sm:$0xff]
      %v2070 = vld [vmem:[#allocation3 + $0xc8] sm:$0xff]
      %v2071 = vld [vmem:[#allocation3 + $0xd0] sm:$0xff]
      %v2072 = vld [vmem:[#allocation3 + $0xd8] sm:$0xff]
      %v2073 = vld [vmem:[#allocation3 + $0xe0] sm:$0xff]
      %v2074 = vld [vmem:[#allocation3 + $0xe8] sm:$0xff]
      %v2075 = vld [vmem:[#allocation3 + $0xf0] sm:$0xff]
      %v2076 = vld [vmem:[#allocation3 + $0xf8] sm:$0xff]
      %v2077 = vld [vmem:[#allocation3 + $0x100] sm:$0xff]
      %v2078 = vld [vmem:[#allocation3 + $0x108] sm:$0xff]
      %v2079 = vld [vmem:[#allocation3 + $0x110] sm:$0xff]
      %v2080 = vld [vmem:[#allocation3 + $0x118] sm:$0xff]
      %v2081 = vld [vmem:[#allocation3 + $0x120] sm:$0xff]
      %v2082 = vld [vmem:[#allocation3 + $0x128] sm:$0xff]
      %v2083 = vld [vmem:[#allocation3 + $0x130] sm:$0xff]
      %v2084 = vld [vmem:[#allocation3 + $0x138] sm:$0xff]
      %v2085 = vld [vmem:[#allocation3 + $0x140] sm:$0xff]
      %v2086 = vld [vmem:[#allocation3 + $0x148] sm:$0xff]
      %v2087 = vld [vmem:[#allocation3 + $0x150] sm:$0xff]
      %v2088 = vld [vmem:[#allocation3 + $0x158] sm:$0xff]
      %v2089 = vld [vmem:[#allocation3 + $0x160] sm:$0xff]
      %v2090 = vld [vmem:[#allocation3 + $0x168] sm:$0xff]
      %v2091 = vld [vmem:[#allocation3 + $0x170] sm:$0xff]
      %v2092 = vld [vmem:[#allocation3 + $0x178] sm:$0xff]
      %v2093 = vld [vmem:[#allocation3 + $0x180] sm:$0xff]
      %v2094 = vld [vmem:[#allocation3 + $0x188] sm:$0xff]
      %v2095 = vld [vmem:[#allocation3 + $0x190] sm:$0xff]
      %v2096 = vld [vmem:[#allocation3 + $0x198] sm:$0xff]
      %v2097 = vld [vmem:[#allocation3 + $0x1a0] sm:$0xff]
      %v2098 = vld [vmem:[#allocation3 + $0x1a8] sm:$0xff]
      %v2099 = vld [vmem:[#allocation3 + $0x1b0] sm:$0xff]
      %v2100 = vld [vmem:[#allocation3 + $0x1b8] sm:$0xff]
      %v2101 = vld [vmem:[#allocation3 + $0x1c0] sm:$0xff]
      %v2102 = vld [vmem:[#allocation3 + $0x1c8] sm:$0xff]
      %v2103 = vld [vmem:[#allocation3 + $0x1d0] sm:$0xff]
      %v2104 = vld [vmem:[#allocation3 + $0x1d8] sm:$0xff]
      %v2105 = vld [vmem:[#allocation3 + $0x1e0] sm:$0xff]
      %v2106 = vld [vmem:[#allocation3 + $0x1e8] sm:$0xff]
      %v2107 = vld [vmem:[#allocation3 + $0x1f0] sm:$0xff]
      %v2108 = vld [vmem:[#allocation3 + $0x1f8] sm:$0xff]
      %v2109 = vld [vmem:[#allocation3 + $0x200] sm:$0xff]
      %v2110 = vld [vmem:[#allocation3 + $0x208] sm:$0xff]
      %v2111 = vld [vmem:[#allocation3 + $0x210] sm:$0xff]
      %v2112 = vld [vmem:[#allocation3 + $0x218] sm:$0xff]
      %v2113 = vld [vmem:[#allocation3 + $0x220] sm:$0xff]
      %v2114 = vld [vmem:[#allocation3 + $0x228] sm:$0xff]
      %v2115 = vld [vmem:[#allocation3 + $0x230] sm:$0xff]
      %v2116 = vld [vmem:[#allocation3 + $0x238] sm:$0xff]
      %v2117 = vld [vmem:[#allocation3 + $0x240] sm:$0xff]
      %v2118 = vld [vmem:[#allocation3 + $0x248] sm:$0xff]
      %v2119 = vld [vmem:[#allocation3 + $0x250] sm:$0xff]
      %v2120 = vld [vmem:[#allocation3 + $0x258] sm:$0xff]
      %v2121 = vld [vmem:[#allocation3 + $0x260] sm:$0xff]
      %v2122 = vld [vmem:[#allocation3 + $0x268] sm:$0xff]
      %v2123 = vld [vmem:[#allocation3 + $0x270] sm:$0xff]
      %v2124 = vld [vmem:[#allocation3 + $0x278] sm:$0xff]
      %v2125 = vld [vmem:[#allocation3 + $0x280] sm:$0xff]
      %v2126 = vld [vmem:[#allocation3 + $0x288] sm:$0xff]
      %v2127 = vld [vmem:[#allocation3 + $0x290] sm:$0xff]
      %v2128 = vld [vmem:[#allocation3 + $0x298] sm:$0xff]
      %v2129 = vld [vmem:[#allocation3 + $0x2a0] sm:$0xff]
      %v2130 = vld [vmem:[#allocation3 + $0x2a8] sm:$0xff]
      %v2131 = vld [vmem:[#allocation3 + $0x2b0] sm:$0xff]
      %v2132 = vld [vmem:[#allocation3 + $0x2b8] sm:$0xff]
      %v2133 = vld [vmem:[#allocation3 + $0x2c0] sm:$0xff]
      %v2134 = vld [vmem:[#allocation3 + $0x2c8] sm:$0xff]
      %v2135 = vld [vmem:[%s4] sm:$0xf]
      %v2136 = vld [vmem:[%s4 + $0x4] sm:$0xf]
      %v2137 = vld [vmem:[%s4 + $0x8] sm:$0xf]
      %v2138 = vld [vmem:[%s4 + $0xc] sm:$0xf]
      %v2139 = vld [vmem:[%s4 + $0x10] sm:$0xf]
      %v2140 = vld [vmem:[%s4 + $0x14] sm:$0xf]
      %v2141 = vld [vmem:[%s4 + $0x18] sm:$0xf]
      %v2142 = vld [vmem:[%s4 + $0x1c] sm:$0xf]
      %v2143 = vld [vmem:[%s4 + $0x20] sm:$0xf]
      %v2144 = vld [vmem:[%s4 + $0x24] sm:$0xf]
      %v2145 = vld [vmem:[%s4 + $0x28] sm:$0xf]
      %v2146 = vld [vmem:[%s4 + $0x2c] sm:$0xf]
      %v2147 = vld [vmem:[%s4 + $0x30] sm:$0xf]
      %v2148 = vld [vmem:[%s4 + $0x34] sm:$0xf]
      %v2149 = vld [vmem:[%s4 + $0x38] sm:$0xf]
      %v2150 = vld [vmem:[%s4 + $0x3c] sm:$0xf]
      %v2151 = vld [vmem:[%s4 + $0x40] sm:$0xf]
      %v2152 = vld [vmem:[%s4 + $0x44] sm:$0xf]
      %v2153 = vld [vmem:[%s4 + $0x48] sm:$0xf]
      %v2154 = vld [vmem:[%s4 + $0x4c] sm:$0xf]
      %v2155 = vld [vmem:[%s4 + $0x50] sm:$0xf]
      %v2156 = vld [vmem:[%s4 + $0x54] sm:$0xf]
      %v2157 = vld [vmem:[%s4 + $0x58] sm:$0xf]
      %v2158 = vld [vmem:[%s4 + $0x5c] sm:$0xf]
      %v2159 = vld [vmem:[%s4 + $0x60] sm:$0xf]
      %v2160 = vld [vmem:[%s4 + $0x64] sm:$0xf]
      %v2161 = vld [vmem:[%s4 + $0x68] sm:$0xf]
      %v2162 = vld [vmem:[%s4 + $0x6c] sm:$0xf]
      %v2163 = vld [vmem:[%s4 + $0x70] sm:$0xf]
      %v2164 = vld [vmem:[%s4 + $0x74] sm:$0xf]
      %v2165 = vld [vmem:[%s4 + $0x78] sm:$0xf]
      %v2166 = vld [vmem:[%s4 + $0x7c] sm:$0xf]
      %v2167 = vld [vmem:[%s4 + $0x80] sm:$0xf]
      %v2168 = vld [vmem:[%s4 + $0x84] sm:$0xf]
      %v2169 = vld [vmem:[%s4 + $0x88] sm:$0xf]
      %v2170 = vld [vmem:[%s4 + $0x8c] sm:$0xf]
      %v2171 = vld [vmem:[%s4 + $0x90] sm:$0xf]
      %v2172 = vld [vmem:[%s4 + $0x94] sm:$0xf]
      %v2173 = vld [vmem:[%s4 + $0x98] sm:$0xf]
      %v2174 = vld [vmem:[%s4 + $0x9c] sm:$0xf]
      %v2175 = vld [vmem:[%s4 + $0xa0] sm:$0xf]
      %v2176 = vld [vmem:[%s4 + $0xa4] sm:$0xf]
      %v2177 = vld [vmem:[%s4 + $0xa8] sm:$0xf]
      %v2178 = vld [vmem:[%s4 + $0xac] sm:$0xf]
      %v2179 = vld [vmem:[%s4 + $0xb0] sm:$0xf]
      %v2180 = vld [vmem:[%s4 + $0xb4] sm:$0xf]
      %v2181 = vld [vmem:[%s4 + $0xb8] sm:$0xf]
      %v2182 = vld [vmem:[%s4 + $0xbc] sm:$0xf]
      %v2183 = vld [vmem:[%s4 + $0xc0] sm:$0xf]
      %v2184 = vld [vmem:[%s4 + $0xc4] sm:$0xf]
      %v2185 = vld [vmem:[%s4 + $0xc8] sm:$0xf]
      %v2186 = vld [vmem:[%s4 + $0xcc] sm:$0xf]
      %v2187 = vld [vmem:[%s4 + $0xd0] sm:$0xf]
      %v2188 = vld [vmem:[%s4 + $0xd4] sm:$0xf]
      %v2189 = vld [vmem:[%s4 + $0xd8] sm:$0xf]
      %v2190 = vld [vmem:[%s4 + $0xdc] sm:$0xf]
      %v2191 = vld [vmem:[%s4 + $0xe0] sm:$0xf]
      %v2192 = vld [vmem:[%s4 + $0xe4] sm:$0xf]
      %v2193 = vld [vmem:[%s4 + $0xe8] sm:$0xf]
      %v2194 = vld [vmem:[%s4 + $0xec] sm:$0xf]
      %v2195 = vld [vmem:[%s4 + $0xf0] sm:$0xf]
      %v2196 = vld [vmem:[%s4 + $0xf4] sm:$0xf]
      %v2197 = vld [vmem:[%s4 + $0xf8] sm:$0xf]
      %v2198 = vld [vmem:[%s4 + $0xfc] sm:$0xf]
      %v2199 = vld [vmem:[%s4 + $0x100] sm:$0xf]
      %v2200 = vld [vmem:[%s4 + $0x104] sm:$0xf]
      %v2201 = vld [vmem:[%s4 + $0x108] sm:$0xf]
      %v2202 = vld [vmem:[%s4 + $0x10c] sm:$0xf]
      %v2203 = vld [vmem:[%s4 + $0x110] sm:$0xf]
      %v2204 = vld [vmem:[%s4 + $0x114] sm:$0xf]
      %v2205 = vld [vmem:[%s4 + $0x118] sm:$0xf]
      %v2206 = vld [vmem:[%s4 + $0x11c] sm:$0xf]
      %v2207 = vld [vmem:[%s5] sm:$0x1]
      %v2209 = vlaneseq
      %v2210 = vshrl.u32 %v2209, 7
      %v2211 = vsub.s32 0, %v2210
      %v2212 = vrot.slane %v2207, %v2211
      %v2286 = vunpack.c.l.b16 %v2135
      %v2287 = vunpack.c.l.b16 %v2136
      %v2288 = vunpack.c.l.b16 %v2137
      %v2289 = vunpack.c.l.b16 %v2138
      %v2290 = vunpack.c.l.b16 %v2139
      %v2291 = vunpack.c.l.b16 %v2140
      %v2292 = vunpack.c.l.b16 %v2141
      %v2293 = vunpack.c.l.b16 %v2142
      %v2294 = vunpack.c.l.b16 %v2143
      %v2295 = vunpack.c.l.b16 %v2144
      %v2296 = vunpack.c.l.b16 %v2145
      %v2297 = vunpack.c.l.b16 %v2146
      %v2298 = vunpack.c.l.b16 %v2147
      %v2299 = vunpack.c.l.b16 %v2148
      %v2300 = vunpack.c.l.b16 %v2149
      %v2301 = vunpack.c.l.b16 %v2150
      %v2302 = vunpack.c.l.b16 %v2151
      %v2303 = vunpack.c.l.b16 %v2152
      %v2304 = vunpack.c.l.b16 %v2153
      %v2305 = vunpack.c.l.b16 %v2154
      %v2306 = vunpack.c.l.b16 %v2155
      %v2307 = vunpack.c.l.b16 %v2156
      %v2308 = vunpack.c.l.b16 %v2157
      %v2309 = vunpack.c.l.b16 %v2158
      %v2310 = vunpack.c.l.b16 %v2159
      %v2311 = vunpack.c.l.b16 %v2160
      %v2312 = vunpack.c.l.b16 %v2161
      %v2313 = vunpack.c.l.b16 %v2162
      %v2314 = vunpack.c.l.b16 %v2163
      %v2315 = vunpack.c.l.b16 %v2164
      %v2316 = vunpack.c.l.b16 %v2165
      %v2317 = vunpack.c.l.b16 %v2166
      %v2318 = vunpack.c.l.b16 %v2167
      %v2319 = vunpack.c.l.b16 %v2168
      %v2320 = vunpack.c.l.b16 %v2169
      %v2321 = vunpack.c.l.b16 %v2170
      %v2322 = vunpack.c.l.b16 %v2171
      %v2323 = vunpack.c.l.b16 %v2172
      %v2324 = vunpack.c.l.b16 %v2173
      %v2325 = vunpack.c.l.b16 %v2174
      %v2326 = vunpack.c.l.b16 %v2175
      %v2327 = vunpack.c.l.b16 %v2176
      %v2328 = vunpack.c.l.b16 %v2177
      %v2329 = vunpack.c.l.b16 %v2178
      %v2330 = vunpack.c.l.b16 %v2179
      %v2331 = vunpack.c.l.b16 %v2180
      %v2332 = vunpack.c.l.b16 %v2181
      %v2333 = vunpack.c.l.b16 %v2182
      %v2334 = vunpack.c.l.b16 %v2183
      %v2335 = vunpack.c.l.b16 %v2184
      %v2336 = vunpack.c.l.b16 %v2185
      %v2337 = vunpack.c.l.b16 %v2186
      %v2338 = vunpack.c.l.b16 %v2187
      %v2339 = vunpack.c.l.b16 %v2188
      %v2340 = vunpack.c.l.b16 %v2189
      %v2341 = vunpack.c.l.b16 %v2190
      %v2342 = vunpack.c.l.b16 %v2191
      %v2343 = vunpack.c.l.b16 %v2192
      %v2344 = vunpack.c.l.b16 %v2193
      %v2345 = vunpack.c.l.b16 %v2194
      %v2346 = vunpack.c.l.b16 %v2195
      %v2347 = vunpack.c.l.b16 %v2196
      %v2348 = vunpack.c.l.b16 %v2197
      %v2349 = vunpack.c.l.b16 %v2198
      %v2350 = vunpack.c.l.b16 %v2199
      %v2351 = vunpack.c.l.b16 %v2200
      %v2352 = vunpack.c.l.b16 %v2201
      %v2353 = vunpack.c.l.b16 %v2202
      %v2354 = vunpack.c.l.b16 %v2203
      %v2355 = vunpack.c.l.b16 %v2204
      %v2356 = vunpack.c.l.b16 %v2205
      %v2357 = vunpack.c.l.b16 %v2206
      %v2358 = vpack.c.b16 %v2287, %v2286
      %v2359 = vpack.c.b16 %v2289, %v2288
      %v2360 = vpack.c.b16 %v2291, %v2290
      %v2361 = vpack.c.b16 %v2293, %v2292
      %v2362 = vpack.c.b16 %v2295, %v2294
      %v2363 = vpack.c.b16 %v2297, %v2296
      %v2364 = vpack.c.b16 %v2299, %v2298
      %v2365 = vpack.c.b16 %v2301, %v2300
      %v2366 = vpack.c.b16 %v2303, %v2302
      %v2367 = vpack.c.b16 %v2305, %v2304
      %v2368 = vpack.c.b16 %v2307, %v2306
      %v2369 = vpack.c.b16 %v2309, %v2308
      %v2370 = vpack.c.b16 %v2311, %v2310
      %v2371 = vpack.c.b16 %v2313, %v2312
      %v2372 = vpack.c.b16 %v2315, %v2314
      %v2373 = vpack.c.b16 %v2317, %v2316
      %v2374 = vpack.c.b16 %v2319, %v2318
      %v2375 = vpack.c.b16 %v2321, %v2320
      %v2376 = vpack.c.b16 %v2323, %v2322
      %v2377 = vpack.c.b16 %v2325, %v2324
      %v2378 = vpack.c.b16 %v2327, %v2326
      %v2379 = vpack.c.b16 %v2329, %v2328
      %v2380 = vpack.c.b16 %v2331, %v2330
      %v2381 = vpack.c.b16 %v2333, %v2332
      %v2382 = vpack.c.b16 %v2335, %v2334
      %v2383 = vpack.c.b16 %v2337, %v2336
      %v2384 = vpack.c.b16 %v2339, %v2338
      %v2385 = vpack.c.b16 %v2341, %v2340
      %v2386 = vpack.c.b16 %v2343, %v2342
      %v2387 = vpack.c.b16 %v2345, %v2344
      %v2388 = vpack.c.b16 %v2347, %v2346
      %v2389 = vpack.c.b16 %v2349, %v2348
      %v2390 = vpack.c.b16 %v2351, %v2350
      %v2391 = vpack.c.b16 %v2353, %v2352
      %v2392 = vpack.c.b16 %v2355, %v2354
      %v2393 = vpack.c.b16 %v2357, %v2356
      %v2431 = vsel %vm361, %v2049, 0
      %v2434 = vsel %vm361, %v2054, 0
      %v2437 = vsel %vm361, %v2059, 0
      %v2440 = vsel %vm361, %v2064, 0
      %v2443 = vsel %vm361, %v2069, 0
      %v2446 = vsel %vm361, %v2074, 0
      %v2449 = vsel %vm361, %v2079, 0
      %v2452 = vsel %vm361, %v2084, 0
      %v2455 = vsel %vm361, %v2089, 0
      %v2458 = vsel %vm361, %v2094, 0
      %v2461 = vsel %vm361, %v2099, 0
      %v2464 = vsel %vm361, %v2104, 0
      %v2467 = vsel %vm361, %v2109, 0
      %v2470 = vsel %vm361, %v2114, 0
      %v2473 = vsel %vm361, %v2119, 0
      %v2476 = vsel %vm361, %v2124, 0
      %v2479 = vsel %vm361, %v2129, 0
      %v2482 = vsel %vm361, %v2134, 0
      %2484 = vmatprep.subr.bf16.mxu0 0
      %2485 = vmatpush1.bf16.msra.mxu0 %v2358
      %2486 = vmatprep.subr.bf16.mxu0 0
      %2487 = vmatpush1.bf16.msra.mxu0 %v2359
      %2488 = vmatprep.subr.bf16.mxu0 0
      %2489 = vmatpush1.bf16.msra.mxu0 %v2360
      %2490 = vmatprep.subr.bf16.mxu0 0
      %2491 = vmatpush1.bf16.msra.mxu0 %v2361
      %2492 = vmatprep.subr.bf16.mxu0 0
      %2493 = vmatpush1.bf16.msra.mxu0 %v2362
      %2494 = vmatprep.subr.bf16.mxu0 0
      %2495 = vmatpush1.bf16.msra.mxu0 %v2363
      %2496 = vmatprep.subr.bf16.mxu0 0
      %2497 = vmatpush1.bf16.msra.mxu0 %v2364
      %2498 = vmatprep.subr.bf16.mxu0 0
      %2499 = vmatpush1.bf16.msra.mxu0 %v2365
      %2500 = vmatprep.subr.bf16.mxu0 0
      %2501 = vmatpush1.bf16.msra.mxu0 %v2366
      %2502 = vmatprep.subr.bf16.mxu0 0
      %2503 = vmatpush1.bf16.msra.mxu0 %v2367
      %2504 = vmatprep.subr.bf16.mxu0 0
      %2505 = vmatpush1.bf16.msra.mxu0 %v2368
      %2506 = vmatprep.subr.bf16.mxu0 0
      %2507 = vmatpush1.bf16.msra.mxu0 %v2369
      %2508 = vmatprep.subr.bf16.mxu0 0
      %2509 = vmatpush1.bf16.msra.mxu0 %v2370
      %2510 = vmatprep.subr.bf16.mxu0 0
      %2511 = vmatpush1.bf16.msra.mxu0 %v2371
      %2512 = vmatprep.subr.bf16.mxu0 0
      %2513 = vmatpush1.bf16.msra.mxu0 %v2372
      %2514 = vmatprep.subr.bf16.mxu0 0
      %2515 = vmatpush1.bf16.msra.mxu0 %v2373
      %2516 = vmatprep.mubr.bf16.mxu0 %v2046
      %2517 = vmatmul.mubr.bf16.gmra.mrb[0].mxu0 %v2045
      %v2518 = vpop.f32.mrb[0].mxu0
      %v2519 = vadd.f32 %v2212, %v2518
      %v2520 = vpop.f32.mrb[0].mxu0
      %v2521 = vpop.f32.mrb[0].mxu0
      %v2522 = vadd.f32 %v2212, %v2521
      %v2523 = vpop.f32.mrb[0].mxu0
      %2524 = vmatprep.mubr.bf16.mxu0 %v2051
      %2525 = vmatmul.mubr.bf16.gmra.mrb[0].mxu0 %v2050
      %v2526 = vpop.f32.mrb[0].mxu0
      %v2527 = vadd.f32 %v2212, %v2526
      %v2528 = vpop.f32.mrb[0].mxu0
      %v2529 = vpop.f32.mrb[0].mxu0
      %v2530 = vadd.f32 %v2212, %v2529
      %v2531 = vpop.f32.mrb[0].mxu0
      %2532 = vmatprep.mubr.bf16.mxu0 %v2056
      %2533 = vmatmul.mubr.bf16.gmra.mrb[0].mxu0 %v2055
      %v2534 = vpop.f32.mrb[0].mxu0
      %v2535 = vadd.f32 %v2212, %v2534
      %v2536 = vpop.f32.mrb[0].mxu0
      %v2537 = vpop.f32.mrb[0].mxu0
      %v2538 = vadd.f32 %v2212, %v2537
      %v2539 = vpop.f32.mrb[0].mxu0
      %2540 = vmatprep.mubr.bf16.mxu0 %v2061
      %2541 = vmatmul.mubr.bf16.gmra.mrb[0].mxu0 %v2060
      %v2542 = vpop.f32.mrb[0].mxu0
      %v2543 = vadd.f32 %v2212, %v2542
      %v2544 = vpop.f32.mrb[0].mxu0
      %v2545 = vpop.f32.mrb[0].mxu0
      %v2546 = vadd.f32 %v2212, %v2545
      %v2547 = vpop.f32.mrb[0].mxu0
      %2548 = vmatprep.mubr.bf16.mxu0 %v2066
      %2549 = vmatmul.mubr.bf16.gmra.mrb[0].mxu0 %v2065
      %v2550 = vpop.f32.mrb[0].mxu0
      %v2551 = vadd.f32 %v2212, %v2550
      %v2552 = vpop.f32.mrb[0].mxu0
      %v2553 = vpop.f32.mrb[0].mxu0
      %v2554 = vadd.f32 %v2212, %v2553
      %v2555 = vpop.f32.mrb[0].mxu0
      %2556 = vmatprep.mubr.bf16.mxu0 %v2071
      %2557 = vmatmul.mubr.bf16.gmra.mrb[0].mxu0 %v2070
      %v2558 = vpop.f32.mrb[0].mxu0
      %v2559 = vadd.f32 %v2212, %v2558
      %v2560 = vpop.f32.mrb[0].mxu0
      %v2561 = vpop.f32.mrb[0].mxu0
      %v2562 = vadd.f32 %v2212, %v2561
      %v2563 = vpop.f32.mrb[0].mxu0
      %2564 = vmatprep.mubr.bf16.mxu0 %v2076
      %2565 = vmatmul.mubr.bf16.gmra.mrb[0].mxu0 %v2075
      %v2566 = vpop.f32.mrb[0].mxu0
      %v2567 = vadd.f32 %v2212, %v2566
      %v2568 = vpop.f32.mrb[0].mxu0
      %v2569 = vpop.f32.mrb[0].mxu0
      %v2570 = vadd.f32 %v2212, %v2569
      %v2571 = vpop.f32.mrb[0].mxu0
      %2572 = vmatprep.mubr.bf16.mxu0 %v2081
      %2573 = vmatmul.mubr.bf16.gmra.mrb[0].mxu0 %v2080
      %v2574 = vpop.f32.mrb[0].mxu0
      %v2575 = vadd.f32 %v2212, %v2574
      %v2576 = vpop.f32.mrb[0].mxu0
      %v2577 = vpop.f32.mrb[0].mxu0
      %v2578 = vadd.f32 %v2212, %v2577
      %v2579 = vpop.f32.mrb[0].mxu0
      %2580 = vmatprep.mubr.bf16.mxu0 %v2086
      %2581 = vmatmul.mubr.bf16.gmra.mrb[0].mxu0 %v2085
      %v2582 = vpop.f32.mrb[0].mxu0
      %v2583 = vadd.f32 %v2212, %v2582
      %v2584 = vpop.f32.mrb[0].mxu0
      %v2585 = vpop.f32.mrb[0].mxu0
      %v2586 = vadd.f32 %v2212, %v2585
      %v2587 = vpop.f32.mrb[0].mxu0
      %2588 = vmatprep.mubr.bf16.mxu0 %v2091
      %2589 = vmatmul.mubr.bf16.gmra.mrb[0].mxu0 %v2090
      %v2590 = vpop.f32.mrb[0].mxu0
      %v2591 = vadd.f32 %v2212, %v2590
      %v2592 = vpop.f32.mrb[0].mxu0
      %v2593 = vpop.f32.mrb[0].mxu0
      %v2594 = vadd.f32 %v2212, %v2593
      %v2595 = vpop.f32.mrb[0].mxu0
      %2596 = vmatprep.mubr.bf16.mxu0 %v2096
      %2597 = vmatmul.mubr.bf16.gmra.mrb[0].mxu0 %v2095
      %v2598 = vpop.f32.mrb[0].mxu0
      %v2599 = vadd.f32 %v2212, %v2598
      %v2600 = vpop.f32.mrb[0].mxu0
      %v2601 = vpop.f32.mrb[0].mxu0
      %v2602 = vadd.f32 %v2212, %v2601
      %v2603 = vpop.f32.mrb[0].mxu0
      %2604 = vmatprep.mubr.bf16.mxu0 %v2101
      %2605 = vmatmul.mubr.bf16.gmra.mrb[0].mxu0 %v2100
      %v2606 = vpop.f32.mrb[0].mxu0
      %v2607 = vadd.f32 %v2212, %v2606
      %v2608 = vpop.f32.mrb[0].mxu0
      %v2609 = vpop.f32.mrb[0].mxu0
      %v2610 = vadd.f32 %v2212, %v2609
      %v2611 = vpop.f32.mrb[0].mxu0
      %2612 = vmatprep.mubr.bf16.mxu0 %v2106
      %2613 = vmatmul.mubr.bf16.gmra.mrb[0].mxu0 %v2105
      %v2614 = vpop.f32.mrb[0].mxu0
      %v2615 = vadd.f32 %v2212, %v2614
      %v2616 = vpop.f32.mrb[0].mxu0
      %v2617 = vpop.f32.mrb[0].mxu0
      %v2618 = vadd.f32 %v2212, %v2617
      %v2619 = vpop.f32.mrb[0].mxu0
      %2620 = vmatprep.mubr.bf16.mxu0 %v2111
      %2621 = vmatmul.mubr.bf16.gmra.mrb[0].mxu0 %v2110
      %v2622 = vpop.f32.mrb[0].mxu0
      %v2623 = vadd.f32 %v2212, %v2622
      %v2624 = vpop.f32.mrb[0].mxu0
      %v2625 = vpop.f32.mrb[0].mxu0
      %v2626 = vadd.f32 %v2212, %v2625
      %v2627 = vpop.f32.mrb[0].mxu0
      %2628 = vmatprep.mubr.bf16.mxu0 %v2116
      %2629 = vmatmul.mubr.bf16.gmra.mrb[0].mxu0 %v2115
      %v2630 = vpop.f32.mrb[0].mxu0
      %v2631 = vadd.f32 %v2212, %v2630
      %v2632 = vpop.f32.mrb[0].mxu0
      %v2633 = vpop.f32.mrb[0].mxu0
      %v2634 = vadd.f32 %v2212, %v2633
      %v2635 = vpop.f32.mrb[0].mxu0
      %2636 = vmatprep.mubr.bf16.mxu0 %v2121
      %2637 = vmatmul.mubr.bf16.gmra.mrb[0].mxu0 %v2120
      %v2638 = vpop.f32.mrb[0].mxu0
      %v2639 = vadd.f32 %v2212, %v2638
      %v2640 = vpop.f32.mrb[0].mxu0
      %v2641 = vpop.f32.mrb[0].mxu0
      %v2642 = vadd.f32 %v2212, %v2641
      %v2643 = vpop.f32.mrb[0].mxu0
      %2644 = vmatprep.mubr.bf16.mxu0 %v2126
      %2645 = vmatmul.mubr.bf16.gmra.mrb[0].mxu0 %v2125
      %v2646 = vpop.f32.mrb[0].mxu0
      %v2647 = vadd.f32 %v2212, %v2646
      %v2648 = vpop.f32.mrb[0].mxu0
      %v2649 = vpop.f32.mrb[0].mxu0
      %v2650 = vadd.f32 %v2212, %v2649
      %v2651 = vpop.f32.mrb[0].mxu0
      %2652 = vmatprep.mubr.bf16.mxu0 %v2131
      %2653 = vmatmul.mubr.bf16.gmra.mrb[0].mxu0 %v2130
      %v2654 = vpop.f32.mrb[0].mxu0
      %v2655 = vadd.f32 %v2212, %v2654
      %v2656 = vpop.f32.mrb[0].mxu0
      %v2657 = vpop.f32.mrb[0].mxu0
      %v2658 = vadd.f32 %v2212, %v2657
      %v2659 = vpop.f32.mrb[0].mxu0
      %2660 = vdwg.mxu0
      %2661 = vmatprep.subr.bf16.mxu0 0
      %2662 = vmatpush1.bf16.msra.mxu0 %v2374
      %2663 = vmatprep.subr.bf16.mxu0 0
      %2664 = vmatpush1.bf16.msra.mxu0 %v2375
      %2665 = vmatprep.subr.bf16.mxu0 0
      %2666 = vmatpush1.bf16.msra.mxu0 %v2376
      %2667 = vmatprep.subr.bf16.mxu0 0
      %2668 = vmatpush1.bf16.msra.mxu0 %v2377
      %2669 = vmatprep.subr.bf16.mxu0 0
      %2670 = vmatpush1.bf16.msra.mxu0 %v2378
      %2671 = vmatprep.subr.bf16.mxu0 0
      %2672 = vmatpush1.bf16.msra.mxu0 %v2379
      %2673 = vmatprep.subr.bf16.mxu0 0
      %2674 = vmatpush1.bf16.msra.mxu0 %v2380
      %2675 = vmatprep.subr.bf16.mxu0 0
      %2676 = vmatpush1.bf16.msra.mxu0 %v2381
      %2677 = vmatprep.subr.bf16.mxu0 0
      %2678 = vmatpush1.bf16.msra.mxu0 %v2382
      %2679 = vmatprep.subr.bf16.mxu0 0
      %2680 = vmatpush1.bf16.msra.mxu0 %v2383
      %2681 = vmatprep.subr.bf16.mxu0 0
      %2682 = vmatpush1.bf16.msra.mxu0 %v2384
      %2683 = vmatprep.subr.bf16.mxu0 0
      %2684 = vmatpush1.bf16.msra.mxu0 %v2385
      %2685 = vmatprep.subr.bf16.mxu0 0
      %2686 = vmatpush1.bf16.msra.mxu0 %v2386
      %2687 = vmatprep.subr.bf16.mxu0 0
      %2688 = vmatpush1.bf16.msra.mxu0 %v2387
      %2689 = vmatprep.subr.bf16.mxu0 0
      %2690 = vmatpush1.bf16.msra.mxu0 %v2388
      %2691 = vmatprep.subr.bf16.mxu0 0
      %2692 = vmatpush1.bf16.msra.mxu0 %v2389
      %2693 = vmatprep.mubr.bf16.mxu0 %v2048
      %2694 = vmatmul.mubr.bf16.gmra.mrb[0].mxu0 %v2047
      %v2695 = vpop.f32.mrb[0].mxu0
      %v2696 = vadd.f32 %v2519, %v2695
      %v2697 = vpop.f32.mrb[0].mxu0
      %v2698 = vpop.f32.mrb[0].mxu0
      %v2699 = vadd.f32 %v2522, %v2698
      %v2700 = vpop.f32.mrb[0].mxu0
      %2701 = vmatprep.mubr.bf16.mxu0 %v2053
      %2702 = vmatmul.mubr.bf16.gmra.mrb[0].mxu0 %v2052
      %v2703 = vpop.f32.mrb[0].mxu0
      %v2704 = vadd.f32 %v2527, %v2703
      %v2705 = vpop.f32.mrb[0].mxu0
      %v2706 = vpop.f32.mrb[0].mxu0
      %v2707 = vadd.f32 %v2530, %v2706
      %v2708 = vpop.f32.mrb[0].mxu0
      %2709 = vmatprep.mubr.bf16.mxu0 %v2058
      %2710 = vmatmul.mubr.bf16.gmra.mrb[0].mxu0 %v2057
      %v2711 = vpop.f32.mrb[0].mxu0
      %v2712 = vadd.f32 %v2535, %v2711
      %v2713 = vpop.f32.mrb[0].mxu0
      %v2714 = vpop.f32.mrb[0].mxu0
      %v2715 = vadd.f32 %v2538, %v2714
      %v2716 = vpop.f32.mrb[0].mxu0
      %2717 = vmatprep.mubr.bf16.mxu0 %v2063
      %2718 = vmatmul.mubr.bf16.gmra.mrb[0].mxu0 %v2062
      %v2719 = vpop.f32.mrb[0].mxu0
      %v2720 = vadd.f32 %v2543, %v2719
      %v2721 = vpop.f32.mrb[0].mxu0
      %v2722 = vpop.f32.mrb[0].mxu0
      %v2723 = vadd.f32 %v2546, %v2722
      %v2724 = vpop.f32.mrb[0].mxu0
      %2725 = vmatprep.mubr.bf16.mxu0 %v2068
      %2726 = vmatmul.mubr.bf16.gmra.mrb[0].mxu0 %v2067
      %v2727 = vpop.f32.mrb[0].mxu0
      %v2728 = vadd.f32 %v2551, %v2727
      %v2729 = vpop.f32.mrb[0].mxu0
      %v2730 = vpop.f32.mrb[0].mxu0
      %v2731 = vadd.f32 %v2554, %v2730
      %v2732 = vpop.f32.mrb[0].mxu0
      %2733 = vmatprep.mubr.bf16.mxu0 %v2073
      %2734 = vmatmul.mubr.bf16.gmra.mrb[0].mxu0 %v2072
      %v2735 = vpop.f32.mrb[0].mxu0
      %v2736 = vadd.f32 %v2559, %v2735
      %v2737 = vpop.f32.mrb[0].mxu0
      %v2738 = vpop.f32.mrb[0].mxu0
      %v2739 = vadd.f32 %v2562, %v2738
      %v2740 = vpop.f32.mrb[0].mxu0
      %2741 = vmatprep.mubr.bf16.mxu0 %v2078
      %2742 = vmatmul.mubr.bf16.gmra.mrb[0].mxu0 %v2077
      %v2743 = vpop.f32.mrb[0].mxu0
      %v2744 = vadd.f32 %v2567, %v2743
      %v2745 = vpop.f32.mrb[0].mxu0
      %v2746 = vpop.f32.mrb[0].mxu0
      %v2747 = vadd.f32 %v2570, %v2746
      %v2748 = vpop.f32.mrb[0].mxu0
      %2749 = vmatprep.mubr.bf16.mxu0 %v2083
      %2750 = vmatmul.mubr.bf16.gmra.mrb[0].mxu0 %v2082
      %v2751 = vpop.f32.mrb[0].mxu0
      %v2752 = vadd.f32 %v2575, %v2751
      %v2753 = vpop.f32.mrb[0].mxu0
      %v2754 = vpop.f32.mrb[0].mxu0
      %v2755 = vadd.f32 %v2578, %v2754
      %v2756 = vpop.f32.mrb[0].mxu0
      %2757 = vmatprep.mubr.bf16.mxu0 %v2088
      %2758 = vmatmul.mubr.bf16.gmra.mrb[0].mxu0 %v2087
      %v2759 = vpop.f32.mrb[0].mxu0
      %v2760 = vadd.f32 %v2583, %v2759
      %v2761 = vpop.f32.mrb[0].mxu0
      %v2762 = vpop.f32.mrb[0].mxu0
      %v2763 = vadd.f32 %v2586, %v2762
      %v2764 = vpop.f32.mrb[0].mxu0
      %2765 = vmatprep.mubr.bf16.mxu0 %v2093
      %2766 = vmatmul.mubr.bf16.gmra.mrb[0].mxu0 %v2092
      %v2767 = vpop.f32.mrb[0].mxu0
      %v2768 = vadd.f32 %v2591, %v2767
      %v2769 = vpop.f32.mrb[0].mxu0
      %v2770 = vpop.f32.mrb[0].mxu0
      %v2771 = vadd.f32 %v2594, %v2770
      %v2772 = vpop.f32.mrb[0].mxu0
      %2773 = vmatprep.mubr.bf16.mxu0 %v2098
      %2774 = vmatmul.mubr.bf16.gmra.mrb[0].mxu0 %v2097
      %v2775 = vpop.f32.mrb[0].mxu0
      %v2776 = vadd.f32 %v2599, %v2775
      %v2777 = vpop.f32.mrb[0].mxu0
      %v2778 = vpop.f32.mrb[0].mxu0
      %v2779 = vadd.f32 %v2602, %v2778
      %v2780 = vpop.f32.mrb[0].mxu0
      %2781 = vmatprep.mubr.bf16.mxu0 %v2103
      %2782 = vmatmul.mubr.bf16.gmra.mrb[0].mxu0 %v2102
      %v2783 = vpop.f32.mrb[0].mxu0
      %v2784 = vadd.f32 %v2607, %v2783
      %v2785 = vpop.f32.mrb[0].mxu0
      %v2786 = vpop.f32.mrb[0].mxu0
      %v2787 = vadd.f32 %v2610, %v2786
      %v2788 = vpop.f32.mrb[0].mxu0
      %2789 = vmatprep.mubr.bf16.mxu0 %v2108
      %2790 = vmatmul.mubr.bf16.gmra.mrb[0].mxu0 %v2107
      %v2791 = vpop.f32.mrb[0].mxu0
      %v2792 = vadd.f32 %v2615, %v2791
      %v2793 = vpop.f32.mrb[0].mxu0
      %v2794 = vpop.f32.mrb[0].mxu0
      %v2795 = vadd.f32 %v2618, %v2794
      %v2796 = vpop.f32.mrb[0].mxu0
      %2797 = vmatprep.mubr.bf16.mxu0 %v2113
      %2798 = vmatmul.mubr.bf16.gmra.mrb[0].mxu0 %v2112
      %v2799 = vpop.f32.mrb[0].mxu0
      %v2800 = vadd.f32 %v2623, %v2799
      %v2801 = vpop.f32.mrb[0].mxu0
      %v2802 = vpop.f32.mrb[0].mxu0
      %v2803 = vadd.f32 %v2626, %v2802
      %v2804 = vpop.f32.mrb[0].mxu0
      %2805 = vmatprep.mubr.bf16.mxu0 %v2118
      %2806 = vmatmul.mubr.bf16.gmra.mrb[0].mxu0 %v2117
      %v2807 = vpop.f32.mrb[0].mxu0
      %v2808 = vadd.f32 %v2631, %v2807
      %v2809 = vpop.f32.mrb[0].mxu0
      %v2810 = vpop.f32.mrb[0].mxu0
      %v2811 = vadd.f32 %v2634, %v2810
      %v2812 = vpop.f32.mrb[0].mxu0
      %2813 = vmatprep.mubr.bf16.mxu0 %v2123
      %2814 = vmatmul.mubr.bf16.gmra.mrb[0].mxu0 %v2122
      %v2815 = vpop.f32.mrb[0].mxu0
      %v2816 = vadd.f32 %v2639, %v2815
      %v2817 = vpop.f32.mrb[0].mxu0
      %v2818 = vpop.f32.mrb[0].mxu0
      %v2819 = vadd.f32 %v2642, %v2818
      %v2820 = vpop.f32.mrb[0].mxu0
      %2821 = vmatprep.mubr.bf16.mxu0 %v2128
      %2822 = vmatmul.mubr.bf16.gmra.mrb[0].mxu0 %v2127
      %v2823 = vpop.f32.mrb[0].mxu0
      %v2824 = vadd.f32 %v2647, %v2823
      %v2825 = vpop.f32.mrb[0].mxu0
      %v2826 = vpop.f32.mrb[0].mxu0
      %v2827 = vadd.f32 %v2650, %v2826
      %v2828 = vpop.f32.mrb[0].mxu0
      %2829 = vmatprep.mubr.bf16.mxu0 %v2133
      %2830 = vmatmul.mubr.bf16.gmra.mrb[0].mxu0 %v2132
      %v2831 = vpop.f32.mrb[0].mxu0
      %v2832 = vadd.f32 %v2655, %v2831
      %v2833 = vpop.f32.mrb[0].mxu0
      %v2834 = vpop.f32.mrb[0].mxu0
      %v2835 = vadd.f32 %v2658, %v2834
      %v2836 = vpop.f32.mrb[0].mxu0
      %2837 = vdwg.mxu0
      %2838 = vmatprep.subr.bf16.mxu0 0
      %2839 = vmatpush1.bf16.msra.mxu0 %v2390
      %2840 = vmatprep.subr.bf16.mxu0 0
      %2841 = vmatpush1.bf16.msra.mxu0 %v2391
      %2842 = vmatprep.subr.bf16.mxu0 0
      %2843 = vmatpush1.bf16.msra.mxu0 %v2392
      %2844 = vmatprep.subr.bf16.mxu0 0
      %2845 = vmatpush1.bf16.msra.mxu0 %v2393
      %2846 = vmatprep.subr.bf16.mxu0 0
      %2847 = vmatpush1.bf16.msra.mxu0 0
      %2848 = vmatprep.subr.bf16.mxu0 0
      %2849 = vmatpush1.bf16.msra.mxu0 0
      %2850 = vmatprep.subr.bf16.mxu0 0
      %2851 = vmatpush1.bf16.msra.mxu0 0
      %2852 = vmatprep.subr.bf16.mxu0 0
      %2853 = vmatpush1.bf16.msra.mxu0 0
      %2854 = vmatprep.subr.bf16.mxu0 0
      %2855 = vmatpush1.bf16.msra.mxu0 0
      %2856 = vmatprep.subr.bf16.mxu0 0
      %2857 = vmatpush1.bf16.msra.mxu0 0
      %2858 = vmatprep.subr.bf16.mxu0 0
      %2859 = vmatpush1.bf16.msra.mxu0 0
      %2860 = vmatprep.subr.bf16.mxu0 0
      %2861 = vmatpush1.bf16.msra.mxu0 0
      %2862 = vmatprep.subr.bf16.mxu0 0
      %2863 = vmatpush1.bf16.msra.mxu0 0
      %2864 = vmatprep.subr.bf16.mxu0 0
      %2865 = vmatpush1.bf16.msra.mxu0 0
      %2866 = vmatprep.subr.bf16.mxu0 0
      %2867 = vmatpush1.bf16.msra.mxu0 0
      %2868 = vmatprep.subr.bf16.mxu0 0
      %2869 = vmatpush1.bf16.msra.mxu0 0
      %2870 = vmatprep.mubr.bf16.mxu0 0
      %2871 = vmatmul.mubr.bf16.gmra.mrb[0].mxu0 %v2431
      %v2872 = vpop.f32.mrb[0].mxu0
      %v2873 = vadd.f32 %v2696, %v2872
      %v2874 = vpop.f32.mrb[0].mxu0
      %v2875 = vpop.f32.mrb[0].mxu0
      %v2876 = vadd.f32 %v2699, %v2875
      %v2877 = vpop.f32.mrb[0].mxu0
      %2878 = vmatprep.mubr.bf16.mxu0 0
      %2879 = vmatmul.mubr.bf16.gmra.mrb[0].mxu0 %v2434
      %v2880 = vpop.f32.mrb[0].mxu0
      %v2881 = vadd.f32 %v2704, %v2880
      %v2882 = vpop.f32.mrb[0].mxu0
      %v2883 = vpop.f32.mrb[0].mxu0
      %v2884 = vadd.f32 %v2707, %v2883
      %v2885 = vpop.f32.mrb[0].mxu0
      %2886 = vmatprep.mubr.bf16.mxu0 0
      %2887 = vmatmul.mubr.bf16.gmra.mrb[0].mxu0 %v2437
      %v2888 = vpop.f32.mrb[0].mxu0
      %v2889 = vadd.f32 %v2712, %v2888
      %v2890 = vpop.f32.mrb[0].mxu0
      %v2891 = vpop.f32.mrb[0].mxu0
      %v2892 = vadd.f32 %v2715, %v2891
      %v2893 = vpop.f32.mrb[0].mxu0
      %2894 = vmatprep.mubr.bf16.mxu0 0
      %2895 = vmatmul.mubr.bf16.gmra.mrb[0].mxu0 %v2440
      %v2896 = vpop.f32.mrb[0].mxu0
      %v2897 = vadd.f32 %v2720, %v2896
      %v2898 = vpop.f32.mrb[0].mxu0
      %v2899 = vpop.f32.mrb[0].mxu0
      %v2900 = vadd.f32 %v2723, %v2899
      %v2901 = vpop.f32.mrb[0].mxu0
      %2902 = vmatprep.mubr.bf16.mxu0 0
      %2903 = vmatmul.mubr.bf16.gmra.mrb[0].mxu0 %v2443
      %v2904 = vpop.f32.mrb[0].mxu0
      %v2905 = vadd.f32 %v2728, %v2904
      %v2906 = vpop.f32.mrb[0].mxu0
      %v2907 = vpop.f32.mrb[0].mxu0
      %v2908 = vadd.f32 %v2731, %v2907
      %v2909 = vpop.f32.mrb[0].mxu0
      %2910 = vmatprep.mubr.bf16.mxu0 0
      %2911 = vmatmul.mubr.bf16.gmra.mrb[0].mxu0 %v2446
      %v2912 = vpop.f32.mrb[0].mxu0
      %v2913 = vadd.f32 %v2736, %v2912
      %v2914 = vpop.f32.mrb[0].mxu0
      %v2915 = vpop.f32.mrb[0].mxu0
      %v2916 = vadd.f32 %v2739, %v2915
      %v2917 = vpop.f32.mrb[0].mxu0
      %2918 = vmatprep.mubr.bf16.mxu0 0
      %2919 = vmatmul.mubr.bf16.gmra.mrb[0].mxu0 %v2449
      %v2920 = vpop.f32.mrb[0].mxu0
      %v2921 = vadd.f32 %v2744, %v2920
      %v2922 = vpop.f32.mrb[0].mxu0
      %v2923 = vpop.f32.mrb[0].mxu0
      %v2924 = vadd.f32 %v2747, %v2923
      %v2925 = vpop.f32.mrb[0].mxu0
      %2926 = vmatprep.mubr.bf16.mxu0 0
      %2927 = vmatmul.mubr.bf16.gmra.mrb[0].mxu0 %v2452
      %v2928 = vpop.f32.mrb[0].mxu0
      %v2929 = vadd.f32 %v2752, %v2928
      %v2930 = vpop.f32.mrb[0].mxu0
      %v2931 = vpop.f32.mrb[0].mxu0
      %v2932 = vadd.f32 %v2755, %v2931
      %v2933 = vpop.f32.mrb[0].mxu0
      %2934 = vmatprep.mubr.bf16.mxu0 0
      %2935 = vmatmul.mubr.bf16.gmra.mrb[0].mxu0 %v2455
      %v2936 = vpop.f32.mrb[0].mxu0
      %v2937 = vadd.f32 %v2760, %v2936
      %v2938 = vpop.f32.mrb[0].mxu0
      %v2939 = vpop.f32.mrb[0].mxu0
      %v2940 = vadd.f32 %v2763, %v2939
      %v2941 = vpop.f32.mrb[0].mxu0
      %2942 = vmatprep.mubr.bf16.mxu0 0
      %2943 = vmatmul.mubr.bf16.gmra.mrb[0].mxu0 %v2458
      %v2944 = vpop.f32.mrb[0].mxu0
      %v2945 = vadd.f32 %v2768, %v2944
      %v2946 = vpop.f32.mrb[0].mxu0
      %v2947 = vpop.f32.mrb[0].mxu0
      %v2948 = vadd.f32 %v2771, %v2947
      %v2949 = vpop.f32.mrb[0].mxu0
      %2950 = vmatprep.mubr.bf16.mxu0 0
      %2951 = vmatmul.mubr.bf16.gmra.mrb[0].mxu0 %v2461
      %v2952 = vpop.f32.mrb[0].mxu0
      %v2953 = vadd.f32 %v2776, %v2952
      %v2954 = vpop.f32.mrb[0].mxu0
      %v2955 = vpop.f32.mrb[0].mxu0
      %v2956 = vadd.f32 %v2779, %v2955
      %v2957 = vpop.f32.mrb[0].mxu0
      %2958 = vmatprep.mubr.bf16.mxu0 0
      %2959 = vmatmul.mubr.bf16.gmra.mrb[0].mxu0 %v2464
      %v2960 = vpop.f32.mrb[0].mxu0
      %v2961 = vadd.f32 %v2784, %v2960
      %v2962 = vpop.f32.mrb[0].mxu0
      %v2963 = vpop.f32.mrb[0].mxu0
      %v2964 = vadd.f32 %v2787, %v2963
      %v2965 = vpop.f32.mrb[0].mxu0
      %2966 = vmatprep.mubr.bf16.mxu0 0
      %2967 = vmatmul.mubr.bf16.gmra.mrb[0].mxu0 %v2467
      %v2968 = vpop.f32.mrb[0].mxu0
      %v2969 = vadd.f32 %v2792, %v2968
      %v2970 = vpop.f32.mrb[0].mxu0
      %v2971 = vpop.f32.mrb[0].mxu0
      %v2972 = vadd.f32 %v2795, %v2971
      %v2973 = vpop.f32.mrb[0].mxu0
      %2974 = vmatprep.mubr.bf16.mxu0 0
      %2975 = vmatmul.mubr.bf16.gmra.mrb[0].mxu0 %v2470
      %v2976 = vpop.f32.mrb[0].mxu0
      %v2977 = vadd.f32 %v2800, %v2976
      %v2978 = vpop.f32.mrb[0].mxu0
      %v2979 = vpop.f32.mrb[0].mxu0
      %v2980 = vadd.f32 %v2803, %v2979
      %v2981 = vpop.f32.mrb[0].mxu0
      %2982 = vmatprep.mubr.bf16.mxu0 0
      %2983 = vmatmul.mubr.bf16.gmra.mrb[0].mxu0 %v2473
      %v2984 = vpop.f32.mrb[0].mxu0
      %v2985 = vadd.f32 %v2808, %v2984
      %v2986 = vpop.f32.mrb[0].mxu0
      %v2987 = vpop.f32.mrb[0].mxu0
      %v2988 = vadd.f32 %v2811, %v2987
      %v2989 = vpop.f32.mrb[0].mxu0
      %2990 = vmatprep.mubr.bf16.mxu0 0
      %2991 = vmatmul.mubr.bf16.gmra.mrb[0].mxu0 %v2476
      %v2992 = vpop.f32.mrb[0].mxu0
      %v2993 = vadd.f32 %v2816, %v2992
      %v2994 = vpop.f32.mrb[0].mxu0
      %v2995 = vpop.f32.mrb[0].mxu0
      %v2996 = vadd.f32 %v2819, %v2995
      %v2997 = vpop.f32.mrb[0].mxu0
      %2998 = vmatprep.mubr.bf16.mxu0 0
      %2999 = vmatmul.mubr.bf16.gmra.mrb[0].mxu0 %v2479
      %v3000 = vpop.f32.mrb[0].mxu0
      %v3001 = vadd.f32 %v2824, %v3000
      %v3002 = vpop.f32.mrb[0].mxu0
      %v3003 = vpop.f32.mrb[0].mxu0
      %v3004 = vadd.f32 %v2827, %v3003
      %v3005 = vpop.f32.mrb[0].mxu0
      %3006 = vmatprep.mubr.bf16.mxu0 0
      %3007 = vmatmul.mubr.bf16.gmra.mrb[0].mxu0 %v2482
      %v3008 = vpop.f32.mrb[0].mxu0
      %v3009 = vadd.f32 %v2832, %v3008
      %v3010 = vpop.f32.mrb[0].mxu0
      %v3011 = vpop.f32.mrb[0].mxu0
      %v3012 = vadd.f32 %v2835, %v3011
      %v3013 = vpop.f32.mrb[0].mxu0
      %3014 = vdwg.mxu0
      %v3015 = vmax.f32 %v2873, 0.0
      %v3016 = vmax.f32 %v2876, 0.0
      %v3017 = vmax.f32 %v2881, 0.0
      %v3018 = vmax.f32 %v2884, 0.0
      %v3019 = vmax.f32 %v2889, 0.0
      %v3020 = vmax.f32 %v2892, 0.0
      %v3021 = vmax.f32 %v2897, 0.0
      %v3022 = vmax.f32 %v2900, 0.0
      %v3023 = vmax.f32 %v2905, 0.0
      %v3024 = vmax.f32 %v2908, 0.0
      %v3025 = vmax.f32 %v2913, 0.0
      %v3026 = vmax.f32 %v2916, 0.0
      %v3027 = vmax.f32 %v2921, 0.0
      %v3028 = vmax.f32 %v2924, 0.0
      %v3029 = vmax.f32 %v2929, 0.0
      %v3030 = vmax.f32 %v2932, 0.0
      %v3031 = vmax.f32 %v2937, 0.0
      %v3032 = vmax.f32 %v2940, 0.0
      %v3033 = vmax.f32 %v2945, 0.0
      %v3034 = vmax.f32 %v2948, 0.0
      %v3035 = vmax.f32 %v2953, 0.0
      %v3036 = vmax.f32 %v2956, 0.0
      %v3037 = vmax.f32 %v2961, 0.0
      %v3038 = vmax.f32 %v2964, 0.0
      %v3039 = vmax.f32 %v2969, 0.0
      %v3040 = vmax.f32 %v2972, 0.0
      %v3041 = vmax.f32 %v2977, 0.0
      %v3042 = vmax.f32 %v2980, 0.0
      %v3043 = vmax.f32 %v2985, 0.0
      %v3044 = vmax.f32 %v2988, 0.0
      %v3045 = vmax.f32 %v2993, 0.0
      %v3046 = vmax.f32 %v2996, 0.0
      %v3047 = vmax.f32 %v3001, 0.0
      %v3048 = vmax.f32 %v3004, 0.0
      %v3049 = vmax.f32 %v3009, 0.0
      %v3050 = vmax.f32 %v3012, 0.0
      %v3051 = vld [vmem:[%s0] sm:$0xff]
      %v3052 = vld [vmem:[%s0 + $0x8] sm:$0xff]
      %v3053 = vld [vmem:[%s0 + $0x10] sm:$0xff]
      %v3054 = vld [vmem:[%s0 + $0x18] sm:$0xff]
      %v3055 = vld [vmem:[%s0 + $0x20] sm:$0xff]
      %v3056 = vld [vmem:[%s0 + $0x28] sm:$0xff]
      %v3057 = vld [vmem:[%s0 + $0x30] sm:$0xff]
      %v3058 = vld [vmem:[%s0 + $0x38] sm:$0xff]
      %v3059 = vld [vmem:[%s0 + $0x40] sm:$0xff]
      %v3060 = vld [vmem:[%s0 + $0x48] sm:$0xff]
      %v3061 = vld [vmem:[%s0 + $0x50] sm:$0xff]
      %v3062 = vld [vmem:[%s0 + $0x58] sm:$0xff]
      %v3063 = vld [vmem:[%s0 + $0x60] sm:$0xff]
      %v3064 = vld [vmem:[%s0 + $0x68] sm:$0xff]
      %v3065 = vld [vmem:[%s0 + $0x70] sm:$0xff]
      %v3066 = vld [vmem:[%s0 + $0x78] sm:$0xff]
      %v3067 = vld [vmem:[%s0 + $0x80] sm:$0xff]
      %v3068 = vld [vmem:[%s0 + $0x88] sm:$0xff]
      %v3069 = vld [vmem:[%s0 + $0x90] sm:$0xff]
      %v3070 = vld [vmem:[%s0 + $0x98] sm:$0xff]
      %v3071 = vld [vmem:[%s0 + $0xa0] sm:$0xff]
      %v3072 = vld [vmem:[%s0 + $0xa8] sm:$0xff]
      %v3073 = vld [vmem:[%s0 + $0xb0] sm:$0xff]
      %v3074 = vld [vmem:[%s0 + $0xb8] sm:$0xff]
      %v3075 = vld [vmem:[%s0 + $0xc0] sm:$0xff]
      %v3076 = vld [vmem:[%s0 + $0xc8] sm:$0xff]
      %v3077 = vld [vmem:[%s0 + $0xd0] sm:$0xff]
      %v3078 = vld [vmem:[%s0 + $0xd8] sm:$0xff]
      %v3079 = vld [vmem:[%s0 + $0xe0] sm:$0xff]
      %v3080 = vld [vmem:[%s0 + $0xe8] sm:$0xff]
      %v3081 = vld [vmem:[%s0 + $0xf0] sm:$0xff]
      %v3082 = vld [vmem:[%s0 + $0xf8] sm:$0xff]
      %v3083 = vld [vmem:[%s0 + $0x100] sm:$0xff]
      %v3084 = vld [vmem:[%s0 + $0x108] sm:$0xff]
      %v3085 = vld [vmem:[%s0 + $0x110] sm:$0xff]
      %v3086 = vld [vmem:[%s0 + $0x118] sm:$0xff]
      %3088 = vset.pattern.permute.xlu0 0
      %3089 = vperm.xlu0 %3088, %v3051
      %v3090 = vpop.permute.xlu0 %3089
      %3093 = vset.pattern.permute.xlu0 0
      %3094 = vperm.xlu0 %3093, %v3052
      %v3095 = vpop.permute.xlu0 %3094
      %3098 = vset.pattern.permute.xlu0 0
      %3099 = vperm.xlu0 %3098, %v3053
      %v3100 = vpop.permute.xlu0 %3099
      %3103 = vset.pattern.permute.xlu0 0
      %3104 = vperm.xlu0 %3103, %v3054
      %v3105 = vpop.permute.xlu0 %3104
      %3108 = vset.pattern.permute.xlu0 0
      %3109 = vperm.xlu0 %3108, %v3055
      %v3110 = vpop.permute.xlu0 %3109
      %3113 = vset.pattern.permute.xlu0 0
      %3114 = vperm.xlu0 %3113, %v3056
      %v3115 = vpop.permute.xlu0 %3114
      %3118 = vset.pattern.permute.xlu0 0
      %3119 = vperm.xlu0 %3118, %v3057
      %v3120 = vpop.permute.xlu0 %3119
      %3123 = vset.pattern.permute.xlu0 0
      %3124 = vperm.xlu0 %3123, %v3058
      %v3125 = vpop.permute.xlu0 %3124
      %3128 = vset.pattern.permute.xlu0 0
      %3129 = vperm.xlu0 %3128, %v3059
      %v3130 = vpop.permute.xlu0 %3129
      %3133 = vset.pattern.permute.xlu0 0
      %3134 = vperm.xlu0 %3133, %v3060
      %v3135 = vpop.permute.xlu0 %3134
      %3138 = vset.pattern.permute.xlu0 0
      %3139 = vperm.xlu0 %3138, %v3061
      %v3140 = vpop.permute.xlu0 %3139
      %3143 = vset.pattern.permute.xlu0 0
      %3144 = vperm.xlu0 %3143, %v3062
      %v3145 = vpop.permute.xlu0 %3144
      %3148 = vset.pattern.permute.xlu0 0
      %3149 = vperm.xlu0 %3148, %v3063
      %v3150 = vpop.permute.xlu0 %3149
      %3153 = vset.pattern.permute.xlu0 0
      %3154 = vperm.xlu0 %3153, %v3064
      %v3155 = vpop.permute.xlu0 %3154
      %3158 = vset.pattern.permute.xlu0 0
      %3159 = vperm.xlu0 %3158, %v3065
      %v3160 = vpop.permute.xlu0 %3159
      %3163 = vset.pattern.permute.xlu0 0
      %3164 = vperm.xlu0 %3163, %v3066
      %v3165 = vpop.permute.xlu0 %3164
      %3168 = vset.pattern.permute.xlu0 0
      %3169 = vperm.xlu0 %3168, %v3067
      %v3170 = vpop.permute.xlu0 %3169
      %3173 = vset.pattern.permute.xlu0 0
      %3174 = vperm.xlu0 %3173, %v3068
      %v3175 = vpop.permute.xlu0 %3174
      %3178 = vset.pattern.permute.xlu0 0
      %3179 = vperm.xlu0 %3178, %v3069
      %v3180 = vpop.permute.xlu0 %3179
      %3183 = vset.pattern.permute.xlu0 0
      %3184 = vperm.xlu0 %3183, %v3070
      %v3185 = vpop.permute.xlu0 %3184
      %3188 = vset.pattern.permute.xlu0 0
      %3189 = vperm.xlu0 %3188, %v3071
      %v3190 = vpop.permute.xlu0 %3189
      %3193 = vset.pattern.permute.xlu0 0
      %3194 = vperm.xlu0 %3193, %v3072
      %v3195 = vpop.permute.xlu0 %3194
      %3198 = vset.pattern.permute.xlu0 0
      %3199 = vperm.xlu0 %3198, %v3073
      %v3200 = vpop.permute.xlu0 %3199
      %3203 = vset.pattern.permute.xlu0 0
      %3204 = vperm.xlu0 %3203, %v3074
      %v3205 = vpop.permute.xlu0 %3204
      %3208 = vset.pattern.permute.xlu0 0
      %3209 = vperm.xlu0 %3208, %v3075
      %v3210 = vpop.permute.xlu0 %3209
      %3213 = vset.pattern.permute.xlu0 0
      %3214 = vperm.xlu0 %3213, %v3076
      %v3215 = vpop.permute.xlu0 %3214
      %3218 = vset.pattern.permute.xlu0 0
      %3219 = vperm.xlu0 %3218, %v3077
      %v3220 = vpop.permute.xlu0 %3219
      %3223 = vset.pattern.permute.xlu0 0
      %3224 = vperm.xlu0 %3223, %v3078
      %v3225 = vpop.permute.xlu0 %3224
      %3228 = vset.pattern.permute.xlu0 0
      %3229 = vperm.xlu0 %3228, %v3079
      %v3230 = vpop.permute.xlu0 %3229
      %3233 = vset.pattern.permute.xlu0 0
      %3234 = vperm.xlu0 %3233, %v3080
      %v3235 = vpop.permute.xlu0 %3234
      %3238 = vset.pattern.permute.xlu0 0
      %3239 = vperm.xlu0 %3238, %v3081
      %v3240 = vpop.permute.xlu0 %3239
      %3243 = vset.pattern.permute.xlu0 0
      %3244 = vperm.xlu0 %3243, %v3082
      %v3245 = vpop.permute.xlu0 %3244
      %3248 = vset.pattern.permute.xlu0 0
      %3249 = vperm.xlu0 %3248, %v3083
      %v3250 = vpop.permute.xlu0 %3249
      %3253 = vset.pattern.permute.xlu0 0
      %3254 = vperm.xlu0 %3253, %v3084
      %v3255 = vpop.permute.xlu0 %3254
      %3258 = vset.pattern.permute.xlu0 0
      %3259 = vperm.xlu0 %3258, %v3085
      %v3260 = vpop.permute.xlu0 %3259
      %3263 = vset.pattern.permute.xlu0 0
      %3264 = vperm.xlu0 %3263, %v3086
      %v3265 = vpop.permute.xlu0 %3264
      %v3267 = vmul.f32 %v3015, %v3090
      %v3268 = vmul.f32 %v3016, %v3095
      %v3269 = vmul.f32 %v3017, %v3100
      %v3270 = vmul.f32 %v3018, %v3105
      %v3271 = vmul.f32 %v3019, %v3110
      %v3272 = vmul.f32 %v3020, %v3115
      %v3273 = vmul.f32 %v3021, %v3120
      %v3274 = vmul.f32 %v3022, %v3125
      %v3275 = vmul.f32 %v3023, %v3130
      %v3276 = vmul.f32 %v3024, %v3135
      %v3277 = vmul.f32 %v3025, %v3140
      %v3278 = vmul.f32 %v3026, %v3145
      %v3279 = vmul.f32 %v3027, %v3150
      %v3280 = vmul.f32 %v3028, %v3155
      %v3281 = vmul.f32 %v3029, %v3160
      %v3282 = vmul.f32 %v3030, %v3165
      %v3283 = vmul.f32 %v3031, %v3170
      %v3284 = vmul.f32 %v3032, %v3175
      %v3285 = vmul.f32 %v3033, %v3180
      %v3286 = vmul.f32 %v3034, %v3185
      %v3287 = vmul.f32 %v3035, %v3190
      %v3288 = vmul.f32 %v3036, %v3195
      %v3289 = vmul.f32 %v3037, %v3200
      %v3290 = vmul.f32 %v3038, %v3205
      %v3291 = vmul.f32 %v3039, %v3210
      %v3292 = vmul.f32 %v3040, %v3215
      %v3293 = vmul.f32 %v3041, %v3220
      %v3294 = vmul.f32 %v3042, %v3225
      %v3295 = vmul.f32 %v3043, %v3230
      %v3296 = vmul.f32 %v3044, %v3235
      %v3297 = vmul.f32 %v3045, %v3240
      %v3298 = vmul.f32 %v3046, %v3245
      %v3299 = vmul.f32 %v3047, %v3250
      %v3300 = vmul.f32 %v3048, %v3255
      %v3301 = vmul.f32 %v3049, %v3260
      %v3302 = vmul.f32 %v3050, %v3265
      %3303 = vst.msk [vmem:[#allocation2 + $0x13] sm:$0xff] %vm361, %v3267
      %3304 = vst.msk [vmem:[#allocation2 + $0x1b] sm:$0xff] %vm361, %v3268
      %3305 = vst.msk [vmem:[#allocation2 + $0x23] sm:$0xff] %vm361, %v3269
      %3306 = vst.msk [vmem:[#allocation2 + $0x2b] sm:$0xff] %vm361, %v3270
      %3307 = vst.msk [vmem:[#allocation2 + $0x33] sm:$0xff] %vm361, %v3271
      %3308 = vst.msk [vmem:[#allocation2 + $0x3b] sm:$0xff] %vm361, %v3272
      %3309 = vst.msk [vmem:[#allocation2 + $0x43] sm:$0xff] %vm361, %v3273
      %3310 = vst.msk [vmem:[#allocation2 + $0x4b] sm:$0xff] %vm361, %v3274
      %3311 = vst.msk [vmem:[#allocation2 + $0x53] sm:$0xff] %vm361, %v3275
      %3312 = vst.msk [vmem:[#allocation2 + $0x5b] sm:$0xff] %vm361, %v3276
      %3313 = vst.msk [vmem:[#allocation2 + $0x63] sm:$0xff] %vm361, %v3277
      %3314 = vst.msk [vmem:[#allocation2 + $0x6b] sm:$0xff] %vm361, %v3278
      %3315 = vst.msk [vmem:[#allocation2 + $0x73] sm:$0xff] %vm361, %v3279
      %3316 = vst.msk [vmem:[#allocation2 + $0x7b] sm:$0xff] %vm361, %v3280
      %3317 = vst.msk [vmem:[#allocation2 + $0x83] sm:$0xff] %vm361, %v3281
      %3318 = vst.msk [vmem:[#allocation2 + $0x8b] sm:$0xff] %vm361, %v3282
      %3319 = vst.msk [vmem:[#allocation2 + $0x93] sm:$0xff] %vm361, %v3283
      %3320 = vst.msk [vmem:[#allocation2 + $0x9b] sm:$0xff] %vm361, %v3284
      %3321 = vst.msk [vmem:[#allocation2 + $0xa3] sm:$0xff] %vm361, %v3285
      %3322 = vst.msk [vmem:[#allocation2 + $0xab] sm:$0xff] %vm361, %v3286
      %3323 = vst.msk [vmem:[#allocation2 + $0xb3] sm:$0xff] %vm361, %v3287
      %3324 = vst.msk [vmem:[#allocation2 + $0xbb] sm:$0xff] %vm361, %v3288
      %3325 = vst.msk [vmem:[#allocation2 + $0xc3] sm:$0xff] %vm361, %v3289
      %3326 = vst.msk [vmem:[#allocation2 + $0xcb] sm:$0xff] %vm361, %v3290
      %3327 = vst.msk [vmem:[#allocation2 + $0xd3] sm:$0xff] %vm361, %v3291
      %3328 = vst.msk [vmem:[#allocation2 + $0xdb] sm:$0xff] %vm361, %v3292
      %3329 = vst.msk [vmem:[#allocation2 + $0xe3] sm:$0xff] %vm361, %v3293
      %3330 = vst.msk [vmem:[#allocation2 + $0xeb] sm:$0xff] %vm361, %v3294
      %3331 = vst.msk [vmem:[#allocation2 + $0xf3] sm:$0xff] %vm361, %v3295
      %3332 = vst.msk [vmem:[#allocation2 + $0xfb] sm:$0xff] %vm361, %v3296
      %3333 = vst.msk [vmem:[#allocation2 + $0x103] sm:$0xff] %vm361, %v3297
      %3334 = vst.msk [vmem:[#allocation2 + $0x10b] sm:$0xff] %vm361, %v3298
      %3335 = vst.msk [vmem:[#allocation2 + $0x113] sm:$0xff] %vm361, %v3299
      %3336 = vst.msk [vmem:[#allocation2 + $0x11b] sm:$0xff] %vm361, %v3300
      %3337 = vst.msk [vmem:[#allocation2 + $0x123] sm:$0xff] %vm361, %v3301
      %3338 = vst.msk [vmem:[#allocation2 + $0x12b] sm:$0xff] %vm361, %v3302
      %v3339 = vld [vmem:[#allocation2] sm:$0xff]
      %v3340 = vld [vmem:[#allocation2 + $0x8] sm:$0xff]
      %v3341 = vld [vmem:[#allocation2 + $0x10] sm:$0xff]
      %v3342 = vld [vmem:[#allocation2 + $0x18] sm:$0xff]
      %v3343 = vld [vmem:[#allocation2 + $0x20] sm:$0xff]
      %v3344 = vld [vmem:[#allocation2 + $0x28] sm:$0xff]
      %v3345 = vld [vmem:[#allocation2 + $0x30] sm:$0xff]
      %v3346 = vld [vmem:[#allocation2 + $0x38] sm:$0xff]
      %v3347 = vld [vmem:[#allocation2 + $0x40] sm:$0xff]
      %v3348 = vld [vmem:[#allocation2 + $0x48] sm:$0xff]
      %v3349 = vld [vmem:[#allocation2 + $0x50] sm:$0xff]
      %v3350 = vld [vmem:[#allocation2 + $0x58] sm:$0xff]
      %v3351 = vld [vmem:[#allocation2 + $0x60] sm:$0xff]
      %v3352 = vld [vmem:[#allocation2 + $0x68] sm:$0xff]
      %v3353 = vld [vmem:[#allocation2 + $0x70] sm:$0xff]
      %v3354 = vld [vmem:[#allocation2 + $0x78] sm:$0xff]
      %v3355 = vld [vmem:[#allocation2 + $0x80] sm:$0xff]
      %v3356 = vld [vmem:[#allocation2 + $0x88] sm:$0xff]
      %v3357 = vld [vmem:[#allocation2 + $0x90] sm:$0xff]
      %v3358 = vld [vmem:[#allocation2 + $0x98] sm:$0xff]
      %v3359 = vld [vmem:[#allocation2 + $0xa0] sm:$0xff]
      %v3360 = vld [vmem:[#allocation2 + $0xa8] sm:$0xff]
      %v3361 = vld [vmem:[#allocation2 + $0xb0] sm:$0xff]
      %v3362 = vld [vmem:[#allocation2 + $0xb8] sm:$0xff]
      %v3363 = vld [vmem:[#allocation2 + $0xc0] sm:$0xff]
      %v3364 = vld [vmem:[#allocation2 + $0xc8] sm:$0xff]
      %v3365 = vld [vmem:[#allocation2 + $0xd0] sm:$0xff]
      %v3366 = vld [vmem:[#allocation2 + $0xd8] sm:$0xff]
      %v3367 = vld [vmem:[#allocation2 + $0xe0] sm:$0xff]
      %v3368 = vld [vmem:[#allocation2 + $0xe8] sm:$0xff]
      %v3369 = vld [vmem:[#allocation2 + $0xf0] sm:$0xff]
      %v3370 = vld [vmem:[#allocation2 + $0xf8] sm:$0xff]
      %v3371 = vld [vmem:[#allocation2 + $0x100] sm:$0xff]
      %v3372 = vld [vmem:[#allocation2 + $0x108] sm:$0xff]
      %v3373 = vld [vmem:[#allocation2 + $0x110] sm:$0xff]
      %v3374 = vld [vmem:[#allocation2 + $0x118] sm:$0xff]
      %v3375 = vpack.c.bf16 %v3340, %v3339
      %v3376 = vpack.c.bf16 %v3342, %v3341
      %v3377 = vpack.c.bf16 %v3344, %v3343
      %v3378 = vpack.c.bf16 %v3346, %v3345
      %v3379 = vpack.c.bf16 %v3348, %v3347
      %v3380 = vpack.c.bf16 %v3350, %v3349
      %v3381 = vpack.c.bf16 %v3352, %v3351
      %v3382 = vpack.c.bf16 %v3354, %v3353
      %v3383 = vpack.c.bf16 %v3356, %v3355
      %v3384 = vpack.c.bf16 %v3358, %v3357
      %v3385 = vpack.c.bf16 %v3360, %v3359
      %v3386 = vpack.c.bf16 %v3362, %v3361
      %v3387 = vpack.c.bf16 %v3364, %v3363
      %v3388 = vpack.c.bf16 %v3366, %v3365
      %v3389 = vpack.c.bf16 %v3368, %v3367
      %v3390 = vpack.c.bf16 %v3370, %v3369
      %v3391 = vpack.c.bf16 %v3372, %v3371
      %v3392 = vpack.c.bf16 %v3374, %v3373
      %3393 = vst.msk [vmem:[#allocation3] sm:$0xff] %vm361, %v3375
      %3394 = vst.msk [vmem:[#allocation3 + $0x28] sm:$0xff] %vm361, %v3376
      %3395 = vst.msk [vmem:[#allocation3 + $0x50] sm:$0xff] %vm361, %v3377
      %3396 = vst.msk [vmem:[#allocation3 + $0x78] sm:$0xff] %vm361, %v3378
      %3397 = vst.msk [vmem:[#allocation3 + $0xa0] sm:$0xff] %vm361, %v3379
      %3398 = vst.msk [vmem:[#allocation3 + $0xc8] sm:$0xff] %vm361, %v3380
      %3399 = vst.msk [vmem:[#allocation3 + $0xf0] sm:$0xff] %vm361, %v3381
      %3400 = vst.msk [vmem:[#allocation3 + $0x118] sm:$0xff] %vm361, %v3382
      %3401 = vst.msk [vmem:[#allocation3 + $0x140] sm:$0xff] %vm361, %v3383
      %3402 = vst.msk [vmem:[#allocation3 + $0x168] sm:$0xff] %vm361, %v3384
      %3403 = vst.msk [vmem:[#allocation3 + $0x190] sm:$0xff] %vm361, %v3385
      %3404 = vst.msk [vmem:[#allocation3 + $0x1b8] sm:$0xff] %vm361, %v3386
      %3405 = vst.msk [vmem:[#allocation3 + $0x1e0] sm:$0xff] %vm361, %v3387
      %3406 = vst.msk [vmem:[#allocation3 + $0x208] sm:$0xff] %vm361, %v3388
      %3407 = vst.msk [vmem:[#allocation3 + $0x230] sm:$0xff] %vm361, %v3389
      %3408 = vst.msk [vmem:[#allocation3 + $0x258] sm:$0xff] %vm361, %v3390
      %3409 = vst.msk [vmem:[#allocation3 + $0x280] sm:$0xff] %vm361, %v3391
      %3410 = vst.msk [vmem:[#allocation3 + $0x2a8] sm:$0xff] %vm361, %v3392
      %v3411 = vld [vmem:[#allocation2 + $0x1] sm:$0xff]
      %v3412 = vld [vmem:[#allocation2 + $0x9] sm:$0xff]
      %v3413 = vld [vmem:[#allocation2 + $0x11] sm:$0xff]
      %v3414 = vld [vmem:[#allocation2 + $0x19] sm:$0xff]
      %v3415 = vld [vmem:[#allocation2 + $0x21] sm:$0xff]
      %v3416 = vld [vmem:[#allocation2 + $0x29] sm:$0xff]
      %v3417 = vld [vmem:[#allocation2 + $0x31] sm:$0xff]
      %v3418 = vld [vmem:[#allocation2 + $0x39] sm:$0xff]
      %v3419 = vld [vmem:[#allocation2 + $0x41] sm:$0xff]
      %v3420 = vld [vmem:[#allocation2 + $0x49] sm:$0xff]
      %v3421 = vld [vmem:[#allocation2 + $0x51] sm:$0xff]
      %v3422 = vld [vmem:[#allocation2 + $0x59] sm:$0xff]
      %v3423 = vld [vmem:[#allocation2 + $0x61] sm:$0xff]
      %v3424 = vld [vmem:[#allocation2 + $0x69] sm:$0xff]
      %v3425 = vld [vmem:[#allocation2 + $0x71] sm:$0xff]
      %v3426 = vld [vmem:[#allocation2 + $0x79] sm:$0xff]
      %v3427 = vld [vmem:[#allocation2 + $0x81] sm:$0xff]
      %v3428 = vld [vmem:[#allocation2 + $0x89] sm:$0xff]
      %v3429 = vld [vmem:[#allocation2 + $0x91] sm:$0xff]
      %v3430 = vld [vmem:[#allocation2 + $0x99] sm:$0xff]
      %v3431 = vld [vmem:[#allocation2 + $0xa1] sm:$0xff]
      %v3432 = vld [vmem:[#allocation2 + $0xa9] sm:$0xff]
      %v3433 = vld [vmem:[#allocation2 + $0xb1] sm:$0xff]
      %v3434 = vld [vmem:[#allocation2 + $0xb9] sm:$0xff]
      %v3435 = vld [vmem:[#allocation2 + $0xc1] sm:$0xff]
      %v3436 = vld [vmem:[#allocation2 + $0xc9] sm:$0xff]
      %v3437 = vld [vmem:[#allocation2 + $0xd1] sm:$0xff]
      %v3438 = vld [vmem:[#allocation2 + $0xd9] sm:$0xff]
      %v3439 = vld [vmem:[#allocation2 + $0xe1] sm:$0xff]
      %v3440 = vld [vmem:[#allocation2 + $0xe9] sm:$0xff]
      %v3441 = vld [vmem:[#allocation2 + $0xf1] sm:$0xff]
      %v3442 = vld [vmem:[#allocation2 + $0xf9] sm:$0xff]
      %v3443 = vld [vmem:[#allocation2 + $0x101] sm:$0xff]
      %v3444 = vld [vmem:[#allocation2 + $0x109] sm:$0xff]
      %v3445 = vld [vmem:[#allocation2 + $0x111] sm:$0xff]
      %v3446 = vld [vmem:[#allocation2 + $0x119] sm:$0xff]
      %v3447 = vpack.c.bf16 %v3412, %v3411
      %v3448 = vpack.c.bf16 %v3414, %v3413
      %v3449 = vpack.c.bf16 %v3416, %v3415
      %v3450 = vpack.c.bf16 %v3418, %v3417
      %v3451 = vpack.c.bf16 %v3420, %v3419
      %v3452 = vpack.c.bf16 %v3422, %v3421
      %v3453 = vpack.c.bf16 %v3424, %v3423
      %v3454 = vpack.c.bf16 %v3426, %v3425
      %v3455 = vpack.c.bf16 %v3428, %v3427
      %v3456 = vpack.c.bf16 %v3430, %v3429
      %v3457 = vpack.c.bf16 %v3432, %v3431
      %v3458 = vpack.c.bf16 %v3434, %v3433
      %v3459 = vpack.c.bf16 %v3436, %v3435
      %v3460 = vpack.c.bf16 %v3438, %v3437
      %v3461 = vpack.c.bf16 %v3440, %v3439
      %v3462 = vpack.c.bf16 %v3442, %v3441
      %v3463 = vpack.c.bf16 %v3444, %v3443
      %v3464 = vpack.c.bf16 %v3446, %v3445
      %3483 = vrot.lane.b32.xlu0 %v3447, 64
      %v3484 = vpop.permute.xlu0 %3483
      %3485 = vrot.lane.b32.xlu0 %v3448, 64
      %v3486 = vpop.permute.xlu0 %3485
      %3487 = vrot.lane.b32.xlu0 %v3449, 64
      %v3488 = vpop.permute.xlu0 %3487
      %3489 = vrot.lane.b32.xlu0 %v3450, 64
      %v3490 = vpop.permute.xlu0 %3489
      %3491 = vrot.lane.b32.xlu0 %v3451, 64
      %v3492 = vpop.permute.xlu0 %3491
      %3493 = vrot.lane.b32.xlu0 %v3452, 64
      %v3494 = vpop.permute.xlu0 %3493
      %3495 = vrot.lane.b32.xlu0 %v3453, 64
      %v3496 = vpop.permute.xlu0 %3495
      %3497 = vrot.lane.b32.xlu0 %v3454, 64
      %v3498 = vpop.permute.xlu0 %3497
      %3499 = vrot.lane.b32.xlu0 %v3455, 64
      %v3500 = vpop.permute.xlu0 %3499
      %3501 = vrot.lane.b32.xlu0 %v3456, 64
      %v3502 = vpop.permute.xlu0 %3501
      %3503 = vrot.lane.b32.xlu0 %v3457, 64
      %v3504 = vpop.permute.xlu0 %3503
      %3505 = vrot.lane.b32.xlu0 %v3458, 64
      %v3506 = vpop.permute.xlu0 %3505
      %3507 = vrot.lane.b32.xlu0 %v3459, 64
      %v3508 = vpop.permute.xlu0 %3507
      %3509 = vrot.lane.b32.xlu0 %v3460, 64
      %v3510 = vpop.permute.xlu0 %3509
      %3511 = vrot.lane.b32.xlu0 %v3461, 64
      %v3512 = vpop.permute.xlu0 %3511
      %3513 = vrot.lane.b32.xlu0 %v3462, 64
      %v3514 = vpop.permute.xlu0 %3513
      %3515 = vrot.lane.b32.xlu0 %v3463, 64
      %v3516 = vpop.permute.xlu0 %3515
      %3517 = vrot.lane.b32.xlu0 %v3464, 64
      %v3518 = vpop.permute.xlu0 %3517
      %3537 = vst.msk [vmem:[#allocation3] sm:$0xff] %vm1306, %v3484
      %3538 = vst.msk [vmem:[#allocation3 + $0x28] sm:$0xff] %vm1306, %v3486
      %3539 = vst.msk [vmem:[#allocation3 + $0x50] sm:$0xff] %vm1306, %v3488
      %3540 = vst.msk [vmem:[#allocation3 + $0x78] sm:$0xff] %vm1306, %v3490
      %3541 = vst.msk [vmem:[#allocation3 + $0xa0] sm:$0xff] %vm1306, %v3492
      %3542 = vst.msk [vmem:[#allocation3 + $0xc8] sm:$0xff] %vm1306, %v3494
      %3543 = vst.msk [vmem:[#allocation3 + $0xf0] sm:$0xff] %vm1306, %v3496
      %3544 = vst.msk [vmem:[#allocation3 + $0x118] sm:$0xff] %vm1306, %v3498
      %3545 = vst.msk [vmem:[#allocation3 + $0x140] sm:$0xff] %vm1306, %v3500
      %3546 = vst.msk [vmem:[#allocation3 + $0x168] sm:$0xff] %vm1306, %v3502
      %3547 = vst.msk [vmem:[#allocation3 + $0x190] sm:$0xff] %vm1306, %v3504
      %3548 = vst.msk [vmem:[#allocation3 + $0x1b8] sm:$0xff] %vm1306, %v3506
      %3549 = vst.msk [vmem:[#allocation3 + $0x1e0] sm:$0xff] %vm1306, %v3508
      %3550 = vst.msk [vmem:[#allocation3 + $0x208] sm:$0xff] %vm1306, %v3510
      %3551 = vst.msk [vmem:[#allocation3 + $0x230] sm:$0xff] %vm1306, %v3512
      %3552 = vst.msk [vmem:[#allocation3 + $0x258] sm:$0xff] %vm1306, %v3514
      %3553 = vst.msk [vmem:[#allocation3 + $0x280] sm:$0xff] %vm1306, %v3516
      %3554 = vst.msk [vmem:[#allocation3 + $0x2a8] sm:$0xff] %vm1306, %v3518
      %v3555 = vld [vmem:[#allocation2 + $0x2] sm:$0xff]
      %v3556 = vld [vmem:[#allocation2 + $0xa] sm:$0xff]
      %v3557 = vld [vmem:[#allocation2 + $0x12] sm:$0xff]
      %v3558 = vld [vmem:[#allocation2 + $0x1a] sm:$0xff]
      %v3559 = vld [vmem:[#allocation2 + $0x22] sm:$0xff]
      %v3560 = vld [vmem:[#allocation2 + $0x2a] sm:$0xff]
      %v3561 = vld [vmem:[#allocation2 + $0x32] sm:$0xff]
      %v3562 = vld [vmem:[#allocation2 + $0x3a] sm:$0xff]
      %v3563 = vld [vmem:[#allocation2 + $0x42] sm:$0xff]
      %v3564 = vld [vmem:[#allocation2 + $0x4a] sm:$0xff]
      %v3565 = vld [vmem:[#allocation2 + $0x52] sm:$0xff]
      %v3566 = vld [vmem:[#allocation2 + $0x5a] sm:$0xff]
      %v3567 = vld [vmem:[#allocation2 + $0x62] sm:$0xff]
      %v3568 = vld [vmem:[#allocation2 + $0x6a] sm:$0xff]
      %v3569 = vld [vmem:[#allocation2 + $0x72] sm:$0xff]
      %v3570 = vld [vmem:[#allocation2 + $0x7a] sm:$0xff]
      %v3571 = vld [vmem:[#allocation2 + $0x82] sm:$0xff]
      %v3572 = vld [vmem:[#allocation2 + $0x8a] sm:$0xff]
      %v3573 = vld [vmem:[#allocation2 + $0x92] sm:$0xff]
      %v3574 = vld [vmem:[#allocation2 + $0x9a] sm:$0xff]
      %v3575 = vld [vmem:[#allocation2 + $0xa2] sm:$0xff]
      %v3576 = vld [vmem:[#allocation2 + $0xaa] sm:$0xff]
      %v3577 = vld [vmem:[#allocation2 + $0xb2] sm:$0xff]
      %v3578 = vld [vmem:[#allocation2 + $0xba] sm:$0xff]
      %v3579 = vld [vmem:[#allocation2 + $0xc2] sm:$0xff]
      %v3580 = vld [vmem:[#allocation2 + $0xca] sm:$0xff]
      %v3581 = vld [vmem:[#allocation2 + $0xd2] sm:$0xff]
      %v3582 = vld [vmem:[#allocation2 + $0xda] sm:$0xff]
      %v3583 = vld [vmem:[#allocation2 + $0xe2] sm:$0xff]
      %v3584 = vld [vmem:[#allocation2 + $0xea] sm:$0xff]
      %v3585 = vld [vmem:[#allocation2 + $0xf2] sm:$0xff]
      %v3586 = vld [vmem:[#allocation2 + $0xfa] sm:$0xff]
      %v3587 = vld [vmem:[#allocation2 + $0x102] sm:$0xff]
      %v3588 = vld [vmem:[#allocation2 + $0x10a] sm:$0xff]
      %v3589 = vld [vmem:[#allocation2 + $0x112] sm:$0xff]
      %v3590 = vld [vmem:[#allocation2 + $0x11a] sm:$0xff]
      %v3591 = vpack.c.bf16 %v3556, %v3555
      %v3592 = vpack.c.bf16 %v3558, %v3557
      %v3593 = vpack.c.bf16 %v3560, %v3559
      %v3594 = vpack.c.bf16 %v3562, %v3561
      %v3595 = vpack.c.bf16 %v3564, %v3563
      %v3596 = vpack.c.bf16 %v3566, %v3565
      %v3597 = vpack.c.bf16 %v3568, %v3567
      %v3598 = vpack.c.bf16 %v3570, %v3569
      %v3599 = vpack.c.bf16 %v3572, %v3571
      %v3600 = vpack.c.bf16 %v3574, %v3573
      %v3601 = vpack.c.bf16 %v3576, %v3575
      %v3602 = vpack.c.bf16 %v3578, %v3577
      %v3603 = vpack.c.bf16 %v3580, %v3579
      %v3604 = vpack.c.bf16 %v3582, %v3581
      %v3605 = vpack.c.bf16 %v3584, %v3583
      %v3606 = vpack.c.bf16 %v3586, %v3585
      %v3607 = vpack.c.bf16 %v3588, %v3587
      %v3608 = vpack.c.bf16 %v3590, %v3589
      %3609 = vst.msk [vmem:[#allocation3 + $0x8] sm:$0xff] %vm361, %v3591
      %3610 = vst.msk [vmem:[#allocation3 + $0x30] sm:$0xff] %vm361, %v3592
      %3611 = vst.msk [vmem:[#allocation3 + $0x58] sm:$0xff] %vm361, %v3593
      %3612 = vst.msk [vmem:[#allocation3 + $0x80] sm:$0xff] %vm361, %v3594
      %3613 = vst.msk [vmem:[#allocation3 + $0xa8] sm:$0xff] %vm361, %v3595
      %3614 = vst.msk [vmem:[#allocation3 + $0xd0] sm:$0xff] %vm361, %v3596
      %3615 = vst.msk [vmem:[#allocation3 + $0xf8] sm:$0xff] %vm361, %v3597
      %3616 = vst.msk [vmem:[#allocation3 + $0x120] sm:$0xff] %vm361, %v3598
      %3617 = vst.msk [vmem:[#allocation3 + $0x148] sm:$0xff] %vm361, %v3599
      %3618 = vst.msk [vmem:[#allocation3 + $0x170] sm:$0xff] %vm361, %v3600
      %3619 = vst.msk [vmem:[#allocation3 + $0x198] sm:$0xff] %vm361, %v3601
      %3620 = vst.msk [vmem:[#allocation3 + $0x1c0] sm:$0xff] %vm361, %v3602
      %3621 = vst.msk [vmem:[#allocation3 + $0x1e8] sm:$0xff] %vm361, %v3603
      %3622 = vst.msk [vmem:[#allocation3 + $0x210] sm:$0xff] %vm361, %v3604
      %3623 = vst.msk [vmem:[#allocation3 + $0x238] sm:$0xff] %vm361, %v3605
      %3624 = vst.msk [vmem:[#allocation3 + $0x260] sm:$0xff] %vm361, %v3606
      %3625 = vst.msk [vmem:[#allocation3 + $0x288] sm:$0xff] %vm361, %v3607
      %3626 = vst.msk [vmem:[#allocation3 + $0x2b0] sm:$0xff] %vm361, %v3608
      %v3627 = vld [vmem:[#allocation2 + $0x12] sm:$0xff]
      %v3628 = vld [vmem:[#allocation2 + $0x1a] sm:$0xff]
      %v3629 = vld [vmem:[#allocation2 + $0x22] sm:$0xff]
      %v3630 = vld [vmem:[#allocation2 + $0x2a] sm:$0xff]
      %v3631 = vld [vmem:[#allocation2 + $0x32] sm:$0xff]
      %v3632 = vld [vmem:[#allocation2 + $0x3a] sm:$0xff]
      %v3633 = vld [vmem:[#allocation2 + $0x42] sm:$0xff]
      %v3634 = vld [vmem:[#allocation2 + $0x4a] sm:$0xff]
      %v3635 = vld [vmem:[#allocation2 + $0x52] sm:$0xff]
      %v3636 = vld [vmem:[#allocation2 + $0x5a] sm:$0xff]
      %v3637 = vld [vmem:[#allocation2 + $0x62] sm:$0xff]
      %v3638 = vld [vmem:[#allocation2 + $0x6a] sm:$0xff]
      %v3639 = vld [vmem:[#allocation2 + $0x72] sm:$0xff]
      %v3640 = vld [vmem:[#allocation2 + $0x7a] sm:$0xff]
      %v3641 = vld [vmem:[#allocation2 + $0x82] sm:$0xff]
      %v3642 = vld [vmem:[#allocation2 + $0x8a] sm:$0xff]
      %v3643 = vld [vmem:[#allocation2 + $0x92] sm:$0xff]
      %v3644 = vld [vmem:[#allocation2 + $0x9a] sm:$0xff]
      %v3645 = vld [vmem:[#allocation2 + $0xa2] sm:$0xff]
      %v3646 = vld [vmem:[#allocation2 + $0xaa] sm:$0xff]
      %v3647 = vld [vmem:[#allocation2 + $0xb2] sm:$0xff]
      %v3648 = vld [vmem:[#allocation2 + $0xba] sm:$0xff]
      %v3649 = vld [vmem:[#allocation2 + $0xc2] sm:$0xff]
      %v3650 = vld [vmem:[#allocation2 + $0xca] sm:$0xff]
      %v3651 = vld [vmem:[#allocation2 + $0xd2] sm:$0xff]
      %v3652 = vld [vmem:[#allocation2 + $0xda] sm:$0xff]
      %v3653 = vld [vmem:[#allocation2 + $0xe2] sm:$0xff]
      %v3654 = vld [vmem:[#allocation2 + $0xea] sm:$0xff]
      %v3655 = vld [vmem:[#allocation2 + $0xf2] sm:$0xff]
      %v3656 = vld [vmem:[#allocation2 + $0xfa] sm:$0xff]
      %v3657 = vld [vmem:[#allocation2 + $0x102] sm:$0xff]
      %v3658 = vld [vmem:[#allocation2 + $0x10a] sm:$0xff]
      %v3659 = vld [vmem:[#allocation2 + $0x112] sm:$0xff]
      %v3660 = vld [vmem:[#allocation2 + $0x11a] sm:$0xff]
      %v3661 = vld [vmem:[#allocation2 + $0x122] sm:$0xff]
      %v3662 = vld [vmem:[#allocation2 + $0x12a] sm:$0xff]
      %v3663 = vpack.c.bf16 %v3628, %v3627
      %v3664 = vpack.c.bf16 %v3630, %v3629
      %v3665 = vpack.c.bf16 %v3632, %v3631
      %v3666 = vpack.c.bf16 %v3634, %v3633
      %v3667 = vpack.c.bf16 %v3636, %v3635
      %v3668 = vpack.c.bf16 %v3638, %v3637
      %v3669 = vpack.c.bf16 %v3640, %v3639
      %v3670 = vpack.c.bf16 %v3642, %v3641
      %v3671 = vpack.c.bf16 %v3644, %v3643
      %v3672 = vpack.c.bf16 %v3646, %v3645
      %v3673 = vpack.c.bf16 %v3648, %v3647
      %v3674 = vpack.c.bf16 %v3650, %v3649
      %v3675 = vpack.c.bf16 %v3652, %v3651
      %v3676 = vpack.c.bf16 %v3654, %v3653
      %v3677 = vpack.c.bf16 %v3656, %v3655
      %v3678 = vpack.c.bf16 %v3658, %v3657
      %v3679 = vpack.c.bf16 %v3660, %v3659
      %v3680 = vpack.c.bf16 %v3662, %v3661
      %3699 = vrot.lane.b32.xlu0 %v3663, 64
      %v3700 = vpop.permute.xlu0 %3699
      %3701 = vrot.lane.b32.xlu0 %v3664, 64
      %v3702 = vpop.permute.xlu0 %3701
      %3703 = vrot.lane.b32.xlu0 %v3665, 64
      %v3704 = vpop.permute.xlu0 %3703
      %3705 = vrot.lane.b32.xlu0 %v3666, 64
      %v3706 = vpop.permute.xlu0 %3705
      %3707 = vrot.lane.b32.xlu0 %v3667, 64
      %v3708 = vpop.permute.xlu0 %3707
      %3709 = vrot.lane.b32.xlu0 %v3668, 64
      %v3710 = vpop.permute.xlu0 %3709
      %3711 = vrot.lane.b32.xlu0 %v3669, 64
      %v3712 = vpop.permute.xlu0 %3711
      %3713 = vrot.lane.b32.xlu0 %v3670, 64
      %v3714 = vpop.permute.xlu0 %3713
      %3715 = vrot.lane.b32.xlu0 %v3671, 64
      %v3716 = vpop.permute.xlu0 %3715
      %3717 = vrot.lane.b32.xlu0 %v3672, 64
      %v3718 = vpop.permute.xlu0 %3717
      %3719 = vrot.lane.b32.xlu0 %v3673, 64
      %v3720 = vpop.permute.xlu0 %3719
      %3721 = vrot.lane.b32.xlu0 %v3674, 64
      %v3722 = vpop.permute.xlu0 %3721
      %3723 = vrot.lane.b32.xlu0 %v3675, 64
      %v3724 = vpop.permute.xlu0 %3723
      %3725 = vrot.lane.b32.xlu0 %v3676, 64
      %v3726 = vpop.permute.xlu0 %3725
      %3727 = vrot.lane.b32.xlu0 %v3677, 64
      %v3728 = vpop.permute.xlu0 %3727
      %3729 = vrot.lane.b32.xlu0 %v3678, 64
      %v3730 = vpop.permute.xlu0 %3729
      %3731 = vrot.lane.b32.xlu0 %v3679, 64
      %v3732 = vpop.permute.xlu0 %3731
      %3733 = vrot.lane.b32.xlu0 %v3680, 64
      %v3734 = vpop.permute.xlu0 %3733
      %3753 = vst.msk [vmem:[#allocation3 + $0x8] sm:$0xff] %vm1306, %v3700
      %3754 = vst.msk [vmem:[#allocation3 + $0x30] sm:$0xff] %vm1306, %v3702
      %3755 = vst.msk [vmem:[#allocation3 + $0x58] sm:$0xff] %vm1306, %v3704
      %3756 = vst.msk [vmem:[#allocation3 + $0x80] sm:$0xff] %vm1306, %v3706
      %3757 = vst.msk [vmem:[#allocation3 + $0xa8] sm:$0xff] %vm1306, %v3708
      %3758 = vst.msk [vmem:[#allocation3 + $0xd0] sm:$0xff] %vm1306, %v3710
      %3759 = vst.msk [vmem:[#allocation3 + $0xf8] sm:$0xff] %vm1306, %v3712
      %3760 = vst.msk [vmem:[#allocation3 + $0x120] sm:$0xff] %vm1306, %v3714
      %3761 = vst.msk [vmem:[#allocation3 + $0x148] sm:$0xff] %vm1306, %v3716
      %3762 = vst.msk [vmem:[#allocation3 + $0x170] sm:$0xff] %vm1306, %v3718
      %3763 = vst.msk [vmem:[#allocation3 + $0x198] sm:$0xff] %vm1306, %v3720
      %3764 = vst.msk [vmem:[#allocation3 + $0x1c0] sm:$0xff] %vm1306, %v3722
      %3765 = vst.msk [vmem:[#allocation3 + $0x1e8] sm:$0xff] %vm1306, %v3724
      %3766 = vst.msk [vmem:[#allocation3 + $0x210] sm:$0xff] %vm1306, %v3726
      %3767 = vst.msk [vmem:[#allocation3 + $0x238] sm:$0xff] %vm1306, %v3728
      %3768 = vst.msk [vmem:[#allocation3 + $0x260] sm:$0xff] %vm1306, %v3730
      %3769 = vst.msk [vmem:[#allocation3 + $0x288] sm:$0xff] %vm1306, %v3732
      %3770 = vst.msk [vmem:[#allocation3 + $0x2b0] sm:$0xff] %vm1306, %v3734
      %v3771 = vld [vmem:[#allocation2 + $0x13] sm:$0xff]
      %v3772 = vld [vmem:[#allocation2 + $0x1b] sm:$0xff]
      %v3773 = vld [vmem:[#allocation2 + $0x23] sm:$0xff]
      %v3774 = vld [vmem:[#allocation2 + $0x2b] sm:$0xff]
      %v3775 = vld [vmem:[#allocation2 + $0x33] sm:$0xff]
      %v3776 = vld [vmem:[#allocation2 + $0x3b] sm:$0xff]
      %v3777 = vld [vmem:[#allocation2 + $0x43] sm:$0xff]
      %v3778 = vld [vmem:[#allocation2 + $0x4b] sm:$0xff]
      %v3779 = vld [vmem:[#allocation2 + $0x53] sm:$0xff]
      %v3780 = vld [vmem:[#allocation2 + $0x5b] sm:$0xff]
      %v3781 = vld [vmem:[#allocation2 + $0x63] sm:$0xff]
      %v3782 = vld [vmem:[#allocation2 + $0x6b] sm:$0xff]
      %v3783 = vld [vmem:[#allocation2 + $0x73] sm:$0xff]
      %v3784 = vld [vmem:[#allocation2 + $0x7b] sm:$0xff]
      %v3785 = vld [vmem:[#allocation2 + $0x83] sm:$0xff]
      %v3786 = vld [vmem:[#allocation2 + $0x8b] sm:$0xff]
      %v3787 = vld [vmem:[#allocation2 + $0x93] sm:$0xff]
      %v3788 = vld [vmem:[#allocation2 + $0x9b] sm:$0xff]
      %v3789 = vld [vmem:[#allocation2 + $0xa3] sm:$0xff]
      %v3790 = vld [vmem:[#allocation2 + $0xab] sm:$0xff]
      %v3791 = vld [vmem:[#allocation2 + $0xb3] sm:$0xff]
      %v3792 = vld [vmem:[#allocation2 + $0xbb] sm:$0xff]
      %v3793 = vld [vmem:[#allocation2 + $0xc3] sm:$0xff]
      %v3794 = vld [vmem:[#allocation2 + $0xcb] sm:$0xff]
      %v3795 = vld [vmem:[#allocation2 + $0xd3] sm:$0xff]
      %v3796 = vld [vmem:[#allocation2 + $0xdb] sm:$0xff]
      %v3797 = vld [vmem:[#allocation2 + $0xe3] sm:$0xff]
      %v3798 = vld [vmem:[#allocation2 + $0xeb] sm:$0xff]
      %v3799 = vld [vmem:[#allocation2 + $0xf3] sm:$0xff]
      %v3800 = vld [vmem:[#allocation2 + $0xfb] sm:$0xff]
      %v3801 = vld [vmem:[#allocation2 + $0x103] sm:$0xff]
      %v3802 = vld [vmem:[#allocation2 + $0x10b] sm:$0xff]
      %v3803 = vld [vmem:[#allocation2 + $0x113] sm:$0xff]
      %v3804 = vld [vmem:[#allocation2 + $0x11b] sm:$0xff]
      %v3805 = vld [vmem:[#allocation2 + $0x123] sm:$0xff]
      %v3806 = vld [vmem:[#allocation2 + $0x12b] sm:$0xff]
      %v3807 = vpack.c.bf16 %v3772, %v3771
      %v3808 = vpack.c.bf16 %v3774, %v3773
      %v3809 = vpack.c.bf16 %v3776, %v3775
      %v3810 = vpack.c.bf16 %v3778, %v3777
      %v3811 = vpack.c.bf16 %v3780, %v3779
      %v3812 = vpack.c.bf16 %v3782, %v3781
      %v3813 = vpack.c.bf16 %v3784, %v3783
      %v3814 = vpack.c.bf16 %v3786, %v3785
      %v3815 = vpack.c.bf16 %v3788, %v3787
      %v3816 = vpack.c.bf16 %v3790, %v3789
      %v3817 = vpack.c.bf16 %v3792, %v3791
      %v3818 = vpack.c.bf16 %v3794, %v3793
      %v3819 = vpack.c.bf16 %v3796, %v3795
      %v3820 = vpack.c.bf16 %v3798, %v3797
      %v3821 = vpack.c.bf16 %v3800, %v3799
      %v3822 = vpack.c.bf16 %v3802, %v3801
      %v3823 = vpack.c.bf16 %v3804, %v3803
      %v3824 = vpack.c.bf16 %v3806, %v3805
      %3825 = vst.msk [vmem:[#allocation3 + $0x10] sm:$0xff] %vm361, %v3807
      %3826 = vst.msk [vmem:[#allocation3 + $0x38] sm:$0xff] %vm361, %v3808
      %3827 = vst.msk [vmem:[#allocation3 + $0x60] sm:$0xff] %vm361, %v3809
      %3828 = vst.msk [vmem:[#allocation3 + $0x88] sm:$0xff] %vm361, %v3810
      %3829 = vst.msk [vmem:[#allocation3 + $0xb0] sm:$0xff] %vm361, %v3811
      %3830 = vst.msk [vmem:[#allocation3 + $0xd8] sm:$0xff] %vm361, %v3812
      %3831 = vst.msk [vmem:[#allocation3 + $0x100] sm:$0xff] %vm361, %v3813
      %3832 = vst.msk [vmem:[#allocation3 + $0x128] sm:$0xff] %vm361, %v3814
      %3833 = vst.msk [vmem:[#allocation3 + $0x150] sm:$0xff] %vm361, %v3815
      %3834 = vst.msk [vmem:[#allocation3 + $0x178] sm:$0xff] %vm361, %v3816
      %3835 = vst.msk [vmem:[#allocation3 + $0x1a0] sm:$0xff] %vm361, %v3817
      %3836 = vst.msk [vmem:[#allocation3 + $0x1c8] sm:$0xff] %vm361, %v3818
      %3837 = vst.msk [vmem:[#allocation3 + $0x1f0] sm:$0xff] %vm361, %v3819
      %3838 = vst.msk [vmem:[#allocation3 + $0x218] sm:$0xff] %vm361, %v3820
      %3839 = vst.msk [vmem:[#allocation3 + $0x240] sm:$0xff] %vm361, %v3821
      %3840 = vst.msk [vmem:[#allocation3 + $0x268] sm:$0xff] %vm361, %v3822
      %3841 = vst.msk [vmem:[#allocation3 + $0x290] sm:$0xff] %vm361, %v3823
      %3842 = vst.msk [vmem:[#allocation3 + $0x2b8] sm:$0xff] %vm361, %v3824
      %v3843 = vld [vmem:[#allocation2 + $0x14] sm:$0xff]
      %v3844 = vld [vmem:[#allocation2 + $0x1c] sm:$0xff]
      %v3845 = vld [vmem:[#allocation2 + $0x24] sm:$0xff]
      %v3846 = vld [vmem:[#allocation2 + $0x2c] sm:$0xff]
      %v3847 = vld [vmem:[#allocation2 + $0x34] sm:$0xff]
      %v3848 = vld [vmem:[#allocation2 + $0x3c] sm:$0xff]
      %v3849 = vld [vmem:[#allocation2 + $0x44] sm:$0xff]
      %v3850 = vld [vmem:[#allocation2 + $0x4c] sm:$0xff]
      %v3851 = vld [vmem:[#allocation2 + $0x54] sm:$0xff]
      %v3852 = vld [vmem:[#allocation2 + $0x5c] sm:$0xff]
      %v3853 = vld [vmem:[#allocation2 + $0x64] sm:$0xff]
      %v3854 = vld [vmem:[#allocation2 + $0x6c] sm:$0xff]
      %v3855 = vld [vmem:[#allocation2 + $0x74] sm:$0xff]
      %v3856 = vld [vmem:[#allocation2 + $0x7c] sm:$0xff]
      %v3857 = vld [vmem:[#allocation2 + $0x84] sm:$0xff]
      %v3858 = vld [vmem:[#allocation2 + $0x8c] sm:$0xff]
      %v3859 = vld [vmem:[#allocation2 + $0x94] sm:$0xff]
      %v3860 = vld [vmem:[#allocation2 + $0x9c] sm:$0xff]
      %v3861 = vld [vmem:[#allocation2 + $0xa4] sm:$0xff]
      %v3862 = vld [vmem:[#allocation2 + $0xac] sm:$0xff]
      %v3863 = vld [vmem:[#allocation2 + $0xb4] sm:$0xff]
      %v3864 = vld [vmem:[#allocation2 + $0xbc] sm:$0xff]
      %v3865 = vld [vmem:[#allocation2 + $0xc4] sm:$0xff]
      %v3866 = vld [vmem:[#allocation2 + $0xcc] sm:$0xff]
      %v3867 = vld [vmem:[#allocation2 + $0xd4] sm:$0xff]
      %v3868 = vld [vmem:[#allocation2 + $0xdc] sm:$0xff]
      %v3869 = vld [vmem:[#allocation2 + $0xe4] sm:$0xff]
      %v3870 = vld [vmem:[#allocation2 + $0xec] sm:$0xff]
      %v3871 = vld [vmem:[#allocation2 + $0xf4] sm:$0xff]
      %v3872 = vld [vmem:[#allocation2 + $0xfc] sm:$0xff]
      %v3873 = vld [vmem:[#allocation2 + $0x104] sm:$0xff]
      %v3874 = vld [vmem:[#allocation2 + $0x10c] sm:$0xff]
      %v3875 = vld [vmem:[#allocation2 + $0x114] sm:$0xff]
      %v3876 = vld [vmem:[#allocation2 + $0x11c] sm:$0xff]
      %v3877 = vld [vmem:[#allocation2 + $0x124] sm:$0xff]
      %v3878 = vld [vmem:[#allocation2 + $0x12c] sm:$0xff]
      %v3879 = vpack.c.bf16 %v3844, %v3843
      %v3880 = vpack.c.bf16 %v3846, %v3845
      %v3881 = vpack.c.bf16 %v3848, %v3847
      %v3882 = vpack.c.bf16 %v3850, %v3849
      %v3883 = vpack.c.bf16 %v3852, %v3851
      %v3884 = vpack.c.bf16 %v3854, %v3853
      %v3885 = vpack.c.bf16 %v3856, %v3855
      %v3886 = vpack.c.bf16 %v3858, %v3857
      %v3887 = vpack.c.bf16 %v3860, %v3859
      %v3888 = vpack.c.bf16 %v3862, %v3861
      %v3889 = vpack.c.bf16 %v3864, %v3863
      %v3890 = vpack.c.bf16 %v3866, %v3865
      %v3891 = vpack.c.bf16 %v3868, %v3867
      %v3892 = vpack.c.bf16 %v3870, %v3869
      %v3893 = vpack.c.bf16 %v3872, %v3871
      %v3894 = vpack.c.bf16 %v3874, %v3873
      %v3895 = vpack.c.bf16 %v3876, %v3875
      %v3896 = vpack.c.bf16 %v3878, %v3877
      %3915 = vrot.lane.b32.xlu0 %v3879, 64
      %v3916 = vpop.permute.xlu0 %3915
      %3917 = vrot.lane.b32.xlu0 %v3880, 64
      %v3918 = vpop.permute.xlu0 %3917
      %3919 = vrot.lane.b32.xlu0 %v3881, 64
      %v3920 = vpop.permute.xlu0 %3919
      %3921 = vrot.lane.b32.xlu0 %v3882, 64
      %v3922 = vpop.permute.xlu0 %3921
      %3923 = vrot.lane.b32.xlu0 %v3883, 64
      %v3924 = vpop.permute.xlu0 %3923
      %3925 = vrot.lane.b32.xlu0 %v3884, 64
      %v3926 = vpop.permute.xlu0 %3925
      %3927 = vrot.lane.b32.xlu0 %v3885, 64
      %v3928 = vpop.permute.xlu0 %3927
      %3929 = vrot.lane.b32.xlu0 %v3886, 64
      %v3930 = vpop.permute.xlu0 %3929
      %3931 = vrot.lane.b32.xlu0 %v3887, 64
      %v3932 = vpop.permute.xlu0 %3931
      %3933 = vrot.lane.b32.xlu0 %v3888, 64
      %v3934 = vpop.permute.xlu0 %3933
      %3935 = vrot.lane.b32.xlu0 %v3889, 64
      %v3936 = vpop.permute.xlu0 %3935
      %3937 = vrot.lane.b32.xlu0 %v3890, 64
      %v3938 = vpop.permute.xlu0 %3937
      %3939 = vrot.lane.b32.xlu0 %v3891, 64
      %v3940 = vpop.permute.xlu0 %3939
      %3941 = vrot.lane.b32.xlu0 %v3892, 64
      %v3942 = vpop.permute.xlu0 %3941
      %3943 = vrot.lane.b32.xlu0 %v3893, 64
      %v3944 = vpop.permute.xlu0 %3943
      %3945 = vrot.lane.b32.xlu0 %v3894, 64
      %v3946 = vpop.permute.xlu0 %3945
      %3947 = vrot.lane.b32.xlu0 %v3895, 64
      %v3948 = vpop.permute.xlu0 %3947
      %3949 = vrot.lane.b32.xlu0 %v3896, 64
      %v3950 = vpop.permute.xlu0 %3949
      %3969 = vst.msk [vmem:[#allocation3 + $0x10] sm:$0xff] %vm1306, %v3916
      %3970 = vst.msk [vmem:[#allocation3 + $0x38] sm:$0xff] %vm1306, %v3918
      %3971 = vst.msk [vmem:[#allocation3 + $0x60] sm:$0xff] %vm1306, %v3920
      %3972 = vst.msk [vmem:[#allocation3 + $0x88] sm:$0xff] %vm1306, %v3922
      %3973 = vst.msk [vmem:[#allocation3 + $0xb0] sm:$0xff] %vm1306, %v3924
      %3974 = vst.msk [vmem:[#allocation3 + $0xd8] sm:$0xff] %vm1306, %v3926
      %3975 = vst.msk [vmem:[#allocation3 + $0x100] sm:$0xff] %vm1306, %v3928
      %3976 = vst.msk [vmem:[#allocation3 + $0x128] sm:$0xff] %vm1306, %v3930
      %3977 = vst.msk [vmem:[#allocation3 + $0x150] sm:$0xff] %vm1306, %v3932
      %3978 = vst.msk [vmem:[#allocation3 + $0x178] sm:$0xff] %vm1306, %v3934
      %3979 = vst.msk [vmem:[#allocation3 + $0x1a0] sm:$0xff] %vm1306, %v3936
      %3980 = vst.msk [vmem:[#allocation3 + $0x1c8] sm:$0xff] %vm1306, %v3938
      %3981 = vst.msk [vmem:[#allocation3 + $0x1f0] sm:$0xff] %vm1306, %v3940
      %3982 = vst.msk [vmem:[#allocation3 + $0x218] sm:$0xff] %vm1306, %v3942
      %3983 = vst.msk [vmem:[#allocation3 + $0x240] sm:$0xff] %vm1306, %v3944
      %3984 = vst.msk [vmem:[#allocation3 + $0x268] sm:$0xff] %vm1306, %v3946
      %3985 = vst.msk [vmem:[#allocation3 + $0x290] sm:$0xff] %vm1306, %v3948
      %3986 = vst.msk [vmem:[#allocation3 + $0x2b8] sm:$0xff] %vm1306, %v3950
      %v3987 = vld [vmem:[#allocation2 + $0x24] sm:$0xff]
      %v3988 = vld [vmem:[#allocation2 + $0x2c] sm:$0xff]
      %v3989 = vld [vmem:[#allocation2 + $0x34] sm:$0xff]
      %v3990 = vld [vmem:[#allocation2 + $0x3c] sm:$0xff]
      %v3991 = vld [vmem:[#allocation2 + $0x44] sm:$0xff]
      %v3992 = vld [vmem:[#allocation2 + $0x4c] sm:$0xff]
      %v3993 = vld [vmem:[#allocation2 + $0x54] sm:$0xff]
      %v3994 = vld [vmem:[#allocation2 + $0x5c] sm:$0xff]
      %v3995 = vld [vmem:[#allocation2 + $0x64] sm:$0xff]
      %v3996 = vld [vmem:[#allocation2 + $0x6c] sm:$0xff]
      %v3997 = vld [vmem:[#allocation2 + $0x74] sm:$0xff]
      %v3998 = vld [vmem:[#allocation2 + $0x7c] sm:$0xff]
      %v3999 = vld [vmem:[#allocation2 + $0x84] sm:$0xff]
      %v4000 = vld [vmem:[#allocation2 + $0x8c] sm:$0xff]
      %v4001 = vld [vmem:[#allocation2 + $0x94] sm:$0xff]
      %v4002 = vld [vmem:[#allocation2 + $0x9c] sm:$0xff]
      %v4003 = vld [vmem:[#allocation2 + $0xa4] sm:$0xff]
      %v4004 = vld [vmem:[#allocation2 + $0xac] sm:$0xff]
      %v4005 = vld [vmem:[#allocation2 + $0xb4] sm:$0xff]
      %v4006 = vld [vmem:[#allocation2 + $0xbc] sm:$0xff]
      %v4007 = vld [vmem:[#allocation2 + $0xc4] sm:$0xff]
      %v4008 = vld [vmem:[#allocation2 + $0xcc] sm:$0xff]
      %v4009 = vld [vmem:[#allocation2 + $0xd4] sm:$0xff]
      %v4010 = vld [vmem:[#allocation2 + $0xdc] sm:$0xff]
      %v4011 = vld [vmem:[#allocation2 + $0xe4] sm:$0xff]
      %v4012 = vld [vmem:[#allocation2 + $0xec] sm:$0xff]
      %v4013 = vld [vmem:[#allocation2 + $0xf4] sm:$0xff]
      %v4014 = vld [vmem:[#allocation2 + $0xfc] sm:$0xff]
      %v4015 = vld [vmem:[#allocation2 + $0x104] sm:$0xff]
      %v4016 = vld [vmem:[#allocation2 + $0x10c] sm:$0xff]
      %v4017 = vld [vmem:[#allocation2 + $0x114] sm:$0xff]
      %v4018 = vld [vmem:[#allocation2 + $0x11c] sm:$0xff]
      %v4019 = vld [vmem:[#allocation2 + $0x124] sm:$0xff]
      %v4020 = vld [vmem:[#allocation2 + $0x12c] sm:$0xff]
      %v4021 = vld [vmem:[#allocation2 + $0x134] sm:$0xff]
      %v4022 = vld [vmem:[#allocation2 + $0x13c] sm:$0xff]
      %v4023 = vpack.c.bf16 %v3988, %v3987
      %v4024 = vpack.c.bf16 %v3990, %v3989
      %v4025 = vpack.c.bf16 %v3992, %v3991
      %v4026 = vpack.c.bf16 %v3994, %v3993
      %v4027 = vpack.c.bf16 %v3996, %v3995
      %v4028 = vpack.c.bf16 %v3998, %v3997
      %v4029 = vpack.c.bf16 %v4000, %v3999
      %v4030 = vpack.c.bf16 %v4002, %v4001
      %v4031 = vpack.c.bf16 %v4004, %v4003
      %v4032 = vpack.c.bf16 %v4006, %v4005
      %v4033 = vpack.c.bf16 %v4008, %v4007
      %v4034 = vpack.c.bf16 %v4010, %v4009
      %v4035 = vpack.c.bf16 %v4012, %v4011
      %v4036 = vpack.c.bf16 %v4014, %v4013
      %v4037 = vpack.c.bf16 %v4016, %v4015
      %v4038 = vpack.c.bf16 %v4018, %v4017
      %v4039 = vpack.c.bf16 %v4020, %v4019
      %v4040 = vpack.c.bf16 %v4022, %v4021
      %4041 = vst.msk [vmem:[#allocation3 + $0x18] sm:$0xff] %vm361, %v4023
      %4042 = vst.msk [vmem:[#allocation3 + $0x40] sm:$0xff] %vm361, %v4024
      %4043 = vst.msk [vmem:[#allocation3 + $0x68] sm:$0xff] %vm361, %v4025
      %4044 = vst.msk [vmem:[#allocation3 + $0x90] sm:$0xff] %vm361, %v4026
      %4045 = vst.msk [vmem:[#allocation3 + $0xb8] sm:$0xff] %vm361, %v4027
      %4046 = vst.msk [vmem:[#allocation3 + $0xe0] sm:$0xff] %vm361, %v4028
      %4047 = vst.msk [vmem:[#allocation3 + $0x108] sm:$0xff] %vm361, %v4029
      %4048 = vst.msk [vmem:[#allocation3 + $0x130] sm:$0xff] %vm361, %v4030
      %4049 = vst.msk [vmem:[#allocation3 + $0x158] sm:$0xff] %vm361, %v4031
      %4050 = vst.msk [vmem:[#allocation3 + $0x180] sm:$0xff] %vm361, %v4032
      %4051 = vst.msk [vmem:[#allocation3 + $0x1a8] sm:$0xff] %vm361, %v4033
      %4052 = vst.msk [vmem:[#allocation3 + $0x1d0] sm:$0xff] %vm361, %v4034
      %4053 = vst.msk [vmem:[#allocation3 + $0x1f8] sm:$0xff] %vm361, %v4035
      %4054 = vst.msk [vmem:[#allocation3 + $0x220] sm:$0xff] %vm361, %v4036
      %4055 = vst.msk [vmem:[#allocation3 + $0x248] sm:$0xff] %vm361, %v4037
      %4056 = vst.msk [vmem:[#allocation3 + $0x270] sm:$0xff] %vm361, %v4038
      %4057 = vst.msk [vmem:[#allocation3 + $0x298] sm:$0xff] %vm361, %v4039
      %4058 = vst.msk [vmem:[#allocation3 + $0x2c0] sm:$0xff] %vm361, %v4040
      %v4059 = vld [vmem:[#allocation2 + $0x25] sm:$0xff]
      %v4060 = vld [vmem:[#allocation2 + $0x2d] sm:$0xff]
      %v4061 = vld [vmem:[#allocation2 + $0x35] sm:$0xff]
      %v4062 = vld [vmem:[#allocation2 + $0x3d] sm:$0xff]
      %v4063 = vld [vmem:[#allocation2 + $0x45] sm:$0xff]
      %v4064 = vld [vmem:[#allocation2 + $0x4d] sm:$0xff]
      %v4065 = vld [vmem:[#allocation2 + $0x55] sm:$0xff]
      %v4066 = vld [vmem:[#allocation2 + $0x5d] sm:$0xff]
      %v4067 = vld [vmem:[#allocation2 + $0x65] sm:$0xff]
      %v4068 = vld [vmem:[#allocation2 + $0x6d] sm:$0xff]
      %v4069 = vld [vmem:[#allocation2 + $0x75] sm:$0xff]
      %v4070 = vld [vmem:[#allocation2 + $0x7d] sm:$0xff]
      %v4071 = vld [vmem:[#allocation2 + $0x85] sm:$0xff]
      %v4072 = vld [vmem:[#allocation2 + $0x8d] sm:$0xff]
      %v4073 = vld [vmem:[#allocation2 + $0x95] sm:$0xff]
      %v4074 = vld [vmem:[#allocation2 + $0x9d] sm:$0xff]
      %v4075 = vld [vmem:[#allocation2 + $0xa5] sm:$0xff]
      %v4076 = vld [vmem:[#allocation2 + $0xad] sm:$0xff]
      %v4077 = vld [vmem:[#allocation2 + $0xb5] sm:$0xff]
      %v4078 = vld [vmem:[#allocation2 + $0xbd] sm:$0xff]
      %v4079 = vld [vmem:[#allocation2 + $0xc5] sm:$0xff]
      %v4080 = vld [vmem:[#allocation2 + $0xcd] sm:$0xff]
      %v4081 = vld [vmem:[#allocation2 + $0xd5] sm:$0xff]
      %v4082 = vld [vmem:[#allocation2 + $0xdd] sm:$0xff]
      %v4083 = vld [vmem:[#allocation2 + $0xe5] sm:$0xff]
      %v4084 = vld [vmem:[#allocation2 + $0xed] sm:$0xff]
      %v4085 = vld [vmem:[#allocation2 + $0xf5] sm:$0xff]
      %v4086 = vld [vmem:[#allocation2 + $0xfd] sm:$0xff]
      %v4087 = vld [vmem:[#allocation2 + $0x105] sm:$0xff]
      %v4088 = vld [vmem:[#allocation2 + $0x10d] sm:$0xff]
      %v4089 = vld [vmem:[#allocation2 + $0x115] sm:$0xff]
      %v4090 = vld [vmem:[#allocation2 + $0x11d] sm:$0xff]
      %v4091 = vld [vmem:[#allocation2 + $0x125] sm:$0xff]
      %v4092 = vld [vmem:[#allocation2 + $0x12d] sm:$0xff]
      %v4093 = vld [vmem:[#allocation2 + $0x135] sm:$0xff]
      %v4094 = vld [vmem:[#allocation2 + $0x13d] sm:$0xff]
      %v4095 = vpack.c.bf16 %v4060, %v4059
      %v4096 = vpack.c.bf16 %v4062, %v4061
      %v4097 = vpack.c.bf16 %v4064, %v4063
      %v4098 = vpack.c.bf16 %v4066, %v4065
      %v4099 = vpack.c.bf16 %v4068, %v4067
      %v4100 = vpack.c.bf16 %v4070, %v4069
      %v4101 = vpack.c.bf16 %v4072, %v4071
      %v4102 = vpack.c.bf16 %v4074, %v4073
      %v4103 = vpack.c.bf16 %v4076, %v4075
      %v4104 = vpack.c.bf16 %v4078, %v4077
      %v4105 = vpack.c.bf16 %v4080, %v4079
      %v4106 = vpack.c.bf16 %v4082, %v4081
      %v4107 = vpack.c.bf16 %v4084, %v4083
      %v4108 = vpack.c.bf16 %v4086, %v4085
      %v4109 = vpack.c.bf16 %v4088, %v4087
      %v4110 = vpack.c.bf16 %v4090, %v4089
      %v4111 = vpack.c.bf16 %v4092, %v4091
      %v4112 = vpack.c.bf16 %v4094, %v4093
      %4131 = vrot.lane.b32.xlu0 %v4095, 64
      %v4132 = vpop.permute.xlu0 %4131
      %4133 = vrot.lane.b32.xlu0 %v4096, 64
      %v4134 = vpop.permute.xlu0 %4133
      %4135 = vrot.lane.b32.xlu0 %v4097, 64
      %v4136 = vpop.permute.xlu0 %4135
      %4137 = vrot.lane.b32.xlu0 %v4098, 64
      %v4138 = vpop.permute.xlu0 %4137
      %4139 = vrot.lane.b32.xlu0 %v4099, 64
      %v4140 = vpop.permute.xlu0 %4139
      %4141 = vrot.lane.b32.xlu0 %v4100, 64
      %v4142 = vpop.permute.xlu0 %4141
      %4143 = vrot.lane.b32.xlu0 %v4101, 64
      %v4144 = vpop.permute.xlu0 %4143
      %4145 = vrot.lane.b32.xlu0 %v4102, 64
      %v4146 = vpop.permute.xlu0 %4145
      %4147 = vrot.lane.b32.xlu0 %v4103, 64
      %v4148 = vpop.permute.xlu0 %4147
      %4149 = vrot.lane.b32.xlu0 %v4104, 64
      %v4150 = vpop.permute.xlu0 %4149
      %4151 = vrot.lane.b32.xlu0 %v4105, 64
      %v4152 = vpop.permute.xlu0 %4151
      %4153 = vrot.lane.b32.xlu0 %v4106, 64
      %v4154 = vpop.permute.xlu0 %4153
      %4155 = vrot.lane.b32.xlu0 %v4107, 64
      %v4156 = vpop.permute.xlu0 %4155
      %4157 = vrot.lane.b32.xlu0 %v4108, 64
      %v4158 = vpop.permute.xlu0 %4157
      %4159 = vrot.lane.b32.xlu0 %v4109, 64
      %v4160 = vpop.permute.xlu0 %4159
      %4161 = vrot.lane.b32.xlu0 %v4110, 64
      %v4162 = vpop.permute.xlu0 %4161
      %4163 = vrot.lane.b32.xlu0 %v4111, 64
      %v4164 = vpop.permute.xlu0 %4163
      %4165 = vrot.lane.b32.xlu0 %v4112, 64
      %v4166 = vpop.permute.xlu0 %4165
      %4185 = vst.msk [vmem:[#allocation3 + $0x18] sm:$0xff] %vm1306, %v4132
      %4186 = vst.msk [vmem:[#allocation3 + $0x40] sm:$0xff] %vm1306, %v4134
      %4187 = vst.msk [vmem:[#allocation3 + $0x68] sm:$0xff] %vm1306, %v4136
      %4188 = vst.msk [vmem:[#allocation3 + $0x90] sm:$0xff] %vm1306, %v4138
      %4189 = vst.msk [vmem:[#allocation3 + $0xb8] sm:$0xff] %vm1306, %v4140
      %4190 = vst.msk [vmem:[#allocation3 + $0xe0] sm:$0xff] %vm1306, %v4142
      %4191 = vst.msk [vmem:[#allocation3 + $0x108] sm:$0xff] %vm1306, %v4144
      %4192 = vst.msk [vmem:[#allocation3 + $0x130] sm:$0xff] %vm1306, %v4146
      %4193 = vst.msk [vmem:[#allocation3 + $0x158] sm:$0xff] %vm1306, %v4148
      %4194 = vst.msk [vmem:[#allocation3 + $0x180] sm:$0xff] %vm1306, %v4150
      %4195 = vst.msk [vmem:[#allocation3 + $0x1a8] sm:$0xff] %vm1306, %v4152
      %4196 = vst.msk [vmem:[#allocation3 + $0x1d0] sm:$0xff] %vm1306, %v4154
      %4197 = vst.msk [vmem:[#allocation3 + $0x1f8] sm:$0xff] %vm1306, %v4156
      %4198 = vst.msk [vmem:[#allocation3 + $0x220] sm:$0xff] %vm1306, %v4158
      %4199 = vst.msk [vmem:[#allocation3 + $0x248] sm:$0xff] %vm1306, %v4160
      %4200 = vst.msk [vmem:[#allocation3 + $0x270] sm:$0xff] %vm1306, %v4162
      %4201 = vst.msk [vmem:[#allocation3 + $0x298] sm:$0xff] %vm1306, %v4164
      %4202 = vst.msk [vmem:[#allocation3 + $0x2c0] sm:$0xff] %vm1306, %v4166
      %v4203 = vld [vmem:[#allocation2 + $0x26] sm:$0xff]
      %v4204 = vld [vmem:[#allocation2 + $0x2e] sm:$0xff]
      %v4205 = vld [vmem:[#allocation2 + $0x36] sm:$0xff]
      %v4206 = vld [vmem:[#allocation2 + $0x3e] sm:$0xff]
      %v4207 = vld [vmem:[#allocation2 + $0x46] sm:$0xff]
      %v4208 = vld [vmem:[#allocation2 + $0x4e] sm:$0xff]
      %v4209 = vld [vmem:[#allocation2 + $0x56] sm:$0xff]
      %v4210 = vld [vmem:[#allocation2 + $0x5e] sm:$0xff]
      %v4211 = vld [vmem:[#allocation2 + $0x66] sm:$0xff]
      %v4212 = vld [vmem:[#allocation2 + $0x6e] sm:$0xff]
      %v4213 = vld [vmem:[#allocation2 + $0x76] sm:$0xff]
      %v4214 = vld [vmem:[#allocation2 + $0x7e] sm:$0xff]
      %v4215 = vld [vmem:[#allocation2 + $0x86] sm:$0xff]
      %v4216 = vld [vmem:[#allocation2 + $0x8e] sm:$0xff]
      %v4217 = vld [vmem:[#allocation2 + $0x96] sm:$0xff]
      %v4218 = vld [vmem:[#allocation2 + $0x9e] sm:$0xff]
      %v4219 = vld [vmem:[#allocation2 + $0xa6] sm:$0xff]
      %v4220 = vld [vmem:[#allocation2 + $0xae] sm:$0xff]
      %v4221 = vld [vmem:[#allocation2 + $0xb6] sm:$0xff]
      %v4222 = vld [vmem:[#allocation2 + $0xbe] sm:$0xff]
      %v4223 = vld [vmem:[#allocation2 + $0xc6] sm:$0xff]
      %v4224 = vld [vmem:[#allocation2 + $0xce] sm:$0xff]
      %v4225 = vld [vmem:[#allocation2 + $0xd6] sm:$0xff]
      %v4226 = vld [vmem:[#allocation2 + $0xde] sm:$0xff]
      %v4227 = vld [vmem:[#allocation2 + $0xe6] sm:$0xff]
      %v4228 = vld [vmem:[#allocation2 + $0xee] sm:$0xff]
      %v4229 = vld [vmem:[#allocation2 + $0xf6] sm:$0xff]
      %v4230 = vld [vmem:[#allocation2 + $0xfe] sm:$0xff]
      %v4231 = vld [vmem:[#allocation2 + $0x106] sm:$0xff]
      %v4232 = vld [vmem:[#allocation2 + $0x10e] sm:$0xff]
      %v4233 = vld [vmem:[#allocation2 + $0x116] sm:$0xff]
      %v4234 = vld [vmem:[#allocation2 + $0x11e] sm:$0xff]
      %v4235 = vld [vmem:[#allocation2 + $0x126] sm:$0xff]
      %v4236 = vld [vmem:[#allocation2 + $0x12e] sm:$0xff]
      %v4237 = vld [vmem:[#allocation2 + $0x136] sm:$0xff]
      %v4238 = vld [vmem:[#allocation2 + $0x13e] sm:$0xff]
      %v4239 = vpack.c.bf16 %v4204, %v4203
      %v4240 = vpack.c.bf16 %v4206, %v4205
      %v4241 = vpack.c.bf16 %v4208, %v4207
      %v4242 = vpack.c.bf16 %v4210, %v4209
      %v4243 = vpack.c.bf16 %v4212, %v4211
      %v4244 = vpack.c.bf16 %v4214, %v4213
      %v4245 = vpack.c.bf16 %v4216, %v4215
      %v4246 = vpack.c.bf16 %v4218, %v4217
      %v4247 = vpack.c.bf16 %v4220, %v4219
      %v4248 = vpack.c.bf16 %v4222, %v4221
      %v4249 = vpack.c.bf16 %v4224, %v4223
      %v4250 = vpack.c.bf16 %v4226, %v4225
      %v4251 = vpack.c.bf16 %v4228, %v4227
      %v4252 = vpack.c.bf16 %v4230, %v4229
      %v4253 = vpack.c.bf16 %v4232, %v4231
      %v4254 = vpack.c.bf16 %v4234, %v4233
      %v4255 = vpack.c.bf16 %v4236, %v4235
      %v4256 = vpack.c.bf16 %v4238, %v4237
      %4257 = vst.msk [vmem:[#allocation3 + $0x20] sm:$0xff] %vm361, %v4239
      %4258 = vst.msk [vmem:[#allocation3 + $0x48] sm:$0xff] %vm361, %v4240
      %4259 = vst.msk [vmem:[#allocation3 + $0x70] sm:$0xff] %vm361, %v4241
      %4260 = vst.msk [vmem:[#allocation3 + $0x98] sm:$0xff] %vm361, %v4242
      %4261 = vst.msk [vmem:[#allocation3 + $0xc0] sm:$0xff] %vm361, %v4243
      %4262 = vst.msk [vmem:[#allocation3 + $0xe8] sm:$0xff] %vm361, %v4244
      %4263 = vst.msk [vmem:[#allocation3 + $0x110] sm:$0xff] %vm361, %v4245
      %4264 = vst.msk [vmem:[#allocation3 + $0x138] sm:$0xff] %vm361, %v4246
      %4265 = vst.msk [vmem:[#allocation3 + $0x160] sm:$0xff] %vm361, %v4247
      %4266 = vst.msk [vmem:[#allocation3 + $0x188] sm:$0xff] %vm361, %v4248
      %4267 = vst.msk [vmem:[#allocation3 + $0x1b0] sm:$0xff] %vm361, %v4249
      %4268 = vst.msk [vmem:[#allocation3 + $0x1d8] sm:$0xff] %vm361, %v4250
      %4269 = vst.msk [vmem:[#allocation3 + $0x200] sm:$0xff] %vm361, %v4251
      %4270 = vst.msk [vmem:[#allocation3 + $0x228] sm:$0xff] %vm361, %v4252
      %4271 = vst.msk [vmem:[#allocation3 + $0x250] sm:$0xff] %vm361, %v4253
      %4272 = vst.msk [vmem:[#allocation3 + $0x278] sm:$0xff] %vm361, %v4254
      %4273 = vst.msk [vmem:[#allocation3 + $0x2a0] sm:$0xff] %vm361, %v4255
      %4274 = vst.msk [vmem:[#allocation3 + $0x2c8] sm:$0xff] %vm361, %v4256
      %v4275 = vld [vmem:[#allocation3] sm:$0xff]
      %v4276 = vld [vmem:[#allocation3 + $0x8] sm:$0xff]
      %v4277 = vld [vmem:[#allocation3 + $0x10] sm:$0xff]
      %v4278 = vld [vmem:[#allocation3 + $0x18] sm:$0xff]
      %v4279 = vld [vmem:[#allocation3 + $0x20] sm:$0xff]
      %v4280 = vld [vmem:[#allocation3 + $0x28] sm:$0xff]
      %v4281 = vld [vmem:[#allocation3 + $0x30] sm:$0xff]
      %v4282 = vld [vmem:[#allocation3 + $0x38] sm:$0xff]
      %v4283 = vld [vmem:[#allocation3 + $0x40] sm:$0xff]
      %v4284 = vld [vmem:[#allocation3 + $0x48] sm:$0xff]
      %v4285 = vld [vmem:[#allocation3 + $0x50] sm:$0xff]
      %v4286 = vld [vmem:[#allocation3 + $0x58] sm:$0xff]
      %v4287 = vld [vmem:[#allocation3 + $0x60] sm:$0xff]
      %v4288 = vld [vmem:[#allocation3 + $0x68] sm:$0xff]
      %v4289 = vld [vmem:[#allocation3 + $0x70] sm:$0xff]
      %v4290 = vld [vmem:[#allocation3 + $0x78] sm:$0xff]
      %v4291 = vld [vmem:[#allocation3 + $0x80] sm:$0xff]
      %v4292 = vld [vmem:[#allocation3 + $0x88] sm:$0xff]
      %v4293 = vld [vmem:[#allocation3 + $0x90] sm:$0xff]
      %v4294 = vld [vmem:[#allocation3 + $0x98] sm:$0xff]
      %v4295 = vld [vmem:[#allocation3 + $0xa0] sm:$0xff]
      %v4296 = vld [vmem:[#allocation3 + $0xa8] sm:$0xff]
      %v4297 = vld [vmem:[#allocation3 + $0xb0] sm:$0xff]
      %v4298 = vld [vmem:[#allocation3 + $0xb8] sm:$0xff]
      %v4299 = vld [vmem:[#allocation3 + $0xc0] sm:$0xff]
      %v4300 = vld [vmem:[#allocation3 + $0xc8] sm:$0xff]
      %v4301 = vld [vmem:[#allocation3 + $0xd0] sm:$0xff]
      %v4302 = vld [vmem:[#allocation3 + $0xd8] sm:$0xff]
      %v4303 = vld [vmem:[#allocation3 + $0xe0] sm:$0xff]
      %v4304 = vld [vmem:[#allocation3 + $0xe8] sm:$0xff]
      %v4305 = vld [vmem:[#allocation3 + $0xf0] sm:$0xff]
      %v4306 = vld [vmem:[#allocation3 + $0xf8] sm:$0xff]
      %v4307 = vld [vmem:[#allocation3 + $0x100] sm:$0xff]
      %v4308 = vld [vmem:[#allocation3 + $0x108] sm:$0xff]
      %v4309 = vld [vmem:[#allocation3 + $0x110] sm:$0xff]
      %v4310 = vld [vmem:[#allocation3 + $0x118] sm:$0xff]
      %v4311 = vld [vmem:[#allocation3 + $0x120] sm:$0xff]
      %v4312 = vld [vmem:[#allocation3 + $0x128] sm:$0xff]
      %v4313 = vld [vmem:[#allocation3 + $0x130] sm:$0xff]
      %v4314 = vld [vmem:[#allocation3 + $0x138] sm:$0xff]
      %v4315 = vld [vmem:[#allocation3 + $0x140] sm:$0xff]
      %v4316 = vld [vmem:[#allocation3 + $0x148] sm:$0xff]
      %v4317 = vld [vmem:[#allocation3 + $0x150] sm:$0xff]
      %v4318 = vld [vmem:[#allocation3 + $0x158] sm:$0xff]
      %v4319 = vld [vmem:[#allocation3 + $0x160] sm:$0xff]
      %v4320 = vld [vmem:[#allocation3 + $0x168] sm:$0xff]
      %v4321 = vld [vmem:[#allocation3 + $0x170] sm:$0xff]
      %v4322 = vld [vmem:[#allocation3 + $0x178] sm:$0xff]
      %v4323 = vld [vmem:[#allocation3 + $0x180] sm:$0xff]
      %v4324 = vld [vmem:[#allocation3 + $0x188] sm:$0xff]
      %v4325 = vld [vmem:[#allocation3 + $0x190] sm:$0xff]
      %v4326 = vld [vmem:[#allocation3 + $0x198] sm:$0xff]
      %v4327 = vld [vmem:[#allocation3 + $0x1a0] sm:$0xff]
      %v4328 = vld [vmem:[#allocation3 + $0x1a8] sm:$0xff]
      %v4329 = vld [vmem:[#allocation3 + $0x1b0] sm:$0xff]
      %v4330 = vld [vmem:[#allocation3 + $0x1b8] sm:$0xff]
      %v4331 = vld [vmem:[#allocation3 + $0x1c0] sm:$0xff]
      %v4332 = vld [vmem:[#allocation3 + $0x1c8] sm:$0xff]
      %v4333 = vld [vmem:[#allocation3 + $0x1d0] sm:$0xff]
      %v4334 = vld [vmem:[#allocation3 + $0x1d8] sm:$0xff]
      %v4335 = vld [vmem:[#allocation3 + $0x1e0] sm:$0xff]
      %v4336 = vld [vmem:[#allocation3 + $0x1e8] sm:$0xff]
      %v4337 = vld [vmem:[#allocation3 + $0x1f0] sm:$0xff]
      %v4338 = vld [vmem:[#allocation3 + $0x1f8] sm:$0xff]
      %v4339 = vld [vmem:[#allocation3 + $0x200] sm:$0xff]
      %v4340 = vld [vmem:[#allocation3 + $0x208] sm:$0xff]
      %v4341 = vld [vmem:[#allocation3 + $0x210] sm:$0xff]
      %v4342 = vld [vmem:[#allocation3 + $0x218] sm:$0xff]
      %v4343 = vld [vmem:[#allocation3 + $0x220] sm:$0xff]
      %v4344 = vld [vmem:[#allocation3 + $0x228] sm:$0xff]
      %v4345 = vld [vmem:[#allocation3 + $0x230] sm:$0xff]
      %v4346 = vld [vmem:[#allocation3 + $0x238] sm:$0xff]
      %v4347 = vld [vmem:[#allocation3 + $0x240] sm:$0xff]
      %v4348 = vld [vmem:[#allocation3 + $0x248] sm:$0xff]
      %v4349 = vld [vmem:[#allocation3 + $0x250] sm:$0xff]
      %v4350 = vld [vmem:[#allocation3 + $0x258] sm:$0xff]
      %v4351 = vld [vmem:[#allocation3 + $0x260] sm:$0xff]
      %v4352 = vld [vmem:[#allocation3 + $0x268] sm:$0xff]
      %v4353 = vld [vmem:[#allocation3 + $0x270] sm:$0xff]
      %v4354 = vld [vmem:[#allocation3 + $0x278] sm:$0xff]
      %v4355 = vld [vmem:[#allocation3 + $0x280] sm:$0xff]
      %v4356 = vld [vmem:[#allocation3 + $0x288] sm:$0xff]
      %v4357 = vld [vmem:[#allocation3 + $0x290] sm:$0xff]
      %v4358 = vld [vmem:[#allocation3 + $0x298] sm:$0xff]
      %v4359 = vld [vmem:[#allocation3 + $0x2a0] sm:$0xff]
      %v4360 = vld [vmem:[#allocation3 + $0x2a8] sm:$0xff]
      %v4361 = vld [vmem:[#allocation3 + $0x2b0] sm:$0xff]
      %v4362 = vld [vmem:[#allocation3 + $0x2b8] sm:$0xff]
      %v4363 = vld [vmem:[#allocation3 + $0x2c0] sm:$0xff]
      %v4364 = vld [vmem:[#allocation3 + $0x2c8] sm:$0xff]
      %v4365 = vld [vmem:[%s6] sm:$0xf]
      %v4366 = vld [vmem:[%s6 + $0x4] sm:$0xf]
      %v4367 = vld [vmem:[%s6 + $0x8] sm:$0xf]
      %v4368 = vld [vmem:[%s6 + $0xc] sm:$0xf]
      %v4369 = vld [vmem:[%s6 + $0x10] sm:$0xf]
      %v4370 = vld [vmem:[%s6 + $0x14] sm:$0xf]
      %v4371 = vld [vmem:[%s6 + $0x18] sm:$0xf]
      %v4372 = vld [vmem:[%s6 + $0x1c] sm:$0xf]
      %v4373 = vld [vmem:[%s6 + $0x20] sm:$0xf]
      %v4374 = vld [vmem:[%s6 + $0x24] sm:$0xf]
      %v4375 = vld [vmem:[%s6 + $0x28] sm:$0xf]
      %v4376 = vld [vmem:[%s6 + $0x2c] sm:$0xf]
      %v4377 = vld [vmem:[%s6 + $0x30] sm:$0xf]
      %v4378 = vld [vmem:[%s6 + $0x34] sm:$0xf]
      %v4379 = vld [vmem:[%s6 + $0x38] sm:$0xf]
      %v4380 = vld [vmem:[%s6 + $0x3c] sm:$0xf]
      %v4381 = vld [vmem:[%s6 + $0x40] sm:$0xf]
      %v4382 = vld [vmem:[%s6 + $0x44] sm:$0xf]
      %v4383 = vld [vmem:[%s6 + $0x48] sm:$0xf]
      %v4384 = vld [vmem:[%s6 + $0x4c] sm:$0xf]
      %v4385 = vld [vmem:[%s6 + $0x50] sm:$0xf]
      %v4386 = vld [vmem:[%s6 + $0x54] sm:$0xf]
      %v4387 = vld [vmem:[%s6 + $0x58] sm:$0xf]
      %v4388 = vld [vmem:[%s6 + $0x5c] sm:$0xf]
      %v4389 = vld [vmem:[%s6 + $0x60] sm:$0xf]
      %v4390 = vld [vmem:[%s6 + $0x64] sm:$0xf]
      %v4391 = vld [vmem:[%s6 + $0x68] sm:$0xf]
      %v4392 = vld [vmem:[%s6 + $0x6c] sm:$0xf]
      %v4393 = vld [vmem:[%s6 + $0x70] sm:$0xf]
      %v4394 = vld [vmem:[%s6 + $0x74] sm:$0xf]
      %v4395 = vld [vmem:[%s6 + $0x78] sm:$0xf]
      %v4396 = vld [vmem:[%s6 + $0x7c] sm:$0xf]
      %v4397 = vld [vmem:[%s6 + $0x80] sm:$0xf]
      %v4398 = vld [vmem:[%s6 + $0x84] sm:$0xf]
      %v4399 = vld [vmem:[%s6 + $0x88] sm:$0xf]
      %v4400 = vld [vmem:[%s6 + $0x8c] sm:$0xf]
      %v4401 = vld [vmem:[%s6 + $0x90] sm:$0xf]
      %v4402 = vld [vmem:[%s6 + $0x94] sm:$0xf]
      %v4403 = vld [vmem:[%s6 + $0x98] sm:$0xf]
      %v4404 = vld [vmem:[%s6 + $0x9c] sm:$0xf]
      %v4405 = vld [vmem:[%s6 + $0xa0] sm:$0xf]
      %v4406 = vld [vmem:[%s6 + $0xa4] sm:$0xf]
      %v4407 = vld [vmem:[%s6 + $0xa8] sm:$0xf]
      %v4408 = vld [vmem:[%s6 + $0xac] sm:$0xf]
      %v4409 = vld [vmem:[%s6 + $0xb0] sm:$0xf]
      %v4410 = vld [vmem:[%s6 + $0xb4] sm:$0xf]
      %v4411 = vld [vmem:[%s6 + $0xb8] sm:$0xf]
      %v4412 = vld [vmem:[%s6 + $0xbc] sm:$0xf]
      %v4413 = vld [vmem:[%s6 + $0xc0] sm:$0xf]
      %v4414 = vld [vmem:[%s6 + $0xc4] sm:$0xf]
      %v4415 = vld [vmem:[%s6 + $0xc8] sm:$0xf]
      %v4416 = vld [vmem:[%s6 + $0xcc] sm:$0xf]
      %v4417 = vld [vmem:[%s6 + $0xd0] sm:$0xf]
      %v4418 = vld [vmem:[%s6 + $0xd4] sm:$0xf]
      %v4419 = vld [vmem:[%s6 + $0xd8] sm:$0xf]
      %v4420 = vld [vmem:[%s6 + $0xdc] sm:$0xf]
      %v4421 = vld [vmem:[%s6 + $0xe0] sm:$0xf]
      %v4422 = vld [vmem:[%s6 + $0xe4] sm:$0xf]
      %v4423 = vld [vmem:[%s6 + $0xe8] sm:$0xf]
      %v4424 = vld [vmem:[%s6 + $0xec] sm:$0xf]
      %v4425 = vld [vmem:[%s6 + $0xf0] sm:$0xf]
      %v4426 = vld [vmem:[%s6 + $0xf4] sm:$0xf]
      %v4427 = vld [vmem:[%s6 + $0xf8] sm:$0xf]
      %v4428 = vld [vmem:[%s6 + $0xfc] sm:$0xf]
      %v4429 = vld [vmem:[%s6 + $0x100] sm:$0xf]
      %v4430 = vld [vmem:[%s6 + $0x104] sm:$0xf]
      %v4431 = vld [vmem:[%s6 + $0x108] sm:$0xf]
      %v4432 = vld [vmem:[%s6 + $0x10c] sm:$0xf]
      %v4433 = vld [vmem:[%s6 + $0x110] sm:$0xf]
      %v4434 = vld [vmem:[%s6 + $0x114] sm:$0xf]
      %v4435 = vld [vmem:[%s6 + $0x118] sm:$0xf]
      %v4436 = vld [vmem:[%s6 + $0x11c] sm:$0xf]
      %v4437 = vld [vmem:[%s7] sm:$0x1]
      %v4439 = vlaneseq
      %v4440 = vshrl.u32 %v4439, 7
      %v4441 = vsub.s32 0, %v4440
      %v4442 = vrot.slane %v4437, %v4441
      %v4516 = vunpack.c.l.b16 %v4365
      %v4517 = vunpack.c.l.b16 %v4366
      %v4518 = vunpack.c.l.b16 %v4367
      %v4519 = vunpack.c.l.b16 %v4368
      %v4520 = vunpack.c.l.b16 %v4369
      %v4521 = vunpack.c.l.b16 %v4370
      %v4522 = vunpack.c.l.b16 %v4371
      %v4523 = vunpack.c.l.b16 %v4372
      %v4524 = vunpack.c.l.b16 %v4373
      %v4525 = vunpack.c.l.b16 %v4374
      %v4526 = vunpack.c.l.b16 %v4375
      %v4527 = vunpack.c.l.b16 %v4376
      %v4528 = vunpack.c.l.b16 %v4377
      %v4529 = vunpack.c.l.b16 %v4378
      %v4530 = vunpack.c.l.b16 %v4379
      %v4531 = vunpack.c.l.b16 %v4380
      %v4532 = vunpack.c.l.b16 %v4381
      %v4533 = vunpack.c.l.b16 %v4382
      %v4534 = vunpack.c.l.b16 %v4383
      %v4535 = vunpack.c.l.b16 %v4384
      %v4536 = vunpack.c.l.b16 %v4385
      %v4537 = vunpack.c.l.b16 %v4386
      %v4538 = vunpack.c.l.b16 %v4387
      %v4539 = vunpack.c.l.b16 %v4388
      %v4540 = vunpack.c.l.b16 %v4389
      %v4541 = vunpack.c.l.b16 %v4390
      %v4542 = vunpack.c.l.b16 %v4391
      %v4543 = vunpack.c.l.b16 %v4392
      %v4544 = vunpack.c.l.b16 %v4393
      %v4545 = vunpack.c.l.b16 %v4394
      %v4546 = vunpack.c.l.b16 %v4395
      %v4547 = vunpack.c.l.b16 %v4396
      %v4548 = vunpack.c.l.b16 %v4397
      %v4549 = vunpack.c.l.b16 %v4398
      %v4550 = vunpack.c.l.b16 %v4399
      %v4551 = vunpack.c.l.b16 %v4400
      %v4552 = vunpack.c.l.b16 %v4401
      %v4553 = vunpack.c.l.b16 %v4402
      %v4554 = vunpack.c.l.b16 %v4403
      %v4555 = vunpack.c.l.b16 %v4404
      %v4556 = vunpack.c.l.b16 %v4405
      %v4557 = vunpack.c.l.b16 %v4406
      %v4558 = vunpack.c.l.b16 %v4407
      %v4559 = vunpack.c.l.b16 %v4408
      %v4560 = vunpack.c.l.b16 %v4409
      %v4561 = vunpack.c.l.b16 %v4410
      %v4562 = vunpack.c.l.b16 %v4411
      %v4563 = vunpack.c.l.b16 %v4412
      %v4564 = vunpack.c.l.b16 %v4413
      %v4565 = vunpack.c.l.b16 %v4414
      %v4566 = vunpack.c.l.b16 %v4415
      %v4567 = vunpack.c.l.b16 %v4416
      %v4568 = vunpack.c.l.b16 %v4417
      %v4569 = vunpack.c.l.b16 %v4418
      %v4570 = vunpack.c.l.b16 %v4419
      %v4571 = vunpack.c.l.b16 %v4420
      %v4572 = vunpack.c.l.b16 %v4421
      %v4573 = vunpack.c.l.b16 %v4422
      %v4574 = vunpack.c.l.b16 %v4423
      %v4575 = vunpack.c.l.b16 %v4424
      %v4576 = vunpack.c.l.b16 %v4425
      %v4577 = vunpack.c.l.b16 %v4426
      %v4578 = vunpack.c.l.b16 %v4427
      %v4579 = vunpack.c.l.b16 %v4428
      %v4580 = vunpack.c.l.b16 %v4429
      %v4581 = vunpack.c.l.b16 %v4430
      %v4582 = vunpack.c.l.b16 %v4431
      %v4583 = vunpack.c.l.b16 %v4432
      %v4584 = vunpack.c.l.b16 %v4433
      %v4585 = vunpack.c.l.b16 %v4434
      %v4586 = vunpack.c.l.b16 %v4435
      %v4587 = vunpack.c.l.b16 %v4436
      %v4588 = vpack.c.b16 %v4517, %v4516
      %v4589 = vpack.c.b16 %v4519, %v4518
      %v4590 = vpack.c.b16 %v4521, %v4520
      %v4591 = vpack.c.b16 %v4523, %v4522
      %v4592 = vpack.c.b16 %v4525, %v4524
      %v4593 = vpack.c.b16 %v4527, %v4526
      %v4594 = vpack.c.b16 %v4529, %v4528
      %v4595 = vpack.c.b16 %v4531, %v4530
      %v4596 = vpack.c.b16 %v4533, %v4532
      %v4597 = vpack.c.b16 %v4535, %v4534
      %v4598 = vpack.c.b16 %v4537, %v4536
      %v4599 = vpack.c.b16 %v4539, %v4538
      %v4600 = vpack.c.b16 %v4541, %v4540
      %v4601 = vpack.c.b16 %v4543, %v4542
      %v4602 = vpack.c.b16 %v4545, %v4544
      %v4603 = vpack.c.b16 %v4547, %v4546
      %v4604 = vpack.c.b16 %v4549, %v4548
      %v4605 = vpack.c.b16 %v4551, %v4550
      %v4606 = vpack.c.b16 %v4553, %v4552
      %v4607 = vpack.c.b16 %v4555, %v4554
      %v4608 = vpack.c.b16 %v4557, %v4556
      %v4609 = vpack.c.b16 %v4559, %v4558
      %v4610 = vpack.c.b16 %v4561, %v4560
      %v4611 = vpack.c.b16 %v4563, %v4562
      %v4612 = vpack.c.b16 %v4565, %v4564
      %v4613 = vpack.c.b16 %v4567, %v4566
      %v4614 = vpack.c.b16 %v4569, %v4568
      %v4615 = vpack.c.b16 %v4571, %v4570
      %v4616 = vpack.c.b16 %v4573, %v4572
      %v4617 = vpack.c.b16 %v4575, %v4574
      %v4618 = vpack.c.b16 %v4577, %v4576
      %v4619 = vpack.c.b16 %v4579, %v4578
      %v4620 = vpack.c.b16 %v4581, %v4580
      %v4621 = vpack.c.b16 %v4583, %v4582
      %v4622 = vpack.c.b16 %v4585, %v4584
      %v4623 = vpack.c.b16 %v4587, %v4586
      %v4661 = vsel %vm361, %v4279, 0
      %v4664 = vsel %vm361, %v4284, 0
      %v4667 = vsel %vm361, %v4289, 0
      %v4670 = vsel %vm361, %v4294, 0
      %v4673 = vsel %vm361, %v4299, 0
      %v4676 = vsel %vm361, %v4304, 0
      %v4679 = vsel %vm361, %v4309, 0
      %v4682 = vsel %vm361, %v4314, 0
      %v4685 = vsel %vm361, %v4319, 0
      %v4688 = vsel %vm361, %v4324, 0
      %v4691 = vsel %vm361, %v4329, 0
      %v4694 = vsel %vm361, %v4334, 0
      %v4697 = vsel %vm361, %v4339, 0
      %v4700 = vsel %vm361, %v4344, 0
      %v4703 = vsel %vm361, %v4349, 0
      %v4706 = vsel %vm361, %v4354, 0
      %v4709 = vsel %vm361, %v4359, 0
      %v4712 = vsel %vm361, %v4364, 0
      %4714 = vmatprep.subr.bf16.mxu0 0
      %4715 = vmatpush1.bf16.msra.mxu0 %v4588
      %4716 = vmatprep.subr.bf16.mxu0 0
      %4717 = vmatpush1.bf16.msra.mxu0 %v4589
      %4718 = vmatprep.subr.bf16.mxu0 0
      %4719 = vmatpush1.bf16.msra.mxu0 %v4590
      %4720 = vmatprep.subr.bf16.mxu0 0
      %4721 = vmatpush1.bf16.msra.mxu0 %v4591
      %4722 = vmatprep.subr.bf16.mxu0 0
      %4723 = vmatpush1.bf16.msra.mxu0 %v4592
      %4724 = vmatprep.subr.bf16.mxu0 0
      %4725 = vmatpush1.bf16.msra.mxu0 %v4593
      %4726 = vmatprep.subr.bf16.mxu0 0
      %4727 = vmatpush1.bf16.msra.mxu0 %v4594
      %4728 = vmatprep.subr.bf16.mxu0 0
      %4729 = vmatpush1.bf16.msra.mxu0 %v4595
      %4730 = vmatprep.subr.bf16.mxu0 0
      %4731 = vmatpush1.bf16.msra.mxu0 %v4596
      %4732 = vmatprep.subr.bf16.mxu0 0
      %4733 = vmatpush1.bf16.msra.mxu0 %v4597
      %4734 = vmatprep.subr.bf16.mxu0 0
      %4735 = vmatpush1.bf16.msra.mxu0 %v4598
      %4736 = vmatprep.subr.bf16.mxu0 0
      %4737 = vmatpush1.bf16.msra.mxu0 %v4599
      %4738 = vmatprep.subr.bf16.mxu0 0
      %4739 = vmatpush1.bf16.msra.mxu0 %v4600
      %4740 = vmatprep.subr.bf16.mxu0 0
      %4741 = vmatpush1.bf16.msra.mxu0 %v4601
      %4742 = vmatprep.subr.bf16.mxu0 0
      %4743 = vmatpush1.bf16.msra.mxu0 %v4602
      %4744 = vmatprep.subr.bf16.mxu0 0
      %4745 = vmatpush1.bf16.msra.mxu0 %v4603
      %4746 = vmatprep.mubr.bf16.mxu0 %v4276
      %4747 = vmatmul.mubr.bf16.gmra.mrb[0].mxu0 %v4275
      %v4748 = vpop.f32.mrb[0].mxu0
      %v4749 = vadd.f32 %v4442, %v4748
      %v4750 = vpop.f32.mrb[0].mxu0
      %v4751 = vpop.f32.mrb[0].mxu0
      %v4752 = vadd.f32 %v4442, %v4751
      %v4753 = vpop.f32.mrb[0].mxu0
      %4754 = vmatprep.mubr.bf16.mxu0 %v4281
      %4755 = vmatmul.mubr.bf16.gmra.mrb[0].mxu0 %v4280
      %v4756 = vpop.f32.mrb[0].mxu0
      %v4757 = vadd.f32 %v4442, %v4756
      %v4758 = vpop.f32.mrb[0].mxu0
      %v4759 = vpop.f32.mrb[0].mxu0
      %v4760 = vadd.f32 %v4442, %v4759
      %v4761 = vpop.f32.mrb[0].mxu0
      %4762 = vmatprep.mubr.bf16.mxu0 %v4286
      %4763 = vmatmul.mubr.bf16.gmra.mrb[0].mxu0 %v4285
      %v4764 = vpop.f32.mrb[0].mxu0
      %v4765 = vadd.f32 %v4442, %v4764
      %v4766 = vpop.f32.mrb[0].mxu0
      %v4767 = vpop.f32.mrb[0].mxu0
      %v4768 = vadd.f32 %v4442, %v4767
      %v4769 = vpop.f32.mrb[0].mxu0
      %4770 = vmatprep.mubr.bf16.mxu0 %v4291
      %4771 = vmatmul.mubr.bf16.gmra.mrb[0].mxu0 %v4290
      %v4772 = vpop.f32.mrb[0].mxu0
      %v4773 = vadd.f32 %v4442, %v4772
      %v4774 = vpop.f32.mrb[0].mxu0
      %v4775 = vpop.f32.mrb[0].mxu0
      %v4776 = vadd.f32 %v4442, %v4775
      %v4777 = vpop.f32.mrb[0].mxu0
      %4778 = vmatprep.mubr.bf16.mxu0 %v4296
      %4779 = vmatmul.mubr.bf16.gmra.mrb[0].mxu0 %v4295
      %v4780 = vpop.f32.mrb[0].mxu0
      %v4781 = vadd.f32 %v4442, %v4780
      %v4782 = vpop.f32.mrb[0].mxu0
      %v4783 = vpop.f32.mrb[0].mxu0
      %v4784 = vadd.f32 %v4442, %v4783
      %v4785 = vpop.f32.mrb[0].mxu0
      %4786 = vmatprep.mubr.bf16.mxu0 %v4301
      %4787 = vmatmul.mubr.bf16.gmra.mrb[0].mxu0 %v4300
      %v4788 = vpop.f32.mrb[0].mxu0
      %v4789 = vadd.f32 %v4442, %v4788
      %v4790 = vpop.f32.mrb[0].mxu0
      %v4791 = vpop.f32.mrb[0].mxu0
      %v4792 = vadd.f32 %v4442, %v4791
      %v4793 = vpop.f32.mrb[0].mxu0
      %4794 = vmatprep.mubr.bf16.mxu0 %v4306
      %4795 = vmatmul.mubr.bf16.gmra.mrb[0].mxu0 %v4305
      %v4796 = vpop.f32.mrb[0].mxu0
      %v4797 = vadd.f32 %v4442, %v4796
      %v4798 = vpop.f32.mrb[0].mxu0
      %v4799 = vpop.f32.mrb[0].mxu0
      %v4800 = vadd.f32 %v4442, %v4799
      %v4801 = vpop.f32.mrb[0].mxu0
      %4802 = vmatprep.mubr.bf16.mxu0 %v4311
      %4803 = vmatmul.mubr.bf16.gmra.mrb[0].mxu0 %v4310
      %v4804 = vpop.f32.mrb[0].mxu0
      %v4805 = vadd.f32 %v4442, %v4804
      %v4806 = vpop.f32.mrb[0].mxu0
      %v4807 = vpop.f32.mrb[0].mxu0
      %v4808 = vadd.f32 %v4442, %v4807
      %v4809 = vpop.f32.mrb[0].mxu0
      %4810 = vmatprep.mubr.bf16.mxu0 %v4316
      %4811 = vmatmul.mubr.bf16.gmra.mrb[0].mxu0 %v4315
      %v4812 = vpop.f32.mrb[0].mxu0
      %v4813 = vadd.f32 %v4442, %v4812
      %v4814 = vpop.f32.mrb[0].mxu0
      %v4815 = vpop.f32.mrb[0].mxu0
      %v4816 = vadd.f32 %v4442, %v4815
      %v4817 = vpop.f32.mrb[0].mxu0
      %4818 = vmatprep.mubr.bf16.mxu0 %v4321
      %4819 = vmatmul.mubr.bf16.gmra.mrb[0].mxu0 %v4320
      %v4820 = vpop.f32.mrb[0].mxu0
      %v4821 = vadd.f32 %v4442, %v4820
      %v4822 = vpop.f32.mrb[0].mxu0
      %v4823 = vpop.f32.mrb[0].mxu0
      %v4824 = vadd.f32 %v4442, %v4823
      %v4825 = vpop.f32.mrb[0].mxu0
      %4826 = vmatprep.mubr.bf16.mxu0 %v4326
      %4827 = vmatmul.mubr.bf16.gmra.mrb[0].mxu0 %v4325
      %v4828 = vpop.f32.mrb[0].mxu0
      %v4829 = vadd.f32 %v4442, %v4828
      %v4830 = vpop.f32.mrb[0].mxu0
      %v4831 = vpop.f32.mrb[0].mxu0
      %v4832 = vadd.f32 %v4442, %v4831
      %v4833 = vpop.f32.mrb[0].mxu0
      %4834 = vmatprep.mubr.bf16.mxu0 %v4331
      %4835 = vmatmul.mubr.bf16.gmra.mrb[0].mxu0 %v4330
      %v4836 = vpop.f32.mrb[0].mxu0
      %v4837 = vadd.f32 %v4442, %v4836
      %v4838 = vpop.f32.mrb[0].mxu0
      %v4839 = vpop.f32.mrb[0].mxu0
      %v4840 = vadd.f32 %v4442, %v4839
      %v4841 = vpop.f32.mrb[0].mxu0
      %4842 = vmatprep.mubr.bf16.mxu0 %v4336
      %4843 = vmatmul.mubr.bf16.gmra.mrb[0].mxu0 %v4335
      %v4844 = vpop.f32.mrb[0].mxu0
      %v4845 = vadd.f32 %v4442, %v4844
      %v4846 = vpop.f32.mrb[0].mxu0
      %v4847 = vpop.f32.mrb[0].mxu0
      %v4848 = vadd.f32 %v4442, %v4847
      %v4849 = vpop.f32.mrb[0].mxu0
      %4850 = vmatprep.mubr.bf16.mxu0 %v4341
      %4851 = vmatmul.mubr.bf16.gmra.mrb[0].mxu0 %v4340
      %v4852 = vpop.f32.mrb[0].mxu0
      %v4853 = vadd.f32 %v4442, %v4852
      %v4854 = vpop.f32.mrb[0].mxu0
      %v4855 = vpop.f32.mrb[0].mxu0
      %v4856 = vadd.f32 %v4442, %v4855
      %v4857 = vpop.f32.mrb[0].mxu0
      %4858 = vmatprep.mubr.bf16.mxu0 %v4346
      %4859 = vmatmul.mubr.bf16.gmra.mrb[0].mxu0 %v4345
      %v4860 = vpop.f32.mrb[0].mxu0
      %v4861 = vadd.f32 %v4442, %v4860
      %v4862 = vpop.f32.mrb[0].mxu0
      %v4863 = vpop.f32.mrb[0].mxu0
      %v4864 = vadd.f32 %v4442, %v4863
      %v4865 = vpop.f32.mrb[0].mxu0
      %4866 = vmatprep.mubr.bf16.mxu0 %v4351
      %4867 = vmatmul.mubr.bf16.gmra.mrb[0].mxu0 %v4350
      %v4868 = vpop.f32.mrb[0].mxu0
      %v4869 = vadd.f32 %v4442, %v4868
      %v4870 = vpop.f32.mrb[0].mxu0
      %v4871 = vpop.f32.mrb[0].mxu0
      %v4872 = vadd.f32 %v4442, %v4871
      %v4873 = vpop.f32.mrb[0].mxu0
      %4874 = vmatprep.mubr.bf16.mxu0 %v4356
      %4875 = vmatmul.mubr.bf16.gmra.mrb[0].mxu0 %v4355
      %v4876 = vpop.f32.mrb[0].mxu0
      %v4877 = vadd.f32 %v4442, %v4876
      %v4878 = vpop.f32.mrb[0].mxu0
      %v4879 = vpop.f32.mrb[0].mxu0
      %v4880 = vadd.f32 %v4442, %v4879
      %v4881 = vpop.f32.mrb[0].mxu0
      %4882 = vmatprep.mubr.bf16.mxu0 %v4361
      %4883 = vmatmul.mubr.bf16.gmra.mrb[0].mxu0 %v4360
      %v4884 = vpop.f32.mrb[0].mxu0
      %v4885 = vadd.f32 %v4442, %v4884
      %v4886 = vpop.f32.mrb[0].mxu0
      %v4887 = vpop.f32.mrb[0].mxu0
      %v4888 = vadd.f32 %v4442, %v4887
      %v4889 = vpop.f32.mrb[0].mxu0
      %4890 = vdwg.mxu0
      %4891 = vmatprep.subr.bf16.mxu0 0
      %4892 = vmatpush1.bf16.msra.mxu0 %v4604
      %4893 = vmatprep.subr.bf16.mxu0 0
      %4894 = vmatpush1.bf16.msra.mxu0 %v4605
      %4895 = vmatprep.subr.bf16.mxu0 0
      %4896 = vmatpush1.bf16.msra.mxu0 %v4606
      %4897 = vmatprep.subr.bf16.mxu0 0
      %4898 = vmatpush1.bf16.msra.mxu0 %v4607
      %4899 = vmatprep.subr.bf16.mxu0 0
      %4900 = vmatpush1.bf16.msra.mxu0 %v4608
      %4901 = vmatprep.subr.bf16.mxu0 0
      %4902 = vmatpush1.bf16.msra.mxu0 %v4609
      %4903 = vmatprep.subr.bf16.mxu0 0
      %4904 = vmatpush1.bf16.msra.mxu0 %v4610
      %4905 = vmatprep.subr.bf16.mxu0 0
      %4906 = vmatpush1.bf16.msra.mxu0 %v4611
      %4907 = vmatprep.subr.bf16.mxu0 0
      %4908 = vmatpush1.bf16.msra.mxu0 %v4612
      %4909 = vmatprep.subr.bf16.mxu0 0
      %4910 = vmatpush1.bf16.msra.mxu0 %v4613
      %4911 = vmatprep.subr.bf16.mxu0 0
      %4912 = vmatpush1.bf16.msra.mxu0 %v4614
      %4913 = vmatprep.subr.bf16.mxu0 0
      %4914 = vmatpush1.bf16.msra.mxu0 %v4615
      %4915 = vmatprep.subr.bf16.mxu0 0
      %4916 = vmatpush1.bf16.msra.mxu0 %v4616
      %4917 = vmatprep.subr.bf16.mxu0 0
      %4918 = vmatpush1.bf16.msra.mxu0 %v4617
      %4919 = vmatprep.subr.bf16.mxu0 0
      %4920 = vmatpush1.bf16.msra.mxu0 %v4618
      %4921 = vmatprep.subr.bf16.mxu0 0
      %4922 = vmatpush1.bf16.msra.mxu0 %v4619
      %4923 = vmatprep.mubr.bf16.mxu0 %v4278
      %4924 = vmatmul.mubr.bf16.gmra.mrb[0].mxu0 %v4277
      %v4925 = vpop.f32.mrb[0].mxu0
      %v4926 = vadd.f32 %v4749, %v4925
      %v4927 = vpop.f32.mrb[0].mxu0
      %v4928 = vpop.f32.mrb[0].mxu0
      %v4929 = vadd.f32 %v4752, %v4928
      %v4930 = vpop.f32.mrb[0].mxu0
      %4931 = vmatprep.mubr.bf16.mxu0 %v4283
      %4932 = vmatmul.mubr.bf16.gmra.mrb[0].mxu0 %v4282
      %v4933 = vpop.f32.mrb[0].mxu0
      %v4934 = vadd.f32 %v4757, %v4933
      %v4935 = vpop.f32.mrb[0].mxu0
      %v4936 = vpop.f32.mrb[0].mxu0
      %v4937 = vadd.f32 %v4760, %v4936
      %v4938 = vpop.f32.mrb[0].mxu0
      %4939 = vmatprep.mubr.bf16.mxu0 %v4288
      %4940 = vmatmul.mubr.bf16.gmra.mrb[0].mxu0 %v4287
      %v4941 = vpop.f32.mrb[0].mxu0
      %v4942 = vadd.f32 %v4765, %v4941
      %v4943 = vpop.f32.mrb[0].mxu0
      %v4944 = vpop.f32.mrb[0].mxu0
      %v4945 = vadd.f32 %v4768, %v4944
      %v4946 = vpop.f32.mrb[0].mxu0
      %4947 = vmatprep.mubr.bf16.mxu0 %v4293
      %4948 = vmatmul.mubr.bf16.gmra.mrb[0].mxu0 %v4292
      %v4949 = vpop.f32.mrb[0].mxu0
      %v4950 = vadd.f32 %v4773, %v4949
      %v4951 = vpop.f32.mrb[0].mxu0
      %v4952 = vpop.f32.mrb[0].mxu0
      %v4953 = vadd.f32 %v4776, %v4952
      %v4954 = vpop.f32.mrb[0].mxu0
      %4955 = vmatprep.mubr.bf16.mxu0 %v4298
      %4956 = vmatmul.mubr.bf16.gmra.mrb[0].mxu0 %v4297
      %v4957 = vpop.f32.mrb[0].mxu0
      %v4958 = vadd.f32 %v4781, %v4957
      %v4959 = vpop.f32.mrb[0].mxu0
      %v4960 = vpop.f32.mrb[0].mxu0
      %v4961 = vadd.f32 %v4784, %v4960
      %v4962 = vpop.f32.mrb[0].mxu0
      %4963 = vmatprep.mubr.bf16.mxu0 %v4303
      %4964 = vmatmul.mubr.bf16.gmra.mrb[0].mxu0 %v4302
      %v4965 = vpop.f32.mrb[0].mxu0
      %v4966 = vadd.f32 %v4789, %v4965
      %v4967 = vpop.f32.mrb[0].mxu0
      %v4968 = vpop.f32.mrb[0].mxu0
      %v4969 = vadd.f32 %v4792, %v4968
      %v4970 = vpop.f32.mrb[0].mxu0
      %4971 = vmatprep.mubr.bf16.mxu0 %v4308
      %4972 = vmatmul.mubr.bf16.gmra.mrb[0].mxu0 %v4307
      %v4973 = vpop.f32.mrb[0].mxu0
      %v4974 = vadd.f32 %v4797, %v4973
      %v4975 = vpop.f32.mrb[0].mxu0
      %v4976 = vpop.f32.mrb[0].mxu0
      %v4977 = vadd.f32 %v4800, %v4976
      %v4978 = vpop.f32.mrb[0].mxu0
      %4979 = vmatprep.mubr.bf16.mxu0 %v4313
      %4980 = vmatmul.mubr.bf16.gmra.mrb[0].mxu0 %v4312
      %v4981 = vpop.f32.mrb[0].mxu0
      %v4982 = vadd.f32 %v4805, %v4981
      %v4983 = vpop.f32.mrb[0].mxu0
      %v4984 = vpop.f32.mrb[0].mxu0
      %v4985 = vadd.f32 %v4808, %v4984
      %v4986 = vpop.f32.mrb[0].mxu0
      %4987 = vmatprep.mubr.bf16.mxu0 %v4318
      %4988 = vmatmul.mubr.bf16.gmra.mrb[0].mxu0 %v4317
      %v4989 = vpop.f32.mrb[0].mxu0
      %v4990 = vadd.f32 %v4813, %v4989
      %v4991 = vpop.f32.mrb[0].mxu0
      %v4992 = vpop.f32.mrb[0].mxu0
      %v4993 = vadd.f32 %v4816, %v4992
      %v4994 = vpop.f32.mrb[0].mxu0
      %4995 = vmatprep.mubr.bf16.mxu0 %v4323
      %4996 = vmatmul.mubr.bf16.gmra.mrb[0].mxu0 %v4322
      %v4997 = vpop.f32.mrb[0].mxu0
      %v4998 = vadd.f32 %v4821, %v4997
      %v4999 = vpop.f32.mrb[0].mxu0
      %v5000 = vpop.f32.mrb[0].mxu0
      %v5001 = vadd.f32 %v4824, %v5000
      %v5002 = vpop.f32.mrb[0].mxu0
      %5003 = vmatprep.mubr.bf16.mxu0 %v4328
      %5004 = vmatmul.mubr.bf16.gmra.mrb[0].mxu0 %v4327
      %v5005 = vpop.f32.mrb[0].mxu0
      %v5006 = vadd.f32 %v4829, %v5005
      %v5007 = vpop.f32.mrb[0].mxu0
      %v5008 = vpop.f32.mrb[0].mxu0
      %v5009 = vadd.f32 %v4832, %v5008
      %v5010 = vpop.f32.mrb[0].mxu0
      %5011 = vmatprep.mubr.bf16.mxu0 %v4333
      %5012 = vmatmul.mubr.bf16.gmra.mrb[0].mxu0 %v4332
      %v5013 = vpop.f32.mrb[0].mxu0
      %v5014 = vadd.f32 %v4837, %v5013
      %v5015 = vpop.f32.mrb[0].mxu0
      %v5016 = vpop.f32.mrb[0].mxu0
      %v5017 = vadd.f32 %v4840, %v5016
      %v5018 = vpop.f32.mrb[0].mxu0
      %5019 = vmatprep.mubr.bf16.mxu0 %v4338
      %5020 = vmatmul.mubr.bf16.gmra.mrb[0].mxu0 %v4337
      %v5021 = vpop.f32.mrb[0].mxu0
      %v5022 = vadd.f32 %v4845, %v5021
      %v5023 = vpop.f32.mrb[0].mxu0
      %v5024 = vpop.f32.mrb[0].mxu0
      %v5025 = vadd.f32 %v4848, %v5024
      %v5026 = vpop.f32.mrb[0].mxu0
      %5027 = vmatprep.mubr.bf16.mxu0 %v4343
      %5028 = vmatmul.mubr.bf16.gmra.mrb[0].mxu0 %v4342
      %v5029 = vpop.f32.mrb[0].mxu0
      %v5030 = vadd.f32 %v4853, %v5029
      %v5031 = vpop.f32.mrb[0].mxu0
      %v5032 = vpop.f32.mrb[0].mxu0
      %v5033 = vadd.f32 %v4856, %v5032
      %v5034 = vpop.f32.mrb[0].mxu0
      %5035 = vmatprep.mubr.bf16.mxu0 %v4348
      %5036 = vmatmul.mubr.bf16.gmra.mrb[0].mxu0 %v4347
      %v5037 = vpop.f32.mrb[0].mxu0
      %v5038 = vadd.f32 %v4861, %v5037
      %v5039 = vpop.f32.mrb[0].mxu0
      %v5040 = vpop.f32.mrb[0].mxu0
      %v5041 = vadd.f32 %v4864, %v5040
      %v5042 = vpop.f32.mrb[0].mxu0
      %5043 = vmatprep.mubr.bf16.mxu0 %v4353
      %5044 = vmatmul.mubr.bf16.gmra.mrb[0].mxu0 %v4352
      %v5045 = vpop.f32.mrb[0].mxu0
      %v5046 = vadd.f32 %v4869, %v5045
      %v5047 = vpop.f32.mrb[0].mxu0
      %v5048 = vpop.f32.mrb[0].mxu0
      %v5049 = vadd.f32 %v4872, %v5048
      %v5050 = vpop.f32.mrb[0].mxu0
      %5051 = vmatprep.mubr.bf16.mxu0 %v4358
      %5052 = vmatmul.mubr.bf16.gmra.mrb[0].mxu0 %v4357
      %v5053 = vpop.f32.mrb[0].mxu0
      %v5054 = vadd.f32 %v4877, %v5053
      %v5055 = vpop.f32.mrb[0].mxu0
      %v5056 = vpop.f32.mrb[0].mxu0
      %v5057 = vadd.f32 %v4880, %v5056
      %v5058 = vpop.f32.mrb[0].mxu0
      %5059 = vmatprep.mubr.bf16.mxu0 %v4363
      %5060 = vmatmul.mubr.bf16.gmra.mrb[0].mxu0 %v4362
      %v5061 = vpop.f32.mrb[0].mxu0
      %v5062 = vadd.f32 %v4885, %v5061
      %v5063 = vpop.f32.mrb[0].mxu0
      %v5064 = vpop.f32.mrb[0].mxu0
      %v5065 = vadd.f32 %v4888, %v5064
      %v5066 = vpop.f32.mrb[0].mxu0
      %5067 = vdwg.mxu0
      %5068 = vmatprep.subr.bf16.mxu0 0
      %5069 = vmatpush1.bf16.msra.mxu0 %v4620
      %5070 = vmatprep.subr.bf16.mxu0 0
      %5071 = vmatpush1.bf16.msra.mxu0 %v4621
      %5072 = vmatprep.subr.bf16.mxu0 0
      %5073 = vmatpush1.bf16.msra.mxu0 %v4622
      %5074 = vmatprep.subr.bf16.mxu0 0
      %5075 = vmatpush1.bf16.msra.mxu0 %v4623
      %5076 = vmatprep.subr.bf16.mxu0 0
      %5077 = vmatpush1.bf16.msra.mxu0 0
      %5078 = vmatprep.subr.bf16.mxu0 0
      %5079 = vmatpush1.bf16.msra.mxu0 0
      %5080 = vmatprep.subr.bf16.mxu0 0
      %5081 = vmatpush1.bf16.msra.mxu0 0
      %5082 = vmatprep.subr.bf16.mxu0 0
      %5083 = vmatpush1.bf16.msra.mxu0 0
      %5084 = vmatprep.subr.bf16.mxu0 0
      %5085 = vmatpush1.bf16.msra.mxu0 0
      %5086 = vmatprep.subr.bf16.mxu0 0
      %5087 = vmatpush1.bf16.msra.mxu0 0
      %5088 = vmatprep.subr.bf16.mxu0 0
      %5089 = vmatpush1.bf16.msra.mxu0 0
      %5090 = vmatprep.subr.bf16.mxu0 0
      %5091 = vmatpush1.bf16.msra.mxu0 0
      %5092 = vmatprep.subr.bf16.mxu0 0
      %5093 = vmatpush1.bf16.msra.mxu0 0
      %5094 = vmatprep.subr.bf16.mxu0 0
      %5095 = vmatpush1.bf16.msra.mxu0 0
      %5096 = vmatprep.subr.bf16.mxu0 0
      %5097 = vmatpush1.bf16.msra.mxu0 0
      %5098 = vmatprep.subr.bf16.mxu0 0
      %5099 = vmatpush1.bf16.msra.mxu0 0
      %5100 = vmatprep.mubr.bf16.mxu0 0
      %5101 = vmatmul.mubr.bf16.gmra.mrb[0].mxu0 %v4661
      %v5102 = vpop.f32.mrb[0].mxu0
      %v5103 = vadd.f32 %v4926, %v5102
      %v5104 = vpop.f32.mrb[0].mxu0
      %v5105 = vpop.f32.mrb[0].mxu0
      %v5106 = vadd.f32 %v4929, %v5105
      %v5107 = vpop.f32.mrb[0].mxu0
      %5108 = vmatprep.mubr.bf16.mxu0 0
      %5109 = vmatmul.mubr.bf16.gmra.mrb[0].mxu0 %v4664
      %v5110 = vpop.f32.mrb[0].mxu0
      %v5111 = vadd.f32 %v4934, %v5110
      %v5112 = vpop.f32.mrb[0].mxu0
      %v5113 = vpop.f32.mrb[0].mxu0
      %v5114 = vadd.f32 %v4937, %v5113
      %v5115 = vpop.f32.mrb[0].mxu0
      %5116 = vmatprep.mubr.bf16.mxu0 0
      %5117 = vmatmul.mubr.bf16.gmra.mrb[0].mxu0 %v4667
      %v5118 = vpop.f32.mrb[0].mxu0
      %v5119 = vadd.f32 %v4942, %v5118
      %v5120 = vpop.f32.mrb[0].mxu0
      %v5121 = vpop.f32.mrb[0].mxu0
      %v5122 = vadd.f32 %v4945, %v5121
      %v5123 = vpop.f32.mrb[0].mxu0
      %5124 = vmatprep.mubr.bf16.mxu0 0
      %5125 = vmatmul.mubr.bf16.gmra.mrb[0].mxu0 %v4670
      %v5126 = vpop.f32.mrb[0].mxu0
      %v5127 = vadd.f32 %v4950, %v5126
      %v5128 = vpop.f32.mrb[0].mxu0
      %v5129 = vpop.f32.mrb[0].mxu0
      %v5130 = vadd.f32 %v4953, %v5129
      %v5131 = vpop.f32.mrb[0].mxu0
      %5132 = vmatprep.mubr.bf16.mxu0 0
      %5133 = vmatmul.mubr.bf16.gmra.mrb[0].mxu0 %v4673
      %v5134 = vpop.f32.mrb[0].mxu0
      %v5135 = vadd.f32 %v4958, %v5134
      %v5136 = vpop.f32.mrb[0].mxu0
      %v5137 = vpop.f32.mrb[0].mxu0
      %v5138 = vadd.f32 %v4961, %v5137
      %v5139 = vpop.f32.mrb[0].mxu0
      %5140 = vmatprep.mubr.bf16.mxu0 0
      %5141 = vmatmul.mubr.bf16.gmra.mrb[0].mxu0 %v4676
      %v5142 = vpop.f32.mrb[0].mxu0
      %v5143 = vadd.f32 %v4966, %v5142
      %v5144 = vpop.f32.mrb[0].mxu0
      %v5145 = vpop.f32.mrb[0].mxu0
      %v5146 = vadd.f32 %v4969, %v5145
      %v5147 = vpop.f32.mrb[0].mxu0
      %5148 = vmatprep.mubr.bf16.mxu0 0
      %5149 = vmatmul.mubr.bf16.gmra.mrb[0].mxu0 %v4679
      %v5150 = vpop.f32.mrb[0].mxu0
      %v5151 = vadd.f32 %v4974, %v5150
      %v5152 = vpop.f32.mrb[0].mxu0
      %v5153 = vpop.f32.mrb[0].mxu0
      %v5154 = vadd.f32 %v4977, %v5153
      %v5155 = vpop.f32.mrb[0].mxu0
      %5156 = vmatprep.mubr.bf16.mxu0 0
      %5157 = vmatmul.mubr.bf16.gmra.mrb[0].mxu0 %v4682
      %v5158 = vpop.f32.mrb[0].mxu0
      %v5159 = vadd.f32 %v4982, %v5158
      %v5160 = vpop.f32.mrb[0].mxu0
      %v5161 = vpop.f32.mrb[0].mxu0
      %v5162 = vadd.f32 %v4985, %v5161
      %v5163 = vpop.f32.mrb[0].mxu0
      %5164 = vmatprep.mubr.bf16.mxu0 0
      %5165 = vmatmul.mubr.bf16.gmra.mrb[0].mxu0 %v4685
      %v5166 = vpop.f32.mrb[0].mxu0
      %v5167 = vadd.f32 %v4990, %v5166
      %v5168 = vpop.f32.mrb[0].mxu0
      %v5169 = vpop.f32.mrb[0].mxu0
      %v5170 = vadd.f32 %v4993, %v5169
      %v5171 = vpop.f32.mrb[0].mxu0
      %5172 = vmatprep.mubr.bf16.mxu0 0
      %5173 = vmatmul.mubr.bf16.gmra.mrb[0].mxu0 %v4688
      %v5174 = vpop.f32.mrb[0].mxu0
      %v5175 = vadd.f32 %v4998, %v5174
      %v5176 = vpop.f32.mrb[0].mxu0
      %v5177 = vpop.f32.mrb[0].mxu0
      %v5178 = vadd.f32 %v5001, %v5177
      %v5179 = vpop.f32.mrb[0].mxu0
      %5180 = vmatprep.mubr.bf16.mxu0 0
      %5181 = vmatmul.mubr.bf16.gmra.mrb[0].mxu0 %v4691
      %v5182 = vpop.f32.mrb[0].mxu0
      %v5183 = vadd.f32 %v5006, %v5182
      %v5184 = vpop.f32.mrb[0].mxu0
      %v5185 = vpop.f32.mrb[0].mxu0
      %v5186 = vadd.f32 %v5009, %v5185
      %v5187 = vpop.f32.mrb[0].mxu0
      %5188 = vmatprep.mubr.bf16.mxu0 0
      %5189 = vmatmul.mubr.bf16.gmra.mrb[0].mxu0 %v4694
      %v5190 = vpop.f32.mrb[0].mxu0
      %v5191 = vadd.f32 %v5014, %v5190
      %v5192 = vpop.f32.mrb[0].mxu0
      %v5193 = vpop.f32.mrb[0].mxu0
      %v5194 = vadd.f32 %v5017, %v5193
      %v5195 = vpop.f32.mrb[0].mxu0
      %5196 = vmatprep.mubr.bf16.mxu0 0
      %5197 = vmatmul.mubr.bf16.gmra.mrb[0].mxu0 %v4697
      %v5198 = vpop.f32.mrb[0].mxu0
      %v5199 = vadd.f32 %v5022, %v5198
      %v5200 = vpop.f32.mrb[0].mxu0
      %v5201 = vpop.f32.mrb[0].mxu0
      %v5202 = vadd.f32 %v5025, %v5201
      %v5203 = vpop.f32.mrb[0].mxu0
      %5204 = vmatprep.mubr.bf16.mxu0 0
      %5205 = vmatmul.mubr.bf16.gmra.mrb[0].mxu0 %v4700
      %v5206 = vpop.f32.mrb[0].mxu0
      %v5207 = vadd.f32 %v5030, %v5206
      %v5208 = vpop.f32.mrb[0].mxu0
      %v5209 = vpop.f32.mrb[0].mxu0
      %v5210 = vadd.f32 %v5033, %v5209
      %v5211 = vpop.f32.mrb[0].mxu0
      %5212 = vmatprep.mubr.bf16.mxu0 0
      %5213 = vmatmul.mubr.bf16.gmra.mrb[0].mxu0 %v4703
      %v5214 = vpop.f32.mrb[0].mxu0
      %v5215 = vadd.f32 %v5038, %v5214
      %v5216 = vpop.f32.mrb[0].mxu0
      %v5217 = vpop.f32.mrb[0].mxu0
      %v5218 = vadd.f32 %v5041, %v5217
      %v5219 = vpop.f32.mrb[0].mxu0
      %5220 = vmatprep.mubr.bf16.mxu0 0
      %5221 = vmatmul.mubr.bf16.gmra.mrb[0].mxu0 %v4706
      %v5222 = vpop.f32.mrb[0].mxu0
      %v5223 = vadd.f32 %v5046, %v5222
      %v5224 = vpop.f32.mrb[0].mxu0
      %v5225 = vpop.f32.mrb[0].mxu0
      %v5226 = vadd.f32 %v5049, %v5225
      %v5227 = vpop.f32.mrb[0].mxu0
      %5228 = vmatprep.mubr.bf16.mxu0 0
      %5229 = vmatmul.mubr.bf16.gmra.mrb[0].mxu0 %v4709
      %v5230 = vpop.f32.mrb[0].mxu0
      %v5231 = vadd.f32 %v5054, %v5230
      %v5232 = vpop.f32.mrb[0].mxu0
      %v5233 = vpop.f32.mrb[0].mxu0
      %v5234 = vadd.f32 %v5057, %v5233
      %v5235 = vpop.f32.mrb[0].mxu0
      %5236 = vmatprep.mubr.bf16.mxu0 0
      %5237 = vmatmul.mubr.bf16.gmra.mrb[0].mxu0 %v4712
      %v5238 = vpop.f32.mrb[0].mxu0
      %v5239 = vadd.f32 %v5062, %v5238
      %v5240 = vpop.f32.mrb[0].mxu0
      %v5241 = vpop.f32.mrb[0].mxu0
      %v5242 = vadd.f32 %v5065, %v5241
      %v5243 = vpop.f32.mrb[0].mxu0
      %5244 = vdwg.mxu0
      %v5245 = vmax.f32 %v5103, 0.0
      %v5246 = vmax.f32 %v5106, 0.0
      %v5247 = vmax.f32 %v5111, 0.0
      %v5248 = vmax.f32 %v5114, 0.0
      %v5249 = vmax.f32 %v5119, 0.0
      %v5250 = vmax.f32 %v5122, 0.0
      %v5251 = vmax.f32 %v5127, 0.0
      %v5252 = vmax.f32 %v5130, 0.0
      %v5253 = vmax.f32 %v5135, 0.0
      %v5254 = vmax.f32 %v5138, 0.0
      %v5255 = vmax.f32 %v5143, 0.0
      %v5256 = vmax.f32 %v5146, 0.0
      %v5257 = vmax.f32 %v5151, 0.0
      %v5258 = vmax.f32 %v5154, 0.0
      %v5259 = vmax.f32 %v5159, 0.0
      %v5260 = vmax.f32 %v5162, 0.0
      %v5261 = vmax.f32 %v5167, 0.0
      %v5262 = vmax.f32 %v5170, 0.0
      %v5263 = vmax.f32 %v5175, 0.0
      %v5264 = vmax.f32 %v5178, 0.0
      %v5265 = vmax.f32 %v5183, 0.0
      %v5266 = vmax.f32 %v5186, 0.0
      %v5267 = vmax.f32 %v5191, 0.0
      %v5268 = vmax.f32 %v5194, 0.0
      %v5269 = vmax.f32 %v5199, 0.0
      %v5270 = vmax.f32 %v5202, 0.0
      %v5271 = vmax.f32 %v5207, 0.0
      %v5272 = vmax.f32 %v5210, 0.0
      %v5273 = vmax.f32 %v5215, 0.0
      %v5274 = vmax.f32 %v5218, 0.0
      %v5275 = vmax.f32 %v5223, 0.0
      %v5276 = vmax.f32 %v5226, 0.0
      %v5277 = vmax.f32 %v5231, 0.0
      %v5278 = vmax.f32 %v5234, 0.0
      %v5279 = vmax.f32 %v5239, 0.0
      %v5280 = vmax.f32 %v5242, 0.0
      %v5281 = vld [vmem:[%s0] sm:$0xff]
      %v5282 = vld [vmem:[%s0 + $0x8] sm:$0xff]
      %v5283 = vld [vmem:[%s0 + $0x10] sm:$0xff]
      %v5284 = vld [vmem:[%s0 + $0x18] sm:$0xff]
      %v5285 = vld [vmem:[%s0 + $0x20] sm:$0xff]
      %v5286 = vld [vmem:[%s0 + $0x28] sm:$0xff]
      %v5287 = vld [vmem:[%s0 + $0x30] sm:$0xff]
      %v5288 = vld [vmem:[%s0 + $0x38] sm:$0xff]
      %v5289 = vld [vmem:[%s0 + $0x40] sm:$0xff]
      %v5290 = vld [vmem:[%s0 + $0x48] sm:$0xff]
      %v5291 = vld [vmem:[%s0 + $0x50] sm:$0xff]
      %v5292 = vld [vmem:[%s0 + $0x58] sm:$0xff]
      %v5293 = vld [vmem:[%s0 + $0x60] sm:$0xff]
      %v5294 = vld [vmem:[%s0 + $0x68] sm:$0xff]
      %v5295 = vld [vmem:[%s0 + $0x70] sm:$0xff]
      %v5296 = vld [vmem:[%s0 + $0x78] sm:$0xff]
      %v5297 = vld [vmem:[%s0 + $0x80] sm:$0xff]
      %v5298 = vld [vmem:[%s0 + $0x88] sm:$0xff]
      %v5299 = vld [vmem:[%s0 + $0x90] sm:$0xff]
      %v5300 = vld [vmem:[%s0 + $0x98] sm:$0xff]
      %v5301 = vld [vmem:[%s0 + $0xa0] sm:$0xff]
      %v5302 = vld [vmem:[%s0 + $0xa8] sm:$0xff]
      %v5303 = vld [vmem:[%s0 + $0xb0] sm:$0xff]
      %v5304 = vld [vmem:[%s0 + $0xb8] sm:$0xff]
      %v5305 = vld [vmem:[%s0 + $0xc0] sm:$0xff]
      %v5306 = vld [vmem:[%s0 + $0xc8] sm:$0xff]
      %v5307 = vld [vmem:[%s0 + $0xd0] sm:$0xff]
      %v5308 = vld [vmem:[%s0 + $0xd8] sm:$0xff]
      %v5309 = vld [vmem:[%s0 + $0xe0] sm:$0xff]
      %v5310 = vld [vmem:[%s0 + $0xe8] sm:$0xff]
      %v5311 = vld [vmem:[%s0 + $0xf0] sm:$0xff]
      %v5312 = vld [vmem:[%s0 + $0xf8] sm:$0xff]
      %v5313 = vld [vmem:[%s0 + $0x100] sm:$0xff]
      %v5314 = vld [vmem:[%s0 + $0x108] sm:$0xff]
      %v5315 = vld [vmem:[%s0 + $0x110] sm:$0xff]
      %v5316 = vld [vmem:[%s0 + $0x118] sm:$0xff]
      %5318 = vset.pattern.permute.xlu0 0
      %5319 = vperm.xlu0 %5318, %v5281
      %v5320 = vpop.permute.xlu0 %5319
      %5323 = vset.pattern.permute.xlu0 0
      %5324 = vperm.xlu0 %5323, %v5282
      %v5325 = vpop.permute.xlu0 %5324
      %5328 = vset.pattern.permute.xlu0 0
      %5329 = vperm.xlu0 %5328, %v5283
      %v5330 = vpop.permute.xlu0 %5329
      %5333 = vset.pattern.permute.xlu0 0
      %5334 = vperm.xlu0 %5333, %v5284
      %v5335 = vpop.permute.xlu0 %5334
      %5338 = vset.pattern.permute.xlu0 0
      %5339 = vperm.xlu0 %5338, %v5285
      %v5340 = vpop.permute.xlu0 %5339
      %5343 = vset.pattern.permute.xlu0 0
      %5344 = vperm.xlu0 %5343, %v5286
      %v5345 = vpop.permute.xlu0 %5344
      %5348 = vset.pattern.permute.xlu0 0
      %5349 = vperm.xlu0 %5348, %v5287
      %v5350 = vpop.permute.xlu0 %5349
      %5353 = vset.pattern.permute.xlu0 0
      %5354 = vperm.xlu0 %5353, %v5288
      %v5355 = vpop.permute.xlu0 %5354
      %5358 = vset.pattern.permute.xlu0 0
      %5359 = vperm.xlu0 %5358, %v5289
      %v5360 = vpop.permute.xlu0 %5359
      %5363 = vset.pattern.permute.xlu0 0
      %5364 = vperm.xlu0 %5363, %v5290
      %v5365 = vpop.permute.xlu0 %5364
      %5368 = vset.pattern.permute.xlu0 0
      %5369 = vperm.xlu0 %5368, %v5291
      %v5370 = vpop.permute.xlu0 %5369
      %5373 = vset.pattern.permute.xlu0 0
      %5374 = vperm.xlu0 %5373, %v5292
      %v5375 = vpop.permute.xlu0 %5374
      %5378 = vset.pattern.permute.xlu0 0
      %5379 = vperm.xlu0 %5378, %v5293
      %v5380 = vpop.permute.xlu0 %5379
      %5383 = vset.pattern.permute.xlu0 0
      %5384 = vperm.xlu0 %5383, %v5294
      %v5385 = vpop.permute.xlu0 %5384
      %5388 = vset.pattern.permute.xlu0 0
      %5389 = vperm.xlu0 %5388, %v5295
      %v5390 = vpop.permute.xlu0 %5389
      %5393 = vset.pattern.permute.xlu0 0
      %5394 = vperm.xlu0 %5393, %v5296
      %v5395 = vpop.permute.xlu0 %5394
      %5398 = vset.pattern.permute.xlu0 0
      %5399 = vperm.xlu0 %5398, %v5297
      %v5400 = vpop.permute.xlu0 %5399
      %5403 = vset.pattern.permute.xlu0 0
      %5404 = vperm.xlu0 %5403, %v5298
      %v5405 = vpop.permute.xlu0 %5404
      %5408 = vset.pattern.permute.xlu0 0
      %5409 = vperm.xlu0 %5408, %v5299
      %v5410 = vpop.permute.xlu0 %5409
      %5413 = vset.pattern.permute.xlu0 0
      %5414 = vperm.xlu0 %5413, %v5300
      %v5415 = vpop.permute.xlu0 %5414
      %5418 = vset.pattern.permute.xlu0 0
      %5419 = vperm.xlu0 %5418, %v5301
      %v5420 = vpop.permute.xlu0 %5419
      %5423 = vset.pattern.permute.xlu0 0
      %5424 = vperm.xlu0 %5423, %v5302
      %v5425 = vpop.permute.xlu0 %5424
      %5428 = vset.pattern.permute.xlu0 0
      %5429 = vperm.xlu0 %5428, %v5303
      %v5430 = vpop.permute.xlu0 %5429
      %5433 = vset.pattern.permute.xlu0 0
      %5434 = vperm.xlu0 %5433, %v5304
      %v5435 = vpop.permute.xlu0 %5434
      %5438 = vset.pattern.permute.xlu0 0
      %5439 = vperm.xlu0 %5438, %v5305
      %v5440 = vpop.permute.xlu0 %5439
      %5443 = vset.pattern.permute.xlu0 0
      %5444 = vperm.xlu0 %5443, %v5306
      %v5445 = vpop.permute.xlu0 %5444
      %5448 = vset.pattern.permute.xlu0 0
      %5449 = vperm.xlu0 %5448, %v5307
      %v5450 = vpop.permute.xlu0 %5449
      %5453 = vset.pattern.permute.xlu0 0
      %5454 = vperm.xlu0 %5453, %v5308
      %v5455 = vpop.permute.xlu0 %5454
      %5458 = vset.pattern.permute.xlu0 0
      %5459 = vperm.xlu0 %5458, %v5309
      %v5460 = vpop.permute.xlu0 %5459
      %5463 = vset.pattern.permute.xlu0 0
      %5464 = vperm.xlu0 %5463, %v5310
      %v5465 = vpop.permute.xlu0 %5464
      %5468 = vset.pattern.permute.xlu0 0
      %5469 = vperm.xlu0 %5468, %v5311
      %v5470 = vpop.permute.xlu0 %5469
      %5473 = vset.pattern.permute.xlu0 0
      %5474 = vperm.xlu0 %5473, %v5312
      %v5475 = vpop.permute.xlu0 %5474
      %5478 = vset.pattern.permute.xlu0 0
      %5479 = vperm.xlu0 %5478, %v5313
      %v5480 = vpop.permute.xlu0 %5479
      %5483 = vset.pattern.permute.xlu0 0
      %5484 = vperm.xlu0 %5483, %v5314
      %v5485 = vpop.permute.xlu0 %5484
      %5488 = vset.pattern.permute.xlu0 0
      %5489 = vperm.xlu0 %5488, %v5315
      %v5490 = vpop.permute.xlu0 %5489
      %5493 = vset.pattern.permute.xlu0 0
      %5494 = vperm.xlu0 %5493, %v5316
      %v5495 = vpop.permute.xlu0 %5494
      %v5497 = vmul.f32 %v5245, %v5320
      %v5498 = vmul.f32 %v5246, %v5325
      %v5499 = vmul.f32 %v5247, %v5330
      %v5500 = vmul.f32 %v5248, %v5335
      %v5501 = vmul.f32 %v5249, %v5340
      %v5502 = vmul.f32 %v5250, %v5345
      %v5503 = vmul.f32 %v5251, %v5350
      %v5504 = vmul.f32 %v5252, %v5355
      %v5505 = vmul.f32 %v5253, %v5360
      %v5506 = vmul.f32 %v5254, %v5365
      %v5507 = vmul.f32 %v5255, %v5370
      %v5508 = vmul.f32 %v5256, %v5375
      %v5509 = vmul.f32 %v5257, %v5380
      %v5510 = vmul.f32 %v5258, %v5385
      %v5511 = vmul.f32 %v5259, %v5390
      %v5512 = vmul.f32 %v5260, %v5395
      %v5513 = vmul.f32 %v5261, %v5400
      %v5514 = vmul.f32 %v5262, %v5405
      %v5515 = vmul.f32 %v5263, %v5410
      %v5516 = vmul.f32 %v5264, %v5415
      %v5517 = vmul.f32 %v5265, %v5420
      %v5518 = vmul.f32 %v5266, %v5425
      %v5519 = vmul.f32 %v5267, %v5430
      %v5520 = vmul.f32 %v5268, %v5435
      %v5521 = vmul.f32 %v5269, %v5440
      %v5522 = vmul.f32 %v5270, %v5445
      %v5523 = vmul.f32 %v5271, %v5450
      %v5524 = vmul.f32 %v5272, %v5455
      %v5525 = vmul.f32 %v5273, %v5460
      %v5526 = vmul.f32 %v5274, %v5465
      %v5527 = vmul.f32 %v5275, %v5470
      %v5528 = vmul.f32 %v5276, %v5475
      %v5529 = vmul.f32 %v5277, %v5480
      %v5530 = vmul.f32 %v5278, %v5485
      %v5531 = vmul.f32 %v5279, %v5490
      %v5532 = vmul.f32 %v5280, %v5495
      %5533 = vst.msk [vmem:[#allocation2 + $0x13] sm:$0xff] %vm552, %v5497
      %5534 = vst.msk [vmem:[#allocation2 + $0x1b] sm:$0xff] %vm552, %v5498
      %5535 = vst.msk [vmem:[#allocation2 + $0x23] sm:$0xff] %vm552, %v5499
      %5536 = vst.msk [vmem:[#allocation2 + $0x2b] sm:$0xff] %vm552, %v5500
      %5537 = vst.msk [vmem:[#allocation2 + $0x33] sm:$0xff] %vm552, %v5501
      %5538 = vst.msk [vmem:[#allocation2 + $0x3b] sm:$0xff] %vm552, %v5502
      %5539 = vst.msk [vmem:[#allocation2 + $0x43] sm:$0xff] %vm552, %v5503
      %5540 = vst.msk [vmem:[#allocation2 + $0x4b] sm:$0xff] %vm552, %v5504
      %5541 = vst.msk [vmem:[#allocation2 + $0x53] sm:$0xff] %vm552, %v5505
      %5542 = vst.msk [vmem:[#allocation2 + $0x5b] sm:$0xff] %vm552, %v5506
      %5543 = vst.msk [vmem:[#allocation2 + $0x63] sm:$0xff] %vm552, %v5507
      %5544 = vst.msk [vmem:[#allocation2 + $0x6b] sm:$0xff] %vm552, %v5508
      %5545 = vst.msk [vmem:[#allocation2 + $0x73] sm:$0xff] %vm552, %v5509
      %5546 = vst.msk [vmem:[#allocation2 + $0x7b] sm:$0xff] %vm552, %v5510
      %5547 = vst.msk [vmem:[#allocation2 + $0x83] sm:$0xff] %vm552, %v5511
      %5548 = vst.msk [vmem:[#allocation2 + $0x8b] sm:$0xff] %vm552, %v5512
      %5549 = vst.msk [vmem:[#allocation2 + $0x93] sm:$0xff] %vm552, %v5513
      %5550 = vst.msk [vmem:[#allocation2 + $0x9b] sm:$0xff] %vm552, %v5514
      %5551 = vst.msk [vmem:[#allocation2 + $0xa3] sm:$0xff] %vm552, %v5515
      %5552 = vst.msk [vmem:[#allocation2 + $0xab] sm:$0xff] %vm552, %v5516
      %5553 = vst.msk [vmem:[#allocation2 + $0xb3] sm:$0xff] %vm552, %v5517
      %5554 = vst.msk [vmem:[#allocation2 + $0xbb] sm:$0xff] %vm552, %v5518
      %5555 = vst.msk [vmem:[#allocation2 + $0xc3] sm:$0xff] %vm552, %v5519
      %5556 = vst.msk [vmem:[#allocation2 + $0xcb] sm:$0xff] %vm552, %v5520
      %5557 = vst.msk [vmem:[#allocation2 + $0xd3] sm:$0xff] %vm552, %v5521
      %5558 = vst.msk [vmem:[#allocation2 + $0xdb] sm:$0xff] %vm552, %v5522
      %5559 = vst.msk [vmem:[#allocation2 + $0xe3] sm:$0xff] %vm552, %v5523
      %5560 = vst.msk [vmem:[#allocation2 + $0xeb] sm:$0xff] %vm552, %v5524
      %5561 = vst.msk [vmem:[#allocation2 + $0xf3] sm:$0xff] %vm552, %v5525
      %5562 = vst.msk [vmem:[#allocation2 + $0xfb] sm:$0xff] %vm552, %v5526
      %5563 = vst.msk [vmem:[#allocation2 + $0x103] sm:$0xff] %vm552, %v5527
      %5564 = vst.msk [vmem:[#allocation2 + $0x10b] sm:$0xff] %vm552, %v5528
      %5565 = vst.msk [vmem:[#allocation2 + $0x113] sm:$0xff] %vm552, %v5529
      %5566 = vst.msk [vmem:[#allocation2 + $0x11b] sm:$0xff] %vm552, %v5530
      %5567 = vst.msk [vmem:[#allocation2 + $0x123] sm:$0xff] %vm552, %v5531
      %5568 = vst.msk [vmem:[#allocation2 + $0x12b] sm:$0xff] %vm552, %v5532
      %v5569 = vld [vmem:[#allocation2] sm:$0xff]
      %v5570 = vld [vmem:[#allocation2 + $0x8] sm:$0xff]
      %v5571 = vld [vmem:[#allocation2 + $0x10] sm:$0xff]
      %v5572 = vld [vmem:[#allocation2 + $0x18] sm:$0xff]
      %v5573 = vld [vmem:[#allocation2 + $0x20] sm:$0xff]
      %v5574 = vld [vmem:[#allocation2 + $0x28] sm:$0xff]
      %v5575 = vld [vmem:[#allocation2 + $0x30] sm:$0xff]
      %v5576 = vld [vmem:[#allocation2 + $0x38] sm:$0xff]
      %v5577 = vld [vmem:[#allocation2 + $0x40] sm:$0xff]
      %v5578 = vld [vmem:[#allocation2 + $0x48] sm:$0xff]
      %v5579 = vld [vmem:[#allocation2 + $0x50] sm:$0xff]
      %v5580 = vld [vmem:[#allocation2 + $0x58] sm:$0xff]
      %v5581 = vld [vmem:[#allocation2 + $0x60] sm:$0xff]
      %v5582 = vld [vmem:[#allocation2 + $0x68] sm:$0xff]
      %v5583 = vld [vmem:[#allocation2 + $0x70] sm:$0xff]
      %v5584 = vld [vmem:[#allocation2 + $0x78] sm:$0xff]
      %v5585 = vld [vmem:[#allocation2 + $0x80] sm:$0xff]
      %v5586 = vld [vmem:[#allocation2 + $0x88] sm:$0xff]
      %v5587 = vld [vmem:[#allocation2 + $0x90] sm:$0xff]
      %v5588 = vld [vmem:[#allocation2 + $0x98] sm:$0xff]
      %v5589 = vld [vmem:[#allocation2 + $0xa0] sm:$0xff]
      %v5590 = vld [vmem:[#allocation2 + $0xa8] sm:$0xff]
      %v5591 = vld [vmem:[#allocation2 + $0xb0] sm:$0xff]
      %v5592 = vld [vmem:[#allocation2 + $0xb8] sm:$0xff]
      %v5593 = vld [vmem:[#allocation2 + $0xc0] sm:$0xff]
      %v5594 = vld [vmem:[#allocation2 + $0xc8] sm:$0xff]
      %v5595 = vld [vmem:[#allocation2 + $0xd0] sm:$0xff]
      %v5596 = vld [vmem:[#allocation2 + $0xd8] sm:$0xff]
      %v5597 = vld [vmem:[#allocation2 + $0xe0] sm:$0xff]
      %v5598 = vld [vmem:[#allocation2 + $0xe8] sm:$0xff]
      %v5599 = vld [vmem:[#allocation2 + $0xf0] sm:$0xff]
      %v5600 = vld [vmem:[#allocation2 + $0xf8] sm:$0xff]
      %v5601 = vld [vmem:[#allocation2 + $0x100] sm:$0xff]
      %v5602 = vld [vmem:[#allocation2 + $0x108] sm:$0xff]
      %v5603 = vld [vmem:[#allocation2 + $0x110] sm:$0xff]
      %v5604 = vld [vmem:[#allocation2 + $0x118] sm:$0xff]
      %v5605 = vpack.c.bf16 %v5570, %v5569
      %v5606 = vpack.c.bf16 %v5572, %v5571
      %v5607 = vpack.c.bf16 %v5574, %v5573
      %v5608 = vpack.c.bf16 %v5576, %v5575
      %v5609 = vpack.c.bf16 %v5578, %v5577
      %v5610 = vpack.c.bf16 %v5580, %v5579
      %v5611 = vpack.c.bf16 %v5582, %v5581
      %v5612 = vpack.c.bf16 %v5584, %v5583
      %v5613 = vpack.c.bf16 %v5586, %v5585
      %v5614 = vpack.c.bf16 %v5588, %v5587
      %v5615 = vpack.c.bf16 %v5590, %v5589
      %v5616 = vpack.c.bf16 %v5592, %v5591
      %v5617 = vpack.c.bf16 %v5594, %v5593
      %v5618 = vpack.c.bf16 %v5596, %v5595
      %v5619 = vpack.c.bf16 %v5598, %v5597
      %v5620 = vpack.c.bf16 %v5600, %v5599
      %v5621 = vpack.c.bf16 %v5602, %v5601
      %v5622 = vpack.c.bf16 %v5604, %v5603
      %5623 = vst.msk [vmem:[#allocation3] sm:$0xff] %vm552, %v5605
      %5624 = vst.msk [vmem:[#allocation3 + $0x28] sm:$0xff] %vm552, %v5606
      %5625 = vst.msk [vmem:[#allocation3 + $0x50] sm:$0xff] %vm552, %v5607
      %5626 = vst.msk [vmem:[#allocation3 + $0x78] sm:$0xff] %vm552, %v5608
      %5627 = vst.msk [vmem:[#allocation3 + $0xa0] sm:$0xff] %vm552, %v5609
      %5628 = vst.msk [vmem:[#allocation3 + $0xc8] sm:$0xff] %vm552, %v5610
      %5629 = vst.msk [vmem:[#allocation3 + $0xf0] sm:$0xff] %vm552, %v5611
      %5630 = vst.msk [vmem:[#allocation3 + $0x118] sm:$0xff] %vm552, %v5612
      %5631 = vst.msk [vmem:[#allocation3 + $0x140] sm:$0xff] %vm552, %v5613
      %5632 = vst.msk [vmem:[#allocation3 + $0x168] sm:$0xff] %vm552, %v5614
      %5633 = vst.msk [vmem:[#allocation3 + $0x190] sm:$0xff] %vm552, %v5615
      %5634 = vst.msk [vmem:[#allocation3 + $0x1b8] sm:$0xff] %vm552, %v5616
      %5635 = vst.msk [vmem:[#allocation3 + $0x1e0] sm:$0xff] %vm552, %v5617
      %5636 = vst.msk [vmem:[#allocation3 + $0x208] sm:$0xff] %vm552, %v5618
      %5637 = vst.msk [vmem:[#allocation3 + $0x230] sm:$0xff] %vm552, %v5619
      %5638 = vst.msk [vmem:[#allocation3 + $0x258] sm:$0xff] %vm552, %v5620
      %5639 = vst.msk [vmem:[#allocation3 + $0x280] sm:$0xff] %vm552, %v5621
      %5640 = vst.msk [vmem:[#allocation3 + $0x2a8] sm:$0xff] %vm552, %v5622
      %v5641 = vld [vmem:[#allocation2 + $0x1] sm:$0xff]
      %v5642 = vld [vmem:[#allocation2 + $0x9] sm:$0xff]
      %v5643 = vld [vmem:[#allocation2 + $0x11] sm:$0xff]
      %v5644 = vld [vmem:[#allocation2 + $0x19] sm:$0xff]
      %v5645 = vld [vmem:[#allocation2 + $0x21] sm:$0xff]
      %v5646 = vld [vmem:[#allocation2 + $0x29] sm:$0xff]
      %v5647 = vld [vmem:[#allocation2 + $0x31] sm:$0xff]
      %v5648 = vld [vmem:[#allocation2 + $0x39] sm:$0xff]
      %v5649 = vld [vmem:[#allocation2 + $0x41] sm:$0xff]
      %v5650 = vld [vmem:[#allocation2 + $0x49] sm:$0xff]
      %v5651 = vld [vmem:[#allocation2 + $0x51] sm:$0xff]
      %v5652 = vld [vmem:[#allocation2 + $0x59] sm:$0xff]
      %v5653 = vld [vmem:[#allocation2 + $0x61] sm:$0xff]
      %v5654 = vld [vmem:[#allocation2 + $0x69] sm:$0xff]
      %v5655 = vld [vmem:[#allocation2 + $0x71] sm:$0xff]
      %v5656 = vld [vmem:[#allocation2 + $0x79] sm:$0xff]
      %v5657 = vld [vmem:[#allocation2 + $0x81] sm:$0xff]
      %v5658 = vld [vmem:[#allocation2 + $0x89] sm:$0xff]
      %v5659 = vld [vmem:[#allocation2 + $0x91] sm:$0xff]
      %v5660 = vld [vmem:[#allocation2 + $0x99] sm:$0xff]
      %v5661 = vld [vmem:[#allocation2 + $0xa1] sm:$0xff]
      %v5662 = vld [vmem:[#allocation2 + $0xa9] sm:$0xff]
      %v5663 = vld [vmem:[#allocation2 + $0xb1] sm:$0xff]
      %v5664 = vld [vmem:[#allocation2 + $0xb9] sm:$0xff]
      %v5665 = vld [vmem:[#allocation2 + $0xc1] sm:$0xff]
      %v5666 = vld [vmem:[#allocation2 + $0xc9] sm:$0xff]
      %v5667 = vld [vmem:[#allocation2 + $0xd1] sm:$0xff]
      %v5668 = vld [vmem:[#allocation2 + $0xd9] sm:$0xff]
      %v5669 = vld [vmem:[#allocation2 + $0xe1] sm:$0xff]
      %v5670 = vld [vmem:[#allocation2 + $0xe9] sm:$0xff]
      %v5671 = vld [vmem:[#allocation2 + $0xf1] sm:$0xff]
      %v5672 = vld [vmem:[#allocation2 + $0xf9] sm:$0xff]
      %v5673 = vld [vmem:[#allocation2 + $0x101] sm:$0xff]
      %v5674 = vld [vmem:[#allocation2 + $0x109] sm:$0xff]
      %v5675 = vld [vmem:[#allocation2 + $0x111] sm:$0xff]
      %v5676 = vld [vmem:[#allocation2 + $0x119] sm:$0xff]
      %v5677 = vpack.c.bf16 %v5642, %v5641
      %v5678 = vpack.c.bf16 %v5644, %v5643
      %v5679 = vpack.c.bf16 %v5646, %v5645
      %v5680 = vpack.c.bf16 %v5648, %v5647
      %v5681 = vpack.c.bf16 %v5650, %v5649
      %v5682 = vpack.c.bf16 %v5652, %v5651
      %v5683 = vpack.c.bf16 %v5654, %v5653
      %v5684 = vpack.c.bf16 %v5656, %v5655
      %v5685 = vpack.c.bf16 %v5658, %v5657
      %v5686 = vpack.c.bf16 %v5660, %v5659
      %v5687 = vpack.c.bf16 %v5662, %v5661
      %v5688 = vpack.c.bf16 %v5664, %v5663
      %v5689 = vpack.c.bf16 %v5666, %v5665
      %v5690 = vpack.c.bf16 %v5668, %v5667
      %v5691 = vpack.c.bf16 %v5670, %v5669
      %v5692 = vpack.c.bf16 %v5672, %v5671
      %v5693 = vpack.c.bf16 %v5674, %v5673
      %v5694 = vpack.c.bf16 %v5676, %v5675
      %5713 = vrot.lane.b32.xlu0 %v5677, 32
      %v5714 = vpop.permute.xlu0 %5713
      %5715 = vrot.lane.b32.xlu0 %v5678, 32
      %v5716 = vpop.permute.xlu0 %5715
      %5717 = vrot.lane.b32.xlu0 %v5679, 32
      %v5718 = vpop.permute.xlu0 %5717
      %5719 = vrot.lane.b32.xlu0 %v5680, 32
      %v5720 = vpop.permute.xlu0 %5719
      %5721 = vrot.lane.b32.xlu0 %v5681, 32
      %v5722 = vpop.permute.xlu0 %5721
      %5723 = vrot.lane.b32.xlu0 %v5682, 32
      %v5724 = vpop.permute.xlu0 %5723
      %5725 = vrot.lane.b32.xlu0 %v5683, 32
      %v5726 = vpop.permute.xlu0 %5725
      %5727 = vrot.lane.b32.xlu0 %v5684, 32
      %v5728 = vpop.permute.xlu0 %5727
      %5729 = vrot.lane.b32.xlu0 %v5685, 32
      %v5730 = vpop.permute.xlu0 %5729
      %5731 = vrot.lane.b32.xlu0 %v5686, 32
      %v5732 = vpop.permute.xlu0 %5731
      %5733 = vrot.lane.b32.xlu0 %v5687, 32
      %v5734 = vpop.permute.xlu0 %5733
      %5735 = vrot.lane.b32.xlu0 %v5688, 32
      %v5736 = vpop.permute.xlu0 %5735
      %5737 = vrot.lane.b32.xlu0 %v5689, 32
      %v5738 = vpop.permute.xlu0 %5737
      %5739 = vrot.lane.b32.xlu0 %v5690, 32
      %v5740 = vpop.permute.xlu0 %5739
      %5741 = vrot.lane.b32.xlu0 %v5691, 32
      %v5742 = vpop.permute.xlu0 %5741
      %5743 = vrot.lane.b32.xlu0 %v5692, 32
      %v5744 = vpop.permute.xlu0 %5743
      %5745 = vrot.lane.b32.xlu0 %v5693, 32
      %v5746 = vpop.permute.xlu0 %5745
      %5747 = vrot.lane.b32.xlu0 %v5694, 32
      %v5748 = vpop.permute.xlu0 %5747
      %vm5767 = vcmask 523520
      %5768 = vst.msk [vmem:[#allocation3] sm:$0xff] %vm5767, %v5714
      %5769 = vst.msk [vmem:[#allocation3 + $0x28] sm:$0xff] %vm5767, %v5716
      %5770 = vst.msk [vmem:[#allocation3 + $0x50] sm:$0xff] %vm5767, %v5718
      %5771 = vst.msk [vmem:[#allocation3 + $0x78] sm:$0xff] %vm5767, %v5720
      %5772 = vst.msk [vmem:[#allocation3 + $0xa0] sm:$0xff] %vm5767, %v5722
      %5773 = vst.msk [vmem:[#allocation3 + $0xc8] sm:$0xff] %vm5767, %v5724
      %5774 = vst.msk [vmem:[#allocation3 + $0xf0] sm:$0xff] %vm5767, %v5726
      %5775 = vst.msk [vmem:[#allocation3 + $0x118] sm:$0xff] %vm5767, %v5728
      %5776 = vst.msk [vmem:[#allocation3 + $0x140] sm:$0xff] %vm5767, %v5730
      %5777 = vst.msk [vmem:[#allocation3 + $0x168] sm:$0xff] %vm5767, %v5732
      %5778 = vst.msk [vmem:[#allocation3 + $0x190] sm:$0xff] %vm5767, %v5734
      %5779 = vst.msk [vmem:[#allocation3 + $0x1b8] sm:$0xff] %vm5767, %v5736
      %5780 = vst.msk [vmem:[#allocation3 + $0x1e0] sm:$0xff] %vm5767, %v5738
      %5781 = vst.msk [vmem:[#allocation3 + $0x208] sm:$0xff] %vm5767, %v5740
      %5782 = vst.msk [vmem:[#allocation3 + $0x230] sm:$0xff] %vm5767, %v5742
      %5783 = vst.msk [vmem:[#allocation3 + $0x258] sm:$0xff] %vm5767, %v5744
      %5784 = vst.msk [vmem:[#allocation3 + $0x280] sm:$0xff] %vm5767, %v5746
      %5785 = vst.msk [vmem:[#allocation3 + $0x2a8] sm:$0xff] %vm5767, %v5748
      %v5786 = vld [vmem:[#allocation2 + $0x2] sm:$0xff]
      %v5787 = vld [vmem:[#allocation2 + $0xa] sm:$0xff]
      %v5788 = vld [vmem:[#allocation2 + $0x12] sm:$0xff]
      %v5789 = vld [vmem:[#allocation2 + $0x1a] sm:$0xff]
      %v5790 = vld [vmem:[#allocation2 + $0x22] sm:$0xff]
      %v5791 = vld [vmem:[#allocation2 + $0x2a] sm:$0xff]
      %v5792 = vld [vmem:[#allocation2 + $0x32] sm:$0xff]
      %v5793 = vld [vmem:[#allocation2 + $0x3a] sm:$0xff]
      %v5794 = vld [vmem:[#allocation2 + $0x42] sm:$0xff]
      %v5795 = vld [vmem:[#allocation2 + $0x4a] sm:$0xff]
      %v5796 = vld [vmem:[#allocation2 + $0x52] sm:$0xff]
      %v5797 = vld [vmem:[#allocation2 + $0x5a] sm:$0xff]
      %v5798 = vld [vmem:[#allocation2 + $0x62] sm:$0xff]
      %v5799 = vld [vmem:[#allocation2 + $0x6a] sm:$0xff]
      %v5800 = vld [vmem:[#allocation2 + $0x72] sm:$0xff]
      %v5801 = vld [vmem:[#allocation2 + $0x7a] sm:$0xff]
      %v5802 = vld [vmem:[#allocation2 + $0x82] sm:$0xff]
      %v5803 = vld [vmem:[#allocation2 + $0x8a] sm:$0xff]
      %v5804 = vld [vmem:[#allocation2 + $0x92] sm:$0xff]
      %v5805 = vld [vmem:[#allocation2 + $0x9a] sm:$0xff]
      %v5806 = vld [vmem:[#allocation2 + $0xa2] sm:$0xff]
      %v5807 = vld [vmem:[#allocation2 + $0xaa] sm:$0xff]
      %v5808 = vld [vmem:[#allocation2 + $0xb2] sm:$0xff]
      %v5809 = vld [vmem:[#allocation2 + $0xba] sm:$0xff]
      %v5810 = vld [vmem:[#allocation2 + $0xc2] sm:$0xff]
      %v5811 = vld [vmem:[#allocation2 + $0xca] sm:$0xff]
      %v5812 = vld [vmem:[#allocation2 + $0xd2] sm:$0xff]
      %v5813 = vld [vmem:[#allocation2 + $0xda] sm:$0xff]
      %v5814 = vld [vmem:[#allocation2 + $0xe2] sm:$0xff]
      %v5815 = vld [vmem:[#allocation2 + $0xea] sm:$0xff]
      %v5816 = vld [vmem:[#allocation2 + $0xf2] sm:$0xff]
      %v5817 = vld [vmem:[#allocation2 + $0xfa] sm:$0xff]
      %v5818 = vld [vmem:[#allocation2 + $0x102] sm:$0xff]
      %v5819 = vld [vmem:[#allocation2 + $0x10a] sm:$0xff]
      %v5820 = vld [vmem:[#allocation2 + $0x112] sm:$0xff]
      %v5821 = vld [vmem:[#allocation2 + $0x11a] sm:$0xff]
      %v5822 = vpack.c.bf16 %v5787, %v5786
      %v5823 = vpack.c.bf16 %v5789, %v5788
      %v5824 = vpack.c.bf16 %v5791, %v5790
      %v5825 = vpack.c.bf16 %v5793, %v5792
      %v5826 = vpack.c.bf16 %v5795, %v5794
      %v5827 = vpack.c.bf16 %v5797, %v5796
      %v5828 = vpack.c.bf16 %v5799, %v5798
      %v5829 = vpack.c.bf16 %v5801, %v5800
      %v5830 = vpack.c.bf16 %v5803, %v5802
      %v5831 = vpack.c.bf16 %v5805, %v5804
      %v5832 = vpack.c.bf16 %v5807, %v5806
      %v5833 = vpack.c.bf16 %v5809, %v5808
      %v5834 = vpack.c.bf16 %v5811, %v5810
      %v5835 = vpack.c.bf16 %v5813, %v5812
      %v5836 = vpack.c.bf16 %v5815, %v5814
      %v5837 = vpack.c.bf16 %v5817, %v5816
      %v5838 = vpack.c.bf16 %v5819, %v5818
      %v5839 = vpack.c.bf16 %v5821, %v5820
      %5858 = vrot.lane.b32.xlu0 %v5822, 64
      %v5859 = vpop.permute.xlu0 %5858
      %5860 = vrot.lane.b32.xlu0 %v5823, 64
      %v5861 = vpop.permute.xlu0 %5860
      %5862 = vrot.lane.b32.xlu0 %v5824, 64
      %v5863 = vpop.permute.xlu0 %5862
      %5864 = vrot.lane.b32.xlu0 %v5825, 64
      %v5865 = vpop.permute.xlu0 %5864
      %5866 = vrot.lane.b32.xlu0 %v5826, 64
      %v5867 = vpop.permute.xlu0 %5866
      %5868 = vrot.lane.b32.xlu0 %v5827, 64
      %v5869 = vpop.permute.xlu0 %5868
      %5870 = vrot.lane.b32.xlu0 %v5828, 64
      %v5871 = vpop.permute.xlu0 %5870
      %5872 = vrot.lane.b32.xlu0 %v5829, 64
      %v5873 = vpop.permute.xlu0 %5872
      %5874 = vrot.lane.b32.xlu0 %v5830, 64
      %v5875 = vpop.permute.xlu0 %5874
      %5876 = vrot.lane.b32.xlu0 %v5831, 64
      %v5877 = vpop.permute.xlu0 %5876
      %5878 = vrot.lane.b32.xlu0 %v5832, 64
      %v5879 = vpop.permute.xlu0 %5878
      %5880 = vrot.lane.b32.xlu0 %v5833, 64
      %v5881 = vpop.permute.xlu0 %5880
      %5882 = vrot.lane.b32.xlu0 %v5834, 64
      %v5883 = vpop.permute.xlu0 %5882
      %5884 = vrot.lane.b32.xlu0 %v5835, 64
      %v5885 = vpop.permute.xlu0 %5884
      %5886 = vrot.lane.b32.xlu0 %v5836, 64
      %v5887 = vpop.permute.xlu0 %5886
      %5888 = vrot.lane.b32.xlu0 %v5837, 64
      %v5889 = vpop.permute.xlu0 %5888
      %5890 = vrot.lane.b32.xlu0 %v5838, 64
      %v5891 = vpop.permute.xlu0 %5890
      %5892 = vrot.lane.b32.xlu0 %v5839, 64
      %v5893 = vpop.permute.xlu0 %5892
      %vm5912 = vcmask 785920
      %5913 = vst.msk [vmem:[#allocation3] sm:$0xff] %vm5912, %v5859
      %5914 = vst.msk [vmem:[#allocation3 + $0x28] sm:$0xff] %vm5912, %v5861
      %5915 = vst.msk [vmem:[#allocation3 + $0x50] sm:$0xff] %vm5912, %v5863
      %5916 = vst.msk [vmem:[#allocation3 + $0x78] sm:$0xff] %vm5912, %v5865
      %5917 = vst.msk [vmem:[#allocation3 + $0xa0] sm:$0xff] %vm5912, %v5867
      %5918 = vst.msk [vmem:[#allocation3 + $0xc8] sm:$0xff] %vm5912, %v5869
      %5919 = vst.msk [vmem:[#allocation3 + $0xf0] sm:$0xff] %vm5912, %v5871
      %5920 = vst.msk [vmem:[#allocation3 + $0x118] sm:$0xff] %vm5912, %v5873
      %5921 = vst.msk [vmem:[#allocation3 + $0x140] sm:$0xff] %vm5912, %v5875
      %5922 = vst.msk [vmem:[#allocation3 + $0x168] sm:$0xff] %vm5912, %v5877
      %5923 = vst.msk [vmem:[#allocation3 + $0x190] sm:$0xff] %vm5912, %v5879
      %5924 = vst.msk [vmem:[#allocation3 + $0x1b8] sm:$0xff] %vm5912, %v5881
      %5925 = vst.msk [vmem:[#allocation3 + $0x1e0] sm:$0xff] %vm5912, %v5883
      %5926 = vst.msk [vmem:[#allocation3 + $0x208] sm:$0xff] %vm5912, %v5885
      %5927 = vst.msk [vmem:[#allocation3 + $0x230] sm:$0xff] %vm5912, %v5887
      %5928 = vst.msk [vmem:[#allocation3 + $0x258] sm:$0xff] %vm5912, %v5889
      %5929 = vst.msk [vmem:[#allocation3 + $0x280] sm:$0xff] %vm5912, %v5891
      %5930 = vst.msk [vmem:[#allocation3 + $0x2a8] sm:$0xff] %vm5912, %v5893
      %v5931 = vld [vmem:[#allocation2 + $0x12] sm:$0xff]
      %v5932 = vld [vmem:[#allocation2 + $0x1a] sm:$0xff]
      %v5933 = vld [vmem:[#allocation2 + $0x22] sm:$0xff]
      %v5934 = vld [vmem:[#allocation2 + $0x2a] sm:$0xff]
      %v5935 = vld [vmem:[#allocation2 + $0x32] sm:$0xff]
      %v5936 = vld [vmem:[#allocation2 + $0x3a] sm:$0xff]
      %v5937 = vld [vmem:[#allocation2 + $0x42] sm:$0xff]
      %v5938 = vld [vmem:[#allocation2 + $0x4a] sm:$0xff]
      %v5939 = vld [vmem:[#allocation2 + $0x52] sm:$0xff]
      %v5940 = vld [vmem:[#allocation2 + $0x5a] sm:$0xff]
      %v5941 = vld [vmem:[#allocation2 + $0x62] sm:$0xff]
      %v5942 = vld [vmem:[#allocation2 + $0x6a] sm:$0xff]
      %v5943 = vld [vmem:[#allocation2 + $0x72] sm:$0xff]
      %v5944 = vld [vmem:[#allocation2 + $0x7a] sm:$0xff]
      %v5945 = vld [vmem:[#allocation2 + $0x82] sm:$0xff]
      %v5946 = vld [vmem:[#allocation2 + $0x8a] sm:$0xff]
      %v5947 = vld [vmem:[#allocation2 + $0x92] sm:$0xff]
      %v5948 = vld [vmem:[#allocation2 + $0x9a] sm:$0xff]
      %v5949 = vld [vmem:[#allocation2 + $0xa2] sm:$0xff]
      %v5950 = vld [vmem:[#allocation2 + $0xaa] sm:$0xff]
      %v5951 = vld [vmem:[#allocation2 + $0xb2] sm:$0xff]
      %v5952 = vld [vmem:[#allocation2 + $0xba] sm:$0xff]
      %v5953 = vld [vmem:[#allocation2 + $0xc2] sm:$0xff]
      %v5954 = vld [vmem:[#allocation2 + $0xca] sm:$0xff]
      %v5955 = vld [vmem:[#allocation2 + $0xd2] sm:$0xff]
      %v5956 = vld [vmem:[#allocation2 + $0xda] sm:$0xff]
      %v5957 = vld [vmem:[#allocation2 + $0xe2] sm:$0xff]
      %v5958 = vld [vmem:[#allocation2 + $0xea] sm:$0xff]
      %v5959 = vld [vmem:[#allocation2 + $0xf2] sm:$0xff]
      %v5960 = vld [vmem:[#allocation2 + $0xfa] sm:$0xff]
      %v5961 = vld [vmem:[#allocation2 + $0x102] sm:$0xff]
      %v5962 = vld [vmem:[#allocation2 + $0x10a] sm:$0xff]
      %v5963 = vld [vmem:[#allocation2 + $0x112] sm:$0xff]
      %v5964 = vld [vmem:[#allocation2 + $0x11a] sm:$0xff]
      %v5965 = vld [vmem:[#allocation2 + $0x122] sm:$0xff]
      %v5966 = vld [vmem:[#allocation2 + $0x12a] sm:$0xff]
      %v5967 = vpack.c.bf16 %v5932, %v5931
      %v5968 = vpack.c.bf16 %v5934, %v5933
      %v5969 = vpack.c.bf16 %v5936, %v5935
      %v5970 = vpack.c.bf16 %v5938, %v5937
      %v5971 = vpack.c.bf16 %v5940, %v5939
      %v5972 = vpack.c.bf16 %v5942, %v5941
      %v5973 = vpack.c.bf16 %v5944, %v5943
      %v5974 = vpack.c.bf16 %v5946, %v5945
      %v5975 = vpack.c.bf16 %v5948, %v5947
      %v5976 = vpack.c.bf16 %v5950, %v5949
      %v5977 = vpack.c.bf16 %v5952, %v5951
      %v5978 = vpack.c.bf16 %v5954, %v5953
      %v5979 = vpack.c.bf16 %v5956, %v5955
      %v5980 = vpack.c.bf16 %v5958, %v5957
      %v5981 = vpack.c.bf16 %v5960, %v5959
      %v5982 = vpack.c.bf16 %v5962, %v5961
      %v5983 = vpack.c.bf16 %v5964, %v5963
      %v5984 = vpack.c.bf16 %v5966, %v5965
      %6003 = vrot.lane.b32.xlu0 %v5967, 96
      %v6004 = vpop.permute.xlu0 %6003
      %6005 = vrot.lane.b32.xlu0 %v5968, 96
      %v6006 = vpop.permute.xlu0 %6005
      %6007 = vrot.lane.b32.xlu0 %v5969, 96
      %v6008 = vpop.permute.xlu0 %6007
      %6009 = vrot.lane.b32.xlu0 %v5970, 96
      %v6010 = vpop.permute.xlu0 %6009
      %6011 = vrot.lane.b32.xlu0 %v5971, 96
      %v6012 = vpop.permute.xlu0 %6011
      %6013 = vrot.lane.b32.xlu0 %v5972, 96
      %v6014 = vpop.permute.xlu0 %6013
      %6015 = vrot.lane.b32.xlu0 %v5973, 96
      %v6016 = vpop.permute.xlu0 %6015
      %6017 = vrot.lane.b32.xlu0 %v5974, 96
      %v6018 = vpop.permute.xlu0 %6017
      %6019 = vrot.lane.b32.xlu0 %v5975, 96
      %v6020 = vpop.permute.xlu0 %6019
      %6021 = vrot.lane.b32.xlu0 %v5976, 96
      %v6022 = vpop.permute.xlu0 %6021
      %6023 = vrot.lane.b32.xlu0 %v5977, 96
      %v6024 = vpop.permute.xlu0 %6023
      %6025 = vrot.lane.b32.xlu0 %v5978, 96
      %v6026 = vpop.permute.xlu0 %6025
      %6027 = vrot.lane.b32.xlu0 %v5979, 96
      %v6028 = vpop.permute.xlu0 %6027
      %6029 = vrot.lane.b32.xlu0 %v5980, 96
      %v6030 = vpop.permute.xlu0 %6029
      %6031 = vrot.lane.b32.xlu0 %v5981, 96
      %v6032 = vpop.permute.xlu0 %6031
      %6033 = vrot.lane.b32.xlu0 %v5982, 96
      %v6034 = vpop.permute.xlu0 %6033
      %6035 = vrot.lane.b32.xlu0 %v5983, 96
      %v6036 = vpop.permute.xlu0 %6035
      %6037 = vrot.lane.b32.xlu0 %v5984, 96
      %v6038 = vpop.permute.xlu0 %6037
      %vm6057 = vcmask 1048320
      %6058 = vst.msk [vmem:[#allocation3] sm:$0xff] %vm6057, %v6004
      %6059 = vst.msk [vmem:[#allocation3 + $0x28] sm:$0xff] %vm6057, %v6006
      %6060 = vst.msk [vmem:[#allocation3 + $0x50] sm:$0xff] %vm6057, %v6008
      %6061 = vst.msk [vmem:[#allocation3 + $0x78] sm:$0xff] %vm6057, %v6010
      %6062 = vst.msk [vmem:[#allocation3 + $0xa0] sm:$0xff] %vm6057, %v6012
      %6063 = vst.msk [vmem:[#allocation3 + $0xc8] sm:$0xff] %vm6057, %v6014
      %6064 = vst.msk [vmem:[#allocation3 + $0xf0] sm:$0xff] %vm6057, %v6016
      %6065 = vst.msk [vmem:[#allocation3 + $0x118] sm:$0xff] %vm6057, %v6018
      %6066 = vst.msk [vmem:[#allocation3 + $0x140] sm:$0xff] %vm6057, %v6020
      %6067 = vst.msk [vmem:[#allocation3 + $0x168] sm:$0xff] %vm6057, %v6022
      %6068 = vst.msk [vmem:[#allocation3 + $0x190] sm:$0xff] %vm6057, %v6024
      %6069 = vst.msk [vmem:[#allocation3 + $0x1b8] sm:$0xff] %vm6057, %v6026
      %6070 = vst.msk [vmem:[#allocation3 + $0x1e0] sm:$0xff] %vm6057, %v6028
      %6071 = vst.msk [vmem:[#allocation3 + $0x208] sm:$0xff] %vm6057, %v6030
      %6072 = vst.msk [vmem:[#allocation3 + $0x230] sm:$0xff] %vm6057, %v6032
      %6073 = vst.msk [vmem:[#allocation3 + $0x258] sm:$0xff] %vm6057, %v6034
      %6074 = vst.msk [vmem:[#allocation3 + $0x280] sm:$0xff] %vm6057, %v6036
      %6075 = vst.msk [vmem:[#allocation3 + $0x2a8] sm:$0xff] %vm6057, %v6038
      %v6076 = vld [vmem:[#allocation2 + $0x13] sm:$0xff]
      %v6077 = vld [vmem:[#allocation2 + $0x1b] sm:$0xff]
      %v6078 = vld [vmem:[#allocation2 + $0x23] sm:$0xff]
      %v6079 = vld [vmem:[#allocation2 + $0x2b] sm:$0xff]
      %v6080 = vld [vmem:[#allocation2 + $0x33] sm:$0xff]
      %v6081 = vld [vmem:[#allocation2 + $0x3b] sm:$0xff]
      %v6082 = vld [vmem:[#allocation2 + $0x43] sm:$0xff]
      %v6083 = vld [vmem:[#allocation2 + $0x4b] sm:$0xff]
      %v6084 = vld [vmem:[#allocation2 + $0x53] sm:$0xff]
      %v6085 = vld [vmem:[#allocation2 + $0x5b] sm:$0xff]
      %v6086 = vld [vmem:[#allocation2 + $0x63] sm:$0xff]
      %v6087 = vld [vmem:[#allocation2 + $0x6b] sm:$0xff]
      %v6088 = vld [vmem:[#allocation2 + $0x73] sm:$0xff]
      %v6089 = vld [vmem:[#allocation2 + $0x7b] sm:$0xff]
      %v6090 = vld [vmem:[#allocation2 + $0x83] sm:$0xff]
      %v6091 = vld [vmem:[#allocation2 + $0x8b] sm:$0xff]
      %v6092 = vld [vmem:[#allocation2 + $0x93] sm:$0xff]
      %v6093 = vld [vmem:[#allocation2 + $0x9b] sm:$0xff]
      %v6094 = vld [vmem:[#allocation2 + $0xa3] sm:$0xff]
      %v6095 = vld [vmem:[#allocation2 + $0xab] sm:$0xff]
      %v6096 = vld [vmem:[#allocation2 + $0xb3] sm:$0xff]
      %v6097 = vld [vmem:[#allocation2 + $0xbb] sm:$0xff]
      %v6098 = vld [vmem:[#allocation2 + $0xc3] sm:$0xff]
      %v6099 = vld [vmem:[#allocation2 + $0xcb] sm:$0xff]
      %v6100 = vld [vmem:[#allocation2 + $0xd3] sm:$0xff]
      %v6101 = vld [vmem:[#allocation2 + $0xdb] sm:$0xff]
      %v6102 = vld [vmem:[#allocation2 + $0xe3] sm:$0xff]
      %v6103 = vld [vmem:[#allocation2 + $0xeb] sm:$0xff]
      %v6104 = vld [vmem:[#allocation2 + $0xf3] sm:$0xff]
      %v6105 = vld [vmem:[#allocation2 + $0xfb] sm:$0xff]
      %v6106 = vld [vmem:[#allocation2 + $0x103] sm:$0xff]
      %v6107 = vld [vmem:[#allocation2 + $0x10b] sm:$0xff]
      %v6108 = vld [vmem:[#allocation2 + $0x113] sm:$0xff]
      %v6109 = vld [vmem:[#allocation2 + $0x11b] sm:$0xff]
      %v6110 = vld [vmem:[#allocation2 + $0x123] sm:$0xff]
      %v6111 = vld [vmem:[#allocation2 + $0x12b] sm:$0xff]
      %v6112 = vpack.c.bf16 %v6077, %v6076
      %v6113 = vpack.c.bf16 %v6079, %v6078
      %v6114 = vpack.c.bf16 %v6081, %v6080
      %v6115 = vpack.c.bf16 %v6083, %v6082
      %v6116 = vpack.c.bf16 %v6085, %v6084
      %v6117 = vpack.c.bf16 %v6087, %v6086
      %v6118 = vpack.c.bf16 %v6089, %v6088
      %v6119 = vpack.c.bf16 %v6091, %v6090
      %v6120 = vpack.c.bf16 %v6093, %v6092
      %v6121 = vpack.c.bf16 %v6095, %v6094
      %v6122 = vpack.c.bf16 %v6097, %v6096
      %v6123 = vpack.c.bf16 %v6099, %v6098
      %v6124 = vpack.c.bf16 %v6101, %v6100
      %v6125 = vpack.c.bf16 %v6103, %v6102
      %v6126 = vpack.c.bf16 %v6105, %v6104
      %v6127 = vpack.c.bf16 %v6107, %v6106
      %v6128 = vpack.c.bf16 %v6109, %v6108
      %v6129 = vpack.c.bf16 %v6111, %v6110
      %6130 = vst.msk [vmem:[#allocation3 + $0x8] sm:$0xff] %vm552, %v6112
      %6131 = vst.msk [vmem:[#allocation3 + $0x30] sm:$0xff] %vm552, %v6113
      %6132 = vst.msk [vmem:[#allocation3 + $0x58] sm:$0xff] %vm552, %v6114
      %6133 = vst.msk [vmem:[#allocation3 + $0x80] sm:$0xff] %vm552, %v6115
      %6134 = vst.msk [vmem:[#allocation3 + $0xa8] sm:$0xff] %vm552, %v6116
      %6135 = vst.msk [vmem:[#allocation3 + $0xd0] sm:$0xff] %vm552, %v6117
      %6136 = vst.msk [vmem:[#allocation3 + $0xf8] sm:$0xff] %vm552, %v6118
      %6137 = vst.msk [vmem:[#allocation3 + $0x120] sm:$0xff] %vm552, %v6119
      %6138 = vst.msk [vmem:[#allocation3 + $0x148] sm:$0xff] %vm552, %v6120
      %6139 = vst.msk [vmem:[#allocation3 + $0x170] sm:$0xff] %vm552, %v6121
      %6140 = vst.msk [vmem:[#allocation3 + $0x198] sm:$0xff] %vm552, %v6122
      %6141 = vst.msk [vmem:[#allocation3 + $0x1c0] sm:$0xff] %vm552, %v6123
      %6142 = vst.msk [vmem:[#allocation3 + $0x1e8] sm:$0xff] %vm552, %v6124
      %6143 = vst.msk [vmem:[#allocation3 + $0x210] sm:$0xff] %vm552, %v6125
      %6144 = vst.msk [vmem:[#allocation3 + $0x238] sm:$0xff] %vm552, %v6126
      %6145 = vst.msk [vmem:[#allocation3 + $0x260] sm:$0xff] %vm552, %v6127
      %6146 = vst.msk [vmem:[#allocation3 + $0x288] sm:$0xff] %vm552, %v6128
      %6147 = vst.msk [vmem:[#allocation3 + $0x2b0] sm:$0xff] %vm552, %v6129
      %v6148 = vld [vmem:[#allocation2 + $0x14] sm:$0xff]
      %v6149 = vld [vmem:[#allocation2 + $0x1c] sm:$0xff]
      %v6150 = vld [vmem:[#allocation2 + $0x24] sm:$0xff]
      %v6151 = vld [vmem:[#allocation2 + $0x2c] sm:$0xff]
      %v6152 = vld [vmem:[#allocation2 + $0x34] sm:$0xff]
      %v6153 = vld [vmem:[#allocation2 + $0x3c] sm:$0xff]
      %v6154 = vld [vmem:[#allocation2 + $0x44] sm:$0xff]
      %v6155 = vld [vmem:[#allocation2 + $0x4c] sm:$0xff]
      %v6156 = vld [vmem:[#allocation2 + $0x54] sm:$0xff]
      %v6157 = vld [vmem:[#allocation2 + $0x5c] sm:$0xff]
      %v6158 = vld [vmem:[#allocation2 + $0x64] sm:$0xff]
      %v6159 = vld [vmem:[#allocation2 + $0x6c] sm:$0xff]
      %v6160 = vld [vmem:[#allocation2 + $0x74] sm:$0xff]
      %v6161 = vld [vmem:[#allocation2 + $0x7c] sm:$0xff]
      %v6162 = vld [vmem:[#allocation2 + $0x84] sm:$0xff]
      %v6163 = vld [vmem:[#allocation2 + $0x8c] sm:$0xff]
      %v6164 = vld [vmem:[#allocation2 + $0x94] sm:$0xff]
      %v6165 = vld [vmem:[#allocation2 + $0x9c] sm:$0xff]
      %v6166 = vld [vmem:[#allocation2 + $0xa4] sm:$0xff]
      %v6167 = vld [vmem:[#allocation2 + $0xac] sm:$0xff]
      %v6168 = vld [vmem:[#allocation2 + $0xb4] sm:$0xff]
      %v6169 = vld [vmem:[#allocation2 + $0xbc] sm:$0xff]
      %v6170 = vld [vmem:[#allocation2 + $0xc4] sm:$0xff]
      %v6171 = vld [vmem:[#allocation2 + $0xcc] sm:$0xff]
      %v6172 = vld [vmem:[#allocation2 + $0xd4] sm:$0xff]
      %v6173 = vld [vmem:[#allocation2 + $0xdc] sm:$0xff]
      %v6174 = vld [vmem:[#allocation2 + $0xe4] sm:$0xff]
      %v6175 = vld [vmem:[#allocation2 + $0xec] sm:$0xff]
      %v6176 = vld [vmem:[#allocation2 + $0xf4] sm:$0xff]
      %v6177 = vld [vmem:[#allocation2 + $0xfc] sm:$0xff]
      %v6178 = vld [vmem:[#allocation2 + $0x104] sm:$0xff]
      %v6179 = vld [vmem:[#allocation2 + $0x10c] sm:$0xff]
      %v6180 = vld [vmem:[#allocation2 + $0x114] sm:$0xff]
      %v6181 = vld [vmem:[#allocation2 + $0x11c] sm:$0xff]
      %v6182 = vld [vmem:[#allocation2 + $0x124] sm:$0xff]
      %v6183 = vld [vmem:[#allocation2 + $0x12c] sm:$0xff]
      %v6184 = vpack.c.bf16 %v6149, %v6148
      %v6185 = vpack.c.bf16 %v6151, %v6150
      %v6186 = vpack.c.bf16 %v6153, %v6152
      %v6187 = vpack.c.bf16 %v6155, %v6154
      %v6188 = vpack.c.bf16 %v6157, %v6156
      %v6189 = vpack.c.bf16 %v6159, %v6158
      %v6190 = vpack.c.bf16 %v6161, %v6160
      %v6191 = vpack.c.bf16 %v6163, %v6162
      %v6192 = vpack.c.bf16 %v6165, %v6164
      %v6193 = vpack.c.bf16 %v6167, %v6166
      %v6194 = vpack.c.bf16 %v6169, %v6168
      %v6195 = vpack.c.bf16 %v6171, %v6170
      %v6196 = vpack.c.bf16 %v6173, %v6172
      %v6197 = vpack.c.bf16 %v6175, %v6174
      %v6198 = vpack.c.bf16 %v6177, %v6176
      %v6199 = vpack.c.bf16 %v6179, %v6178
      %v6200 = vpack.c.bf16 %v6181, %v6180
      %v6201 = vpack.c.bf16 %v6183, %v6182
      %6220 = vrot.lane.b32.xlu0 %v6184, 32
      %v6221 = vpop.permute.xlu0 %6220
      %6222 = vrot.lane.b32.xlu0 %v6185, 32
      %v6223 = vpop.permute.xlu0 %6222
      %6224 = vrot.lane.b32.xlu0 %v6186, 32
      %v6225 = vpop.permute.xlu0 %6224
      %6226 = vrot.lane.b32.xlu0 %v6187, 32
      %v6227 = vpop.permute.xlu0 %6226
      %6228 = vrot.lane.b32.xlu0 %v6188, 32
      %v6229 = vpop.permute.xlu0 %6228
      %6230 = vrot.lane.b32.xlu0 %v6189, 32
      %v6231 = vpop.permute.xlu0 %6230
      %6232 = vrot.lane.b32.xlu0 %v6190, 32
      %v6233 = vpop.permute.xlu0 %6232
      %6234 = vrot.lane.b32.xlu0 %v6191, 32
      %v6235 = vpop.permute.xlu0 %6234
      %6236 = vrot.lane.b32.xlu0 %v6192, 32
      %v6237 = vpop.permute.xlu0 %6236
      %6238 = vrot.lane.b32.xlu0 %v6193, 32
      %v6239 = vpop.permute.xlu0 %6238
      %6240 = vrot.lane.b32.xlu0 %v6194, 32
      %v6241 = vpop.permute.xlu0 %6240
      %6242 = vrot.lane.b32.xlu0 %v6195, 32
      %v6243 = vpop.permute.xlu0 %6242
      %6244 = vrot.lane.b32.xlu0 %v6196, 32
      %v6245 = vpop.permute.xlu0 %6244
      %6246 = vrot.lane.b32.xlu0 %v6197, 32
      %v6247 = vpop.permute.xlu0 %6246
      %6248 = vrot.lane.b32.xlu0 %v6198, 32
      %v6249 = vpop.permute.xlu0 %6248
      %6250 = vrot.lane.b32.xlu0 %v6199, 32
      %v6251 = vpop.permute.xlu0 %6250
      %6252 = vrot.lane.b32.xlu0 %v6200, 32
      %v6253 = vpop.permute.xlu0 %6252
      %6254 = vrot.lane.b32.xlu0 %v6201, 32
      %v6255 = vpop.permute.xlu0 %6254
      %6274 = vst.msk [vmem:[#allocation3 + $0x8] sm:$0xff] %vm5767, %v6221
      %6275 = vst.msk [vmem:[#allocation3 + $0x30] sm:$0xff] %vm5767, %v6223
      %6276 = vst.msk [vmem:[#allocation3 + $0x58] sm:$0xff] %vm5767, %v6225
      %6277 = vst.msk [vmem:[#allocation3 + $0x80] sm:$0xff] %vm5767, %v6227
      %6278 = vst.msk [vmem:[#allocation3 + $0xa8] sm:$0xff] %vm5767, %v6229
      %6279 = vst.msk [vmem:[#allocation3 + $0xd0] sm:$0xff] %vm5767, %v6231
      %6280 = vst.msk [vmem:[#allocation3 + $0xf8] sm:$0xff] %vm5767, %v6233
      %6281 = vst.msk [vmem:[#allocation3 + $0x120] sm:$0xff] %vm5767, %v6235
      %6282 = vst.msk [vmem:[#allocation3 + $0x148] sm:$0xff] %vm5767, %v6237
      %6283 = vst.msk [vmem:[#allocation3 + $0x170] sm:$0xff] %vm5767, %v6239
      %6284 = vst.msk [vmem:[#allocation3 + $0x198] sm:$0xff] %vm5767, %v6241
      %6285 = vst.msk [vmem:[#allocation3 + $0x1c0] sm:$0xff] %vm5767, %v6243
      %6286 = vst.msk [vmem:[#allocation3 + $0x1e8] sm:$0xff] %vm5767, %v6245
      %6287 = vst.msk [vmem:[#allocation3 + $0x210] sm:$0xff] %vm5767, %v6247
      %6288 = vst.msk [vmem:[#allocation3 + $0x238] sm:$0xff] %vm5767, %v6249
      %6289 = vst.msk [vmem:[#allocation3 + $0x260] sm:$0xff] %vm5767, %v6251
      %6290 = vst.msk [vmem:[#allocation3 + $0x288] sm:$0xff] %vm5767, %v6253
      %6291 = vst.msk [vmem:[#allocation3 + $0x2b0] sm:$0xff] %vm5767, %v6255
      %v6292 = vld [vmem:[#allocation2 + $0x24] sm:$0xff]
      %v6293 = vld [vmem:[#allocation2 + $0x2c] sm:$0xff]
      %v6294 = vld [vmem:[#allocation2 + $0x34] sm:$0xff]
      %v6295 = vld [vmem:[#allocation2 + $0x3c] sm:$0xff]
      %v6296 = vld [vmem:[#allocation2 + $0x44] sm:$0xff]
      %v6297 = vld [vmem:[#allocation2 + $0x4c] sm:$0xff]
      %v6298 = vld [vmem:[#allocation2 + $0x54] sm:$0xff]
      %v6299 = vld [vmem:[#allocation2 + $0x5c] sm:$0xff]
      %v6300 = vld [vmem:[#allocation2 + $0x64] sm:$0xff]
      %v6301 = vld [vmem:[#allocation2 + $0x6c] sm:$0xff]
      %v6302 = vld [vmem:[#allocation2 + $0x74] sm:$0xff]
      %v6303 = vld [vmem:[#allocation2 + $0x7c] sm:$0xff]
      %v6304 = vld [vmem:[#allocation2 + $0x84] sm:$0xff]
      %v6305 = vld [vmem:[#allocation2 + $0x8c] sm:$0xff]
      %v6306 = vld [vmem:[#allocation2 + $0x94] sm:$0xff]
      %v6307 = vld [vmem:[#allocation2 + $0x9c] sm:$0xff]
      %v6308 = vld [vmem:[#allocation2 + $0xa4] sm:$0xff]
      %v6309 = vld [vmem:[#allocation2 + $0xac] sm:$0xff]
      %v6310 = vld [vmem:[#allocation2 + $0xb4] sm:$0xff]
      %v6311 = vld [vmem:[#allocation2 + $0xbc] sm:$0xff]
      %v6312 = vld [vmem:[#allocation2 + $0xc4] sm:$0xff]
      %v6313 = vld [vmem:[#allocation2 + $0xcc] sm:$0xff]
      %v6314 = vld [vmem:[#allocation2 + $0xd4] sm:$0xff]
      %v6315 = vld [vmem:[#allocation2 + $0xdc] sm:$0xff]
      %v6316 = vld [vmem:[#allocation2 + $0xe4] sm:$0xff]
      %v6317 = vld [vmem:[#allocation2 + $0xec] sm:$0xff]
      %v6318 = vld [vmem:[#allocation2 + $0xf4] sm:$0xff]
      %v6319 = vld [vmem:[#allocation2 + $0xfc] sm:$0xff]
      %v6320 = vld [vmem:[#allocation2 + $0x104] sm:$0xff]
      %v6321 = vld [vmem:[#allocation2 + $0x10c] sm:$0xff]
      %v6322 = vld [vmem:[#allocation2 + $0x114] sm:$0xff]
      %v6323 = vld [vmem:[#allocation2 + $0x11c] sm:$0xff]
      %v6324 = vld [vmem:[#allocation2 + $0x124] sm:$0xff]
      %v6325 = vld [vmem:[#allocation2 + $0x12c] sm:$0xff]
      %v6326 = vld [vmem:[#allocation2 + $0x134] sm:$0xff]
      %v6327 = vld [vmem:[#allocation2 + $0x13c] sm:$0xff]
      %v6328 = vpack.c.bf16 %v6293, %v6292
      %v6329 = vpack.c.bf16 %v6295, %v6294
      %v6330 = vpack.c.bf16 %v6297, %v6296
      %v6331 = vpack.c.bf16 %v6299, %v6298
      %v6332 = vpack.c.bf16 %v6301, %v6300
      %v6333 = vpack.c.bf16 %v6303, %v6302
      %v6334 = vpack.c.bf16 %v6305, %v6304
      %v6335 = vpack.c.bf16 %v6307, %v6306
      %v6336 = vpack.c.bf16 %v6309, %v6308
      %v6337 = vpack.c.bf16 %v6311, %v6310
      %v6338 = vpack.c.bf16 %v6313, %v6312
      %v6339 = vpack.c.bf16 %v6315, %v6314
      %v6340 = vpack.c.bf16 %v6317, %v6316
      %v6341 = vpack.c.bf16 %v6319, %v6318
      %v6342 = vpack.c.bf16 %v6321, %v6320
      %v6343 = vpack.c.bf16 %v6323, %v6322
      %v6344 = vpack.c.bf16 %v6325, %v6324
      %v6345 = vpack.c.bf16 %v6327, %v6326
      %6364 = vrot.lane.b32.xlu0 %v6328, 64
      %v6365 = vpop.permute.xlu0 %6364
      %6366 = vrot.lane.b32.xlu0 %v6329, 64
      %v6367 = vpop.permute.xlu0 %6366
      %6368 = vrot.lane.b32.xlu0 %v6330, 64
      %v6369 = vpop.permute.xlu0 %6368
      %6370 = vrot.lane.b32.xlu0 %v6331, 64
      %v6371 = vpop.permute.xlu0 %6370
      %6372 = vrot.lane.b32.xlu0 %v6332, 64
      %v6373 = vpop.permute.xlu0 %6372
      %6374 = vrot.lane.b32.xlu0 %v6333, 64
      %v6375 = vpop.permute.xlu0 %6374
      %6376 = vrot.lane.b32.xlu0 %v6334, 64
      %v6377 = vpop.permute.xlu0 %6376
      %6378 = vrot.lane.b32.xlu0 %v6335, 64
      %v6379 = vpop.permute.xlu0 %6378
      %6380 = vrot.lane.b32.xlu0 %v6336, 64
      %v6381 = vpop.permute.xlu0 %6380
      %6382 = vrot.lane.b32.xlu0 %v6337, 64
      %v6383 = vpop.permute.xlu0 %6382
      %6384 = vrot.lane.b32.xlu0 %v6338, 64
      %v6385 = vpop.permute.xlu0 %6384
      %6386 = vrot.lane.b32.xlu0 %v6339, 64
      %v6387 = vpop.permute.xlu0 %6386
      %6388 = vrot.lane.b32.xlu0 %v6340, 64
      %v6389 = vpop.permute.xlu0 %6388
      %6390 = vrot.lane.b32.xlu0 %v6341, 64
      %v6391 = vpop.permute.xlu0 %6390
      %6392 = vrot.lane.b32.xlu0 %v6342, 64
      %v6393 = vpop.permute.xlu0 %6392
      %6394 = vrot.lane.b32.xlu0 %v6343, 64
      %v6395 = vpop.permute.xlu0 %6394
      %6396 = vrot.lane.b32.xlu0 %v6344, 64
      %v6397 = vpop.permute.xlu0 %6396
      %6398 = vrot.lane.b32.xlu0 %v6345, 64
      %v6399 = vpop.permute.xlu0 %6398
      %6418 = vst.msk [vmem:[#allocation3 + $0x8] sm:$0xff] %vm5912, %v6365
      %6419 = vst.msk [vmem:[#allocation3 + $0x30] sm:$0xff] %vm5912, %v6367
      %6420 = vst.msk [vmem:[#allocation3 + $0x58] sm:$0xff] %vm5912, %v6369
      %6421 = vst.msk [vmem:[#allocation3 + $0x80] sm:$0xff] %vm5912, %v6371
      %6422 = vst.msk [vmem:[#allocation3 + $0xa8] sm:$0xff] %vm5912, %v6373
      %6423 = vst.msk [vmem:[#allocation3 + $0xd0] sm:$0xff] %vm5912, %v6375
      %6424 = vst.msk [vmem:[#allocation3 + $0xf8] sm:$0xff] %vm5912, %v6377
      %6425 = vst.msk [vmem:[#allocation3 + $0x120] sm:$0xff] %vm5912, %v6379
      %6426 = vst.msk [vmem:[#allocation3 + $0x148] sm:$0xff] %vm5912, %v6381
      %6427 = vst.msk [vmem:[#allocation3 + $0x170] sm:$0xff] %vm5912, %v6383
      %6428 = vst.msk [vmem:[#allocation3 + $0x198] sm:$0xff] %vm5912, %v6385
      %6429 = vst.msk [vmem:[#allocation3 + $0x1c0] sm:$0xff] %vm5912, %v6387
      %6430 = vst.msk [vmem:[#allocation3 + $0x1e8] sm:$0xff] %vm5912, %v6389
      %6431 = vst.msk [vmem:[#allocation3 + $0x210] sm:$0xff] %vm5912, %v6391
      %6432 = vst.msk [vmem:[#allocation3 + $0x238] sm:$0xff] %vm5912, %v6393
      %6433 = vst.msk [vmem:[#allocation3 + $0x260] sm:$0xff] %vm5912, %v6395
      %6434 = vst.msk [vmem:[#allocation3 + $0x288] sm:$0xff] %vm5912, %v6397
      %6435 = vst.msk [vmem:[#allocation3 + $0x2b0] sm:$0xff] %vm5912, %v6399
      %v6436 = vld [vmem:[#allocation2 + $0x25] sm:$0xff]
      %v6437 = vld [vmem:[#allocation2 + $0x2d] sm:$0xff]
      %v6438 = vld [vmem:[#allocation2 + $0x35] sm:$0xff]
      %v6439 = vld [vmem:[#allocation2 + $0x3d] sm:$0xff]
      %v6440 = vld [vmem:[#allocation2 + $0x45] sm:$0xff]
      %v6441 = vld [vmem:[#allocation2 + $0x4d] sm:$0xff]
      %v6442 = vld [vmem:[#allocation2 + $0x55] sm:$0xff]
      %v6443 = vld [vmem:[#allocation2 + $0x5d] sm:$0xff]
      %v6444 = vld [vmem:[#allocation2 + $0x65] sm:$0xff]
      %v6445 = vld [vmem:[#allocation2 + $0x6d] sm:$0xff]
      %v6446 = vld [vmem:[#allocation2 + $0x75] sm:$0xff]
      %v6447 = vld [vmem:[#allocation2 + $0x7d] sm:$0xff]
      %v6448 = vld [vmem:[#allocation2 + $0x85] sm:$0xff]
      %v6449 = vld [vmem:[#allocation2 + $0x8d] sm:$0xff]
      %v6450 = vld [vmem:[#allocation2 + $0x95] sm:$0xff]
      %v6451 = vld [vmem:[#allocation2 + $0x9d] sm:$0xff]
      %v6452 = vld [vmem:[#allocation2 + $0xa5] sm:$0xff]
      %v6453 = vld [vmem:[#allocation2 + $0xad] sm:$0xff]
      %v6454 = vld [vmem:[#allocation2 + $0xb5] sm:$0xff]
      %v6455 = vld [vmem:[#allocation2 + $0xbd] sm:$0xff]
      %v6456 = vld [vmem:[#allocation2 + $0xc5] sm:$0xff]
      %v6457 = vld [vmem:[#allocation2 + $0xcd] sm:$0xff]
      %v6458 = vld [vmem:[#allocation2 + $0xd5] sm:$0xff]
      %v6459 = vld [vmem:[#allocation2 + $0xdd] sm:$0xff]
      %v6460 = vld [vmem:[#allocation2 + $0xe5] sm:$0xff]
      %v6461 = vld [vmem:[#allocation2 + $0xed] sm:$0xff]
      %v6462 = vld [vmem:[#allocation2 + $0xf5] sm:$0xff]
      %v6463 = vld [vmem:[#allocation2 + $0xfd] sm:$0xff]
      %v6464 = vld [vmem:[#allocation2 + $0x105] sm:$0xff]
      %v6465 = vld [vmem:[#allocation2 + $0x10d] sm:$0xff]
      %v6466 = vld [vmem:[#allocation2 + $0x115] sm:$0xff]
      %v6467 = vld [vmem:[#allocation2 + $0x11d] sm:$0xff]
      %v6468 = vld [vmem:[#allocation2 + $0x125] sm:$0xff]
      %v6469 = vld [vmem:[#allocation2 + $0x12d] sm:$0xff]
      %v6470 = vld [vmem:[#allocation2 + $0x135] sm:$0xff]
      %v6471 = vld [vmem:[#allocation2 + $0x13d] sm:$0xff]
      %v6472 = vpack.c.bf16 %v6437, %v6436
      %v6473 = vpack.c.bf16 %v6439, %v6438
      %v6474 = vpack.c.bf16 %v6441, %v6440
      %v6475 = vpack.c.bf16 %v6443, %v6442
      %v6476 = vpack.c.bf16 %v6445, %v6444
      %v6477 = vpack.c.bf16 %v6447, %v6446
      %v6478 = vpack.c.bf16 %v6449, %v6448
      %v6479 = vpack.c.bf16 %v6451, %v6450
      %v6480 = vpack.c.bf16 %v6453, %v6452
      %v6481 = vpack.c.bf16 %v6455, %v6454
      %v6482 = vpack.c.bf16 %v6457, %v6456
      %v6483 = vpack.c.bf16 %v6459, %v6458
      %v6484 = vpack.c.bf16 %v6461, %v6460
      %v6485 = vpack.c.bf16 %v6463, %v6462
      %v6486 = vpack.c.bf16 %v6465, %v6464
      %v6487 = vpack.c.bf16 %v6467, %v6466
      %v6488 = vpack.c.bf16 %v6469, %v6468
      %v6489 = vpack.c.bf16 %v6471, %v6470
      %6508 = vrot.lane.b32.xlu0 %v6472, 96
      %v6509 = vpop.permute.xlu0 %6508
      %6510 = vrot.lane.b32.xlu0 %v6473, 96
      %v6511 = vpop.permute.xlu0 %6510
      %6512 = vrot.lane.b32.xlu0 %v6474, 96
      %v6513 = vpop.permute.xlu0 %6512
      %6514 = vrot.lane.b32.xlu0 %v6475, 96
      %v6515 = vpop.permute.xlu0 %6514
      %6516 = vrot.lane.b32.xlu0 %v6476, 96
      %v6517 = vpop.permute.xlu0 %6516
      %6518 = vrot.lane.b32.xlu0 %v6477, 96
      %v6519 = vpop.permute.xlu0 %6518
      %6520 = vrot.lane.b32.xlu0 %v6478, 96
      %v6521 = vpop.permute.xlu0 %6520
      %6522 = vrot.lane.b32.xlu0 %v6479, 96
      %v6523 = vpop.permute.xlu0 %6522
      %6524 = vrot.lane.b32.xlu0 %v6480, 96
      %v6525 = vpop.permute.xlu0 %6524
      %6526 = vrot.lane.b32.xlu0 %v6481, 96
      %v6527 = vpop.permute.xlu0 %6526
      %6528 = vrot.lane.b32.xlu0 %v6482, 96
      %v6529 = vpop.permute.xlu0 %6528
      %6530 = vrot.lane.b32.xlu0 %v6483, 96
      %v6531 = vpop.permute.xlu0 %6530
      %6532 = vrot.lane.b32.xlu0 %v6484, 96
      %v6533 = vpop.permute.xlu0 %6532
      %6534 = vrot.lane.b32.xlu0 %v6485, 96
      %v6535 = vpop.permute.xlu0 %6534
      %6536 = vrot.lane.b32.xlu0 %v6486, 96
      %v6537 = vpop.permute.xlu0 %6536
      %6538 = vrot.lane.b32.xlu0 %v6487, 96
      %v6539 = vpop.permute.xlu0 %6538
      %6540 = vrot.lane.b32.xlu0 %v6488, 96
      %v6541 = vpop.permute.xlu0 %6540
      %6542 = vrot.lane.b32.xlu0 %v6489, 96
      %v6543 = vpop.permute.xlu0 %6542
      %6562 = vst.msk [vmem:[#allocation3 + $0x8] sm:$0xff] %vm6057, %v6509
      %6563 = vst.msk [vmem:[#allocation3 + $0x30] sm:$0xff] %vm6057, %v6511
      %6564 = vst.msk [vmem:[#allocation3 + $0x58] sm:$0xff] %vm6057, %v6513
      %6565 = vst.msk [vmem:[#allocation3 + $0x80] sm:$0xff] %vm6057, %v6515
      %6566 = vst.msk [vmem:[#allocation3 + $0xa8] sm:$0xff] %vm6057, %v6517
      %6567 = vst.msk [vmem:[#allocation3 + $0xd0] sm:$0xff] %vm6057, %v6519
      %6568 = vst.msk [vmem:[#allocation3 + $0xf8] sm:$0xff] %vm6057, %v6521
      %6569 = vst.msk [vmem:[#allocation3 + $0x120] sm:$0xff] %vm6057, %v6523
      %6570 = vst.msk [vmem:[#allocation3 + $0x148] sm:$0xff] %vm6057, %v6525
      %6571 = vst.msk [vmem:[#allocation3 + $0x170] sm:$0xff] %vm6057, %v6527
      %6572 = vst.msk [vmem:[#allocation3 + $0x198] sm:$0xff] %vm6057, %v6529
      %6573 = vst.msk [vmem:[#allocation3 + $0x1c0] sm:$0xff] %vm6057, %v6531
      %6574 = vst.msk [vmem:[#allocation3 + $0x1e8] sm:$0xff] %vm6057, %v6533
      %6575 = vst.msk [vmem:[#allocation3 + $0x210] sm:$0xff] %vm6057, %v6535
      %6576 = vst.msk [vmem:[#allocation3 + $0x238] sm:$0xff] %vm6057, %v6537
      %6577 = vst.msk [vmem:[#allocation3 + $0x260] sm:$0xff] %vm6057, %v6539
      %6578 = vst.msk [vmem:[#allocation3 + $0x288] sm:$0xff] %vm6057, %v6541
      %6579 = vst.msk [vmem:[#allocation3 + $0x2b0] sm:$0xff] %vm6057, %v6543
      %v6580 = vld [vmem:[#allocation2 + $0x26] sm:$0xff]
      %v6581 = vld [vmem:[#allocation2 + $0x2e] sm:$0xff]
      %v6582 = vld [vmem:[#allocation2 + $0x36] sm:$0xff]
      %v6583 = vld [vmem:[#allocation2 + $0x3e] sm:$0xff]
      %v6584 = vld [vmem:[#allocation2 + $0x46] sm:$0xff]
      %v6585 = vld [vmem:[#allocation2 + $0x4e] sm:$0xff]
      %v6586 = vld [vmem:[#allocation2 + $0x56] sm:$0xff]
      %v6587 = vld [vmem:[#allocation2 + $0x5e] sm:$0xff]
      %v6588 = vld [vmem:[#allocation2 + $0x66] sm:$0xff]
      %v6589 = vld [vmem:[#allocation2 + $0x6e] sm:$0xff]
      %v6590 = vld [vmem:[#allocation2 + $0x76] sm:$0xff]
      %v6591 = vld [vmem:[#allocation2 + $0x7e] sm:$0xff]
      %v6592 = vld [vmem:[#allocation2 + $0x86] sm:$0xff]
      %v6593 = vld [vmem:[#allocation2 + $0x8e] sm:$0xff]
      %v6594 = vld [vmem:[#allocation2 + $0x96] sm:$0xff]
      %v6595 = vld [vmem:[#allocation2 + $0x9e] sm:$0xff]
      %v6596 = vld [vmem:[#allocation2 + $0xa6] sm:$0xff]
      %v6597 = vld [vmem:[#allocation2 + $0xae] sm:$0xff]
      %v6598 = vld [vmem:[#allocation2 + $0xb6] sm:$0xff]
      %v6599 = vld [vmem:[#allocation2 + $0xbe] sm:$0xff]
      %v6600 = vld [vmem:[#allocation2 + $0xc6] sm:$0xff]
      %v6601 = vld [vmem:[#allocation2 + $0xce] sm:$0xff]
      %v6602 = vld [vmem:[#allocation2 + $0xd6] sm:$0xff]
      %v6603 = vld [vmem:[#allocation2 + $0xde] sm:$0xff]
      %v6604 = vld [vmem:[#allocation2 + $0xe6] sm:$0xff]
      %v6605 = vld [vmem:[#allocation2 + $0xee] sm:$0xff]
      %v6606 = vld [vmem:[#allocation2 + $0xf6] sm:$0xff]
      %v6607 = vld [vmem:[#allocation2 + $0xfe] sm:$0xff]
      %v6608 = vld [vmem:[#allocation2 + $0x106] sm:$0xff]
      %v6609 = vld [vmem:[#allocation2 + $0x10e] sm:$0xff]
      %v6610 = vld [vmem:[#allocation2 + $0x116] sm:$0xff]
      %v6611 = vld [vmem:[#allocation2 + $0x11e] sm:$0xff]
      %v6612 = vld [vmem:[#allocation2 + $0x126] sm:$0xff]
      %v6613 = vld [vmem:[#allocation2 + $0x12e] sm:$0xff]
      %v6614 = vld [vmem:[#allocation2 + $0x136] sm:$0xff]
      %v6615 = vld [vmem:[#allocation2 + $0x13e] sm:$0xff]
      %v6616 = vpack.c.bf16 %v6581, %v6580
      %v6617 = vpack.c.bf16 %v6583, %v6582
      %v6618 = vpack.c.bf16 %v6585, %v6584
      %v6619 = vpack.c.bf16 %v6587, %v6586
      %v6620 = vpack.c.bf16 %v6589, %v6588
      %v6621 = vpack.c.bf16 %v6591, %v6590
      %v6622 = vpack.c.bf16 %v6593, %v6592
      %v6623 = vpack.c.bf16 %v6595, %v6594
      %v6624 = vpack.c.bf16 %v6597, %v6596
      %v6625 = vpack.c.bf16 %v6599, %v6598
      %v6626 = vpack.c.bf16 %v6601, %v6600
      %v6627 = vpack.c.bf16 %v6603, %v6602
      %v6628 = vpack.c.bf16 %v6605, %v6604
      %v6629 = vpack.c.bf16 %v6607, %v6606
      %v6630 = vpack.c.bf16 %v6609, %v6608
      %v6631 = vpack.c.bf16 %v6611, %v6610
      %v6632 = vpack.c.bf16 %v6613, %v6612
      %v6633 = vpack.c.bf16 %v6615, %v6614
      %6634 = vst.msk [vmem:[#allocation3 + $0x10] sm:$0xff] %vm552, %v6616
      %6635 = vst.msk [vmem:[#allocation3 + $0x38] sm:$0xff] %vm552, %v6617
      %6636 = vst.msk [vmem:[#allocation3 + $0x60] sm:$0xff] %vm552, %v6618
      %6637 = vst.msk [vmem:[#allocation3 + $0x88] sm:$0xff] %vm552, %v6619
      %6638 = vst.msk [vmem:[#allocation3 + $0xb0] sm:$0xff] %vm552, %v6620
      %6639 = vst.msk [vmem:[#allocation3 + $0xd8] sm:$0xff] %vm552, %v6621
      %6640 = vst.msk [vmem:[#allocation3 + $0x100] sm:$0xff] %vm552, %v6622
      %6641 = vst.msk [vmem:[#allocation3 + $0x128] sm:$0xff] %vm552, %v6623
      %6642 = vst.msk [vmem:[#allocation3 + $0x150] sm:$0xff] %vm552, %v6624
      %6643 = vst.msk [vmem:[#allocation3 + $0x178] sm:$0xff] %vm552, %v6625
      %6644 = vst.msk [vmem:[#allocation3 + $0x1a0] sm:$0xff] %vm552, %v6626
      %6645 = vst.msk [vmem:[#allocation3 + $0x1c8] sm:$0xff] %vm552, %v6627
      %6646 = vst.msk [vmem:[#allocation3 + $0x1f0] sm:$0xff] %vm552, %v6628
      %6647 = vst.msk [vmem:[#allocation3 + $0x218] sm:$0xff] %vm552, %v6629
      %6648 = vst.msk [vmem:[#allocation3 + $0x240] sm:$0xff] %vm552, %v6630
      %6649 = vst.msk [vmem:[#allocation3 + $0x268] sm:$0xff] %vm552, %v6631
      %6650 = vst.msk [vmem:[#allocation3 + $0x290] sm:$0xff] %vm552, %v6632
      %6651 = vst.msk [vmem:[#allocation3 + $0x2b8] sm:$0xff] %vm552, %v6633
      %v6652 = vld [vmem:[#allocation3] sm:$0xff]
      %v6653 = vld [vmem:[#allocation3 + $0x8] sm:$0xff]
      %v6654 = vld [vmem:[#allocation3 + $0x10] sm:$0xff]
      %v6655 = vld [vmem:[#allocation3 + $0x28] sm:$0xff]
      %v6656 = vld [vmem:[#allocation3 + $0x30] sm:$0xff]
      %v6657 = vld [vmem:[#allocation3 + $0x38] sm:$0xff]
      %v6658 = vld [vmem:[#allocation3 + $0x50] sm:$0xff]
      %v6659 = vld [vmem:[#allocation3 + $0x58] sm:$0xff]
      %v6660 = vld [vmem:[#allocation3 + $0x60] sm:$0xff]
      %v6661 = vld [vmem:[#allocation3 + $0x78] sm:$0xff]
      %v6662 = vld [vmem:[#allocation3 + $0x80] sm:$0xff]
      %v6663 = vld [vmem:[#allocation3 + $0x88] sm:$0xff]
      %v6664 = vld [vmem:[#allocation3 + $0xa0] sm:$0xff]
      %v6665 = vld [vmem:[#allocation3 + $0xa8] sm:$0xff]
      %v6666 = vld [vmem:[#allocation3 + $0xb0] sm:$0xff]
      %v6667 = vld [vmem:[#allocation3 + $0xc8] sm:$0xff]
      %v6668 = vld [vmem:[#allocation3 + $0xd0] sm:$0xff]
      %v6669 = vld [vmem:[#allocation3 + $0xd8] sm:$0xff]
      %v6670 = vld [vmem:[#allocation3 + $0xf0] sm:$0xff]
      %v6671 = vld [vmem:[#allocation3 + $0xf8] sm:$0xff]
      %v6672 = vld [vmem:[#allocation3 + $0x100] sm:$0xff]
      %v6673 = vld [vmem:[#allocation3 + $0x118] sm:$0xff]
      %v6674 = vld [vmem:[#allocation3 + $0x120] sm:$0xff]
      %v6675 = vld [vmem:[#allocation3 + $0x128] sm:$0xff]
      %v6676 = vld [vmem:[#allocation3 + $0x140] sm:$0xff]
      %v6677 = vld [vmem:[#allocation3 + $0x148] sm:$0xff]
      %v6678 = vld [vmem:[#allocation3 + $0x150] sm:$0xff]
      %v6679 = vld [vmem:[#allocation3 + $0x168] sm:$0xff]
      %v6680 = vld [vmem:[#allocation3 + $0x170] sm:$0xff]
      %v6681 = vld [vmem:[#allocation3 + $0x178] sm:$0xff]
      %v6682 = vld [vmem:[#allocation3 + $0x190] sm:$0xff]
      %v6683 = vld [vmem:[#allocation3 + $0x198] sm:$0xff]
      %v6684 = vld [vmem:[#allocation3 + $0x1a0] sm:$0xff]
      %v6685 = vld [vmem:[#allocation3 + $0x1b8] sm:$0xff]
      %v6686 = vld [vmem:[#allocation3 + $0x1c0] sm:$0xff]
      %v6687 = vld [vmem:[#allocation3 + $0x1c8] sm:$0xff]
      %v6688 = vld [vmem:[#allocation3 + $0x1e0] sm:$0xff]
      %v6689 = vld [vmem:[#allocation3 + $0x1e8] sm:$0xff]
      %v6690 = vld [vmem:[#allocation3 + $0x1f0] sm:$0xff]
      %v6691 = vld [vmem:[#allocation3 + $0x208] sm:$0xff]
      %v6692 = vld [vmem:[#allocation3 + $0x210] sm:$0xff]
      %v6693 = vld [vmem:[#allocation3 + $0x218] sm:$0xff]
      %v6694 = vld [vmem:[#allocation3 + $0x230] sm:$0xff]
      %v6695 = vld [vmem:[#allocation3 + $0x238] sm:$0xff]
      %v6696 = vld [vmem:[#allocation3 + $0x240] sm:$0xff]
      %v6697 = vld [vmem:[#allocation3 + $0x258] sm:$0xff]
      %v6698 = vld [vmem:[#allocation3 + $0x260] sm:$0xff]
      %v6699 = vld [vmem:[#allocation3 + $0x268] sm:$0xff]
      %v6700 = vld [vmem:[#allocation3 + $0x280] sm:$0xff]
      %v6701 = vld [vmem:[#allocation3 + $0x288] sm:$0xff]
      %v6702 = vld [vmem:[#allocation3 + $0x290] sm:$0xff]
      %v6703 = vld [vmem:[#allocation3 + $0x2a8] sm:$0xff]
      %v6704 = vld [vmem:[#allocation3 + $0x2b0] sm:$0xff]
      %v6705 = vld [vmem:[#allocation3 + $0x2b8] sm:$0xff]
      %v6706 = vld [vmem:[%s8] sm:$0xf]
      %v6707 = vld [vmem:[%s8 + $0x4] sm:$0xf]
      %v6708 = vld [vmem:[%s8 + $0x8] sm:$0xf]
      %v6709 = vld [vmem:[%s8 + $0xc] sm:$0xf]
      %v6710 = vld [vmem:[%s8 + $0x10] sm:$0xf]
      %v6711 = vld [vmem:[%s8 + $0x14] sm:$0xf]
      %v6712 = vld [vmem:[%s8 + $0x18] sm:$0xf]
      %v6713 = vld [vmem:[%s8 + $0x1c] sm:$0xf]
      %v6714 = vld [vmem:[%s8 + $0x20] sm:$0xf]
      %v6715 = vld [vmem:[%s8 + $0x24] sm:$0xf]
      %v6716 = vld [vmem:[%s8 + $0x28] sm:$0xf]
      %v6717 = vld [vmem:[%s8 + $0x2c] sm:$0xf]
      %v6718 = vld [vmem:[%s8 + $0x30] sm:$0xf]
      %v6719 = vld [vmem:[%s8 + $0x34] sm:$0xf]
      %v6720 = vld [vmem:[%s8 + $0x38] sm:$0xf]
      %v6721 = vld [vmem:[%s8 + $0x3c] sm:$0xf]
      %v6722 = vld [vmem:[%s8 + $0x40] sm:$0xf]
      %v6723 = vld [vmem:[%s8 + $0x44] sm:$0xf]
      %v6724 = vld [vmem:[%s8 + $0x48] sm:$0xf]
      %v6725 = vld [vmem:[%s8 + $0x4c] sm:$0xf]
      %v6726 = vld [vmem:[%s8 + $0x50] sm:$0xf]
      %v6727 = vld [vmem:[%s8 + $0x54] sm:$0xf]
      %v6728 = vld [vmem:[%s8 + $0x58] sm:$0xf]
      %v6729 = vld [vmem:[%s8 + $0x5c] sm:$0xf]
      %v6730 = vld [vmem:[%s8 + $0x60] sm:$0xf]
      %v6731 = vld [vmem:[%s8 + $0x64] sm:$0xf]
      %v6732 = vld [vmem:[%s8 + $0x68] sm:$0xf]
      %v6733 = vld [vmem:[%s8 + $0x6c] sm:$0xf]
      %v6734 = vld [vmem:[%s8 + $0x70] sm:$0xf]
      %v6735 = vld [vmem:[%s8 + $0x74] sm:$0xf]
      %v6736 = vld [vmem:[%s8 + $0x78] sm:$0xf]
      %v6737 = vld [vmem:[%s8 + $0x7c] sm:$0xf]
      %v6738 = vld [vmem:[%s8 + $0x80] sm:$0xf]
      %v6739 = vld [vmem:[%s8 + $0x84] sm:$0xf]
      %v6740 = vld [vmem:[%s8 + $0x88] sm:$0xf]
      %v6741 = vld [vmem:[%s8 + $0x8c] sm:$0xf]
      %v6742 = vld [vmem:[%s9] sm:$0x1]
      %v6744 = vlaneseq
      %v6745 = vshrl.u32 %v6744, 7
      %v6746 = vsub.s32 0, %v6745
      %v6747 = vrot.slane %v6742, %v6746
      %v6785 = vunpack.c.l.b16 %v6706
      %v6786 = vunpack.c.l.b16 %v6707
      %v6787 = vunpack.c.l.b16 %v6708
      %v6788 = vunpack.c.l.b16 %v6709
      %v6789 = vunpack.c.l.b16 %v6710
      %v6790 = vunpack.c.l.b16 %v6711
      %v6791 = vunpack.c.l.b16 %v6712
      %v6792 = vunpack.c.l.b16 %v6713
      %v6793 = vunpack.c.l.b16 %v6714
      %v6794 = vunpack.c.l.b16 %v6715
      %v6795 = vunpack.c.l.b16 %v6716
      %v6796 = vunpack.c.l.b16 %v6717
      %v6797 = vunpack.c.l.b16 %v6718
      %v6798 = vunpack.c.l.b16 %v6719
      %v6799 = vunpack.c.l.b16 %v6720
      %v6800 = vunpack.c.l.b16 %v6721
      %v6801 = vunpack.c.l.b16 %v6722
      %v6802 = vunpack.c.l.b16 %v6723
      %v6803 = vunpack.c.l.b16 %v6724
      %v6804 = vunpack.c.l.b16 %v6725
      %v6805 = vunpack.c.l.b16 %v6726
      %v6806 = vunpack.c.l.b16 %v6727
      %v6807 = vunpack.c.l.b16 %v6728
      %v6808 = vunpack.c.l.b16 %v6729
      %v6809 = vunpack.c.l.b16 %v6730
      %v6810 = vunpack.c.l.b16 %v6731
      %v6811 = vunpack.c.l.b16 %v6732
      %v6812 = vunpack.c.l.b16 %v6733
      %v6813 = vunpack.c.l.b16 %v6734
      %v6814 = vunpack.c.l.b16 %v6735
      %v6815 = vunpack.c.l.b16 %v6736
      %v6816 = vunpack.c.l.b16 %v6737
      %v6817 = vunpack.c.l.b16 %v6738
      %v6818 = vunpack.c.l.b16 %v6739
      %v6819 = vunpack.c.l.b16 %v6740
      %v6820 = vunpack.c.l.b16 %v6741
      %v6821 = vpack.c.b16 %v6786, %v6785
      %v6822 = vpack.c.b16 %v6788, %v6787
      %v6823 = vpack.c.b16 %v6790, %v6789
      %v6824 = vpack.c.b16 %v6792, %v6791
      %v6825 = vpack.c.b16 %v6794, %v6793
      %v6826 = vpack.c.b16 %v6796, %v6795
      %v6827 = vpack.c.b16 %v6798, %v6797
      %v6828 = vpack.c.b16 %v6800, %v6799
      %v6829 = vpack.c.b16 %v6802, %v6801
      %v6830 = vpack.c.b16 %v6804, %v6803
      %v6831 = vpack.c.b16 %v6806, %v6805
      %v6832 = vpack.c.b16 %v6808, %v6807
      %v6833 = vpack.c.b16 %v6810, %v6809
      %v6834 = vpack.c.b16 %v6812, %v6811
      %v6835 = vpack.c.b16 %v6814, %v6813
      %v6836 = vpack.c.b16 %v6816, %v6815
      %v6837 = vpack.c.b16 %v6818, %v6817
      %v6838 = vpack.c.b16 %v6820, %v6819
      %v6858 = vsel %vm552, %v6654, 0
      %v6861 = vsel %vm552, %v6657, 0
      %v6864 = vsel %vm552, %v6660, 0
      %v6867 = vsel %vm552, %v6663, 0
      %v6870 = vsel %vm552, %v6666, 0
      %v6873 = vsel %vm552, %v6669, 0
      %v6876 = vsel %vm552, %v6672, 0
      %v6879 = vsel %vm552, %v6675, 0
      %v6882 = vsel %vm552, %v6678, 0
      %v6885 = vsel %vm552, %v6681, 0
      %v6888 = vsel %vm552, %v6684, 0
      %v6891 = vsel %vm552, %v6687, 0
      %v6894 = vsel %vm552, %v6690, 0
      %v6897 = vsel %vm552, %v6693, 0
      %v6900 = vsel %vm552, %v6696, 0
      %v6903 = vsel %vm552, %v6699, 0
      %v6906 = vsel %vm552, %v6702, 0
      %v6909 = vsel %vm552, %v6705, 0
      %6911 = vmatprep.subr.bf16.mxu0 0
      %6912 = vmatpush1.bf16.msra.mxu0 %v6821
      %6913 = vmatprep.subr.bf16.mxu0 0
      %6914 = vmatpush1.bf16.msra.mxu0 %v6822
      %6915 = vmatprep.subr.bf16.mxu0 0
      %6916 = vmatpush1.bf16.msra.mxu0 %v6823
      %6917 = vmatprep.subr.bf16.mxu0 0
      %6918 = vmatpush1.bf16.msra.mxu0 %v6824
      %6919 = vmatprep.subr.bf16.mxu0 0
      %6920 = vmatpush1.bf16.msra.mxu0 %v6825
      %6921 = vmatprep.subr.bf16.mxu0 0
      %6922 = vmatpush1.bf16.msra.mxu0 %v6826
      %6923 = vmatprep.subr.bf16.mxu0 0
      %6924 = vmatpush1.bf16.msra.mxu0 %v6827
      %6925 = vmatprep.subr.bf16.mxu0 0
      %6926 = vmatpush1.bf16.msra.mxu0 %v6828
      %6927 = vmatprep.subr.bf16.mxu0 0
      %6928 = vmatpush1.bf16.msra.mxu0 %v6829
      %6929 = vmatprep.subr.bf16.mxu0 0
      %6930 = vmatpush1.bf16.msra.mxu0 %v6830
      %6931 = vmatprep.subr.bf16.mxu0 0
      %6932 = vmatpush1.bf16.msra.mxu0 %v6831
      %6933 = vmatprep.subr.bf16.mxu0 0
      %6934 = vmatpush1.bf16.msra.mxu0 %v6832
      %6935 = vmatprep.subr.bf16.mxu0 0
      %6936 = vmatpush1.bf16.msra.mxu0 %v6833
      %6937 = vmatprep.subr.bf16.mxu0 0
      %6938 = vmatpush1.bf16.msra.mxu0 %v6834
      %6939 = vmatprep.subr.bf16.mxu0 0
      %6940 = vmatpush1.bf16.msra.mxu0 %v6835
      %6941 = vmatprep.subr.bf16.mxu0 0
      %6942 = vmatpush1.bf16.msra.mxu0 %v6836
      %6943 = vmatprep.mubr.bf16.mxu0 %v6653
      %6944 = vmatmul.mubr.bf16.gmra.mrb[0].mxu0 %v6652
      %v6945 = vpop.f32.mrb[0].mxu0
      %v6946 = vadd.f32 %v6747, %v6945
      %v6947 = vpop.f32.mrb[0].mxu0
      %v6948 = vpop.f32.mrb[0].mxu0
      %v6949 = vadd.f32 %v6747, %v6948
      %v6950 = vpop.f32.mrb[0].mxu0
      %6951 = vmatprep.mubr.bf16.mxu0 %v6656
      %6952 = vmatmul.mubr.bf16.gmra.mrb[0].mxu0 %v6655
      %v6953 = vpop.f32.mrb[0].mxu0
      %v6954 = vadd.f32 %v6747, %v6953
      %v6955 = vpop.f32.mrb[0].mxu0
      %v6956 = vpop.f32.mrb[0].mxu0
      %v6957 = vadd.f32 %v6747, %v6956
      %v6958 = vpop.f32.mrb[0].mxu0
      %6959 = vmatprep.mubr.bf16.mxu0 %v6659
      %6960 = vmatmul.mubr.bf16.gmra.mrb[0].mxu0 %v6658
      %v6961 = vpop.f32.mrb[0].mxu0
      %v6962 = vadd.f32 %v6747, %v6961
      %v6963 = vpop.f32.mrb[0].mxu0
      %v6964 = vpop.f32.mrb[0].mxu0
      %v6965 = vadd.f32 %v6747, %v6964
      %v6966 = vpop.f32.mrb[0].mxu0
      %6967 = vmatprep.mubr.bf16.mxu0 %v6662
      %6968 = vmatmul.mubr.bf16.gmra.mrb[0].mxu0 %v6661
      %v6969 = vpop.f32.mrb[0].mxu0
      %v6970 = vadd.f32 %v6747, %v6969
      %v6971 = vpop.f32.mrb[0].mxu0
      %v6972 = vpop.f32.mrb[0].mxu0
      %v6973 = vadd.f32 %v6747, %v6972
      %v6974 = vpop.f32.mrb[0].mxu0
      %6975 = vmatprep.mubr.bf16.mxu0 %v6665
      %6976 = vmatmul.mubr.bf16.gmra.mrb[0].mxu0 %v6664
      %v6977 = vpop.f32.mrb[0].mxu0
      %v6978 = vadd.f32 %v6747, %v6977
      %v6979 = vpop.f32.mrb[0].mxu0
      %v6980 = vpop.f32.mrb[0].mxu0
      %v6981 = vadd.f32 %v6747, %v6980
      %v6982 = vpop.f32.mrb[0].mxu0
      %6983 = vmatprep.mubr.bf16.mxu0 %v6668
      %6984 = vmatmul.mubr.bf16.gmra.mrb[0].mxu0 %v6667
      %v6985 = vpop.f32.mrb[0].mxu0
      %v6986 = vadd.f32 %v6747, %v6985
      %v6987 = vpop.f32.mrb[0].mxu0
      %v6988 = vpop.f32.mrb[0].mxu0
      %v6989 = vadd.f32 %v6747, %v6988
      %v6990 = vpop.f32.mrb[0].mxu0
      %6991 = vmatprep.mubr.bf16.mxu0 %v6671
      %6992 = vmatmul.mubr.bf16.gmra.mrb[0].mxu0 %v6670
      %v6993 = vpop.f32.mrb[0].mxu0
      %v6994 = vadd.f32 %v6747, %v6993
      %v6995 = vpop.f32.mrb[0].mxu0
      %v6996 = vpop.f32.mrb[0].mxu0
      %v6997 = vadd.f32 %v6747, %v6996
      %v6998 = vpop.f32.mrb[0].mxu0
      %6999 = vmatprep.mubr.bf16.mxu0 %v6674
      %7000 = vmatmul.mubr.bf16.gmra.mrb[0].mxu0 %v6673
      %v7001 = vpop.f32.mrb[0].mxu0
      %v7002 = vadd.f32 %v6747, %v7001
      %v7003 = vpop.f32.mrb[0].mxu0
      %v7004 = vpop.f32.mrb[0].mxu0
      %v7005 = vadd.f32 %v6747, %v7004
      %v7006 = vpop.f32.mrb[0].mxu0
      %7007 = vmatprep.mubr.bf16.mxu0 %v6677
      %7008 = vmatmul.mubr.bf16.gmra.mrb[0].mxu0 %v6676
      %v7009 = vpop.f32.mrb[0].mxu0
      %v7010 = vadd.f32 %v6747, %v7009
      %v7011 = vpop.f32.mrb[0].mxu0
      %v7012 = vpop.f32.mrb[0].mxu0
      %v7013 = vadd.f32 %v6747, %v7012
      %v7014 = vpop.f32.mrb[0].mxu0
      %7015 = vmatprep.mubr.bf16.mxu0 %v6680
      %7016 = vmatmul.mubr.bf16.gmra.mrb[0].mxu0 %v6679
      %v7017 = vpop.f32.mrb[0].mxu0
      %v7018 = vadd.f32 %v6747, %v7017
      %v7019 = vpop.f32.mrb[0].mxu0
      %v7020 = vpop.f32.mrb[0].mxu0
      %v7021 = vadd.f32 %v6747, %v7020
      %v7022 = vpop.f32.mrb[0].mxu0
      %7023 = vmatprep.mubr.bf16.mxu0 %v6683
      %7024 = vmatmul.mubr.bf16.gmra.mrb[0].mxu0 %v6682
      %v7025 = vpop.f32.mrb[0].mxu0
      %v7026 = vadd.f32 %v6747, %v7025
      %v7027 = vpop.f32.mrb[0].mxu0
      %v7028 = vpop.f32.mrb[0].mxu0
      %v7029 = vadd.f32 %v6747, %v7028
      %v7030 = vpop.f32.mrb[0].mxu0
      %7031 = vmatprep.mubr.bf16.mxu0 %v6686
      %7032 = vmatmul.mubr.bf16.gmra.mrb[0].mxu0 %v6685
      %v7033 = vpop.f32.mrb[0].mxu0
      %v7034 = vadd.f32 %v6747, %v7033
      %v7035 = vpop.f32.mrb[0].mxu0
      %v7036 = vpop.f32.mrb[0].mxu0
      %v7037 = vadd.f32 %v6747, %v7036
      %v7038 = vpop.f32.mrb[0].mxu0
      %7039 = vmatprep.mubr.bf16.mxu0 %v6689
      %7040 = vmatmul.mubr.bf16.gmra.mrb[0].mxu0 %v6688
      %v7041 = vpop.f32.mrb[0].mxu0
      %v7042 = vadd.f32 %v6747, %v7041
      %v7043 = vpop.f32.mrb[0].mxu0
      %v7044 = vpop.f32.mrb[0].mxu0
      %v7045 = vadd.f32 %v6747, %v7044
      %v7046 = vpop.f32.mrb[0].mxu0
      %7047 = vmatprep.mubr.bf16.mxu0 %v6692
      %7048 = vmatmul.mubr.bf16.gmra.mrb[0].mxu0 %v6691
      %v7049 = vpop.f32.mrb[0].mxu0
      %v7050 = vadd.f32 %v6747, %v7049
      %v7051 = vpop.f32.mrb[0].mxu0
      %v7052 = vpop.f32.mrb[0].mxu0
      %v7053 = vadd.f32 %v6747, %v7052
      %v7054 = vpop.f32.mrb[0].mxu0
      %7055 = vmatprep.mubr.bf16.mxu0 %v6695
      %7056 = vmatmul.mubr.bf16.gmra.mrb[0].mxu0 %v6694
      %v7057 = vpop.f32.mrb[0].mxu0
      %v7058 = vadd.f32 %v6747, %v7057
      %v7059 = vpop.f32.mrb[0].mxu0
      %v7060 = vpop.f32.mrb[0].mxu0
      %v7061 = vadd.f32 %v6747, %v7060
      %v7062 = vpop.f32.mrb[0].mxu0
      %7063 = vmatprep.mubr.bf16.mxu0 %v6698
      %7064 = vmatmul.mubr.bf16.gmra.mrb[0].mxu0 %v6697
      %v7065 = vpop.f32.mrb[0].mxu0
      %v7066 = vadd.f32 %v6747, %v7065
      %v7067 = vpop.f32.mrb[0].mxu0
      %v7068 = vpop.f32.mrb[0].mxu0
      %v7069 = vadd.f32 %v6747, %v7068
      %v7070 = vpop.f32.mrb[0].mxu0
      %7071 = vmatprep.mubr.bf16.mxu0 %v6701
      %7072 = vmatmul.mubr.bf16.gmra.mrb[0].mxu0 %v6700
      %v7073 = vpop.f32.mrb[0].mxu0
      %v7074 = vadd.f32 %v6747, %v7073
      %v7075 = vpop.f32.mrb[0].mxu0
      %v7076 = vpop.f32.mrb[0].mxu0
      %v7077 = vadd.f32 %v6747, %v7076
      %v7078 = vpop.f32.mrb[0].mxu0
      %7079 = vmatprep.mubr.bf16.mxu0 %v6704
      %7080 = vmatmul.mubr.bf16.gmra.mrb[0].mxu0 %v6703
      %v7081 = vpop.f32.mrb[0].mxu0
      %v7082 = vadd.f32 %v6747, %v7081
      %v7083 = vpop.f32.mrb[0].mxu0
      %v7084 = vpop.f32.mrb[0].mxu0
      %v7085 = vadd.f32 %v6747, %v7084
      %v7086 = vpop.f32.mrb[0].mxu0
      %7087 = vdwg.mxu0
      %7088 = vmatprep.subr.bf16.mxu0 0
      %7089 = vmatpush1.bf16.msra.mxu0 %v6837
      %7090 = vmatprep.subr.bf16.mxu0 0
      %7091 = vmatpush1.bf16.msra.mxu0 %v6838
      %7092 = vmatprep.subr.bf16.mxu0 0
      %7093 = vmatpush1.bf16.msra.mxu0 0
      %7094 = vmatprep.subr.bf16.mxu0 0
      %7095 = vmatpush1.bf16.msra.mxu0 0
      %7096 = vmatprep.subr.bf16.mxu0 0
      %7097 = vmatpush1.bf16.msra.mxu0 0
      %7098 = vmatprep.subr.bf16.mxu0 0
      %7099 = vmatpush1.bf16.msra.mxu0 0
      %7100 = vmatprep.subr.bf16.mxu0 0
      %7101 = vmatpush1.bf16.msra.mxu0 0
      %7102 = vmatprep.subr.bf16.mxu0 0
      %7103 = vmatpush1.bf16.msra.mxu0 0
      %7104 = vmatprep.subr.bf16.mxu0 0
      %7105 = vmatpush1.bf16.msra.mxu0 0
      %7106 = vmatprep.subr.bf16.mxu0 0
      %7107 = vmatpush1.bf16.msra.mxu0 0
      %7108 = vmatprep.subr.bf16.mxu0 0
      %7109 = vmatpush1.bf16.msra.mxu0 0
      %7110 = vmatprep.subr.bf16.mxu0 0
      %7111 = vmatpush1.bf16.msra.mxu0 0
      %7112 = vmatprep.subr.bf16.mxu0 0
      %7113 = vmatpush1.bf16.msra.mxu0 0
      %7114 = vmatprep.subr.bf16.mxu0 0
      %7115 = vmatpush1.bf16.msra.mxu0 0
      %7116 = vmatprep.subr.bf16.mxu0 0
      %7117 = vmatpush1.bf16.msra.mxu0 0
      %7118 = vmatprep.subr.bf16.mxu0 0
      %7119 = vmatpush1.bf16.msra.mxu0 0
      %7120 = vmatprep.mubr.bf16.mxu0 0
      %7121 = vmatmul.mubr.bf16.gmra.mrb[0].mxu0 %v6858
      %v7122 = vpop.f32.mrb[0].mxu0
      %v7123 = vadd.f32 %v6946, %v7122
      %v7124 = vpop.f32.mrb[0].mxu0
      %v7125 = vpop.f32.mrb[0].mxu0
      %v7126 = vadd.f32 %v6949, %v7125
      %v7127 = vpop.f32.mrb[0].mxu0
      %7128 = vmatprep.mubr.bf16.mxu0 0
      %7129 = vmatmul.mubr.bf16.gmra.mrb[0].mxu0 %v6861
      %v7130 = vpop.f32.mrb[0].mxu0
      %v7131 = vadd.f32 %v6954, %v7130
      %v7132 = vpop.f32.mrb[0].mxu0
      %v7133 = vpop.f32.mrb[0].mxu0
      %v7134 = vadd.f32 %v6957, %v7133
      %v7135 = vpop.f32.mrb[0].mxu0
      %7136 = vmatprep.mubr.bf16.mxu0 0
      %7137 = vmatmul.mubr.bf16.gmra.mrb[0].mxu0 %v6864
      %v7138 = vpop.f32.mrb[0].mxu0
      %v7139 = vadd.f32 %v6962, %v7138
      %v7140 = vpop.f32.mrb[0].mxu0
      %v7141 = vpop.f32.mrb[0].mxu0
      %v7142 = vadd.f32 %v6965, %v7141
      %v7143 = vpop.f32.mrb[0].mxu0
      %7144 = vmatprep.mubr.bf16.mxu0 0
      %7145 = vmatmul.mubr.bf16.gmra.mrb[0].mxu0 %v6867
      %v7146 = vpop.f32.mrb[0].mxu0
      %v7147 = vadd.f32 %v6970, %v7146
      %v7148 = vpop.f32.mrb[0].mxu0
      %v7149 = vpop.f32.mrb[0].mxu0
      %v7150 = vadd.f32 %v6973, %v7149
      %v7151 = vpop.f32.mrb[0].mxu0
      %7152 = vmatprep.mubr.bf16.mxu0 0
      %7153 = vmatmul.mubr.bf16.gmra.mrb[0].mxu0 %v6870
      %v7154 = vpop.f32.mrb[0].mxu0
      %v7155 = vadd.f32 %v6978, %v7154
      %v7156 = vpop.f32.mrb[0].mxu0
      %v7157 = vpop.f32.mrb[0].mxu0
      %v7158 = vadd.f32 %v6981, %v7157
      %v7159 = vpop.f32.mrb[0].mxu0
      %7160 = vmatprep.mubr.bf16.mxu0 0
      %7161 = vmatmul.mubr.bf16.gmra.mrb[0].mxu0 %v6873
      %v7162 = vpop.f32.mrb[0].mxu0
      %v7163 = vadd.f32 %v6986, %v7162
      %v7164 = vpop.f32.mrb[0].mxu0
      %v7165 = vpop.f32.mrb[0].mxu0
      %v7166 = vadd.f32 %v6989, %v7165
      %v7167 = vpop.f32.mrb[0].mxu0
      %7168 = vmatprep.mubr.bf16.mxu0 0
      %7169 = vmatmul.mubr.bf16.gmra.mrb[0].mxu0 %v6876
      %v7170 = vpop.f32.mrb[0].mxu0
      %v7171 = vadd.f32 %v6994, %v7170
      %v7172 = vpop.f32.mrb[0].mxu0
      %v7173 = vpop.f32.mrb[0].mxu0
      %v7174 = vadd.f32 %v6997, %v7173
      %v7175 = vpop.f32.mrb[0].mxu0
      %7176 = vmatprep.mubr.bf16.mxu0 0
      %7177 = vmatmul.mubr.bf16.gmra.mrb[0].mxu0 %v6879
      %v7178 = vpop.f32.mrb[0].mxu0
      %v7179 = vadd.f32 %v7002, %v7178
      %v7180 = vpop.f32.mrb[0].mxu0
      %v7181 = vpop.f32.mrb[0].mxu0
      %v7182 = vadd.f32 %v7005, %v7181
      %v7183 = vpop.f32.mrb[0].mxu0
      %7184 = vmatprep.mubr.bf16.mxu0 0
      %7185 = vmatmul.mubr.bf16.gmra.mrb[0].mxu0 %v6882
      %v7186 = vpop.f32.mrb[0].mxu0
      %v7187 = vadd.f32 %v7010, %v7186
      %v7188 = vpop.f32.mrb[0].mxu0
      %v7189 = vpop.f32.mrb[0].mxu0
      %v7190 = vadd.f32 %v7013, %v7189
      %v7191 = vpop.f32.mrb[0].mxu0
      %7192 = vmatprep.mubr.bf16.mxu0 0
      %7193 = vmatmul.mubr.bf16.gmra.mrb[0].mxu0 %v6885
      %v7194 = vpop.f32.mrb[0].mxu0
      %v7195 = vadd.f32 %v7018, %v7194
      %v7196 = vpop.f32.mrb[0].mxu0
      %v7197 = vpop.f32.mrb[0].mxu0
      %v7198 = vadd.f32 %v7021, %v7197
      %v7199 = vpop.f32.mrb[0].mxu0
      %7200 = vmatprep.mubr.bf16.mxu0 0
      %7201 = vmatmul.mubr.bf16.gmra.mrb[0].mxu0 %v6888
      %v7202 = vpop.f32.mrb[0].mxu0
      %v7203 = vadd.f32 %v7026, %v7202
      %v7204 = vpop.f32.mrb[0].mxu0
      %v7205 = vpop.f32.mrb[0].mxu0
      %v7206 = vadd.f32 %v7029, %v7205
      %v7207 = vpop.f32.mrb[0].mxu0
      %7208 = vmatprep.mubr.bf16.mxu0 0
      %7209 = vmatmul.mubr.bf16.gmra.mrb[0].mxu0 %v6891
      %v7210 = vpop.f32.mrb[0].mxu0
      %v7211 = vadd.f32 %v7034, %v7210
      %v7212 = vpop.f32.mrb[0].mxu0
      %v7213 = vpop.f32.mrb[0].mxu0
      %v7214 = vadd.f32 %v7037, %v7213
      %v7215 = vpop.f32.mrb[0].mxu0
      %7216 = vmatprep.mubr.bf16.mxu0 0
      %7217 = vmatmul.mubr.bf16.gmra.mrb[0].mxu0 %v6894
      %v7218 = vpop.f32.mrb[0].mxu0
      %v7219 = vadd.f32 %v7042, %v7218
      %v7220 = vpop.f32.mrb[0].mxu0
      %v7221 = vpop.f32.mrb[0].mxu0
      %v7222 = vadd.f32 %v7045, %v7221
      %v7223 = vpop.f32.mrb[0].mxu0
      %7224 = vmatprep.mubr.bf16.mxu0 0
      %7225 = vmatmul.mubr.bf16.gmra.mrb[0].mxu0 %v6897
      %v7226 = vpop.f32.mrb[0].mxu0
      %v7227 = vadd.f32 %v7050, %v7226
      %v7228 = vpop.f32.mrb[0].mxu0
      %v7229 = vpop.f32.mrb[0].mxu0
      %v7230 = vadd.f32 %v7053, %v7229
      %v7231 = vpop.f32.mrb[0].mxu0
      %7232 = vmatprep.mubr.bf16.mxu0 0
      %7233 = vmatmul.mubr.bf16.gmra.mrb[0].mxu0 %v6900
      %v7234 = vpop.f32.mrb[0].mxu0
      %v7235 = vadd.f32 %v7058, %v7234
      %v7236 = vpop.f32.mrb[0].mxu0
      %v7237 = vpop.f32.mrb[0].mxu0
      %v7238 = vadd.f32 %v7061, %v7237
      %v7239 = vpop.f32.mrb[0].mxu0
      %7240 = vmatprep.mubr.bf16.mxu0 0
      %7241 = vmatmul.mubr.bf16.gmra.mrb[0].mxu0 %v6903
      %v7242 = vpop.f32.mrb[0].mxu0
      %v7243 = vadd.f32 %v7066, %v7242
      %v7244 = vpop.f32.mrb[0].mxu0
      %v7245 = vpop.f32.mrb[0].mxu0
      %v7246 = vadd.f32 %v7069, %v7245
      %v7247 = vpop.f32.mrb[0].mxu0
      %7248 = vmatprep.mubr.bf16.mxu0 0
      %7249 = vmatmul.mubr.bf16.gmra.mrb[0].mxu0 %v6906
      %v7250 = vpop.f32.mrb[0].mxu0
      %v7251 = vadd.f32 %v7074, %v7250
      %v7252 = vpop.f32.mrb[0].mxu0
      %v7253 = vpop.f32.mrb[0].mxu0
      %v7254 = vadd.f32 %v7077, %v7253
      %v7255 = vpop.f32.mrb[0].mxu0
      %7256 = vmatprep.mubr.bf16.mxu0 0
      %7257 = vmatmul.mubr.bf16.gmra.mrb[0].mxu0 %v6909
      %v7258 = vpop.f32.mrb[0].mxu0
      %v7259 = vadd.f32 %v7082, %v7258
      %v7260 = vpop.f32.mrb[0].mxu0
      %v7261 = vpop.f32.mrb[0].mxu0
      %v7262 = vadd.f32 %v7085, %v7261
      %v7263 = vpop.f32.mrb[0].mxu0
      %7264 = vdwg.mxu0
      %7265 = vst [vmem:[%s359] sm:$0xff] %v7123
      %7266 = vst [vmem:[%s359 + $0x8] sm:$0xff] %v7126
      %7267 = vst [vmem:[%s359 + $0x10] sm:$0xff] %v7131
      %7268 = vst [vmem:[%s359 + $0x18] sm:$0xff] %v7134
      %7269 = vst [vmem:[%s359 + $0x20] sm:$0xff] %v7139
      %7270 = vst [vmem:[%s359 + $0x28] sm:$0xff] %v7142
      %7271 = vst [vmem:[%s359 + $0x30] sm:$0xff] %v7147
      %7272 = vst [vmem:[%s359 + $0x38] sm:$0xff] %v7150
      %7273 = vst [vmem:[%s359 + $0x40] sm:$0xff] %v7155
      %7274 = vst [vmem:[%s359 + $0x48] sm:$0xff] %v7158
      %7275 = vst [vmem:[%s359 + $0x50] sm:$0xff] %v7163
      %7276 = vst [vmem:[%s359 + $0x58] sm:$0xff] %v7166
      %7277 = vst [vmem:[%s359 + $0x60] sm:$0xff] %v7171
      %7278 = vst [vmem:[%s359 + $0x68] sm:$0xff] %v7174
      %7279 = vst [vmem:[%s359 + $0x70] sm:$0xff] %v7179
      %7280 = vst [vmem:[%s359 + $0x78] sm:$0xff] %v7182
      %7281 = vst [vmem:[%s359 + $0x80] sm:$0xff] %v7187
      %7282 = vst [vmem:[%s359 + $0x88] sm:$0xff] %v7190
      %7283 = vst [vmem:[%s359 + $0x90] sm:$0xff] %v7195
      %7284 = vst [vmem:[%s359 + $0x98] sm:$0xff] %v7198
      %7285 = vst [vmem:[%s359 + $0xa0] sm:$0xff] %v7203
      %7286 = vst [vmem:[%s359 + $0xa8] sm:$0xff] %v7206
      %7287 = vst [vmem:[%s359 + $0xb0] sm:$0xff] %v7211
      %7288 = vst [vmem:[%s359 + $0xb8] sm:$0xff] %v7214
      %7289 = vst [vmem:[%s359 + $0xc0] sm:$0xff] %v7219
      %7290 = vst [vmem:[%s359 + $0xc8] sm:$0xff] %v7222
      %7291 = vst [vmem:[%s359 + $0xd0] sm:$0xff] %v7227
      %7292 = vst [vmem:[%s359 + $0xd8] sm:$0xff] %v7230
      %7293 = vst [vmem:[%s359 + $0xe0] sm:$0xff] %v7235
      %7294 = vst [vmem:[%s359 + $0xe8] sm:$0xff] %v7238
      %7295 = vst [vmem:[%s359 + $0xf0] sm:$0xff] %v7243
      %7296 = vst [vmem:[%s359 + $0xf8] sm:$0xff] %v7246
      %7297 = vst [vmem:[%s359 + $0x100] sm:$0xff] %v7251
      %7298 = vst [vmem:[%s359 + $0x108] sm:$0xff] %v7254
      %7299 = vst [vmem:[%s359 + $0x110] sm:$0xff] %v7259
      %7300 = vst [vmem:[%s359 + $0x118] sm:$0xff] %v7262
      %p7301 = scmp.lt.s32.totalorder %s21, 1
      %s7302 = scalar_select %p7301, %s21, 1
      %s7303 = smul.addr %s7302, 36
      %s7304 = smul.addr %s7303, 8
      %s7305 = scalar_lea.vmem %s10, %s7304
      // Predicated region
      $region61: #{super_resolution_forward.1} parent=59 // pred_check
        %p7306 = pneg %p254
      $region62: #{super_resolution_forward.1} parent=59 // pred_check_branch
        %7308 = sbr.rel (%p7306) target = $region64
      $region63: #{super_resolution_forward.1} parent=59 // pred_region
        _
      $region64: #{super_resolution_forward.1} parent=59 // pred_fallthru
        _
    $region60: #{super_resolution_forward.1} parent=5 // pred_fallthru
      _
    %p7309 = scmp.le.s32.totalorder 2, %s16
    // Predicated region
    $region65: #{super_resolution_forward.1} parent=5 // pred_check
      %p7310 = pneg %p7309
    $region66: #{super_resolution_forward.1} parent=5 // pred_check_branch
      %7312 = sbr.rel (%p7310) target = $region68
    $region67: #{super_resolution_forward.1} parent=5 // pred_region
      %s7313 = ssub.s32 %s16, 2
      // Predicated region
      $region69: #{super_resolution_forward.1} parent=67 // pred_check
        %p7314 = pneg %p260
      $region70: #{super_resolution_forward.1} parent=67 // pred_check_branch
        %7316 = sbr.rel (%p7314) target = $region72
      $region71: #{super_resolution_forward.1} parent=67 // pred_region
        %p7317 = scmp.lt.s32.totalorder %s22, 1
        %s7318 = scalar_select %p7317, %s22, 1
        %s7319 = smul.addr %s7318, 36
        %s7320 = smul.addr %s7319, 8
        %s7321 = scalar_lea.vmem %s10, %s7320
      $region72: #{super_resolution_forward.1} parent=67 // pred_fallthru
        _
    $region68: #{super_resolution_forward.1} parent=5 // pred_fallthru
      _
  $region6: #{super_resolution_forward.1} parent=0 // loop_footer
    %s20 = sadd.s32 1, %s16
  $region7: #{super_resolution_forward.1} parent=0 // loop_footer_branch
    %15 = sbr.rel target = $region3
  $region8: #{super_resolution_forward.1} parent=0 // loop_exit
    _

</llo_original>
